<compile_context>
chip_gen: v5e
topology: v5e:2x2
jax: 0.10.0
libtpu: 0.0.40
codegen_flags: <defaults>
</compile_context>

<pallas_src>
import functools

import jax
import jax.numpy as jnp
from jax.experimental import pallas as pl
from jax.experimental.pallas import tpu as pltpu

BN_EPS = 1e-5
LANE = 128


def _round_up(x, m):
    return (x + m - 1) // m * m


def _downsample(n_samples_in, n_samples_out):
    d = n_samples_in // n_samples_out
    assert d >= 1 and n_samples_in % n_samples_out == 0
    return d


def _padding(downsample, kernel_size):
    return max(0, (kernel_size - downsample + 1) // 2)


# ---------------------------------------------------------------------------
# Fused conv1d + BN [+ maxpool/1x1-skip residual] [+ ReLU] Pallas kernel
# ---------------------------------------------------------------------------
def _conv_bn_kernel(x_ref, w_ref, scale_ref, shift_ref, *rest,
                    taps, stride, l_out, relu, residual, res_pool, res_conv,
                    dual_out):
    """Per-(batch, cout-tile) grid step:
       x_ref     : (1, stride, Lphase, Cin_p) bf16  phase-split padded input
       w_ref     : (K, Cin_p, TN) bf16               tap-major conv weights
       scale_ref : (1, TN) f32                       folded BN scale
       shift_ref : (1, TN) f32                       folded BN shift
       [y_ref]   : (1, res_pool, Lyp, TN|Cy_p) bf16  residual carry, phase-split
       [wskip]   : (1, Cy_p, TN) bf16                1x1 skip-conv weights
       o_ref     : (1, l_out, TN)                    relu(bn(conv [+ skip(y)]))
       [oy_ref]  : (1, l_out, TN)                    pre-BN carry"""
    idx = 0
    y_ref = wskip_ref = oy_ref = None
    if residual:
        y_ref = rest[idx]; idx += 1
        if res_conv:
            wskip_ref = rest[idx]; idx += 1
    o_ref = rest[idx]; idx += 1
    if dual_out:
        oy_ref = rest[idx]

    # --- main conv: static unroll over taps; every tap read is contiguous ---
    acc = None
    for k in range(taps):
        r, q = k % stride, k // stride
        xk = x_ref[0, r, pl.ds(q, l_out), :].astype(jnp.bfloat16)
        part = jnp.dot(xk, w_ref[k], preferred_element_type=jnp.float32)
        acc = part if acc is None else acc + part

    # --- fused skip path: in-VMEM MaxPool1d [+ 1x1 conv] + residual add ---
    if residual:
        ym = y_ref[0, 0, pl.ds(0, l_out), :]
        for r in range(1, res_pool):                    # MaxPool over phases
            ym = jnp.maximum(ym, y_ref[0, r, pl.ds(0, l_out), :])
        if res_conv:                                    # 1x1 skip conv (no BN)
            acc = acc + jnp.dot(ym.astype(jnp.bfloat16), wskip_ref[0],
                                preferred_element_type=jnp.float32)
        else:
            acc = acc + ym.astype(jnp.float32)

    if dual_out:                                        # pre-BN carry y_new
        oy_ref[0] = acc.astype(oy_ref.dtype)

    out = acc * scale_ref[...] + shift_ref[...]         # f32 epilogue (v5e-safe)
    if relu:
        out = jnp.maximum(out, 0.0)
    o_ref[0] = out.astype(o_ref.dtype)


def _phase_split(x, phases, length):
    """(B, L, C) -> (B, phases, length, C), out[b, r, j] = x[b, j*phases + r]."""
    B, L, C = x.shape
    need = phases * length
    if L < need:
        x = jnp.pad(x, ((0, 0), (0, need - L), (0, 0)))
    x = x[:, :need, :]
    if phases == 1:
        return x.reshape(B, 1, length, C)
    return x.reshape(B, length, phases, C).transpose(0, 2, 1, 3)


def conv1d_bn_act(x, layer, *, relu, y_res=None, y_pool=1, skip_layer=None,
                  dual_out=False):
    """x: (B, L, Cin_p) channels-last, lane-padded bf16.
    Returns (B, L_out, Cout_p) bf16 (plus the pre-BN carry when dual_out)."""
    B, L, cin_p = x.shape
    K, cin_p2, cout_p = layer["w"].shape
    assert cin_p == cin_p2, (cin_p, cin_p2)
    s, pad = layer["stride"], layer["padding"]
    l_out = (L + 2 * pad - K) // s + 1
    assert l_out >= 1

    # Stride-phase split of the zero-padded input so every in-kernel tap read
    # is a contiguous static slice (no strided VMEM reads, no im2col in HBM).
    l_phase = l_out + (K - 1) // s
    xph = _phase_split(jnp.pad(x, ((0, 0), (pad, 0), (0, 0))), s, l_phase)

    tn = 256 if cout_p % 256 == 0 else 128      # 256-wide tiles for v6e/v7x MXU
    grid = (B, cout_p // tn)

    in_specs = [
        pl.BlockSpec((1, s, l_phase, cin_p), lambda b, n: (b, 0, 0, 0)),
        pl.BlockSpec((K, cin_p, tn), lambda b, n: (0, 0, n)),
        pl.BlockSpec((1, tn), lambda b, n: (0, n)),
        pl.BlockSpec((1, tn), lambda b, n: (0, n)),
    ]
    args = [xph, layer["w"], layer["scale"], layer["shift"]]

    residual = y_res is not None
    res_conv = skip_layer is not None
    if residual:
        _, Ly, cy = y_res.shape
        lyp = Ly // y_pool                       # MaxPool1d truncates the tail
        assert lyp >= l_out, (lyp, l_out)        # (equal in valid ResNet1d configs)
        yph = _phase_split(y_res, y_pool, lyp)
        if res_conv:
            assert skip_layer["w"].shape == (1, cy, cout_p)
            in_specs.append(pl.BlockSpec((1, y_pool, lyp, cy),
                                         lambda b, n: (b, 0, 0, 0)))
            args.append(yph)
            in_specs.append(pl.BlockSpec((1, cy, tn), lambda b, n: (0, 0, n)))
            args.append(skip_layer["w"])
        else:
            assert cy == cout_p
            in_specs.append(pl.BlockSpec((1, y_pool, lyp, tn),
                                         lambda b, n: (b, 0, 0, n)))
            args.append(yph)

    out_spec = pl.BlockSpec((1, l_out, tn), lambda b, n: (b, 0, n))
    if dual_out:
        out_shape = (jax.ShapeDtypeStruct((B, l_out, cout_p), jnp.bfloat16),
                     jax.ShapeDtypeStruct((B, l_out, cout_p), jnp.bfloat16))
        out_specs = (out_spec, out_spec)
    else:
        out_shape = jax.ShapeDtypeStruct((B, l_out, cout_p), jnp.bfloat16)
        out_specs = out_spec

    kernel = functools.partial(
        _conv_bn_kernel, taps=K, stride=s, l_out=l_out, relu=relu,
        residual=residual, res_pool=y_pool, res_conv=res_conv, dual_out=dual_out)

    return pl.pallas_call(
        kernel,
        out_shape=out_shape,
        grid=grid,
        in_specs=in_specs,
        out_specs=out_specs,
        compiler_params=pltpu.CompilerParams(
            dimension_semantics=("parallel", "parallel"),
            vmem_limit_bytes=48 * 1024 * 1024),
    )(*args)


# ---------------------------------------------------------------------------
# ResNet1d forward (eval mode) — 2 pallas_calls per residual block
# ---------------------------------------------------------------------------
def resblock_forward(blk, x, y):
    # conv1 + bn1 + relu (dropout1 = eval identity)
    x = conv1d_bn_act(x, blk["conv1"], relu=True)
    # conv2 + [MaxPool + 1x1 skip conv on y] + residual add + bn2 + relu, all
    # fused; also emits the pre-BN carry y_new (dropout2 = eval identity).
    x, y_new = conv1d_bn_act(x, blk["conv2"], relu=True, y_res=y,
                             y_pool=blk["downsample"], skip_layer=blk["skip"],
                             dual_out=True)
    return x, y_new


def resnet1d_forward(params, x_ncl):
    B, c_in, _ = x_ncl.shape
    x = jnp.transpose(x_ncl, (0, 2, 1)).astype(jnp.bfloat16)    # NCL -> (B, L, C)
    x = jnp.pad(x, ((0, 0), (0, 0), (0, params["cin_pad"] - c_in)))  # lane-align once
    x = conv1d_bn_act(x, params["stem"], relu=False)            # conv1 + bn1
    y = x
    for blk in params["blocks"]:
        x, y = resblock_forward(blk, x, y)
    x = x[:, :, :params["c_last"]].astype(jnp.float32)          # drop lane padding
    return jnp.transpose(x, (0, 2, 1)).reshape(B, -1)           # PyTorch NCL flatten


# ---------------------------------------------------------------------------
# Raw (PyTorch-like) parameters, prepared Pallas parameters, pure-JAX reference
# ---------------------------------------------------------------------------
def init_raw_params(key, input_dim, blocks_dim, kernel_size):
    keys = iter(jax.random.split(key, 128))

    def rnd(shape, s=0.05):
        return s * jax.random.normal(next(keys), shape, jnp.float32)

    def bn_stats(c):
        return dict(
            gamma=1.0 + 0.1 * jax.random.normal(next(keys), (c,), jnp.float32),
            beta=0.1 * jax.random.normal(next(keys), (c,), jnp.float32),
            mean=0.1 * jax.random.normal(next(keys), (c,), jnp.float32),
            var=jax.random.uniform(next(keys), (c,), jnp.float32, 0.5, 1.5))

    f_in, f_out = input_dim[0], blocks_dim[0][0]
    s_in, s_out = input_dim[1], blocks_dim[0][1]
    ds = _downsample(s_in, s_out)
    raw = dict(
        conv1=dict(w=rnd((f_out, f_in, kernel_size)), stride=ds,
                   padding=_padding(ds, kernel_size)),
        bn1=bn_stats(f_out), blocks=[])
    for n_filters, n_samples in blocks_dim:
        f_in, f_out = f_out, n_filters
        s_in, s_out = s_out, n_samples
        ds = _downsample(s_in, s_out)
        raw["blocks"].append(dict(
            downsample=ds,
            skip_w=(rnd((f_out, f_in, 1)) if f_in != f_out else None),
            conv1=dict(w=rnd((f_out, f_in, kernel_size)), stride=1,
                       padding=_padding(1, kernel_size)),
            bn1=bn_stats(f_out),
            conv2=dict(w=rnd((f_out, f_out, kernel_size)), stride=ds,
                       padding=_padding(ds, kernel_size)),
            bn2=bn_stats(f_out)))
    raw["n_filters_last"] = f_out
    return raw


def _prep_conv(conv, bn, cin_pad, cout_pad):
    w = conv["w"]                                       # (Cout, Cin, K)
    cout, cin, _ = w.shape
    w = jnp.transpose(w, (2, 1, 0))                     # (K, Cin, Cout) tap-major
    w = jnp.pad(w, ((0, 0), (0, cin_pad - cin), (0, cout_pad - cout)))
    if bn is None:
        scale = jnp.ones((cout,), jnp.float32)
        shift = jnp.zeros((cout,), jnp.float32)
    else:
        s = bn["gamma"] / jnp.sqrt(bn["var"] + BN_EPS)
        scale, shift = s, bn["beta"] - bn["mean"] * s
    scale = jnp.pad(scale, (0, cout_pad - cout)).reshape(1, cout_pad)
    shift = jnp.pad(shift, (0, cout_pad - cout)).reshape(1, cout_pad)
    return dict(w=w.astype(jnp.bfloat16), scale=scale, shift=shift,
                stride=conv["stride"], padding=conv["padding"])


def prepare_params(raw, input_dim, blocks_dim):
    cp = lambda c: _round_up(c, LANE)
    f_in, f_out = input_dim[0], blocks_dim[0][0]
    params = dict(cin_pad=cp(f_in), c_last=raw["n_filters_last"],
                  stem=_prep_conv(raw["conv1"], raw["bn1"], cp(f_in), cp(f_out)),
                  blocks=[])
    for blk_raw, (n_filters, _) in zip(raw["blocks"], blocks_dim):
        f_in, f_out = f_out, n_filters
        skip = None
        if blk_raw["skip_w"] is not None:
            skip = _prep_conv(dict(w=blk_raw["skip_w"], stride=1, padding=0),
                              None, cp(f_in), cp(f_out))
        params["blocks"].append(dict(
            downsample=blk_raw["downsample"], skip=skip,
            conv1=_prep_conv(blk_raw["conv1"], blk_raw["bn1"], cp(f_in), cp(f_out)),
            conv2=_prep_conv(blk_raw["conv2"], blk_raw["bn2"], cp(f_out), cp(f_out))))
    return params


def _conv1d_ref(x_ncl, w_oik, stride, padding):
    return jax.lax.conv_general_dilated(
        x_ncl, w_oik, window_strides=(stride,), padding=[(padding, padding)],
        dimension_numbers=("NCH", "OIH", "NCH"),
        precision=jax.lax.Precision.HIGHEST)


def _bn_ref(x_ncl, bn):
    s = bn["gamma"] / jnp.sqrt(bn["var"] + BN_EPS)
    return x_ncl * s[None, :, None] + (bn["beta"] - bn["mean"] * s)[None, :, None]


def _maxpool_ref(x_ncl, d):
    B, C, L = x_ncl.shape
    L2 = (L // d) * d
    return x_ncl[:, :, :L2].reshape(B, C, L2 // d, d).max(axis=3)


def resnet1d_reference(raw, x):
    x = _conv1d_ref(x, raw["conv1"]["w"], raw["conv1"]["stride"], raw["conv1"]["padding"])
    x = _bn_ref(x, raw["bn1"])
    y = x
    for blk in raw["blocks"]:
        ys = _maxpool_ref(y, blk["downsample"]) if blk["downsample"] > 1 else y
        if blk["skip_w"] is not None:
            ys = _conv1d_ref(ys, blk["skip_w"], 1, 0)
        x = _conv1d_ref(x, blk["conv1"]["w"], 1, blk["conv1"]["padding"])
        x = jax.nn.relu(_bn_ref(x, blk["bn1"]))
        x = _conv1d_ref(x, blk["conv2"]["w"], blk["conv2"]["stride"], blk["conv2"]["padding"])
        x = x + ys
        y = x
        x = jax.nn.relu(_bn_ref(x, blk["bn2"]))
    return x.reshape(x.shape[0], -1)


# ---------------------------------------------------------------------------
if __name__ == "__main__":
    batch = 2
    input_dim = (4, 64)                  # (channels, samples)
    blocks_dim = [(8, 32), (16, 16)]     # (filters, samples) per residual block
    kernel_size = 17
    # n_classes / dropout_rate are accepted by ResNet1d.__init__ but do not
    # affect this forward pass (no classifier head; dropout = eval identity).

    key = jax.random.PRNGKey(0)
    kp, kx = jax.random.split(key)
    raw = init_raw_params(kp, input_dim, blocks_dim, kernel_size)
    params = prepare_params(raw, input_dim, blocks_dim)
    cnn_x = jax.random.normal(kx, (batch,) + input_dim, jnp.float32)   # (B, C, L)

    fwd = jax.jit(functools.partial(resnet1d_forward, params))
    out = jax.block_until_ready(fwd(cnn_x))

    n_filters_last, n_samples_last = blocks_dim[-1]
    assert out.shape == (batch, n_filters_last * n_samples_last), out.shape
    assert bool(jnp.all(jnp.isfinite(out)))

    ref = resnet1d_reference(raw, cnn_x)                 # pure-JAX f32 reference
    err = jnp.max(jnp.abs(out - ref)) / (jnp.max(jnp.abs(ref)) + 1e-6)
    assert float(err) < 5e-2, float(err)
    print("KERNEL_OK")
</pallas_src>

<mosaic_0001>
module attributes {stable_mosaic.version = 11 : i64} {
  func.func @_conv_bn_kernel(%arg0: i32, %arg1: i32, %arg2: memref<1x2x24x128xbf16, #tpu.memory_space<vmem>>, %arg3: memref<17x128x128xbf16, #tpu.memory_space<vmem>>, %arg4: memref<1x128xf32, #tpu.memory_space<vmem>>, %arg5: memref<1x128xf32, #tpu.memory_space<vmem>>, %arg6: memref<1x2x16x128xbf16, #tpu.memory_space<vmem>>, %arg7: memref<1x128x128xbf16, #tpu.memory_space<vmem>>, %arg8: memref<1x16x128xbf16, #tpu.memory_space<vmem>>, %arg9: memref<1x16x128xbf16, #tpu.memory_space<vmem>>) attributes {dimension_semantics = [#tpu.dimension_semantics<parallel>, #tpu.dimension_semantics<parallel>], iteration_bounds = array<i64: 2, 1>, scalar_prefetch = 0 : i64, scratch_operands = 0 : i64, tpu.core_type = #tpu.core_type<tc>, window_params = [{transform_indices = @transform_0, window_bounds = array<i64: 1, 2, 24, 128>}, {transform_indices = @transform_1, window_bounds = array<i64: 17, 128, 128>}, {transform_indices = @transform_2, window_bounds = array<i64: 1, 128>}, {transform_indices = @transform_3, window_bounds = array<i64: 1, 128>}, {transform_indices = @transform_4, window_bounds = array<i64: 1, 2, 16, 128>}, {transform_indices = @transform_5, window_bounds = array<i64: 1, 128, 128>}, {transform_indices = @transform_6, window_bounds = array<i64: 1, 16, 128>}, {transform_indices = @transform_7, window_bounds = array<i64: 1, 16, 128>}]} {
    %c0 = arith.constant 0 : index
    %c0_0 = arith.constant 0 : index
    %c0_1 = arith.constant 0 : index
    %c0_2 = arith.constant 0 : index
    %0 = vector.load %arg2[%c0, %c0_0, %c0_1, %c0_2] : memref<1x2x24x128xbf16, #tpu.memory_space<vmem>>, vector<1x1x16x128xbf16>
    %1 = vector.shape_cast %0 : vector<1x1x16x128xbf16> to vector<16x128xbf16>
    %c0_3 = arith.constant 0 : index
    %c0_4 = arith.constant 0 : index
    %c0_5 = arith.constant 0 : index
    %2 = vector.load %arg3[%c0_3, %c0_4, %c0_5] : memref<17x128x128xbf16, #tpu.memory_space<vmem>>, vector<1x128x128xbf16>
    %3 = vector.shape_cast %2 : vector<1x128x128xbf16> to vector<128x128xbf16>
    %cst = arith.constant dense<0.000000e+00> : vector<16x128xf32>
    %4 = tpu.matmul %1, %3, %cst {dimension_numbers = #tpu.dot_dimension_numbers<[1], [0], [0], [1], [0, 0, 1, 1], [], []>} : vector<16x128xbf16>, vector<128x128xbf16>, vector<16x128xf32> -> vector<16x128xf32>
    %c0_6 = arith.constant 0 : index
    %c1 = arith.constant 1 : index
    %c0_7 = arith.constant 0 : index
    %c0_8 = arith.constant 0 : index
    %5 = vector.load %arg2[%c0_6, %c1, %c0_7, %c0_8] : memref<1x2x24x128xbf16, #tpu.memory_space<vmem>>, vector<1x1x16x128xbf16>
    %6 = vector.shape_cast %5 : vector<1x1x16x128xbf16> to vector<16x128xbf16>
    %c1_9 = arith.constant 1 : index
    %c0_10 = arith.constant 0 : index
    %c0_11 = arith.constant 0 : index
    %7 = vector.load %arg3[%c1_9, %c0_10, %c0_11] : memref<17x128x128xbf16, #tpu.memory_space<vmem>>, vector<1x128x128xbf16>
    %8 = vector.shape_cast %7 : vector<1x128x128xbf16> to vector<128x128xbf16>
    %cst_12 = arith.constant dense<0.000000e+00> : vector<16x128xf32>
    %9 = tpu.matmul %6, %8, %cst_12 {dimension_numbers = #tpu.dot_dimension_numbers<[1], [0], [0], [1], [0, 0, 1, 1], [], []>} : vector<16x128xbf16>, vector<128x128xbf16>, vector<16x128xf32> -> vector<16x128xf32>
    %10 = arith.addf %4, %9 : vector<16x128xf32>
    %c0_13 = arith.constant 0 : index
    %c0_14 = arith.constant 0 : index
    %c1_15 = arith.constant 1 : index
    %c0_16 = arith.constant 0 : index
    %11 = vector.load %arg2[%c0_13, %c0_14, %c1_15, %c0_16] : memref<1x2x24x128xbf16, #tpu.memory_space<vmem>>, vector<1x1x16x128xbf16>
    %12 = vector.shape_cast %11 : vector<1x1x16x128xbf16> to vector<16x128xbf16>
    %c2 = arith.constant 2 : index
    %c0_17 = arith.constant 0 : index
    %c0_18 = arith.constant 0 : index
    %13 = vector.load %arg3[%c2, %c0_17, %c0_18] : memref<17x128x128xbf16, #tpu.memory_space<vmem>>, vector<1x128x128xbf16>
    %14 = vector.shape_cast %13 : vector<1x128x128xbf16> to vector<128x128xbf16>
    %cst_19 = arith.constant dense<0.000000e+00> : vector<16x128xf32>
    %15 = tpu.matmul %12, %14, %cst_19 {dimension_numbers = #tpu.dot_dimension_numbers<[1], [0], [0], [1], [0, 0, 1, 1], [], []>} : vector<16x128xbf16>, vector<128x128xbf16>, vector<16x128xf32> -> vector<16x128xf32>
    %16 = arith.addf %10, %15 : vector<16x128xf32>
    %c0_20 = arith.constant 0 : index
    %c1_21 = arith.constant 1 : index
    %c1_22 = arith.constant 1 : index
    %c0_23 = arith.constant 0 : index
    %17 = vector.load %arg2[%c0_20, %c1_21, %c1_22, %c0_23] : memref<1x2x24x128xbf16, #tpu.memory_space<vmem>>, vector<1x1x16x128xbf16>
    %18 = vector.shape_cast %17 : vector<1x1x16x128xbf16> to vector<16x128xbf16>
    %c3 = arith.constant 3 : index
    %c0_24 = arith.constant 0 : index
    %c0_25 = arith.constant 0 : index
    %19 = vector.load %arg3[%c3, %c0_24, %c0_25] : memref<17x128x128xbf16, #tpu.memory_space<vmem>>, vector<1x128x128xbf16>
    %20 = vector.shape_cast %19 : vector<1x128x128xbf16> to vector<128x128xbf16>
    %cst_26 = arith.constant dense<0.000000e+00> : vector<16x128xf32>
    %21 = tpu.matmul %18, %20, %cst_26 {dimension_numbers = #tpu.dot_dimension_numbers<[1], [0], [0], [1], [0, 0, 1, 1], [], []>} : vector<16x128xbf16>, vector<128x128xbf16>, vector<16x128xf32> -> vector<16x128xf32>
    %22 = arith.addf %16, %21 : vector<16x128xf32>
    %c0_27 = arith.constant 0 : index
    %c0_28 = arith.constant 0 : index
    %c2_29 = arith.constant 2 : index
    %c0_30 = arith.constant 0 : index
    %23 = vector.load %arg2[%c0_27, %c0_28, %c2_29, %c0_30] : memref<1x2x24x128xbf16, #tpu.memory_space<vmem>>, vector<1x1x16x128xbf16>
    %24 = vector.shape_cast %23 : vector<1x1x16x128xbf16> to vector<16x128xbf16>
    %c4 = arith.constant 4 : index
    %c0_31 = arith.constant 0 : index
    %c0_32 = arith.constant 0 : index
    %25 = vector.load %arg3[%c4, %c0_31, %c0_32] : memref<17x128x128xbf16, #tpu.memory_space<vmem>>, vector<1x128x128xbf16>
    %26 = vector.shape_cast %25 : vector<1x128x128xbf16> to vector<128x128xbf16>
    %cst_33 = arith.constant dense<0.000000e+00> : vector<16x128xf32>
    %27 = tpu.matmul %24, %26, %cst_33 {dimension_numbers = #tpu.dot_dimension_numbers<[1], [0], [0], [1], [0, 0, 1, 1], [], []>} : vector<16x128xbf16>, vector<128x128xbf16>, vector<16x128xf32> -> vector<16x128xf32>
    %28 = arith.addf %22, %27 : vector<16x128xf32>
    %c0_34 = arith.constant 0 : index
    %c1_35 = arith.constant 1 : index
    %c2_36 = arith.constant 2 : index
    %c0_37 = arith.constant 0 : index
    %29 = vector.load %arg2[%c0_34, %c1_35, %c2_36, %c0_37] : memref<1x2x24x128xbf16, #tpu.memory_space<vmem>>, vector<1x1x16x128xbf16>
    %30 = vector.shape_cast %29 : vector<1x1x16x128xbf16> to vector<16x128xbf16>
    %c5 = arith.constant 5 : index
    %c0_38 = arith.constant 0 : index
    %c0_39 = arith.constant 0 : index
    %31 = vector.load %arg3[%c5, %c0_38, %c0_39] : memref<17x128x128xbf16, #tpu.memory_space<vmem>>, vector<1x128x128xbf16>
    %32 = vector.shape_cast %31 : vector<1x128x128xbf16> to vector<128x128xbf16>
    %cst_40 = arith.constant dense<0.000000e+00> : vector<16x128xf32>
    %33 = tpu.matmul %30, %32, %cst_40 {dimension_numbers = #tpu.dot_dimension_numbers<[1], [0], [0], [1], [0, 0, 1, 1], [], []>} : vector<16x128xbf16>, vector<128x128xbf16>, vector<16x128xf32> -> vector<16x128xf32>
    %34 = arith.addf %28, %33 : vector<16x128xf32>
    %c0_41 = arith.constant 0 : index
    %c0_42 = arith.constant 0 : index
    %c3_43 = arith.constant 3 : index
    %c0_44 = arith.constant 0 : index
    %35 = vector.load %arg2[%c0_41, %c0_42, %c3_43, %c0_44] : memref<1x2x24x128xbf16, #tpu.memory_space<vmem>>, vector<1x1x16x128xbf16>
    %36 = vector.shape_cast %35 : vector<1x1x16x128xbf16> to vector<16x128xbf16>
    %c6 = arith.constant 6 : index
    %c0_45 = arith.constant 0 : index
    %c0_46 = arith.constant 0 : index
    %37 = vector.load %arg3[%c6, %c0_45, %c0_46] : memref<17x128x128xbf16, #tpu.memory_space<vmem>>, vector<1x128x128xbf16>
    %38 = vector.shape_cast %37 : vector<1x128x128xbf16> to vector<128x128xbf16>
    %cst_47 = arith.constant dense<0.000000e+00> : vector<16x128xf32>
    %39 = tpu.matmul %36, %38, %cst_47 {dimension_numbers = #tpu.dot_dimension_numbers<[1], [0], [0], [1], [0, 0, 1, 1], [], []>} : vector<16x128xbf16>, vector<128x128xbf16>, vector<16x128xf32> -> vector<16x128xf32>
    %40 = arith.addf %34, %39 : vector<16x128xf32>
    %c0_48 = arith.constant 0 : index
    %c1_49 = arith.constant 1 : index
    %c3_50 = arith.constant 3 : index
    %c0_51 = arith.constant 0 : index
    %41 = vector.load %arg2[%c0_48, %c1_49, %c3_50, %c0_51] : memref<1x2x24x128xbf16, #tpu.memory_space<vmem>>, vector<1x1x16x128xbf16>
    %42 = vector.shape_cast %41 : vector<1x1x16x128xbf16> to vector<16x128xbf16>
    %c7 = arith.constant 7 : index
    %c0_52 = arith.constant 0 : index
    %c0_53 = arith.constant 0 : index
    %43 = vector.load %arg3[%c7, %c0_52, %c0_53] : memref<17x128x128xbf16, #tpu.memory_space<vmem>>, vector<1x128x128xbf16>
    %44 = vector.shape_cast %43 : vector<1x128x128xbf16> to vector<128x128xbf16>
    %cst_54 = arith.constant dense<0.000000e+00> : vector<16x128xf32>
    %45 = tpu.matmul %42, %44, %cst_54 {dimension_numbers = #tpu.dot_dimension_numbers<[1], [0], [0], [1], [0, 0, 1, 1], [], []>} : vector<16x128xbf16>, vector<128x128xbf16>, vector<16x128xf32> -> vector<16x128xf32>
    %46 = arith.addf %40, %45 : vector<16x128xf32>
    %c0_55 = arith.constant 0 : index
    %c0_56 = arith.constant 0 : index
    %c4_57 = arith.constant 4 : index
    %c0_58 = arith.constant 0 : index
    %47 = vector.load %arg2[%c0_55, %c0_56, %c4_57, %c0_58] : memref<1x2x24x128xbf16, #tpu.memory_space<vmem>>, vector<1x1x16x128xbf16>
    %48 = vector.shape_cast %47 : vector<1x1x16x128xbf16> to vector<16x128xbf16>
    %c8 = arith.constant 8 : index
    %c0_59 = arith.constant 0 : index
    %c0_60 = arith.constant 0 : index
    %49 = vector.load %arg3[%c8, %c0_59, %c0_60] : memref<17x128x128xbf16, #tpu.memory_space<vmem>>, vector<1x128x128xbf16>
    %50 = vector.shape_cast %49 : vector<1x128x128xbf16> to vector<128x128xbf16>
    %cst_61 = arith.constant dense<0.000000e+00> : vector<16x128xf32>
    %51 = tpu.matmul %48, %50, %cst_61 {dimension_numbers = #tpu.dot_dimension_numbers<[1], [0], [0], [1], [0, 0, 1, 1], [], []>} : vector<16x128xbf16>, vector<128x128xbf16>, vector<16x128xf32> -> vector<16x128xf32>
    %52 = arith.addf %46, %51 : vector<16x128xf32>
    %c0_62 = arith.constant 0 : index
    %c1_63 = arith.constant 1 : index
    %c4_64 = arith.constant 4 : index
    %c0_65 = arith.constant 0 : index
    %53 = vector.load %arg2[%c0_62, %c1_63, %c4_64, %c0_65] : memref<1x2x24x128xbf16, #tpu.memory_space<vmem>>, vector<1x1x16x128xbf16>
    %54 = vector.shape_cast %53 : vector<1x1x16x128xbf16> to vector<16x128xbf16>
    %c9 = arith.constant 9 : index
    %c0_66 = arith.constant 0 : index
    %c0_67 = arith.constant 0 : index
    %55 = vector.load %arg3[%c9, %c0_66, %c0_67] : memref<17x128x128xbf16, #tpu.memory_space<vmem>>, vector<1x128x128xbf16>
    %56 = vector.shape_cast %55 : vector<1x128x128xbf16> to vector<128x128xbf16>
    %cst_68 = arith.constant dense<0.000000e+00> : vector<16x128xf32>
    %57 = tpu.matmul %54, %56, %cst_68 {dimension_numbers = #tpu.dot_dimension_numbers<[1], [0], [0], [1], [0, 0, 1, 1], [], []>} : vector<16x128xbf16>, vector<128x128xbf16>, vector<16x128xf32> -> vector<16x128xf32>
    %58 = arith.addf %52, %57 : vector<16x128xf32>
    %c0_69 = arith.constant 0 : index
    %c0_70 = arith.constant 0 : index
    %c5_71 = arith.constant 5 : index
    %c0_72 = arith.constant 0 : index
    %59 = vector.load %arg2[%c0_69, %c0_70, %c5_71, %c0_72] : memref<1x2x24x128xbf16, #tpu.memory_space<vmem>>, vector<1x1x16x128xbf16>
    %60 = vector.shape_cast %59 : vector<1x1x16x128xbf16> to vector<16x128xbf16>
    %c10 = arith.constant 10 : index
    %c0_73 = arith.constant 0 : index
    %c0_74 = arith.constant 0 : index
    %61 = vector.load %arg3[%c10, %c0_73, %c0_74] : memref<17x128x128xbf16, #tpu.memory_space<vmem>>, vector<1x128x128xbf16>
    %62 = vector.shape_cast %61 : vector<1x128x128xbf16> to vector<128x128xbf16>
    %cst_75 = arith.constant dense<0.000000e+00> : vector<16x128xf32>
    %63 = tpu.matmul %60, %62, %cst_75 {dimension_numbers = #tpu.dot_dimension_numbers<[1], [0], [0], [1], [0, 0, 1, 1], [], []>} : vector<16x128xbf16>, vector<128x128xbf16>, vector<16x128xf32> -> vector<16x128xf32>
    %64 = arith.addf %58, %63 : vector<16x128xf32>
    %c0_76 = arith.constant 0 : index
    %c1_77 = arith.constant 1 : index
    %c5_78 = arith.constant 5 : index
    %c0_79 = arith.constant 0 : index
    %65 = vector.load %arg2[%c0_76, %c1_77, %c5_78, %c0_79] : memref<1x2x24x128xbf16, #tpu.memory_space<vmem>>, vector<1x1x16x128xbf16>
    %66 = vector.shape_cast %65 : vector<1x1x16x128xbf16> to vector<16x128xbf16>
    %c11 = arith.constant 11 : index
    %c0_80 = arith.constant 0 : index
    %c0_81 = arith.constant 0 : index
    %67 = vector.load %arg3[%c11, %c0_80, %c0_81] : memref<17x128x128xbf16, #tpu.memory_space<vmem>>, vector<1x128x128xbf16>
    %68 = vector.shape_cast %67 : vector<1x128x128xbf16> to vector<128x128xbf16>
    %cst_82 = arith.constant dense<0.000000e+00> : vector<16x128xf32>
    %69 = tpu.matmul %66, %68, %cst_82 {dimension_numbers = #tpu.dot_dimension_numbers<[1], [0], [0], [1], [0, 0, 1, 1], [], []>} : vector<16x128xbf16>, vector<128x128xbf16>, vector<16x128xf32> -> vector<16x128xf32>
    %70 = arith.addf %64, %69 : vector<16x128xf32>
    %c0_83 = arith.constant 0 : index
    %c0_84 = arith.constant 0 : index
    %c6_85 = arith.constant 6 : index
    %c0_86 = arith.constant 0 : index
    %71 = vector.load %arg2[%c0_83, %c0_84, %c6_85, %c0_86] : memref<1x2x24x128xbf16, #tpu.memory_space<vmem>>, vector<1x1x16x128xbf16>
    %72 = vector.shape_cast %71 : vector<1x1x16x128xbf16> to vector<16x128xbf16>
    %c12 = arith.constant 12 : index
    %c0_87 = arith.constant 0 : index
    %c0_88 = arith.constant 0 : index
    %73 = vector.load %arg3[%c12, %c0_87, %c0_88] : memref<17x128x128xbf16, #tpu.memory_space<vmem>>, vector<1x128x128xbf16>
    %74 = vector.shape_cast %73 : vector<1x128x128xbf16> to vector<128x128xbf16>
    %cst_89 = arith.constant dense<0.000000e+00> : vector<16x128xf32>
    %75 = tpu.matmul %72, %74, %cst_89 {dimension_numbers = #tpu.dot_dimension_numbers<[1], [0], [0], [1], [0, 0, 1, 1], [], []>} : vector<16x128xbf16>, vector<128x128xbf16>, vector<16x128xf32> -> vector<16x128xf32>
    %76 = arith.addf %70, %75 : vector<16x128xf32>
    %c0_90 = arith.constant 0 : index
    %c1_91 = arith.constant 1 : index
    %c6_92 = arith.constant 6 : index
    %c0_93 = arith.constant 0 : index
    %77 = vector.load %arg2[%c0_90, %c1_91, %c6_92, %c0_93] : memref<1x2x24x128xbf16, #tpu.memory_space<vmem>>, vector<1x1x16x128xbf16>
    %78 = vector.shape_cast %77 : vector<1x1x16x128xbf16> to vector<16x128xbf16>
    %c13 = arith.constant 13 : index
    %c0_94 = arith.constant 0 : index
    %c0_95 = arith.constant 0 : index
    %79 = vector.load %arg3[%c13, %c0_94, %c0_95] : memref<17x128x128xbf16, #tpu.memory_space<vmem>>, vector<1x128x128xbf16>
    %80 = vector.shape_cast %79 : vector<1x128x128xbf16> to vector<128x128xbf16>
    %cst_96 = arith.constant dense<0.000000e+00> : vector<16x128xf32>
    %81 = tpu.matmul %78, %80, %cst_96 {dimension_numbers = #tpu.dot_dimension_numbers<[1], [0], [0], [1], [0, 0, 1, 1], [], []>} : vector<16x128xbf16>, vector<128x128xbf16>, vector<16x128xf32> -> vector<16x128xf32>
    %82 = arith.addf %76, %81 : vector<16x128xf32>
    %c0_97 = arith.constant 0 : index
    %c0_98 = arith.constant 0 : index
    %c7_99 = arith.constant 7 : index
    %c0_100 = arith.constant 0 : index
    %83 = vector.load %arg2[%c0_97, %c0_98, %c7_99, %c0_100] : memref<1x2x24x128xbf16, #tpu.memory_space<vmem>>, vector<1x1x16x128xbf16>
    %84 = vector.shape_cast %83 : vector<1x1x16x128xbf16> to vector<16x128xbf16>
    %c14 = arith.constant 14 : index
    %c0_101 = arith.constant 0 : index
    %c0_102 = arith.constant 0 : index
    %85 = vector.load %arg3[%c14, %c0_101, %c0_102] : memref<17x128x128xbf16, #tpu.memory_space<vmem>>, vector<1x128x128xbf16>
    %86 = vector.shape_cast %85 : vector<1x128x128xbf16> to vector<128x128xbf16>
    %cst_103 = arith.constant dense<0.000000e+00> : vector<16x128xf32>
    %87 = tpu.matmul %84, %86, %cst_103 {dimension_numbers = #tpu.dot_dimension_numbers<[1], [0], [0], [1], [0, 0, 1, 1], [], []>} : vector<16x128xbf16>, vector<128x128xbf16>, vector<16x128xf32> -> vector<16x128xf32>
    %88 = arith.addf %82, %87 : vector<16x128xf32>
    %c0_104 = arith.constant 0 : index
    %c1_105 = arith.constant 1 : index
    %c7_106 = arith.constant 7 : index
    %c0_107 = arith.constant 0 : index
    %89 = vector.load %arg2[%c0_104, %c1_105, %c7_106, %c0_107] : memref<1x2x24x128xbf16, #tpu.memory_space<vmem>>, vector<1x1x16x128xbf16>
    %90 = vector.shape_cast %89 : vector<1x1x16x128xbf16> to vector<16x128xbf16>
    %c15 = arith.constant 15 : index
    %c0_108 = arith.constant 0 : index
    %c0_109 = arith.constant 0 : index
    %91 = vector.load %arg3[%c15, %c0_108, %c0_109] : memref<17x128x128xbf16, #tpu.memory_space<vmem>>, vector<1x128x128xbf16>
    %92 = vector.shape_cast %91 : vector<1x128x128xbf16> to vector<128x128xbf16>
    %cst_110 = arith.constant dense<0.000000e+00> : vector<16x128xf32>
    %93 = tpu.matmul %90, %92, %cst_110 {dimension_numbers = #tpu.dot_dimension_numbers<[1], [0], [0], [1], [0, 0, 1, 1], [], []>} : vector<16x128xbf16>, vector<128x128xbf16>, vector<16x128xf32> -> vector<16x128xf32>
    %94 = arith.addf %88, %93 : vector<16x128xf32>
    %c0_111 = arith.constant 0 : index
    %c0_112 = arith.constant 0 : index
    %c8_113 = arith.constant 8 : index
    %c0_114 = arith.constant 0 : index
    %95 = vector.load %arg2[%c0_111, %c0_112, %c8_113, %c0_114] : memref<1x2x24x128xbf16, #tpu.memory_space<vmem>>, vector<1x1x16x128xbf16>
    %96 = vector.shape_cast %95 : vector<1x1x16x128xbf16> to vector<16x128xbf16>
    %c16 = arith.constant 16 : index
    %c0_115 = arith.constant 0 : index
    %c0_116 = arith.constant 0 : index
    %97 = vector.load %arg3[%c16, %c0_115, %c0_116] : memref<17x128x128xbf16, #tpu.memory_space<vmem>>, vector<1x128x128xbf16>
    %98 = vector.shape_cast %97 : vector<1x128x128xbf16> to vector<128x128xbf16>
    %cst_117 = arith.constant dense<0.000000e+00> : vector<16x128xf32>
    %99 = tpu.matmul %96, %98, %cst_117 {dimension_numbers = #tpu.dot_dimension_numbers<[1], [0], [0], [1], [0, 0, 1, 1], [], []>} : vector<16x128xbf16>, vector<128x128xbf16>, vector<16x128xf32> -> vector<16x128xf32>
    %100 = arith.addf %94, %99 : vector<16x128xf32>
    %c0_118 = arith.constant 0 : index
    %c0_119 = arith.constant 0 : index
    %c0_120 = arith.constant 0 : index
    %c0_121 = arith.constant 0 : index
    %101 = vector.load %arg6[%c0_118, %c0_119, %c0_120, %c0_121] : memref<1x2x16x128xbf16, #tpu.memory_space<vmem>>, vector<1x1x16x128xbf16>
    %102 = vector.shape_cast %101 : vector<1x1x16x128xbf16> to vector<16x128xbf16>
    %c0_122 = arith.constant 0 : index
    %c1_123 = arith.constant 1 : index
    %c0_124 = arith.constant 0 : index
    %c0_125 = arith.constant 0 : index
    %103 = vector.load %arg6[%c0_122, %c1_123, %c0_124, %c0_125] : memref<1x2x16x128xbf16, #tpu.memory_space<vmem>>, vector<1x1x16x128xbf16>
    %104 = vector.shape_cast %103 : vector<1x1x16x128xbf16> to vector<16x128xbf16>
    %105 = arith.maximumf %102, %104 : vector<16x128xbf16>
    %c0_126 = arith.constant 0 : index
    %c0_127 = arith.constant 0 : index
    %c0_128 = arith.constant 0 : index
    %106 = vector.load %arg7[%c0_126, %c0_127, %c0_128] : memref<1x128x128xbf16, #tpu.memory_space<vmem>>, vector<1x128x128xbf16>
    %107 = vector.shape_cast %106 : vector<1x128x128xbf16> to vector<128x128xbf16>
    %cst_129 = arith.constant dense<0.000000e+00> : vector<16x128xf32>
    %108 = tpu.matmul %105, %107, %cst_129 {dimension_numbers = #tpu.dot_dimension_numbers<[1], [0], [0], [1], [0, 0, 1, 1], [], []>} : vector<16x128xbf16>, vector<128x128xbf16>, vector<16x128xf32> -> vector<16x128xf32>
    %109 = arith.addf %100, %108 : vector<16x128xf32>
    %110 = arith.truncf %109 : vector<16x128xf32> to vector<16x128xbf16>
    %c0_130 = arith.constant 0 : index
    %c0_131 = arith.constant 0 : index
    %c0_132 = arith.constant 0 : index
    %111 = vector.load %arg9[%c0_130, %c0_131, %c0_132] : memref<1x16x128xbf16, #tpu.memory_space<vmem>>, vector<1x16x128xbf16>
    %112 = vector.shape_cast %111 : vector<1x16x128xbf16> to vector<16x128xbf16>
    %113 = vector.shape_cast %110 : vector<16x128xbf16> to vector<1x16x128xbf16>
    tpu.vector_store %arg9[%c0_130, %c0_131, %c0_132], %113 {strides = array<i32>} : memref<1x16x128xbf16, #tpu.memory_space<vmem>>, vector<1x16x128xbf16>,
    %c0_133 = arith.constant 0 : index
    %c0_134 = arith.constant 0 : index
    %114 = vector.load %arg4[%c0_133, %c0_134] : memref<1x128xf32, #tpu.memory_space<vmem>>, vector<1x128xf32>
    %115 = vector.broadcast %114 : vector<1x128xf32> to vector<16x128xf32>
    %116 = arith.mulf %109, %115 : vector<16x128xf32>
    %c0_135 = arith.constant 0 : index
    %c0_136 = arith.constant 0 : index
    %117 = vector.load %arg5[%c0_135, %c0_136] : memref<1x128xf32, #tpu.memory_space<vmem>>, vector<1x128xf32>
    %118 = vector.broadcast %117 : vector<1x128xf32> to vector<16x128xf32>
    %119 = arith.addf %116, %118 : vector<16x128xf32>
    %cst_137 = arith.constant 0.000000e+00 : f32
    %120 = vector.broadcast %cst_137 : f32 to vector<16x128xf32>
    %121 = arith.maximumf %119, %120 : vector<16x128xf32>
    %122 = arith.truncf %121 : vector<16x128xf32> to vector<16x128xbf16>
    %c0_138 = arith.constant 0 : index
    %c0_139 = arith.constant 0 : index
    %c0_140 = arith.constant 0 : index
    %123 = vector.load %arg8[%c0_138, %c0_139, %c0_140] : memref<1x16x128xbf16, #tpu.memory_space<vmem>>, vector<1x16x128xbf16>
    %124 = vector.shape_cast %123 : vector<1x16x128xbf16> to vector<16x128xbf16>
    %125 = vector.shape_cast %122 : vector<16x128xbf16> to vector<1x16x128xbf16>
    tpu.vector_store %arg8[%c0_138, %c0_139, %c0_140], %125 {strides = array<i32>} : memref<1x16x128xbf16, #tpu.memory_space<vmem>>, vector<1x16x128xbf16>,
    return
  }
  func.func @transform_0(%arg0: i32, %arg1: i32) -> (i32, i32, i32, i32) {
    %c0_i32 = arith.constant 0 : i32
    %c0_i32_0 = arith.constant 0 : i32
    %c0_i32_1 = arith.constant 0 : i32
    %c0_i32_2 = arith.constant 0 : i32
    return %arg0, %c0_i32, %c0_i32_0, %c0_i32_1 : i32, i32, i32, i32
  }
  func.func @transform_1(%arg0: i32, %arg1: i32) -> (i32, i32, i32) {
    %c0_i32 = arith.constant 0 : i32
    %c0_i32_0 = arith.constant 0 : i32
    %c0_i32_1 = arith.constant 0 : i32
    return %c0_i32, %c0_i32_0, %arg1 : i32, i32, i32
  }
  func.func @transform_2(%arg0: i32, %arg1: i32) -> (i32, i32) {
    %c0_i32 = arith.constant 0 : i32
    %c0_i32_0 = arith.constant 0 : i32
    return %c0_i32, %arg1 : i32, i32
  }
  func.func @transform_3(%arg0: i32, %arg1: i32) -> (i32, i32) {
    %c0_i32 = arith.constant 0 : i32
    %c0_i32_0 = arith.constant 0 : i32
    return %c0_i32, %arg1 : i32, i32
  }
  func.func @transform_4(%arg0: i32, %arg1: i32) -> (i32, i32, i32, i32) {
    %c0_i32 = arith.constant 0 : i32
    %c0_i32_0 = arith.constant 0 : i32
    %c0_i32_1 = arith.constant 0 : i32
    %c0_i32_2 = arith.constant 0 : i32
    return %arg0, %c0_i32, %c0_i32_0, %c0_i32_1 : i32, i32, i32, i32
  }
  func.func @transform_5(%arg0: i32, %arg1: i32) -> (i32, i32, i32) {
    %c0_i32 = arith.constant 0 : i32
    %c0_i32_0 = arith.constant 0 : i32
    %c0_i32_1 = arith.constant 0 : i32
    return %c0_i32, %c0_i32_0, %arg1 : i32, i32, i32
  }
  func.func @transform_6(%arg0: i32, %arg1: i32) -> (i32, i32, i32) {
    %c0_i32 = arith.constant 0 : i32
    %c0_i32_0 = arith.constant 0 : i32
    return %arg0, %c0_i32, %arg1 : i32, i32, i32
  }
  func.func @transform_7(%arg0: i32, %arg1: i32) -> (i32, i32, i32) {
    %c0_i32 = arith.constant 0 : i32
    %c0_i32_0 = arith.constant 0 : i32
    return %arg0, %c0_i32, %arg1 : i32, i32, i32
  }
}

module attributes {stable_mosaic.version = 11 : i64} {
  func.func @_conv_bn_kernel(%arg0: i32, %arg1: i32, %arg2: memref<1x2x40x128xbf16, #tpu.memory_space<vmem>>, %arg3: memref<17x128x128xbf16, #tpu.memory_space<vmem>>, %arg4: memref<1x128xf32, #tpu.memory_space<vmem>>, %arg5: memref<1x128xf32, #tpu.memory_space<vmem>>, %arg6: memref<1x32x128xbf16, #tpu.memory_space<vmem>>) attributes {dimension_semantics = [#tpu.dimension_semantics<parallel>, #tpu.dimension_semantics<parallel>], iteration_bounds = array<i64: 2, 1>, scalar_prefetch = 0 : i64, scratch_operands = 0 : i64, tpu.core_type = #tpu.core_type<tc>, window_params = [{transform_indices = @transform_0, window_bounds = array<i64: 1, 2, 40, 128>}, {transform_indices = @transform_1, window_bounds = array<i64: 17, 128, 128>}, {transform_indices = @transform_2, window_bounds = array<i64: 1, 128>}, {transform_indices = @transform_3, window_bounds = array<i64: 1, 128>}, {transform_indices = @transform_4, window_bounds = array<i64: 1, 32, 128>}]} {
    %c0 = arith.constant 0 : index
    %c0_0 = arith.constant 0 : index
    %c0_1 = arith.constant 0 : index
    %c0_2 = arith.constant 0 : index
    %0 = vector.load %arg2[%c0, %c0_0, %c0_1, %c0_2] : memref<1x2x40x128xbf16, #tpu.memory_space<vmem>>, vector<1x1x32x128xbf16>
    %1 = vector.shape_cast %0 : vector<1x1x32x128xbf16> to vector<32x128xbf16>
    %c0_3 = arith.constant 0 : index
    %c0_4 = arith.constant 0 : index
    %c0_5 = arith.constant 0 : index
    %2 = vector.load %arg3[%c0_3, %c0_4, %c0_5] : memref<17x128x128xbf16, #tpu.memory_space<vmem>>, vector<1x128x128xbf16>
    %3 = vector.shape_cast %2 : vector<1x128x128xbf16> to vector<128x128xbf16>
    %cst = arith.constant dense<0.000000e+00> : vector<32x128xf32>
    %4 = tpu.matmul %1, %3, %cst {dimension_numbers = #tpu.dot_dimension_numbers<[1], [0], [0], [1], [0, 0, 1, 1], [], []>} : vector<32x128xbf16>, vector<128x128xbf16>, vector<32x128xf32> -> vector<32x128xf32>
    %c0_6 = arith.constant 0 : index
    %c1 = arith.constant 1 : index
    %c0_7 = arith.constant 0 : index
    %c0_8 = arith.constant 0 : index
    %5 = vector.load %arg2[%c0_6, %c1, %c0_7, %c0_8] : memref<1x2x40x128xbf16, #tpu.memory_space<vmem>>, vector<1x1x32x128xbf16>
    %6 = vector.shape_cast %5 : vector<1x1x32x128xbf16> to vector<32x128xbf16>
    %c1_9 = arith.constant 1 : index
    %c0_10 = arith.constant 0 : index
    %c0_11 = arith.constant 0 : index
    %7 = vector.load %arg3[%c1_9, %c0_10, %c0_11] : memref<17x128x128xbf16, #tpu.memory_space<vmem>>, vector<1x128x128xbf16>
    %8 = vector.shape_cast %7 : vector<1x128x128xbf16> to vector<128x128xbf16>
    %cst_12 = arith.constant dense<0.000000e+00> : vector<32x128xf32>
    %9 = tpu.matmul %6, %8, %cst_12 {dimension_numbers = #tpu.dot_dimension_numbers<[1], [0], [0], [1], [0, 0, 1, 1], [], []>} : vector<32x128xbf16>, vector<128x128xbf16>, vector<32x128xf32> -> vector<32x128xf32>
    %10 = arith.addf %4, %9 : vector<32x128xf32>
    %c0_13 = arith.constant 0 : index
    %c0_14 = arith.constant 0 : index
    %c1_15 = arith.constant 1 : index
    %c0_16 = arith.constant 0 : index
    %11 = vector.load %arg2[%c0_13, %c0_14, %c1_15, %c0_16] : memref<1x2x40x128xbf16, #tpu.memory_space<vmem>>, vector<1x1x32x128xbf16>
    %12 = vector.shape_cast %11 : vector<1x1x32x128xbf16> to vector<32x128xbf16>
    %c2 = arith.constant 2 : index
    %c0_17 = arith.constant 0 : index
    %c0_18 = arith.constant 0 : index
    %13 = vector.load %arg3[%c2, %c0_17, %c0_18] : memref<17x128x128xbf16, #tpu.memory_space<vmem>>, vector<1x128x128xbf16>
    %14 = vector.shape_cast %13 : vector<1x128x128xbf16> to vector<128x128xbf16>
    %cst_19 = arith.constant dense<0.000000e+00> : vector<32x128xf32>
    %15 = tpu.matmul %12, %14, %cst_19 {dimension_numbers = #tpu.dot_dimension_numbers<[1], [0], [0], [1], [0, 0, 1, 1], [], []>} : vector<32x128xbf16>, vector<128x128xbf16>, vector<32x128xf32> -> vector<32x128xf32>
    %16 = arith.addf %10, %15 : vector<32x128xf32>
    %c0_20 = arith.constant 0 : index
    %c1_21 = arith.constant 1 : index
    %c1_22 = arith.constant 1 : index
    %c0_23 = arith.constant 0 : index
    %17 = vector.load %arg2[%c0_20, %c1_21, %c1_22, %c0_23] : memref<1x2x40x128xbf16, #tpu.memory_space<vmem>>, vector<1x1x32x128xbf16>
    %18 = vector.shape_cast %17 : vector<1x1x32x128xbf16> to vector<32x128xbf16>
    %c3 = arith.constant 3 : index
    %c0_24 = arith.constant 0 : index
    %c0_25 = arith.constant 0 : index
    %19 = vector.load %arg3[%c3, %c0_24, %c0_25] : memref<17x128x128xbf16, #tpu.memory_space<vmem>>, vector<1x128x128xbf16>
    %20 = vector.shape_cast %19 : vector<1x128x128xbf16> to vector<128x128xbf16>
    %cst_26 = arith.constant dense<0.000000e+00> : vector<32x128xf32>
    %21 = tpu.matmul %18, %20, %cst_26 {dimension_numbers = #tpu.dot_dimension_numbers<[1], [0], [0], [1], [0, 0, 1, 1], [], []>} : vector<32x128xbf16>, vector<128x128xbf16>, vector<32x128xf32> -> vector<32x128xf32>
    %22 = arith.addf %16, %21 : vector<32x128xf32>
    %c0_27 = arith.constant 0 : index
    %c0_28 = arith.constant 0 : index
    %c2_29 = arith.constant 2 : index
    %c0_30 = arith.constant 0 : index
    %23 = vector.load %arg2[%c0_27, %c0_28, %c2_29, %c0_30] : memref<1x2x40x128xbf16, #tpu.memory_space<vmem>>, vector<1x1x32x128xbf16>
    %24 = vector.shape_cast %23 : vector<1x1x32x128xbf16> to vector<32x128xbf16>
    %c4 = arith.constant 4 : index
    %c0_31 = arith.constant 0 : index
    %c0_32 = arith.constant 0 : index
    %25 = vector.load %arg3[%c4, %c0_31, %c0_32] : memref<17x128x128xbf16, #tpu.memory_space<vmem>>, vector<1x128x128xbf16>
    %26 = vector.shape_cast %25 : vector<1x128x128xbf16> to vector<128x128xbf16>
    %cst_33 = arith.constant dense<0.000000e+00> : vector<32x128xf32>
    %27 = tpu.matmul %24, %26, %cst_33 {dimension_numbers = #tpu.dot_dimension_numbers<[1], [0], [0], [1], [0, 0, 1, 1], [], []>} : vector<32x128xbf16>, vector<128x128xbf16>, vector<32x128xf32> -> vector<32x128xf32>
    %28 = arith.addf %22, %27 : vector<32x128xf32>
    %c0_34 = arith.constant 0 : index
    %c1_35 = arith.constant 1 : index
    %c2_36 = arith.constant 2 : index
    %c0_37 = arith.constant 0 : index
    %29 = vector.load %arg2[%c0_34, %c1_35, %c2_36, %c0_37] : memref<1x2x40x128xbf16, #tpu.memory_space<vmem>>, vector<1x1x32x128xbf16>
    %30 = vector.shape_cast %29 : vector<1x1x32x128xbf16> to vector<32x128xbf16>
    %c5 = arith.constant 5 : index
    %c0_38 = arith.constant 0 : index
    %c0_39 = arith.constant 0 : index
    %31 = vector.load %arg3[%c5, %c0_38, %c0_39] : memref<17x128x128xbf16, #tpu.memory_space<vmem>>, vector<1x128x128xbf16>
    %32 = vector.shape_cast %31 : vector<1x128x128xbf16> to vector<128x128xbf16>
    %cst_40 = arith.constant dense<0.000000e+00> : vector<32x128xf32>
    %33 = tpu.matmul %30, %32, %cst_40 {dimension_numbers = #tpu.dot_dimension_numbers<[1], [0], [0], [1], [0, 0, 1, 1], [], []>} : vector<32x128xbf16>, vector<128x128xbf16>, vector<32x128xf32> -> vector<32x128xf32>
    %34 = arith.addf %28, %33 : vector<32x128xf32>
    %c0_41 = arith.constant 0 : index
    %c0_42 = arith.constant 0 : index
    %c3_43 = arith.constant 3 : index
    %c0_44 = arith.constant 0 : index
    %35 = vector.load %arg2[%c0_41, %c0_42, %c3_43, %c0_44] : memref<1x2x40x128xbf16, #tpu.memory_space<vmem>>, vector<1x1x32x128xbf16>
    %36 = vector.shape_cast %35 : vector<1x1x32x128xbf16> to vector<32x128xbf16>
    %c6 = arith.constant 6 : index
    %c0_45 = arith.constant 0 : index
    %c0_46 = arith.constant 0 : index
    %37 = vector.load %arg3[%c6, %c0_45, %c0_46] : memref<17x128x128xbf16, #tpu.memory_space<vmem>>, vector<1x128x128xbf16>
    %38 = vector.shape_cast %37 : vector<1x128x128xbf16> to vector<128x128xbf16>
    %cst_47 = arith.constant dense<0.000000e+00> : vector<32x128xf32>
    %39 = tpu.matmul %36, %38, %cst_47 {dimension_numbers = #tpu.dot_dimension_numbers<[1], [0], [0], [1], [0, 0, 1, 1], [], []>} : vector<32x128xbf16>, vector<128x128xbf16>, vector<32x128xf32> -> vector<32x128xf32>
    %40 = arith.addf %34, %39 : vector<32x128xf32>
    %c0_48 = arith.constant 0 : index
    %c1_49 = arith.constant 1 : index
    %c3_50 = arith.constant 3 : index
    %c0_51 = arith.constant 0 : index
    %41 = vector.load %arg2[%c0_48, %c1_49, %c3_50, %c0_51] : memref<1x2x40x128xbf16, #tpu.memory_space<vmem>>, vector<1x1x32x128xbf16>
    %42 = vector.shape_cast %41 : vector<1x1x32x128xbf16> to vector<32x128xbf16>
    %c7 = arith.constant 7 : index
    %c0_52 = arith.constant 0 : index
    %c0_53 = arith.constant 0 : index
    %43 = vector.load %arg3[%c7, %c0_52, %c0_53] : memref<17x128x128xbf16, #tpu.memory_space<vmem>>, vector<1x128x128xbf16>
    %44 = vector.shape_cast %43 : vector<1x128x128xbf16> to vector<128x128xbf16>
    %cst_54 = arith.constant dense<0.000000e+00> : vector<32x128xf32>
    %45 = tpu.matmul %42, %44, %cst_54 {dimension_numbers = #tpu.dot_dimension_numbers<[1], [0], [0], [1], [0, 0, 1, 1], [], []>} : vector<32x128xbf16>, vector<128x128xbf16>, vector<32x128xf32> -> vector<32x128xf32>
    %46 = arith.addf %40, %45 : vector<32x128xf32>
    %c0_55 = arith.constant 0 : index
    %c0_56 = arith.constant 0 : index
    %c4_57 = arith.constant 4 : index
    %c0_58 = arith.constant 0 : index
    %47 = vector.load %arg2[%c0_55, %c0_56, %c4_57, %c0_58] : memref<1x2x40x128xbf16, #tpu.memory_space<vmem>>, vector<1x1x32x128xbf16>
    %48 = vector.shape_cast %47 : vector<1x1x32x128xbf16> to vector<32x128xbf16>
    %c8 = arith.constant 8 : index
    %c0_59 = arith.constant 0 : index
    %c0_60 = arith.constant 0 : index
    %49 = vector.load %arg3[%c8, %c0_59, %c0_60] : memref<17x128x128xbf16, #tpu.memory_space<vmem>>, vector<1x128x128xbf16>
    %50 = vector.shape_cast %49 : vector<1x128x128xbf16> to vector<128x128xbf16>
    %cst_61 = arith.constant dense<0.000000e+00> : vector<32x128xf32>
    %51 = tpu.matmul %48, %50, %cst_61 {dimension_numbers = #tpu.dot_dimension_numbers<[1], [0], [0], [1], [0, 0, 1, 1], [], []>} : vector<32x128xbf16>, vector<128x128xbf16>, vector<32x128xf32> -> vector<32x128xf32>
    %52 = arith.addf %46, %51 : vector<32x128xf32>
    %c0_62 = arith.constant 0 : index
    %c1_63 = arith.constant 1 : index
    %c4_64 = arith.constant 4 : index
    %c0_65 = arith.constant 0 : index
    %53 = vector.load %arg2[%c0_62, %c1_63, %c4_64, %c0_65] : memref<1x2x40x128xbf16, #tpu.memory_space<vmem>>, vector<1x1x32x128xbf16>
    %54 = vector.shape_cast %53 : vector<1x1x32x128xbf16> to vector<32x128xbf16>
    %c9 = arith.constant 9 : index
    %c0_66 = arith.constant 0 : index
    %c0_67 = arith.constant 0 : index
    %55 = vector.load %arg3[%c9, %c0_66, %c0_67] : memref<17x128x128xbf16, #tpu.memory_space<vmem>>, vector<1x128x128xbf16>
    %56 = vector.shape_cast %55 : vector<1x128x128xbf16> to vector<128x128xbf16>
    %cst_68 = arith.constant dense<0.000000e+00> : vector<32x128xf32>
    %57 = tpu.matmul %54, %56, %cst_68 {dimension_numbers = #tpu.dot_dimension_numbers<[1], [0], [0], [1], [0, 0, 1, 1], [], []>} : vector<32x128xbf16>, vector<128x128xbf16>, vector<32x128xf32> -> vector<32x128xf32>
    %58 = arith.addf %52, %57 : vector<32x128xf32>
    %c0_69 = arith.constant 0 : index
    %c0_70 = arith.constant 0 : index
    %c5_71 = arith.constant 5 : index
    %c0_72 = arith.constant 0 : index
    %59 = vector.load %arg2[%c0_69, %c0_70, %c5_71, %c0_72] : memref<1x2x40x128xbf16, #tpu.memory_space<vmem>>, vector<1x1x32x128xbf16>
    %60 = vector.shape_cast %59 : vector<1x1x32x128xbf16> to vector<32x128xbf16>
    %c10 = arith.constant 10 : index
    %c0_73 = arith.constant 0 : index
    %c0_74 = arith.constant 0 : index
    %61 = vector.load %arg3[%c10, %c0_73, %c0_74] : memref<17x128x128xbf16, #tpu.memory_space<vmem>>, vector<1x128x128xbf16>
    %62 = vector.shape_cast %61 : vector<1x128x128xbf16> to vector<128x128xbf16>
    %cst_75 = arith.constant dense<0.000000e+00> : vector<32x128xf32>
    %63 = tpu.matmul %60, %62, %cst_75 {dimension_numbers = #tpu.dot_dimension_numbers<[1], [0], [0], [1], [0, 0, 1, 1], [], []>} : vector<32x128xbf16>, vector<128x128xbf16>, vector<32x128xf32> -> vector<32x128xf32>
    %64 = arith.addf %58, %63 : vector<32x128xf32>
    %c0_76 = arith.constant 0 : index
    %c1_77 = arith.constant 1 : index
    %c5_78 = arith.constant 5 : index
    %c0_79 = arith.constant 0 : index
    %65 = vector.load %arg2[%c0_76, %c1_77, %c5_78, %c0_79] : memref<1x2x40x128xbf16, #tpu.memory_space<vmem>>, vector<1x1x32x128xbf16>
    %66 = vector.shape_cast %65 : vector<1x1x32x128xbf16> to vector<32x128xbf16>
    %c11 = arith.constant 11 : index
    %c0_80 = arith.constant 0 : index
    %c0_81 = arith.constant 0 : index
    %67 = vector.load %arg3[%c11, %c0_80, %c0_81] : memref<17x128x128xbf16, #tpu.memory_space<vmem>>, vector<1x128x128xbf16>
    %68 = vector.shape_cast %67 : vector<1x128x128xbf16> to vector<128x128xbf16>
    %cst_82 = arith.constant dense<0.000000e+00> : vector<32x128xf32>
    %69 = tpu.matmul %66, %68, %cst_82 {dimension_numbers = #tpu.dot_dimension_numbers<[1], [0], [0], [1], [0, 0, 1, 1], [], []>} : vector<32x128xbf16>, vector<128x128xbf16>, vector<32x128xf32> -> vector<32x128xf32>
    %70 = arith.addf %64, %69 : vector<32x128xf32>
    %c0_83 = arith.constant 0 : index
    %c0_84 = arith.constant 0 : index
    %c6_85 = arith.constant 6 : index
    %c0_86 = arith.constant 0 : index
    %71 = vector.load %arg2[%c0_83, %c0_84, %c6_85, %c0_86] : memref<1x2x40x128xbf16, #tpu.memory_space<vmem>>, vector<1x1x32x128xbf16>
    %72 = vector.shape_cast %71 : vector<1x1x32x128xbf16> to vector<32x128xbf16>
    %c12 = arith.constant 12 : index
    %c0_87 = arith.constant 0 : index
    %c0_88 = arith.constant 0 : index
    %73 = vector.load %arg3[%c12, %c0_87, %c0_88] : memref<17x128x128xbf16, #tpu.memory_space<vmem>>, vector<1x128x128xbf16>
    %74 = vector.shape_cast %73 : vector<1x128x128xbf16> to vector<128x128xbf16>
    %cst_89 = arith.constant dense<0.000000e+00> : vector<32x128xf32>
    %75 = tpu.matmul %72, %74, %cst_89 {dimension_numbers = #tpu.dot_dimension_numbers<[1], [0], [0], [1], [0, 0, 1, 1], [], []>} : vector<32x128xbf16>, vector<128x128xbf16>, vector<32x128xf32> -> vector<32x128xf32>
    %76 = arith.addf %70, %75 : vector<32x128xf32>
    %c0_90 = arith.constant 0 : index
    %c1_91 = arith.constant 1 : index
    %c6_92 = arith.constant 6 : index
    %c0_93 = arith.constant 0 : index
    %77 = vector.load %arg2[%c0_90, %c1_91, %c6_92, %c0_93] : memref<1x2x40x128xbf16, #tpu.memory_space<vmem>>, vector<1x1x32x128xbf16>
    %78 = vector.shape_cast %77 : vector<1x1x32x128xbf16> to vector<32x128xbf16>
    %c13 = arith.constant 13 : index
    %c0_94 = arith.constant 0 : index
    %c0_95 = arith.constant 0 : index
    %79 = vector.load %arg3[%c13, %c0_94, %c0_95] : memref<17x128x128xbf16, #tpu.memory_space<vmem>>, vector<1x128x128xbf16>
    %80 = vector.shape_cast %79 : vector<1x128x128xbf16> to vector<128x128xbf16>
    %cst_96 = arith.constant dense<0.000000e+00> : vector<32x128xf32>
    %81 = tpu.matmul %78, %80, %cst_96 {dimension_numbers = #tpu.dot_dimension_numbers<[1], [0], [0], [1], [0, 0, 1, 1], [], []>} : vector<32x128xbf16>, vector<128x128xbf16>, vector<32x128xf32> -> vector<32x128xf32>
    %82 = arith.addf %76, %81 : vector<32x128xf32>
    %c0_97 = arith.constant 0 : index
    %c0_98 = arith.constant 0 : index
    %c7_99 = arith.constant 7 : index
    %c0_100 = arith.constant 0 : index
    %83 = vector.load %arg2[%c0_97, %c0_98, %c7_99, %c0_100] : memref<1x2x40x128xbf16, #tpu.memory_space<vmem>>, vector<1x1x32x128xbf16>
    %84 = vector.shape_cast %83 : vector<1x1x32x128xbf16> to vector<32x128xbf16>
    %c14 = arith.constant 14 : index
    %c0_101 = arith.constant 0 : index
    %c0_102 = arith.constant 0 : index
    %85 = vector.load %arg3[%c14, %c0_101, %c0_102] : memref<17x128x128xbf16, #tpu.memory_space<vmem>>, vector<1x128x128xbf16>
    %86 = vector.shape_cast %85 : vector<1x128x128xbf16> to vector<128x128xbf16>
    %cst_103 = arith.constant dense<0.000000e+00> : vector<32x128xf32>
    %87 = tpu.matmul %84, %86, %cst_103 {dimension_numbers = #tpu.dot_dimension_numbers<[1], [0], [0], [1], [0, 0, 1, 1], [], []>} : vector<32x128xbf16>, vector<128x128xbf16>, vector<32x128xf32> -> vector<32x128xf32>
    %88 = arith.addf %82, %87 : vector<32x128xf32>
    %c0_104 = arith.constant 0 : index
    %c1_105 = arith.constant 1 : index
    %c7_106 = arith.constant 7 : index
    %c0_107 = arith.constant 0 : index
    %89 = vector.load %arg2[%c0_104, %c1_105, %c7_106, %c0_107] : memref<1x2x40x128xbf16, #tpu.memory_space<vmem>>, vector<1x1x32x128xbf16>
    %90 = vector.shape_cast %89 : vector<1x1x32x128xbf16> to vector<32x128xbf16>
    %c15 = arith.constant 15 : index
    %c0_108 = arith.constant 0 : index
    %c0_109 = arith.constant 0 : index
    %91 = vector.load %arg3[%c15, %c0_108, %c0_109] : memref<17x128x128xbf16, #tpu.memory_space<vmem>>, vector<1x128x128xbf16>
    %92 = vector.shape_cast %91 : vector<1x128x128xbf16> to vector<128x128xbf16>
    %cst_110 = arith.constant dense<0.000000e+00> : vector<32x128xf32>
    %93 = tpu.matmul %90, %92, %cst_110 {dimension_numbers = #tpu.dot_dimension_numbers<[1], [0], [0], [1], [0, 0, 1, 1], [], []>} : vector<32x128xbf16>, vector<128x128xbf16>, vector<32x128xf32> -> vector<32x128xf32>
    %94 = arith.addf %88, %93 : vector<32x128xf32>
    %c0_111 = arith.constant 0 : index
    %c0_112 = arith.constant 0 : index
    %c8_113 = arith.constant 8 : index
    %c0_114 = arith.constant 0 : index
    %95 = vector.load %arg2[%c0_111, %c0_112, %c8_113, %c0_114] : memref<1x2x40x128xbf16, #tpu.memory_space<vmem>>, vector<1x1x32x128xbf16>
    %96 = vector.shape_cast %95 : vector<1x1x32x128xbf16> to vector<32x128xbf16>
    %c16 = arith.constant 16 : index
    %c0_115 = arith.constant 0 : index
    %c0_116 = arith.constant 0 : index
    %97 = vector.load %arg3[%c16, %c0_115, %c0_116] : memref<17x128x128xbf16, #tpu.memory_space<vmem>>, vector<1x128x128xbf16>
    %98 = vector.shape_cast %97 : vector<1x128x128xbf16> to vector<128x128xbf16>
    %cst_117 = arith.constant dense<0.000000e+00> : vector<32x128xf32>
    %99 = tpu.matmul %96, %98, %cst_117 {dimension_numbers = #tpu.dot_dimension_numbers<[1], [0], [0], [1], [0, 0, 1, 1], [], []>} : vector<32x128xbf16>, vector<128x128xbf16>, vector<32x128xf32> -> vector<32x128xf32>
    %100 = arith.addf %94, %99 : vector<32x128xf32>
    %c0_118 = arith.constant 0 : index
    %c0_119 = arith.constant 0 : index
    %101 = vector.load %arg4[%c0_118, %c0_119] : memref<1x128xf32, #tpu.memory_space<vmem>>, vector<1x128xf32>
    %102 = vector.broadcast %101 : vector<1x128xf32> to vector<32x128xf32>
    %103 = arith.mulf %100, %102 : vector<32x128xf32>
    %c0_120 = arith.constant 0 : index
    %c0_121 = arith.constant 0 : index
    %104 = vector.load %arg5[%c0_120, %c0_121] : memref<1x128xf32, #tpu.memory_space<vmem>>, vector<1x128xf32>
    %105 = vector.broadcast %104 : vector<1x128xf32> to vector<32x128xf32>
    %106 = arith.addf %103, %105 : vector<32x128xf32>
    %107 = arith.truncf %106 : vector<32x128xf32> to vector<32x128xbf16>
    %c0_122 = arith.constant 0 : index
    %c0_123 = arith.constant 0 : index
    %c0_124 = arith.constant 0 : index
    %108 = vector.load %arg6[%c0_122, %c0_123, %c0_124] : memref<1x32x128xbf16, #tpu.memory_space<vmem>>, vector<1x32x128xbf16>
    %109 = vector.shape_cast %108 : vector<1x32x128xbf16> to vector<32x128xbf16>
    %110 = vector.shape_cast %107 : vector<32x128xbf16> to vector<1x32x128xbf16>
    tpu.vector_store %arg6[%c0_122, %c0_123, %c0_124], %110 {strides = array<i32>} : memref<1x32x128xbf16, #tpu.memory_space<vmem>>, vector<1x32x128xbf16>,
    return
  }
  func.func @transform_0(%arg0: i32, %arg1: i32) -> (i32, i32, i32, i32) {
    %c0_i32 = arith.constant 0 : i32
    %c0_i32_0 = arith.constant 0 : i32
    %c0_i32_1 = arith.constant 0 : i32
    %c0_i32_2 = arith.constant 0 : i32
    return %arg0, %c0_i32, %c0_i32_0, %c0_i32_1 : i32, i32, i32, i32
  }
  func.func @transform_1(%arg0: i32, %arg1: i32) -> (i32, i32, i32) {
    %c0_i32 = arith.constant 0 : i32
    %c0_i32_0 = arith.constant 0 : i32
    %c0_i32_1 = arith.constant 0 : i32
    return %c0_i32, %c0_i32_0, %arg1 : i32, i32, i32
  }
  func.func @transform_2(%arg0: i32, %arg1: i32) -> (i32, i32) {
    %c0_i32 = arith.constant 0 : i32
    %c0_i32_0 = arith.constant 0 : i32
    return %c0_i32, %arg1 : i32, i32
  }
  func.func @transform_3(%arg0: i32, %arg1: i32) -> (i32, i32) {
    %c0_i32 = arith.constant 0 : i32
    %c0_i32_0 = arith.constant 0 : i32
    return %c0_i32, %arg1 : i32, i32
  }
  func.func @transform_4(%arg0: i32, %arg1: i32) -> (i32, i32, i32) {
    %c0_i32 = arith.constant 0 : i32
    %c0_i32_0 = arith.constant 0 : i32
    return %arg0, %c0_i32, %arg1 : i32, i32, i32
  }
}

module attributes {stable_mosaic.version = 11 : i64} {
  func.func @_conv_bn_kernel(%arg0: i32, %arg1: i32, %arg2: memref<1x1x48x128xbf16, #tpu.memory_space<vmem>>, %arg3: memref<17x128x128xbf16, #tpu.memory_space<vmem>>, %arg4: memref<1x128xf32, #tpu.memory_space<vmem>>, %arg5: memref<1x128xf32, #tpu.memory_space<vmem>>, %arg6: memref<1x32x128xbf16, #tpu.memory_space<vmem>>) attributes {dimension_semantics = [#tpu.dimension_semantics<parallel>, #tpu.dimension_semantics<parallel>], iteration_bounds = array<i64: 2, 1>, scalar_prefetch = 0 : i64, scratch_operands = 0 : i64, tpu.core_type = #tpu.core_type<tc>, window_params = [{transform_indices = @transform_0, window_bounds = array<i64: 1, 1, 48, 128>}, {transform_indices = @transform_1, window_bounds = array<i64: 17, 128, 128>}, {transform_indices = @transform_2, window_bounds = array<i64: 1, 128>}, {transform_indices = @transform_3, window_bounds = array<i64: 1, 128>}, {transform_indices = @transform_4, window_bounds = array<i64: 1, 32, 128>}]} {
    %c0 = arith.constant 0 : index
    %c0_0 = arith.constant 0 : index
    %c0_1 = arith.constant 0 : index
    %c0_2 = arith.constant 0 : index
    %0 = vector.load %arg2[%c0, %c0_0, %c0_1, %c0_2] : memref<1x1x48x128xbf16, #tpu.memory_space<vmem>>, vector<1x1x32x128xbf16>
    %1 = vector.shape_cast %0 : vector<1x1x32x128xbf16> to vector<32x128xbf16>
    %c0_3 = arith.constant 0 : index
    %c0_4 = arith.constant 0 : index
    %c0_5 = arith.constant 0 : index
    %2 = vector.load %arg3[%c0_3, %c0_4, %c0_5] : memref<17x128x128xbf16, #tpu.memory_space<vmem>>, vector<1x128x128xbf16>
    %3 = vector.shape_cast %2 : vector<1x128x128xbf16> to vector<128x128xbf16>
    %cst = arith.constant dense<0.000000e+00> : vector<32x128xf32>
    %4 = tpu.matmul %1, %3, %cst {dimension_numbers = #tpu.dot_dimension_numbers<[1], [0], [0], [1], [0, 0, 1, 1], [], []>} : vector<32x128xbf16>, vector<128x128xbf16>, vector<32x128xf32> -> vector<32x128xf32>
    %c0_6 = arith.constant 0 : index
    %c0_7 = arith.constant 0 : index
    %c1 = arith.constant 1 : index
    %c0_8 = arith.constant 0 : index
    %5 = vector.load %arg2[%c0_6, %c0_7, %c1, %c0_8] : memref<1x1x48x128xbf16, #tpu.memory_space<vmem>>, vector<1x1x32x128xbf16>
    %6 = vector.shape_cast %5 : vector<1x1x32x128xbf16> to vector<32x128xbf16>
    %c1_9 = arith.constant 1 : index
    %c0_10 = arith.constant 0 : index
    %c0_11 = arith.constant 0 : index
    %7 = vector.load %arg3[%c1_9, %c0_10, %c0_11] : memref<17x128x128xbf16, #tpu.memory_space<vmem>>, vector<1x128x128xbf16>
    %8 = vector.shape_cast %7 : vector<1x128x128xbf16> to vector<128x128xbf16>
    %cst_12 = arith.constant dense<0.000000e+00> : vector<32x128xf32>
    %9 = tpu.matmul %6, %8, %cst_12 {dimension_numbers = #tpu.dot_dimension_numbers<[1], [0], [0], [1], [0, 0, 1, 1], [], []>} : vector<32x128xbf16>, vector<128x128xbf16>, vector<32x128xf32> -> vector<32x128xf32>
    %10 = arith.addf %4, %9 : vector<32x128xf32>
    %c0_13 = arith.constant 0 : index
    %c0_14 = arith.constant 0 : index
    %c2 = arith.constant 2 : index
    %c0_15 = arith.constant 0 : index
    %11 = vector.load %arg2[%c0_13, %c0_14, %c2, %c0_15] : memref<1x1x48x128xbf16, #tpu.memory_space<vmem>>, vector<1x1x32x128xbf16>
    %12 = vector.shape_cast %11 : vector<1x1x32x128xbf16> to vector<32x128xbf16>
    %c2_16 = arith.constant 2 : index
    %c0_17 = arith.constant 0 : index
    %c0_18 = arith.constant 0 : index
    %13 = vector.load %arg3[%c2_16, %c0_17, %c0_18] : memref<17x128x128xbf16, #tpu.memory_space<vmem>>, vector<1x128x128xbf16>
    %14 = vector.shape_cast %13 : vector<1x128x128xbf16> to vector<128x128xbf16>
    %cst_19 = arith.constant dense<0.000000e+00> : vector<32x128xf32>
    %15 = tpu.matmul %12, %14, %cst_19 {dimension_numbers = #tpu.dot_dimension_numbers<[1], [0], [0], [1], [0, 0, 1, 1], [], []>} : vector<32x128xbf16>, vector<128x128xbf16>, vector<32x128xf32> -> vector<32x128xf32>
    %16 = arith.addf %10, %15 : vector<32x128xf32>
    %c0_20 = arith.constant 0 : index
    %c0_21 = arith.constant 0 : index
    %c3 = arith.constant 3 : index
    %c0_22 = arith.constant 0 : index
    %17 = vector.load %arg2[%c0_20, %c0_21, %c3, %c0_22] : memref<1x1x48x128xbf16, #tpu.memory_space<vmem>>, vector<1x1x32x128xbf16>
    %18 = vector.shape_cast %17 : vector<1x1x32x128xbf16> to vector<32x128xbf16>
    %c3_23 = arith.constant 3 : index
    %c0_24 = arith.constant 0 : index
    %c0_25 = arith.constant 0 : index
    %19 = vector.load %arg3[%c3_23, %c0_24, %c0_25] : memref<17x128x128xbf16, #tpu.memory_space<vmem>>, vector<1x128x128xbf16>
    %20 = vector.shape_cast %19 : vector<1x128x128xbf16> to vector<128x128xbf16>
    %cst_26 = arith.constant dense<0.000000e+00> : vector<32x128xf32>
    %21 = tpu.matmul %18, %20, %cst_26 {dimension_numbers = #tpu.dot_dimension_numbers<[1], [0], [0], [1], [0, 0, 1, 1], [], []>} : vector<32x128xbf16>, vector<128x128xbf16>, vector<32x128xf32> -> vector<32x128xf32>
    %22 = arith.addf %16, %21 : vector<32x128xf32>
    %c0_27 = arith.constant 0 : index
    %c0_28 = arith.constant 0 : index
    %c4 = arith.constant 4 : index
    %c0_29 = arith.constant 0 : index
    %23 = vector.load %arg2[%c0_27, %c0_28, %c4, %c0_29] : memref<1x1x48x128xbf16, #tpu.memory_space<vmem>>, vector<1x1x32x128xbf16>
    %24 = vector.shape_cast %23 : vector<1x1x32x128xbf16> to vector<32x128xbf16>
    %c4_30 = arith.constant 4 : index
    %c0_31 = arith.constant 0 : index
    %c0_32 = arith.constant 0 : index
    %25 = vector.load %arg3[%c4_30, %c0_31, %c0_32] : memref<17x128x128xbf16, #tpu.memory_space<vmem>>, vector<1x128x128xbf16>
    %26 = vector.shape_cast %25 : vector<1x128x128xbf16> to vector<128x128xbf16>
    %cst_33 = arith.constant dense<0.000000e+00> : vector<32x128xf32>
    %27 = tpu.matmul %24, %26, %cst_33 {dimension_numbers = #tpu.dot_dimension_numbers<[1], [0], [0], [1], [0, 0, 1, 1], [], []>} : vector<32x128xbf16>, vector<128x128xbf16>, vector<32x128xf32> -> vector<32x128xf32>
    %28 = arith.addf %22, %27 : vector<32x128xf32>
    %c0_34 = arith.constant 0 : index
    %c0_35 = arith.constant 0 : index
    %c5 = arith.constant 5 : index
    %c0_36 = arith.constant 0 : index
    %29 = vector.load %arg2[%c0_34, %c0_35, %c5, %c0_36] : memref<1x1x48x128xbf16, #tpu.memory_space<vmem>>, vector<1x1x32x128xbf16>
    %30 = vector.shape_cast %29 : vector<1x1x32x128xbf16> to vector<32x128xbf16>
    %c5_37 = arith.constant 5 : index
    %c0_38 = arith.constant 0 : index
    %c0_39 = arith.constant 0 : index
    %31 = vector.load %arg3[%c5_37, %c0_38, %c0_39] : memref<17x128x128xbf16, #tpu.memory_space<vmem>>, vector<1x128x128xbf16>
    %32 = vector.shape_cast %31 : vector<1x128x128xbf16> to vector<128x128xbf16>
    %cst_40 = arith.constant dense<0.000000e+00> : vector<32x128xf32>
    %33 = tpu.matmul %30, %32, %cst_40 {dimension_numbers = #tpu.dot_dimension_numbers<[1], [0], [0], [1], [0, 0, 1, 1], [], []>} : vector<32x128xbf16>, vector<128x128xbf16>, vector<32x128xf32> -> vector<32x128xf32>
    %34 = arith.addf %28, %33 : vector<32x128xf32>
    %c0_41 = arith.constant 0 : index
    %c0_42 = arith.constant 0 : index
    %c6 = arith.constant 6 : index
    %c0_43 = arith.constant 0 : index
    %35 = vector.load %arg2[%c0_41, %c0_42, %c6, %c0_43] : memref<1x1x48x128xbf16, #tpu.memory_space<vmem>>, vector<1x1x32x128xbf16>
    %36 = vector.shape_cast %35 : vector<1x1x32x128xbf16> to vector<32x128xbf16>
    %c6_44 = arith.constant 6 : index
    %c0_45 = arith.constant 0 : index
    %c0_46 = arith.constant 0 : index
    %37 = vector.load %arg3[%c6_44, %c0_45, %c0_46] : memref<17x128x128xbf16, #tpu.memory_space<vmem>>, vector<1x128x128xbf16>
    %38 = vector.shape_cast %37 : vector<1x128x128xbf16> to vector<128x128xbf16>
    %cst_47 = arith.constant dense<0.000000e+00> : vector<32x128xf32>
    %39 = tpu.matmul %36, %38, %cst_47 {dimension_numbers = #tpu.dot_dimension_numbers<[1], [0], [0], [1], [0, 0, 1, 1], [], []>} : vector<32x128xbf16>, vector<128x128xbf16>, vector<32x128xf32> -> vector<32x128xf32>
    %40 = arith.addf %34, %39 : vector<32x128xf32>
    %c0_48 = arith.constant 0 : index
    %c0_49 = arith.constant 0 : index
    %c7 = arith.constant 7 : index
    %c0_50 = arith.constant 0 : index
    %41 = vector.load %arg2[%c0_48, %c0_49, %c7, %c0_50] : memref<1x1x48x128xbf16, #tpu.memory_space<vmem>>, vector<1x1x32x128xbf16>
    %42 = vector.shape_cast %41 : vector<1x1x32x128xbf16> to vector<32x128xbf16>
    %c7_51 = arith.constant 7 : index
    %c0_52 = arith.constant 0 : index
    %c0_53 = arith.constant 0 : index
    %43 = vector.load %arg3[%c7_51, %c0_52, %c0_53] : memref<17x128x128xbf16, #tpu.memory_space<vmem>>, vector<1x128x128xbf16>
    %44 = vector.shape_cast %43 : vector<1x128x128xbf16> to vector<128x128xbf16>
    %cst_54 = arith.constant dense<0.000000e+00> : vector<32x128xf32>
    %45 = tpu.matmul %42, %44, %cst_54 {dimension_numbers = #tpu.dot_dimension_numbers<[1], [0], [0], [1], [0, 0, 1, 1], [], []>} : vector<32x128xbf16>, vector<128x128xbf16>, vector<32x128xf32> -> vector<32x128xf32>
    %46 = arith.addf %40, %45 : vector<32x128xf32>
    %c0_55 = arith.constant 0 : index
    %c0_56 = arith.constant 0 : index
    %c8 = arith.constant 8 : index
    %c0_57 = arith.constant 0 : index
    %47 = vector.load %arg2[%c0_55, %c0_56, %c8, %c0_57] : memref<1x1x48x128xbf16, #tpu.memory_space<vmem>>, vector<1x1x32x128xbf16>
    %48 = vector.shape_cast %47 : vector<1x1x32x128xbf16> to vector<32x128xbf16>
    %c8_58 = arith.constant 8 : index
    %c0_59 = arith.constant 0 : index
    %c0_60 = arith.constant 0 : index
    %49 = vector.load %arg3[%c8_58, %c0_59, %c0_60] : memref<17x128x128xbf16, #tpu.memory_space<vmem>>, vector<1x128x128xbf16>
    %50 = vector.shape_cast %49 : vector<1x128x128xbf16> to vector<128x128xbf16>
    %cst_61 = arith.constant dense<0.000000e+00> : vector<32x128xf32>
    %51 = tpu.matmul %48, %50, %cst_61 {dimension_numbers = #tpu.dot_dimension_numbers<[1], [0], [0], [1], [0, 0, 1, 1], [], []>} : vector<32x128xbf16>, vector<128x128xbf16>, vector<32x128xf32> -> vector<32x128xf32>
    %52 = arith.addf %46, %51 : vector<32x128xf32>
    %c0_62 = arith.constant 0 : index
    %c0_63 = arith.constant 0 : index
    %c9 = arith.constant 9 : index
    %c0_64 = arith.constant 0 : index
    %53 = vector.load %arg2[%c0_62, %c0_63, %c9, %c0_64] : memref<1x1x48x128xbf16, #tpu.memory_space<vmem>>, vector<1x1x32x128xbf16>
    %54 = vector.shape_cast %53 : vector<1x1x32x128xbf16> to vector<32x128xbf16>
    %c9_65 = arith.constant 9 : index
    %c0_66 = arith.constant 0 : index
    %c0_67 = arith.constant 0 : index
    %55 = vector.load %arg3[%c9_65, %c0_66, %c0_67] : memref<17x128x128xbf16, #tpu.memory_space<vmem>>, vector<1x128x128xbf16>
    %56 = vector.shape_cast %55 : vector<1x128x128xbf16> to vector<128x128xbf16>
    %cst_68 = arith.constant dense<0.000000e+00> : vector<32x128xf32>
    %57 = tpu.matmul %54, %56, %cst_68 {dimension_numbers = #tpu.dot_dimension_numbers<[1], [0], [0], [1], [0, 0, 1, 1], [], []>} : vector<32x128xbf16>, vector<128x128xbf16>, vector<32x128xf32> -> vector<32x128xf32>
    %58 = arith.addf %52, %57 : vector<32x128xf32>
    %c0_69 = arith.constant 0 : index
    %c0_70 = arith.constant 0 : index
    %c10 = arith.constant 10 : index
    %c0_71 = arith.constant 0 : index
    %59 = vector.load %arg2[%c0_69, %c0_70, %c10, %c0_71] : memref<1x1x48x128xbf16, #tpu.memory_space<vmem>>, vector<1x1x32x128xbf16>
    %60 = vector.shape_cast %59 : vector<1x1x32x128xbf16> to vector<32x128xbf16>
    %c10_72 = arith.constant 10 : index
    %c0_73 = arith.constant 0 : index
    %c0_74 = arith.constant 0 : index
    %61 = vector.load %arg3[%c10_72, %c0_73, %c0_74] : memref<17x128x128xbf16, #tpu.memory_space<vmem>>, vector<1x128x128xbf16>
    %62 = vector.shape_cast %61 : vector<1x128x128xbf16> to vector<128x128xbf16>
    %cst_75 = arith.constant dense<0.000000e+00> : vector<32x128xf32>
    %63 = tpu.matmul %60, %62, %cst_75 {dimension_numbers = #tpu.dot_dimension_numbers<[1], [0], [0], [1], [0, 0, 1, 1], [], []>} : vector<32x128xbf16>, vector<128x128xbf16>, vector<32x128xf32> -> vector<32x128xf32>
    %64 = arith.addf %58, %63 : vector<32x128xf32>
    %c0_76 = arith.constant 0 : index
    %c0_77 = arith.constant 0 : index
    %c11 = arith.constant 11 : index
    %c0_78 = arith.constant 0 : index
    %65 = vector.load %arg2[%c0_76, %c0_77, %c11, %c0_78] : memref<1x1x48x128xbf16, #tpu.memory_space<vmem>>, vector<1x1x32x128xbf16>
    %66 = vector.shape_cast %65 : vector<1x1x32x128xbf16> to vector<32x128xbf16>
    %c11_79 = arith.constant 11 : index
    %c0_80 = arith.constant 0 : index
    %c0_81 = arith.constant 0 : index
    %67 = vector.load %arg3[%c11_79, %c0_80, %c0_81] : memref<17x128x128xbf16, #tpu.memory_space<vmem>>, vector<1x128x128xbf16>
    %68 = vector.shape_cast %67 : vector<1x128x128xbf16> to vector<128x128xbf16>
    %cst_82 = arith.constant dense<0.000000e+00> : vector<32x128xf32>
    %69 = tpu.matmul %66, %68, %cst_82 {dimension_numbers = #tpu.dot_dimension_numbers<[1], [0], [0], [1], [0, 0, 1, 1], [], []>} : vector<32x128xbf16>, vector<128x128xbf16>, vector<32x128xf32> -> vector<32x128xf32>
    %70 = arith.addf %64, %69 : vector<32x128xf32>
    %c0_83 = arith.constant 0 : index
    %c0_84 = arith.constant 0 : index
    %c12 = arith.constant 12 : index
    %c0_85 = arith.constant 0 : index
    %71 = vector.load %arg2[%c0_83, %c0_84, %c12, %c0_85] : memref<1x1x48x128xbf16, #tpu.memory_space<vmem>>, vector<1x1x32x128xbf16>
    %72 = vector.shape_cast %71 : vector<1x1x32x128xbf16> to vector<32x128xbf16>
    %c12_86 = arith.constant 12 : index
    %c0_87 = arith.constant 0 : index
    %c0_88 = arith.constant 0 : index
    %73 = vector.load %arg3[%c12_86, %c0_87, %c0_88] : memref<17x128x128xbf16, #tpu.memory_space<vmem>>, vector<1x128x128xbf16>
    %74 = vector.shape_cast %73 : vector<1x128x128xbf16> to vector<128x128xbf16>
    %cst_89 = arith.constant dense<0.000000e+00> : vector<32x128xf32>
    %75 = tpu.matmul %72, %74, %cst_89 {dimension_numbers = #tpu.dot_dimension_numbers<[1], [0], [0], [1], [0, 0, 1, 1], [], []>} : vector<32x128xbf16>, vector<128x128xbf16>, vector<32x128xf32> -> vector<32x128xf32>
    %76 = arith.addf %70, %75 : vector<32x128xf32>
    %c0_90 = arith.constant 0 : index
    %c0_91 = arith.constant 0 : index
    %c13 = arith.constant 13 : index
    %c0_92 = arith.constant 0 : index
    %77 = vector.load %arg2[%c0_90, %c0_91, %c13, %c0_92] : memref<1x1x48x128xbf16, #tpu.memory_space<vmem>>, vector<1x1x32x128xbf16>
    %78 = vector.shape_cast %77 : vector<1x1x32x128xbf16> to vector<32x128xbf16>
    %c13_93 = arith.constant 13 : index
    %c0_94 = arith.constant 0 : index
    %c0_95 = arith.constant 0 : index
    %79 = vector.load %arg3[%c13_93, %c0_94, %c0_95] : memref<17x128x128xbf16, #tpu.memory_space<vmem>>, vector<1x128x128xbf16>
    %80 = vector.shape_cast %79 : vector<1x128x128xbf16> to vector<128x128xbf16>
    %cst_96 = arith.constant dense<0.000000e+00> : vector<32x128xf32>
    %81 = tpu.matmul %78, %80, %cst_96 {dimension_numbers = #tpu.dot_dimension_numbers<[1], [0], [0], [1], [0, 0, 1, 1], [], []>} : vector<32x128xbf16>, vector<128x128xbf16>, vector<32x128xf32> -> vector<32x128xf32>
    %82 = arith.addf %76, %81 : vector<32x128xf32>
    %c0_97 = arith.constant 0 : index
    %c0_98 = arith.constant 0 : index
    %c14 = arith.constant 14 : index
    %c0_99 = arith.constant 0 : index
    %83 = vector.load %arg2[%c0_97, %c0_98, %c14, %c0_99] : memref<1x1x48x128xbf16, #tpu.memory_space<vmem>>, vector<1x1x32x128xbf16>
    %84 = vector.shape_cast %83 : vector<1x1x32x128xbf16> to vector<32x128xbf16>
    %c14_100 = arith.constant 14 : index
    %c0_101 = arith.constant 0 : index
    %c0_102 = arith.constant 0 : index
    %85 = vector.load %arg3[%c14_100, %c0_101, %c0_102] : memref<17x128x128xbf16, #tpu.memory_space<vmem>>, vector<1x128x128xbf16>
    %86 = vector.shape_cast %85 : vector<1x128x128xbf16> to vector<128x128xbf16>
    %cst_103 = arith.constant dense<0.000000e+00> : vector<32x128xf32>
    %87 = tpu.matmul %84, %86, %cst_103 {dimension_numbers = #tpu.dot_dimension_numbers<[1], [0], [0], [1], [0, 0, 1, 1], [], []>} : vector<32x128xbf16>, vector<128x128xbf16>, vector<32x128xf32> -> vector<32x128xf32>
    %88 = arith.addf %82, %87 : vector<32x128xf32>
    %c0_104 = arith.constant 0 : index
    %c0_105 = arith.constant 0 : index
    %c15 = arith.constant 15 : index
    %c0_106 = arith.constant 0 : index
    %89 = vector.load %arg2[%c0_104, %c0_105, %c15, %c0_106] : memref<1x1x48x128xbf16, #tpu.memory_space<vmem>>, vector<1x1x32x128xbf16>
    %90 = vector.shape_cast %89 : vector<1x1x32x128xbf16> to vector<32x128xbf16>
    %c15_107 = arith.constant 15 : index
    %c0_108 = arith.constant 0 : index
    %c0_109 = arith.constant 0 : index
    %91 = vector.load %arg3[%c15_107, %c0_108, %c0_109] : memref<17x128x128xbf16, #tpu.memory_space<vmem>>, vector<1x128x128xbf16>
    %92 = vector.shape_cast %91 : vector<1x128x128xbf16> to vector<128x128xbf16>
    %cst_110 = arith.constant dense<0.000000e+00> : vector<32x128xf32>
    %93 = tpu.matmul %90, %92, %cst_110 {dimension_numbers = #tpu.dot_dimension_numbers<[1], [0], [0], [1], [0, 0, 1, 1], [], []>} : vector<32x128xbf16>, vector<128x128xbf16>, vector<32x128xf32> -> vector<32x128xf32>
    %94 = arith.addf %88, %93 : vector<32x128xf32>
    %c0_111 = arith.constant 0 : index
    %c0_112 = arith.constant 0 : index
    %c16 = arith.constant 16 : index
    %c0_113 = arith.constant 0 : index
    %95 = vector.load %arg2[%c0_111, %c0_112, %c16, %c0_113] : memref<1x1x48x128xbf16, #tpu.memory_space<vmem>>, vector<1x1x32x128xbf16>
    %96 = vector.shape_cast %95 : vector<1x1x32x128xbf16> to vector<32x128xbf16>
    %c16_114 = arith.constant 16 : index
    %c0_115 = arith.constant 0 : index
    %c0_116 = arith.constant 0 : index
    %97 = vector.load %arg3[%c16_114, %c0_115, %c0_116] : memref<17x128x128xbf16, #tpu.memory_space<vmem>>, vector<1x128x128xbf16>
    %98 = vector.shape_cast %97 : vector<1x128x128xbf16> to vector<128x128xbf16>
    %cst_117 = arith.constant dense<0.000000e+00> : vector<32x128xf32>
    %99 = tpu.matmul %96, %98, %cst_117 {dimension_numbers = #tpu.dot_dimension_numbers<[1], [0], [0], [1], [0, 0, 1, 1], [], []>} : vector<32x128xbf16>, vector<128x128xbf16>, vector<32x128xf32> -> vector<32x128xf32>
    %100 = arith.addf %94, %99 : vector<32x128xf32>
    %c0_118 = arith.constant 0 : index
    %c0_119 = arith.constant 0 : index
    %101 = vector.load %arg4[%c0_118, %c0_119] : memref<1x128xf32, #tpu.memory_space<vmem>>, vector<1x128xf32>
    %102 = vector.broadcast %101 : vector<1x128xf32> to vector<32x128xf32>
    %103 = arith.mulf %100, %102 : vector<32x128xf32>
    %c0_120 = arith.constant 0 : index
    %c0_121 = arith.constant 0 : index
    %104 = vector.load %arg5[%c0_120, %c0_121] : memref<1x128xf32, #tpu.memory_space<vmem>>, vector<1x128xf32>
    %105 = vector.broadcast %104 : vector<1x128xf32> to vector<32x128xf32>
    %106 = arith.addf %103, %105 : vector<32x128xf32>
    %cst_122 = arith.constant 0.000000e+00 : f32
    %107 = vector.broadcast %cst_122 : f32 to vector<32x128xf32>
    %108 = arith.maximumf %106, %107 : vector<32x128xf32>
    %109 = arith.truncf %108 : vector<32x128xf32> to vector<32x128xbf16>
    %c0_123 = arith.constant 0 : index
    %c0_124 = arith.constant 0 : index
    %c0_125 = arith.constant 0 : index
    %110 = vector.load %arg6[%c0_123, %c0_124, %c0_125] : memref<1x32x128xbf16, #tpu.memory_space<vmem>>, vector<1x32x128xbf16>
    %111 = vector.shape_cast %110 : vector<1x32x128xbf16> to vector<32x128xbf16>
    %112 = vector.shape_cast %109 : vector<32x128xbf16> to vector<1x32x128xbf16>
    tpu.vector_store %arg6[%c0_123, %c0_124, %c0_125], %112 {strides = array<i32>} : memref<1x32x128xbf16, #tpu.memory_space<vmem>>, vector<1x32x128xbf16>,
    return
  }
  func.func @transform_0(%arg0: i32, %arg1: i32) -> (i32, i32, i32, i32) {
    %c0_i32 = arith.constant 0 : i32
    %c0_i32_0 = arith.constant 0 : i32
    %c0_i32_1 = arith.constant 0 : i32
    %c0_i32_2 = arith.constant 0 : i32
    return %arg0, %c0_i32, %c0_i32_0, %c0_i32_1 : i32, i32, i32, i32
  }
  func.func @transform_1(%arg0: i32, %arg1: i32) -> (i32, i32, i32) {
    %c0_i32 = arith.constant 0 : i32
    %c0_i32_0 = arith.constant 0 : i32
    %c0_i32_1 = arith.constant 0 : i32
    return %c0_i32, %c0_i32_0, %arg1 : i32, i32, i32
  }
  func.func @transform_2(%arg0: i32, %arg1: i32) -> (i32, i32) {
    %c0_i32 = arith.constant 0 : i32
    %c0_i32_0 = arith.constant 0 : i32
    return %c0_i32, %arg1 : i32, i32
  }
  func.func @transform_3(%arg0: i32, %arg1: i32) -> (i32, i32) {
    %c0_i32 = arith.constant 0 : i32
    %c0_i32_0 = arith.constant 0 : i32
    return %c0_i32, %arg1 : i32, i32
  }
  func.func @transform_4(%arg0: i32, %arg1: i32) -> (i32, i32, i32) {
    %c0_i32 = arith.constant 0 : i32
    %c0_i32_0 = arith.constant 0 : i32
    return %arg0, %c0_i32, %arg1 : i32, i32, i32
  }
}

module attributes {stable_mosaic.version = 11 : i64} {
  func.func @_conv_bn_kernel(%arg0: i32, %arg1: i32, %arg2: memref<1x1x48x128xbf16, #tpu.memory_space<vmem>>, %arg3: memref<17x128x128xbf16, #tpu.memory_space<vmem>>, %arg4: memref<1x128xf32, #tpu.memory_space<vmem>>, %arg5: memref<1x128xf32, #tpu.memory_space<vmem>>, %arg6: memref<1x1x32x128xbf16, #tpu.memory_space<vmem>>, %arg7: memref<1x32x128xbf16, #tpu.memory_space<vmem>>, %arg8: memref<1x32x128xbf16, #tpu.memory_space<vmem>>) attributes {dimension_semantics = [#tpu.dimension_semantics<parallel>, #tpu.dimension_semantics<parallel>], iteration_bounds = array<i64: 2, 1>, scalar_prefetch = 0 : i64, scratch_operands = 0 : i64, tpu.core_type = #tpu.core_type<tc>, window_params = [{transform_indices = @transform_0, window_bounds = array<i64: 1, 1, 48, 128>}, {transform_indices = @transform_1, window_bounds = array<i64: 17, 128, 128>}, {transform_indices = @transform_2, window_bounds = array<i64: 1, 128>}, {transform_indices = @transform_3, window_bounds = array<i64: 1, 128>}, {transform_indices = @transform_4, window_bounds = array<i64: 1, 1, 32, 128>}, {transform_indices = @transform_5, window_bounds = array<i64: 1, 32, 128>}, {transform_indices = @transform_6, window_bounds = array<i64: 1, 32, 128>}]} {
    %c0 = arith.constant 0 : index
    %c0_0 = arith.constant 0 : index
    %c0_1 = arith.constant 0 : index
    %c0_2 = arith.constant 0 : index
    %0 = vector.load %arg2[%c0, %c0_0, %c0_1, %c0_2] : memref<1x1x48x128xbf16, #tpu.memory_space<vmem>>, vector<1x1x32x128xbf16>
    %1 = vector.shape_cast %0 : vector<1x1x32x128xbf16> to vector<32x128xbf16>
    %c0_3 = arith.constant 0 : index
    %c0_4 = arith.constant 0 : index
    %c0_5 = arith.constant 0 : index
    %2 = vector.load %arg3[%c0_3, %c0_4, %c0_5] : memref<17x128x128xbf16, #tpu.memory_space<vmem>>, vector<1x128x128xbf16>
    %3 = vector.shape_cast %2 : vector<1x128x128xbf16> to vector<128x128xbf16>
    %cst = arith.constant dense<0.000000e+00> : vector<32x128xf32>
    %4 = tpu.matmul %1, %3, %cst {dimension_numbers = #tpu.dot_dimension_numbers<[1], [0], [0], [1], [0, 0, 1, 1], [], []>} : vector<32x128xbf16>, vector<128x128xbf16>, vector<32x128xf32> -> vector<32x128xf32>
    %c0_6 = arith.constant 0 : index
    %c0_7 = arith.constant 0 : index
    %c1 = arith.constant 1 : index
    %c0_8 = arith.constant 0 : index
    %5 = vector.load %arg2[%c0_6, %c0_7, %c1, %c0_8] : memref<1x1x48x128xbf16, #tpu.memory_space<vmem>>, vector<1x1x32x128xbf16>
    %6 = vector.shape_cast %5 : vector<1x1x32x128xbf16> to vector<32x128xbf16>
    %c1_9 = arith.constant 1 : index
    %c0_10 = arith.constant 0 : index
    %c0_11 = arith.constant 0 : index
    %7 = vector.load %arg3[%c1_9, %c0_10, %c0_11] : memref<17x128x128xbf16, #tpu.memory_space<vmem>>, vector<1x128x128xbf16>
    %8 = vector.shape_cast %7 : vector<1x128x128xbf16> to vector<128x128xbf16>
    %cst_12 = arith.constant dense<0.000000e+00> : vector<32x128xf32>
    %9 = tpu.matmul %6, %8, %cst_12 {dimension_numbers = #tpu.dot_dimension_numbers<[1], [0], [0], [1], [0, 0, 1, 1], [], []>} : vector<32x128xbf16>, vector<128x128xbf16>, vector<32x128xf32> -> vector<32x128xf32>
    %10 = arith.addf %4, %9 : vector<32x128xf32>
    %c0_13 = arith.constant 0 : index
    %c0_14 = arith.constant 0 : index
    %c2 = arith.constant 2 : index
    %c0_15 = arith.constant 0 : index
    %11 = vector.load %arg2[%c0_13, %c0_14, %c2, %c0_15] : memref<1x1x48x128xbf16, #tpu.memory_space<vmem>>, vector<1x1x32x128xbf16>
    %12 = vector.shape_cast %11 : vector<1x1x32x128xbf16> to vector<32x128xbf16>
    %c2_16 = arith.constant 2 : index
    %c0_17 = arith.constant 0 : index
    %c0_18 = arith.constant 0 : index
    %13 = vector.load %arg3[%c2_16, %c0_17, %c0_18] : memref<17x128x128xbf16, #tpu.memory_space<vmem>>, vector<1x128x128xbf16>
    %14 = vector.shape_cast %13 : vector<1x128x128xbf16> to vector<128x128xbf16>
    %cst_19 = arith.constant dense<0.000000e+00> : vector<32x128xf32>
    %15 = tpu.matmul %12, %14, %cst_19 {dimension_numbers = #tpu.dot_dimension_numbers<[1], [0], [0], [1], [0, 0, 1, 1], [], []>} : vector<32x128xbf16>, vector<128x128xbf16>, vector<32x128xf32> -> vector<32x128xf32>
    %16 = arith.addf %10, %15 : vector<32x128xf32>
    %c0_20 = arith.constant 0 : index
    %c0_21 = arith.constant 0 : index
    %c3 = arith.constant 3 : index
    %c0_22 = arith.constant 0 : index
    %17 = vector.load %arg2[%c0_20, %c0_21, %c3, %c0_22] : memref<1x1x48x128xbf16, #tpu.memory_space<vmem>>, vector<1x1x32x128xbf16>
    %18 = vector.shape_cast %17 : vector<1x1x32x128xbf16> to vector<32x128xbf16>
    %c3_23 = arith.constant 3 : index
    %c0_24 = arith.constant 0 : index
    %c0_25 = arith.constant 0 : index
    %19 = vector.load %arg3[%c3_23, %c0_24, %c0_25] : memref<17x128x128xbf16, #tpu.memory_space<vmem>>, vector<1x128x128xbf16>
    %20 = vector.shape_cast %19 : vector<1x128x128xbf16> to vector<128x128xbf16>
    %cst_26 = arith.constant dense<0.000000e+00> : vector<32x128xf32>
    %21 = tpu.matmul %18, %20, %cst_26 {dimension_numbers = #tpu.dot_dimension_numbers<[1], [0], [0], [1], [0, 0, 1, 1], [], []>} : vector<32x128xbf16>, vector<128x128xbf16>, vector<32x128xf32> -> vector<32x128xf32>
    %22 = arith.addf %16, %21 : vector<32x128xf32>
    %c0_27 = arith.constant 0 : index
    %c0_28 = arith.constant 0 : index
    %c4 = arith.constant 4 : index
    %c0_29 = arith.constant 0 : index
    %23 = vector.load %arg2[%c0_27, %c0_28, %c4, %c0_29] : memref<1x1x48x128xbf16, #tpu.memory_space<vmem>>, vector<1x1x32x128xbf16>
    %24 = vector.shape_cast %23 : vector<1x1x32x128xbf16> to vector<32x128xbf16>
    %c4_30 = arith.constant 4 : index
    %c0_31 = arith.constant 0 : index
    %c0_32 = arith.constant 0 : index
    %25 = vector.load %arg3[%c4_30, %c0_31, %c0_32] : memref<17x128x128xbf16, #tpu.memory_space<vmem>>, vector<1x128x128xbf16>
    %26 = vector.shape_cast %25 : vector<1x128x128xbf16> to vector<128x128xbf16>
    %cst_33 = arith.constant dense<0.000000e+00> : vector<32x128xf32>
    %27 = tpu.matmul %24, %26, %cst_33 {dimension_numbers = #tpu.dot_dimension_numbers<[1], [0], [0], [1], [0, 0, 1, 1], [], []>} : vector<32x128xbf16>, vector<128x128xbf16>, vector<32x128xf32> -> vector<32x128xf32>
    %28 = arith.addf %22, %27 : vector<32x128xf32>
    %c0_34 = arith.constant 0 : index
    %c0_35 = arith.constant 0 : index
    %c5 = arith.constant 5 : index
    %c0_36 = arith.constant 0 : index
    %29 = vector.load %arg2[%c0_34, %c0_35, %c5, %c0_36] : memref<1x1x48x128xbf16, #tpu.memory_space<vmem>>, vector<1x1x32x128xbf16>
    %30 = vector.shape_cast %29 : vector<1x1x32x128xbf16> to vector<32x128xbf16>
    %c5_37 = arith.constant 5 : index
    %c0_38 = arith.constant 0 : index
    %c0_39 = arith.constant 0 : index
    %31 = vector.load %arg3[%c5_37, %c0_38, %c0_39] : memref<17x128x128xbf16, #tpu.memory_space<vmem>>, vector<1x128x128xbf16>
    %32 = vector.shape_cast %31 : vector<1x128x128xbf16> to vector<128x128xbf16>
    %cst_40 = arith.constant dense<0.000000e+00> : vector<32x128xf32>
    %33 = tpu.matmul %30, %32, %cst_40 {dimension_numbers = #tpu.dot_dimension_numbers<[1], [0], [0], [1], [0, 0, 1, 1], [], []>} : vector<32x128xbf16>, vector<128x128xbf16>, vector<32x128xf32> -> vector<32x128xf32>
    %34 = arith.addf %28, %33 : vector<32x128xf32>
    %c0_41 = arith.constant 0 : index
    %c0_42 = arith.constant 0 : index
    %c6 = arith.constant 6 : index
    %c0_43 = arith.constant 0 : index
    %35 = vector.load %arg2[%c0_41, %c0_42, %c6, %c0_43] : memref<1x1x48x128xbf16, #tpu.memory_space<vmem>>, vector<1x1x32x128xbf16>
    %36 = vector.shape_cast %35 : vector<1x1x32x128xbf16> to vector<32x128xbf16>
    %c6_44 = arith.constant 6 : index
    %c0_45 = arith.constant 0 : index
    %c0_46 = arith.constant 0 : index
    %37 = vector.load %arg3[%c6_44, %c0_45, %c0_46] : memref<17x128x128xbf16, #tpu.memory_space<vmem>>, vector<1x128x128xbf16>
    %38 = vector.shape_cast %37 : vector<1x128x128xbf16> to vector<128x128xbf16>
    %cst_47 = arith.constant dense<0.000000e+00> : vector<32x128xf32>
    %39 = tpu.matmul %36, %38, %cst_47 {dimension_numbers = #tpu.dot_dimension_numbers<[1], [0], [0], [1], [0, 0, 1, 1], [], []>} : vector<32x128xbf16>, vector<128x128xbf16>, vector<32x128xf32> -> vector<32x128xf32>
    %40 = arith.addf %34, %39 : vector<32x128xf32>
    %c0_48 = arith.constant 0 : index
    %c0_49 = arith.constant 0 : index
    %c7 = arith.constant 7 : index
    %c0_50 = arith.constant 0 : index
    %41 = vector.load %arg2[%c0_48, %c0_49, %c7, %c0_50] : memref<1x1x48x128xbf16, #tpu.memory_space<vmem>>, vector<1x1x32x128xbf16>
    %42 = vector.shape_cast %41 : vector<1x1x32x128xbf16> to vector<32x128xbf16>
    %c7_51 = arith.constant 7 : index
    %c0_52 = arith.constant 0 : index
    %c0_53 = arith.constant 0 : index
    %43 = vector.load %arg3[%c7_51, %c0_52, %c0_53] : memref<17x128x128xbf16, #tpu.memory_space<vmem>>, vector<1x128x128xbf16>
    %44 = vector.shape_cast %43 : vector<1x128x128xbf16> to vector<128x128xbf16>
    %cst_54 = arith.constant dense<0.000000e+00> : vector<32x128xf32>
    %45 = tpu.matmul %42, %44, %cst_54 {dimension_numbers = #tpu.dot_dimension_numbers<[1], [0], [0], [1], [0, 0, 1, 1], [], []>} : vector<32x128xbf16>, vector<128x128xbf16>, vector<32x128xf32> -> vector<32x128xf32>
    %46 = arith.addf %40, %45 : vector<32x128xf32>
    %c0_55 = arith.constant 0 : index
    %c0_56 = arith.constant 0 : index
    %c8 = arith.constant 8 : index
    %c0_57 = arith.constant 0 : index
    %47 = vector.load %arg2[%c0_55, %c0_56, %c8, %c0_57] : memref<1x1x48x128xbf16, #tpu.memory_space<vmem>>, vector<1x1x32x128xbf16>
    %48 = vector.shape_cast %47 : vector<1x1x32x128xbf16> to vector<32x128xbf16>
    %c8_58 = arith.constant 8 : index
    %c0_59 = arith.constant 0 : index
    %c0_60 = arith.constant 0 : index
    %49 = vector.load %arg3[%c8_58, %c0_59, %c0_60] : memref<17x128x128xbf16, #tpu.memory_space<vmem>>, vector<1x128x128xbf16>
    %50 = vector.shape_cast %49 : vector<1x128x128xbf16> to vector<128x128xbf16>
    %cst_61 = arith.constant dense<0.000000e+00> : vector<32x128xf32>
    %51 = tpu.matmul %48, %50, %cst_61 {dimension_numbers = #tpu.dot_dimension_numbers<[1], [0], [0], [1], [0, 0, 1, 1], [], []>} : vector<32x128xbf16>, vector<128x128xbf16>, vector<32x128xf32> -> vector<32x128xf32>
    %52 = arith.addf %46, %51 : vector<32x128xf32>
    %c0_62 = arith.constant 0 : index
    %c0_63 = arith.constant 0 : index
    %c9 = arith.constant 9 : index
    %c0_64 = arith.constant 0 : index
    %53 = vector.load %arg2[%c0_62, %c0_63, %c9, %c0_64] : memref<1x1x48x128xbf16, #tpu.memory_space<vmem>>, vector<1x1x32x128xbf16>
    %54 = vector.shape_cast %53 : vector<1x1x32x128xbf16> to vector<32x128xbf16>
    %c9_65 = arith.constant 9 : index
    %c0_66 = arith.constant 0 : index
    %c0_67 = arith.constant 0 : index
    %55 = vector.load %arg3[%c9_65, %c0_66, %c0_67] : memref<17x128x128xbf16, #tpu.memory_space<vmem>>, vector<1x128x128xbf16>
    %56 = vector.shape_cast %55 : vector<1x128x128xbf16> to vector<128x128xbf16>
    %cst_68 = arith.constant dense<0.000000e+00> : vector<32x128xf32>
    %57 = tpu.matmul %54, %56, %cst_68 {dimension_numbers = #tpu.dot_dimension_numbers<[1], [0], [0], [1], [0, 0, 1, 1], [], []>} : vector<32x128xbf16>, vector<128x128xbf16>, vector<32x128xf32> -> vector<32x128xf32>
    %58 = arith.addf %52, %57 : vector<32x128xf32>
    %c0_69 = arith.constant 0 : index
    %c0_70 = arith.constant 0 : index
    %c10 = arith.constant 10 : index
    %c0_71 = arith.constant 0 : index
    %59 = vector.load %arg2[%c0_69, %c0_70, %c10, %c0_71] : memref<1x1x48x128xbf16, #tpu.memory_space<vmem>>, vector<1x1x32x128xbf16>
    %60 = vector.shape_cast %59 : vector<1x1x32x128xbf16> to vector<32x128xbf16>
    %c10_72 = arith.constant 10 : index
    %c0_73 = arith.constant 0 : index
    %c0_74 = arith.constant 0 : index
    %61 = vector.load %arg3[%c10_72, %c0_73, %c0_74] : memref<17x128x128xbf16, #tpu.memory_space<vmem>>, vector<1x128x128xbf16>
    %62 = vector.shape_cast %61 : vector<1x128x128xbf16> to vector<128x128xbf16>
    %cst_75 = arith.constant dense<0.000000e+00> : vector<32x128xf32>
    %63 = tpu.matmul %60, %62, %cst_75 {dimension_numbers = #tpu.dot_dimension_numbers<[1], [0], [0], [1], [0, 0, 1, 1], [], []>} : vector<32x128xbf16>, vector<128x128xbf16>, vector<32x128xf32> -> vector<32x128xf32>
    %64 = arith.addf %58, %63 : vector<32x128xf32>
    %c0_76 = arith.constant 0 : index
    %c0_77 = arith.constant 0 : index
    %c11 = arith.constant 11 : index
    %c0_78 = arith.constant 0 : index
    %65 = vector.load %arg2[%c0_76, %c0_77, %c11, %c0_78] : memref<1x1x48x128xbf16, #tpu.memory_space<vmem>>, vector<1x1x32x128xbf16>
    %66 = vector.shape_cast %65 : vector<1x1x32x128xbf16> to vector<32x128xbf16>
    %c11_79 = arith.constant 11 : index
    %c0_80 = arith.constant 0 : index
    %c0_81 = arith.constant 0 : index
    %67 = vector.load %arg3[%c11_79, %c0_80, %c0_81] : memref<17x128x128xbf16, #tpu.memory_space<vmem>>, vector<1x128x128xbf16>
    %68 = vector.shape_cast %67 : vector<1x128x128xbf16> to vector<128x128xbf16>
    %cst_82 = arith.constant dense<0.000000e+00> : vector<32x128xf32>
    %69 = tpu.matmul %66, %68, %cst_82 {dimension_numbers = #tpu.dot_dimension_numbers<[1], [0], [0], [1], [0, 0, 1, 1], [], []>} : vector<32x128xbf16>, vector<128x128xbf16>, vector<32x128xf32> -> vector<32x128xf32>
    %70 = arith.addf %64, %69 : vector<32x128xf32>
    %c0_83 = arith.constant 0 : index
    %c0_84 = arith.constant 0 : index
    %c12 = arith.constant 12 : index
    %c0_85 = arith.constant 0 : index
    %71 = vector.load %arg2[%c0_83, %c0_84, %c12, %c0_85] : memref<1x1x48x128xbf16, #tpu.memory_space<vmem>>, vector<1x1x32x128xbf16>
    %72 = vector.shape_cast %71 : vector<1x1x32x128xbf16> to vector<32x128xbf16>
    %c12_86 = arith.constant 12 : index
    %c0_87 = arith.constant 0 : index
    %c0_88 = arith.constant 0 : index
    %73 = vector.load %arg3[%c12_86, %c0_87, %c0_88] : memref<17x128x128xbf16, #tpu.memory_space<vmem>>, vector<1x128x128xbf16>
    %74 = vector.shape_cast %73 : vector<1x128x128xbf16> to vector<128x128xbf16>
    %cst_89 = arith.constant dense<0.000000e+00> : vector<32x128xf32>
    %75 = tpu.matmul %72, %74, %cst_89 {dimension_numbers = #tpu.dot_dimension_numbers<[1], [0], [0], [1], [0, 0, 1, 1], [], []>} : vector<32x128xbf16>, vector<128x128xbf16>, vector<32x128xf32> -> vector<32x128xf32>
    %76 = arith.addf %70, %75 : vector<32x128xf32>
    %c0_90 = arith.constant 0 : index
    %c0_91 = arith.constant 0 : index
    %c13 = arith.constant 13 : index
    %c0_92 = arith.constant 0 : index
    %77 = vector.load %arg2[%c0_90, %c0_91, %c13, %c0_92] : memref<1x1x48x128xbf16, #tpu.memory_space<vmem>>, vector<1x1x32x128xbf16>
    %78 = vector.shape_cast %77 : vector<1x1x32x128xbf16> to vector<32x128xbf16>
    %c13_93 = arith.constant 13 : index
    %c0_94 = arith.constant 0 : index
    %c0_95 = arith.constant 0 : index
    %79 = vector.load %arg3[%c13_93, %c0_94, %c0_95] : memref<17x128x128xbf16, #tpu.memory_space<vmem>>, vector<1x128x128xbf16>
    %80 = vector.shape_cast %79 : vector<1x128x128xbf16> to vector<128x128xbf16>
    %cst_96 = arith.constant dense<0.000000e+00> : vector<32x128xf32>
    %81 = tpu.matmul %78, %80, %cst_96 {dimension_numbers = #tpu.dot_dimension_numbers<[1], [0], [0], [1], [0, 0, 1, 1], [], []>} : vector<32x128xbf16>, vector<128x128xbf16>, vector<32x128xf32> -> vector<32x128xf32>
    %82 = arith.addf %76, %81 : vector<32x128xf32>
    %c0_97 = arith.constant 0 : index
    %c0_98 = arith.constant 0 : index
    %c14 = arith.constant 14 : index
    %c0_99 = arith.constant 0 : index
    %83 = vector.load %arg2[%c0_97, %c0_98, %c14, %c0_99] : memref<1x1x48x128xbf16, #tpu.memory_space<vmem>>, vector<1x1x32x128xbf16>
    %84 = vector.shape_cast %83 : vector<1x1x32x128xbf16> to vector<32x128xbf16>
    %c14_100 = arith.constant 14 : index
    %c0_101 = arith.constant 0 : index
    %c0_102 = arith.constant 0 : index
    %85 = vector.load %arg3[%c14_100, %c0_101, %c0_102] : memref<17x128x128xbf16, #tpu.memory_space<vmem>>, vector<1x128x128xbf16>
    %86 = vector.shape_cast %85 : vector<1x128x128xbf16> to vector<128x128xbf16>
    %cst_103 = arith.constant dense<0.000000e+00> : vector<32x128xf32>
    %87 = tpu.matmul %84, %86, %cst_103 {dimension_numbers = #tpu.dot_dimension_numbers<[1], [0], [0], [1], [0, 0, 1, 1], [], []>} : vector<32x128xbf16>, vector<128x128xbf16>, vector<32x128xf32> -> vector<32x128xf32>
    %88 = arith.addf %82, %87 : vector<32x128xf32>
    %c0_104 = arith.constant 0 : index
    %c0_105 = arith.constant 0 : index
    %c15 = arith.constant 15 : index
    %c0_106 = arith.constant 0 : index
    %89 = vector.load %arg2[%c0_104, %c0_105, %c15, %c0_106] : memref<1x1x48x128xbf16, #tpu.memory_space<vmem>>, vector<1x1x32x128xbf16>
    %90 = vector.shape_cast %89 : vector<1x1x32x128xbf16> to vector<32x128xbf16>
    %c15_107 = arith.constant 15 : index
    %c0_108 = arith.constant 0 : index
    %c0_109 = arith.constant 0 : index
    %91 = vector.load %arg3[%c15_107, %c0_108, %c0_109] : memref<17x128x128xbf16, #tpu.memory_space<vmem>>, vector<1x128x128xbf16>
    %92 = vector.shape_cast %91 : vector<1x128x128xbf16> to vector<128x128xbf16>
    %cst_110 = arith.constant dense<0.000000e+00> : vector<32x128xf32>
    %93 = tpu.matmul %90, %92, %cst_110 {dimension_numbers = #tpu.dot_dimension_numbers<[1], [0], [0], [1], [0, 0, 1, 1], [], []>} : vector<32x128xbf16>, vector<128x128xbf16>, vector<32x128xf32> -> vector<32x128xf32>
    %94 = arith.addf %88, %93 : vector<32x128xf32>
    %c0_111 = arith.constant 0 : index
    %c0_112 = arith.constant 0 : index
    %c16 = arith.constant 16 : index
    %c0_113 = arith.constant 0 : index
    %95 = vector.load %arg2[%c0_111, %c0_112, %c16, %c0_113] : memref<1x1x48x128xbf16, #tpu.memory_space<vmem>>, vector<1x1x32x128xbf16>
    %96 = vector.shape_cast %95 : vector<1x1x32x128xbf16> to vector<32x128xbf16>
    %c16_114 = arith.constant 16 : index
    %c0_115 = arith.constant 0 : index
    %c0_116 = arith.constant 0 : index
    %97 = vector.load %arg3[%c16_114, %c0_115, %c0_116] : memref<17x128x128xbf16, #tpu.memory_space<vmem>>, vector<1x128x128xbf16>
    %98 = vector.shape_cast %97 : vector<1x128x128xbf16> to vector<128x128xbf16>
    %cst_117 = arith.constant dense<0.000000e+00> : vector<32x128xf32>
    %99 = tpu.matmul %96, %98, %cst_117 {dimension_numbers = #tpu.dot_dimension_numbers<[1], [0], [0], [1], [0, 0, 1, 1], [], []>} : vector<32x128xbf16>, vector<128x128xbf16>, vector<32x128xf32> -> vector<32x128xf32>
    %100 = arith.addf %94, %99 : vector<32x128xf32>
    %c0_118 = arith.constant 0 : index
    %c0_119 = arith.constant 0 : index
    %c0_120 = arith.constant 0 : index
    %c0_121 = arith.constant 0 : index
    %101 = vector.load %arg6[%c0_118, %c0_119, %c0_120, %c0_121] : memref<1x1x32x128xbf16, #tpu.memory_space<vmem>>, vector<1x1x32x128xbf16>
    %102 = vector.shape_cast %101 : vector<1x1x32x128xbf16> to vector<32x128xbf16>
    %103 = arith.extf %102 : vector<32x128xbf16> to vector<32x128xf32>
    %104 = arith.addf %100, %103 : vector<32x128xf32>
    %105 = arith.truncf %104 : vector<32x128xf32> to vector<32x128xbf16>
    %c0_122 = arith.constant 0 : index
    %c0_123 = arith.constant 0 : index
    %c0_124 = arith.constant 0 : index
    %106 = vector.load %arg8[%c0_122, %c0_123, %c0_124] : memref<1x32x128xbf16, #tpu.memory_space<vmem>>, vector<1x32x128xbf16>
    %107 = vector.shape_cast %106 : vector<1x32x128xbf16> to vector<32x128xbf16>
    %108 = vector.shape_cast %105 : vector<32x128xbf16> to vector<1x32x128xbf16>
    tpu.vector_store %arg8[%c0_122, %c0_123, %c0_124], %108 {strides = array<i32>} : memref<1x32x128xbf16, #tpu.memory_space<vmem>>, vector<1x32x128xbf16>,
    %c0_125 = arith.constant 0 : index
    %c0_126 = arith.constant 0 : index
    %109 = vector.load %arg4[%c0_125, %c0_126] : memref<1x128xf32, #tpu.memory_space<vmem>>, vector<1x128xf32>
    %110 = vector.broadcast %109 : vector<1x128xf32> to vector<32x128xf32>
    %111 = arith.mulf %104, %110 : vector<32x128xf32>
    %c0_127 = arith.constant 0 : index
    %c0_128 = arith.constant 0 : index
    %112 = vector.load %arg5[%c0_127, %c0_128] : memref<1x128xf32, #tpu.memory_space<vmem>>, vector<1x128xf32>
    %113 = vector.broadcast %112 : vector<1x128xf32> to vector<32x128xf32>
    %114 = arith.addf %111, %113 : vector<32x128xf32>
    %cst_129 = arith.constant 0.000000e+00 : f32
    %115 = vector.broadcast %cst_129 : f32 to vector<32x128xf32>
    %116 = arith.maximumf %114, %115 : vector<32x128xf32>
    %117 = arith.truncf %116 : vector<32x128xf32> to vector<32x128xbf16>
    %c0_130 = arith.constant 0 : index
    %c0_131 = arith.constant 0 : index
    %c0_132 = arith.constant 0 : index
    %118 = vector.load %arg7[%c0_130, %c0_131, %c0_132] : memref<1x32x128xbf16, #tpu.memory_space<vmem>>, vector<1x32x128xbf16>
    %119 = vector.shape_cast %118 : vector<1x32x128xbf16> to vector<32x128xbf16>
    %120 = vector.shape_cast %117 : vector<32x128xbf16> to vector<1x32x128xbf16>
    tpu.vector_store %arg7[%c0_130, %c0_131, %c0_132], %120 {strides = array<i32>} : memref<1x32x128xbf16, #tpu.memory_space<vmem>>, vector<1x32x128xbf16>,
    return
  }
  func.func @transform_0(%arg0: i32, %arg1: i32) -> (i32, i32, i32, i32) {
    %c0_i32 = arith.constant 0 : i32
    %c0_i32_0 = arith.constant 0 : i32
    %c0_i32_1 = arith.constant 0 : i32
    %c0_i32_2 = arith.constant 0 : i32
    return %arg0, %c0_i32, %c0_i32_0, %c0_i32_1 : i32, i32, i32, i32
  }
  func.func @transform_1(%arg0: i32, %arg1: i32) -> (i32, i32, i32) {
    %c0_i32 = arith.constant 0 : i32
    %c0_i32_0 = arith.constant 0 : i32
    %c0_i32_1 = arith.constant 0 : i32
    return %c0_i32, %c0_i32_0, %arg1 : i32, i32, i32
  }
  func.func @transform_2(%arg0: i32, %arg1: i32) -> (i32, i32) {
    %c0_i32 = arith.constant 0 : i32
    %c0_i32_0 = arith.constant 0 : i32
    return %c0_i32, %arg1 : i32, i32
  }
  func.func @transform_3(%arg0: i32, %arg1: i32) -> (i32, i32) {
    %c0_i32 = arith.constant 0 : i32
    %c0_i32_0 = arith.constant 0 : i32
    return %c0_i32, %arg1 : i32, i32
  }
  func.func @transform_4(%arg0: i32, %arg1: i32) -> (i32, i32, i32, i32) {
    %c0_i32 = arith.constant 0 : i32
    %c0_i32_0 = arith.constant 0 : i32
    %c0_i32_1 = arith.constant 0 : i32
    return %arg0, %c0_i32, %c0_i32_0, %arg1 : i32, i32, i32, i32
  }
  func.func @transform_5(%arg0: i32, %arg1: i32) -> (i32, i32, i32) {
    %c0_i32 = arith.constant 0 : i32
    %c0_i32_0 = arith.constant 0 : i32
    return %arg0, %c0_i32, %arg1 : i32, i32, i32
  }
  func.func @transform_6(%arg0: i32, %arg1: i32) -> (i32, i32, i32) {
    %c0_i32 = arith.constant 0 : i32
    %c0_i32_0 = arith.constant 0 : i32
    return %arg0, %c0_i32, %arg1 : i32, i32, i32
  }
}

</mosaic_0001>

<llo_original>
// kernel: resnet1d_forward.5
$region0: #{resnet1d_forward.5}
  #allocation0 [shape = 'u32[]', space=smem, size = 0x4, offset = 0x4, fixed_abs, tag = 'smem constant byte address 0x4 - core index']
  #allocation1 [shape = 'u32[72,128]{1,0:T(1,128)}', space=vmem, size = 0x9000, scoped, tag = 'internal scratch']
  %s0 = inlined_call_operand.vmem [shape: bf16[2,2,40,128], index: 0, kind: input, shape index: {}]
  %s1 = inlined_call_operand.hbm [shape: bf16[17,128,128], index: 1, kind: input, shape index: {}]
  %s2 = inlined_call_operand.vmem [shape: f32[1,128], index: 2, kind: input, shape index: {}]
  %s3 = inlined_call_operand.vmem [shape: f32[1,128], index: 3, kind: input, shape index: {}]
  %s4 = inlined_call_operand.vmem [shape: bf16[2,32,128], index: 4, kind: output, shape index: {}]
  %s5 = sld [smem:[#allocation0]]
  $region53: #{resnet1d_forward.5} parent=0
    _
  %s7 = ssub.s32 1, %s5
  %s8 = scalar_select 0, %s7, %s5
  $region1: #{resnet1d_forward.5} parent=0
    #allocation2 [shape = 'u8[557056]{0}', space=vmem, size = 0x88000, scoped, tag = 'input window, operand 1, single buffered']
    #allocation3 [shape = 's32[2]{0}', space=sflag, size = 0x8, scoped, tag = 'scoped memory for resnet1d_forward.5']
    %9 = vsyncpa [#allocation3], 0
    loop: start=0, step=1, limit=4
    $region2: #{resnet1d_forward.5} parent=1 // loop_pre_header
      _
    $region3: #{resnet1d_forward.5} parent=1 // loop_header
      %s11 = sphi 0, %s15
      %p12 = scmp.ge.s32.totalorder %s11, 4
      %s18 = sphi 0, %s30
      %s19 = sphi 0, %s26
      %s20 = sphi 0, %s18
      %s21 = sphi 0, %s19
      %s22 = sphi 0, %s20
      %s23 = sphi 0, %s21
      %s33 = sphi 0, %s35
      %s36 = sphi 0, %s33
      %s37 = sphi 0, %s36
      %s53 = sphi 0, %s37
      %s59 = sphi 0, %s61
      %s62 = sphi 0, %s59
      %s63 = sphi 0, %s62
      %s79 = sphi 0, %s63
      %s85 = sphi 0, %s87
      %s88 = sphi 0, %s85
      %s89 = sphi 0, %s88
      %s105 = sphi 0, %s89
      %s111 = sphi 0, %s113
      %s114 = sphi 0, %s111
      %s115 = sphi 0, %s114
      %s131 = sphi 0, %s115
      %s139 = sphi 0, %s141
      %s142 = sphi 0, %s139
      %s143 = sphi 0, %s142
      %s159 = sphi 0, %s143
    $region4: #{resnet1d_forward.5} parent=1 // loop_header_branch
      %14 = sbr.rel (%p12) target = $region8
    $region5: #{resnet1d_forward.5} parent=1 // loop_body
      %s16 = ssub.s32 %s11, 1
      %s17 = ssub.s32 %s11, 2
      %s24 = sadd.s32 1, %s19
      %p25 = scmp.ge.s32.totalorder %s24, 1
      %s26 = scalar_select %p25, 0, %s24
      %s27 = sadd.s32 1, %s18
      %s28 = scalar_select %p25, %s27, %s18
      %p29 = scmp.ge.s32.totalorder %s28, 2
      %s30 = scalar_select %p29, 0, %s28
      %s31 = ssub.s32 %s18, %s30
      %p32 = scmp.eq.s32.totalorder %s31, 0
      %s34 = sadd.s32 %s33, 1
      %s35 = scalar_select %p32, %s33, %s34
      %p38 = pneg %p32
      %p39 = scmp.eq.s32.totalorder %s11, 1
      %p40 = por %p38, %p39
      %p41 = scmp.ne.s32.totalorder %s33, %s36
      %p42 = scmp.eq.s32.totalorder %s11, 0
      %p43 = por %p41, %p42
      %p44 = scmp.ne.s32.totalorder %s33, %s36
      %p45 = scmp.eq.s32.totalorder %s16, 1
      %p46 = por %p44, %p45
      %p47 = scmp.ne.s32.totalorder %s36, %s37
      %p48 = scmp.eq.s32.totalorder %s16, 0
      %p49 = por %p47, %p48
      %p50 = scmp.ne.s32.totalorder %s36, %s37
      %p51 = scmp.eq.s32.totalorder %s17, 1
      %p52 = por %p50, %p51
      %p54 = scmp.ne.s32.totalorder %s37, %s53
      %p55 = scmp.eq.s32.totalorder %s17, 0
      %p56 = por %p54, %p55
      %s57 = ssub.s32 %s19, %s26
      %p58 = scmp.eq.s32.totalorder %s57, 0
      %s60 = sadd.s32 %s59, 1
      %s61 = scalar_select %p58, %s59, %s60
      %p64 = pneg %p58
      %p65 = scmp.eq.s32.totalorder %s11, 1
      %p66 = por %p64, %p65
      %p67 = scmp.ne.s32.totalorder %s59, %s62
      %p68 = scmp.eq.s32.totalorder %s11, 0
      %p69 = por %p67, %p68
      %p70 = scmp.ne.s32.totalorder %s59, %s62
      %p71 = scmp.eq.s32.totalorder %s16, 1
      %p72 = por %p70, %p71
      %p73 = scmp.ne.s32.totalorder %s62, %s63
      %p74 = scmp.eq.s32.totalorder %s16, 0
      %p75 = por %p73, %p74
      %p76 = scmp.ne.s32.totalorder %s62, %s63
      %p77 = scmp.eq.s32.totalorder %s17, 1
      %p78 = por %p76, %p77
      %p80 = scmp.ne.s32.totalorder %s63, %s79
      %p81 = scmp.eq.s32.totalorder %s17, 0
      %p82 = por %p80, %p81
      %s83 = ssub.s32 %s19, %s26
      %p84 = scmp.eq.s32.totalorder %s83, 0
      %s86 = sadd.s32 %s85, 1
      %s87 = scalar_select %p84, %s85, %s86
      %p90 = pneg %p84
      %p91 = scmp.eq.s32.totalorder %s11, 1
      %p92 = por %p90, %p91
      %p93 = scmp.ne.s32.totalorder %s85, %s88
      %p94 = scmp.eq.s32.totalorder %s11, 0
      %p95 = por %p93, %p94
      %p96 = scmp.ne.s32.totalorder %s85, %s88
      %p97 = scmp.eq.s32.totalorder %s16, 1
      %p98 = por %p96, %p97
      %p99 = scmp.ne.s32.totalorder %s88, %s89
      %p100 = scmp.eq.s32.totalorder %s16, 0
      %p101 = por %p99, %p100
      %p102 = scmp.ne.s32.totalorder %s88, %s89
      %p103 = scmp.eq.s32.totalorder %s17, 1
      %p104 = por %p102, %p103
      %p106 = scmp.ne.s32.totalorder %s89, %s105
      %p107 = scmp.eq.s32.totalorder %s17, 0
      %p108 = por %p106, %p107
      %s109 = ssub.s32 %s19, %s26
      %p110 = scmp.eq.s32.totalorder %s109, 0
      %s112 = sadd.s32 %s111, 1
      %s113 = scalar_select %p110, %s111, %s112
      %p116 = pneg %p110
      %p117 = scmp.eq.s32.totalorder %s11, 1
      %p118 = por %p116, %p117
      %p119 = scmp.ne.s32.totalorder %s111, %s114
      %p120 = scmp.eq.s32.totalorder %s11, 0
      %p121 = por %p119, %p120
      %p122 = scmp.ne.s32.totalorder %s111, %s114
      %p123 = scmp.eq.s32.totalorder %s16, 1
      %p124 = por %p122, %p123
      %p125 = scmp.ne.s32.totalorder %s114, %s115
      %p126 = scmp.eq.s32.totalorder %s16, 0
      %p127 = por %p125, %p126
      %p128 = scmp.ne.s32.totalorder %s114, %s115
      %p129 = scmp.eq.s32.totalorder %s17, 1
      %p130 = por %p128, %p129
      %p132 = scmp.ne.s32.totalorder %s115, %s131
      %p133 = scmp.eq.s32.totalorder %s17, 0
      %p134 = por %p132, %p133
      %s135 = ssub.s32 %s18, %s30
      %s136 = ssub.s32 %s19, %s26
      %s137 = sor.u32 %s135, %s136
      %p138 = scmp.eq.s32.totalorder %s137, 0
      %s140 = sadd.s32 %s139, 1
      %s141 = scalar_select %p138, %s139, %s140
      %p144 = pneg %p138
      %p145 = scmp.eq.s32.totalorder %s11, 1
      %p146 = por %p144, %p145
      %p147 = scmp.ne.s32.totalorder %s139, %s142
      %p148 = scmp.eq.s32.totalorder %s11, 0
      %p149 = por %p147, %p148
      %p150 = scmp.ne.s32.totalorder %s139, %s142
      %p151 = scmp.eq.s32.totalorder %s16, 1
      %p152 = por %p150, %p151
      %p153 = scmp.ne.s32.totalorder %s142, %s143
      %p154 = scmp.eq.s32.totalorder %s16, 0
      %p155 = por %p153, %p154
      %p156 = scmp.ne.s32.totalorder %s142, %s143
      %p157 = scmp.eq.s32.totalorder %s17, 1
      %p158 = por %p156, %p157
      %p160 = scmp.ne.s32.totalorder %s143, %s159
      %p161 = scmp.eq.s32.totalorder %s17, 0
      %p162 = por %p160, %p161
      %p163 = scmp.le.s32.totalorder 1, %s11
      %p164 = scmp.lt.s32.totalorder %s11, 3
      %p165 = pnand %p163, %p164
      %p166 = pneg %p165
      // Predicated region
      $region9: #{resnet1d_forward.5} parent=5 // pred_check
        _
      $region10: #{resnet1d_forward.5} parent=5 // pred_check_branch
        %168 = sbr.rel (%p165) target = $region12
      $region11: #{resnet1d_forward.5} parent=5 // pred_region
        %s169 = ssub.s32 %s11, 1
        // Predicated region
        $region13: #{resnet1d_forward.5} parent=11 // pred_check
          %p170 = pneg %p75
        $region14: #{resnet1d_forward.5} parent=11 // pred_check_branch
          %172 = sbr.rel (%p170) target = $region16
        $region15: #{resnet1d_forward.5} parent=11 // pred_region
          %174 = vsyncadd [#allocation3], 0
          %s175 = smul.addr %s21, 4
          %s176 = scalar_lea.hbm %s1, %s175
          %s177 = sshll.u32 %s176, 4
          %s178 = int_to_ptr.hbm [resolvable:$true] %s177
          %s179 = sshll.u32 [#allocation2], 4
          %s180 = int_to_ptr.vmem [resolvable:$true] %s179
          %185 = dma.hbm_to_vmem [thread:$0]  %s178, 17408, %s180, [#allocation3], 64, 64, 4
        $region16: #{resnet1d_forward.5} parent=11 // pred_fallthru
          _
        // Predicated region
        $region17: #{resnet1d_forward.5} parent=11 // pred_check
          %p186 = pneg %p101
        $region18: #{resnet1d_forward.5} parent=11 // pred_check_branch
          %188 = sbr.rel (%p186) target = $region20
        $region19: #{resnet1d_forward.5} parent=11 // pred_region
          %p189 = scmp.lt.s32.totalorder %s21, 0
          %s190 = scalar_select %p189, %s21, 0
          %s191 = scalar_lea.vmem %s2, %s190
        $region20: #{resnet1d_forward.5} parent=11 // pred_fallthru
          _
        // Predicated region
        $region21: #{resnet1d_forward.5} parent=11 // pred_check
          %p192 = pneg %p127
        $region22: #{resnet1d_forward.5} parent=11 // pred_check_branch
          %194 = sbr.rel (%p192) target = $region24
        $region23: #{resnet1d_forward.5} parent=11 // pred_region
          %p195 = scmp.lt.s32.totalorder %s21, 0
          %s196 = scalar_select %p195, %s21, 0
          %s197 = scalar_lea.vmem %s3, %s196
        $region24: #{resnet1d_forward.5} parent=11 // pred_fallthru
          _
      $region12: #{resnet1d_forward.5} parent=5 // pred_fallthru
        _
      %p198 = scmp.lt.s32.totalorder %s11, 2
      // Predicated region
      $region25: #{resnet1d_forward.5} parent=5 // pred_check
        %p199 = pneg %p198
      $region26: #{resnet1d_forward.5} parent=5 // pred_check_branch
        %201 = sbr.rel (%p199) target = $region28
      $region27: #{resnet1d_forward.5} parent=5 // pred_region
        // Predicated region
        $region29: #{resnet1d_forward.5} parent=27 // pred_check
          %p202 = pneg %p43
        $region30: #{resnet1d_forward.5} parent=27 // pred_check_branch
          %204 = sbr.rel (%p202) target = $region32
        $region31: #{resnet1d_forward.5} parent=27 // pred_region
          %p205 = scmp.lt.s32.totalorder %s18, 1
          %s206 = scalar_select %p205, %s18, 1
          %s207 = smul.addr %s206, 10
          %s208 = smul.addr %s207, 4
          %s209 = scalar_lea.vmem %s0, %s208
        $region32: #{resnet1d_forward.5} parent=27 // pred_fallthru
          _
      $region28: #{resnet1d_forward.5} parent=5 // pred_fallthru
        _
      %p210 = scmp.le.s32.totalorder 1, %s11
      %p211 = scmp.lt.s32.totalorder %s11, 3
      %p212 = pnand %p210, %p211
      %p213 = pneg %p212
      // Predicated region
      $region33: #{resnet1d_forward.5} parent=5 // pred_check
        _
      $region34: #{resnet1d_forward.5} parent=5 // pred_check_branch
        %215 = sbr.rel (%p212) target = $region36
      $region35: #{resnet1d_forward.5} parent=5 // pred_region
        %s216 = ssub.s32 %s11, 1
        // Predicated region
        $region37: #{resnet1d_forward.5} parent=35 // pred_check
          %p217 = pneg %p75
        $region38: #{resnet1d_forward.5} parent=35 // pred_check_branch
          %219 = sbr.rel (%p217) target = $region40
        $region39: #{resnet1d_forward.5} parent=35 // pred_region
          %221 = dma.done [#allocation3], 17408
        $region40: #{resnet1d_forward.5} parent=35 // pred_fallthru
          _
        %p222 = scmp.lt.s32.totalorder %s20, 1
        %s223 = scalar_select %p222, %s20, 1
        %s224 = smul.addr %s223, 10
        %s225 = smul.addr %s224, 4
        %s226 = scalar_lea.vmem %s0, %s225
        %p227 = pneg %p49
        %p228 = pneg %p46
        %p229 = pneg %p75
        %p230 = pneg %p72
        %p231 = scmp.lt.s32.totalorder %s21, 0
        %s232 = scalar_select %p231, %s21, 0
        %s233 = scalar_lea.vmem %s2, %s232
        %p234 = pneg %p101
        %p235 = pneg %p98
        %p236 = scmp.lt.s32.totalorder %s21, 0
        %s237 = scalar_select %p236, %s21, 0
        %s238 = scalar_lea.vmem %s3, %s237
        %p239 = pneg %p127
        %p240 = pneg %p124
        %p241 = pneg %p155
        %p242 = pneg %p152
        %p243 = scmp.lt.s32.totalorder %s20, 1
        %s244 = scalar_select %p243, %s20, 1
        %p245 = scmp.lt.s32.totalorder %s21, 0
        %s246 = scalar_select %p245, %s21, 0
        %s247 = smul.addr %s244, 4
        %s248 = sadd.s32 %s246, %s247
        %s249 = smul.addr %s248, 4
        %s250 = scalar_lea.vmem %s4, %s249
        %p251 = scmp.lt.s32.totalorder %s20, 1
        %s252 = scalar_select %p251, %s20, 1
        %s253 = smul.addr %s252, 10
        %s254 = smul.addr %s253, 4
        %s255 = scalar_lea.vmem %s0, %s254
        %p256 = scmp.lt.s32.totalorder %s21, 0
        %s257 = scalar_select %p256, %s21, 0
        %s258 = scalar_lea.vmem %s2, %s257
        %p259 = scmp.lt.s32.totalorder %s21, 0
        %s260 = scalar_select %p259, %s21, 0
        %s261 = scalar_lea.vmem %s3, %s260
        %p262 = scmp.lt.s32.totalorder %s20, 1
        %s263 = scalar_select %p262, %s20, 1
        %p264 = scmp.lt.s32.totalorder %s21, 0
        %s265 = scalar_select %p264, %s21, 0
        %s266 = smul.addr %s263, 4
        %s267 = sadd.s32 %s265, %s266
        %s268 = smul.addr %s267, 4
        %s269 = scalar_lea.vmem %s4, %s268
        %v270 = vld [vmem:[%s255] sm:$0xf]
        %v271 = vld [vmem:[%s255 + $0x4] sm:$0xf]
        %v272 = vld [vmem:[%s255 + $0x8] sm:$0xf]
        %v273 = vld [vmem:[%s255 + $0xc] sm:$0xf]
        %v274 = vld [vmem:[#allocation2] sm:$0xf]
        %v275 = vld [vmem:[#allocation2 + $0x4] sm:$0xf]
        %v276 = vld [vmem:[#allocation2 + $0x8] sm:$0xf]
        %v277 = vld [vmem:[#allocation2 + $0xc] sm:$0xf]
        %v278 = vld [vmem:[#allocation2 + $0x10] sm:$0xf]
        %v279 = vld [vmem:[#allocation2 + $0x14] sm:$0xf]
        %v280 = vld [vmem:[#allocation2 + $0x18] sm:$0xf]
        %v281 = vld [vmem:[#allocation2 + $0x1c] sm:$0xf]
        %v282 = vld [vmem:[#allocation2 + $0x20] sm:$0xf]
        %v283 = vld [vmem:[#allocation2 + $0x24] sm:$0xf]
        %v284 = vld [vmem:[#allocation2 + $0x28] sm:$0xf]
        %v285 = vld [vmem:[#allocation2 + $0x2c] sm:$0xf]
        %v286 = vld [vmem:[#allocation2 + $0x30] sm:$0xf]
        %v287 = vld [vmem:[#allocation2 + $0x34] sm:$0xf]
        %v288 = vld [vmem:[#allocation2 + $0x38] sm:$0xf]
        %v289 = vld [vmem:[#allocation2 + $0x3c] sm:$0xf]
        %s290 = scalar_lea.vmem %s255, 20
        %v291 = vld [vmem:[%s290] sm:$0xf]
        %v292 = vld [vmem:[%s290 + $0x4] sm:$0xf]
        %v293 = vld [vmem:[%s290 + $0x8] sm:$0xf]
        %v294 = vld [vmem:[%s290 + $0xc] sm:$0xf]
        %s295 = scalar_lea.vmem [#allocation2], 64
        %v296 = vld [vmem:[%s295] sm:$0xf]
        %v297 = vld [vmem:[%s295 + $0x4] sm:$0xf]
        %v298 = vld [vmem:[%s295 + $0x8] sm:$0xf]
        %v299 = vld [vmem:[%s295 + $0xc] sm:$0xf]
        %v300 = vld [vmem:[%s295 + $0x10] sm:$0xf]
        %v301 = vld [vmem:[%s295 + $0x14] sm:$0xf]
        %v302 = vld [vmem:[%s295 + $0x18] sm:$0xf]
        %v303 = vld [vmem:[%s295 + $0x1c] sm:$0xf]
        %v304 = vld [vmem:[%s295 + $0x20] sm:$0xf]
        %v305 = vld [vmem:[%s295 + $0x24] sm:$0xf]
        %v306 = vld [vmem:[%s295 + $0x28] sm:$0xf]
        %v307 = vld [vmem:[%s295 + $0x2c] sm:$0xf]
        %v308 = vld [vmem:[%s295 + $0x30] sm:$0xf]
        %v309 = vld [vmem:[%s295 + $0x34] sm:$0xf]
        %v310 = vld [vmem:[%s295 + $0x38] sm:$0xf]
        %v311 = vld [vmem:[%s295 + $0x3c] sm:$0xf]
        %v316 = vunpack.c.l.b16 %v291
        %v317 = vunpack.c.l.b16 %v292
        %v318 = vunpack.c.l.b16 %v293
        %v319 = vunpack.c.l.b16 %v294
        %v320 = vpack.c.b16 %v317, %v316
        %v321 = vpack.c.b16 %v319, %v318
        %v340 = vunpack.c.l.b16 %v296
        %v341 = vunpack.c.l.b16 %v297
        %v342 = vunpack.c.l.b16 %v298
        %v343 = vunpack.c.l.b16 %v299
        %v344 = vunpack.c.l.b16 %v300
        %v345 = vunpack.c.l.b16 %v301
        %v346 = vunpack.c.l.b16 %v302
        %v347 = vunpack.c.l.b16 %v303
        %v348 = vunpack.c.l.b16 %v304
        %v349 = vunpack.c.l.b16 %v305
        %v350 = vunpack.c.l.b16 %v306
        %v351 = vunpack.c.l.b16 %v307
        %v352 = vunpack.c.l.b16 %v308
        %v353 = vunpack.c.l.b16 %v309
        %v354 = vunpack.c.l.b16 %v310
        %v355 = vunpack.c.l.b16 %v311
        %v356 = vpack.c.b16 %v341, %v340
        %v357 = vpack.c.b16 %v343, %v342
        %v358 = vpack.c.b16 %v345, %v344
        %v359 = vpack.c.b16 %v347, %v346
        %v360 = vpack.c.b16 %v349, %v348
        %v361 = vpack.c.b16 %v351, %v350
        %v362 = vpack.c.b16 %v353, %v352
        %v363 = vpack.c.b16 %v355, %v354
        %372 = vmatpush.bf16.msra.mxu0 %v363
        %373 = vmatpush.bf16.msra.mxu0 %v362
        %374 = vmatpush.bf16.msra.mxu0 %v361
        %375 = vmatpush.bf16.msra.mxu0 %v360
        %376 = vmatpush.bf16.msra.mxu0 %v359
        %377 = vmatpush.bf16.msra.mxu0 %v358
        %378 = vmatpush.bf16.msra.mxu0 %v357
        %379 = vmatpush.bf16.msra.mxu0 %v356
        %380 = vmatmul.bf16.gmra.mxu0 %v320
        %v381 = vpop.f32.mrf.mxu0
        %v382 = vadd.f32 0.0, %v381
        %v383 = vpop.f32.mrf.mxu0
        %v384 = vadd.f32 0.0, %v383
        %385 = vmatmul.bf16.gmra.mxu0 %v321
        %v386 = vpop.f32.mrf.mxu0
        %v387 = vadd.f32 0.0, %v386
        %v388 = vpop.f32.mrf.mxu0
        %v389 = vadd.f32 0.0, %v388
        %390 = vdwg.mxu0
        %v395 = vunpack.c.l.b16 %v270
        %v396 = vunpack.c.l.b16 %v271
        %v397 = vunpack.c.l.b16 %v272
        %v398 = vunpack.c.l.b16 %v273
        %v399 = vpack.c.b16 %v396, %v395
        %v400 = vpack.c.b16 %v398, %v397
        %v419 = vunpack.c.l.b16 %v274
        %v420 = vunpack.c.l.b16 %v275
        %v421 = vunpack.c.l.b16 %v276
        %v422 = vunpack.c.l.b16 %v277
        %v423 = vunpack.c.l.b16 %v278
        %v424 = vunpack.c.l.b16 %v279
        %v425 = vunpack.c.l.b16 %v280
        %v426 = vunpack.c.l.b16 %v281
        %v427 = vunpack.c.l.b16 %v282
        %v428 = vunpack.c.l.b16 %v283
        %v429 = vunpack.c.l.b16 %v284
        %v430 = vunpack.c.l.b16 %v285
        %v431 = vunpack.c.l.b16 %v286
        %v432 = vunpack.c.l.b16 %v287
        %v433 = vunpack.c.l.b16 %v288
        %v434 = vunpack.c.l.b16 %v289
        %v435 = vpack.c.b16 %v420, %v419
        %v436 = vpack.c.b16 %v422, %v421
        %v437 = vpack.c.b16 %v424, %v423
        %v438 = vpack.c.b16 %v426, %v425
        %v439 = vpack.c.b16 %v428, %v427
        %v440 = vpack.c.b16 %v430, %v429
        %v441 = vpack.c.b16 %v432, %v431
        %v442 = vpack.c.b16 %v434, %v433
        %451 = vmatpush.bf16.msra.mxu0 %v442
        %452 = vmatpush.bf16.msra.mxu0 %v441
        %453 = vmatpush.bf16.msra.mxu0 %v440
        %454 = vmatpush.bf16.msra.mxu0 %v439
        %455 = vmatpush.bf16.msra.mxu0 %v438
        %456 = vmatpush.bf16.msra.mxu0 %v437
        %457 = vmatpush.bf16.msra.mxu0 %v436
        %458 = vmatpush.bf16.msra.mxu0 %v435
        %459 = vmatmul.bf16.gmra.mxu0 %v399
        %v460 = vpop.f32.mrf.mxu0
        %v461 = vadd.f32 %v382, %v460
        %v462 = vpop.f32.mrf.mxu0
        %v463 = vadd.f32 %v384, %v462
        %464 = vmatmul.bf16.gmra.mxu0 %v400
        %v465 = vpop.f32.mrf.mxu0
        %v466 = vadd.f32 %v387, %v465
        %v467 = vpop.f32.mrf.mxu0
        %v468 = vadd.f32 %v389, %v467
        %469 = vdwg.mxu0
        %v470 = vld [vmem:[%s255] sm:$0xf]
        %v471 = vld [vmem:[%s255 + $0x4] sm:$0xf]
        %v472 = vld [vmem:[%s255 + $0x8] sm:$0xf]
        %v473 = vld [vmem:[%s255 + $0xc] sm:$0xf]
        %v474 = vld [vmem:[%s255 + $0x10] sm:$0x1]
        %s475 = scalar_lea.vmem [#allocation2], 128
        %v476 = vld [vmem:[%s475] sm:$0xf]
        %v477 = vld [vmem:[%s475 + $0x4] sm:$0xf]
        %v478 = vld [vmem:[%s475 + $0x8] sm:$0xf]
        %v479 = vld [vmem:[%s475 + $0xc] sm:$0xf]
        %v480 = vld [vmem:[%s475 + $0x10] sm:$0xf]
        %v481 = vld [vmem:[%s475 + $0x14] sm:$0xf]
        %v482 = vld [vmem:[%s475 + $0x18] sm:$0xf]
        %v483 = vld [vmem:[%s475 + $0x1c] sm:$0xf]
        %v484 = vld [vmem:[%s475 + $0x20] sm:$0xf]
        %v485 = vld [vmem:[%s475 + $0x24] sm:$0xf]
        %v486 = vld [vmem:[%s475 + $0x28] sm:$0xf]
        %v487 = vld [vmem:[%s475 + $0x2c] sm:$0xf]
        %v488 = vld [vmem:[%s475 + $0x30] sm:$0xf]
        %v489 = vld [vmem:[%s475 + $0x34] sm:$0xf]
        %v490 = vld [vmem:[%s475 + $0x38] sm:$0xf]
        %v491 = vld [vmem:[%s475 + $0x3c] sm:$0xf]
        %v497 = vunpack.c.l.b16 %v470
        %v498 = vunpack.c.l.b16 %v471
        %v499 = vunpack.c.l.b16 %v472
        %v500 = vunpack.c.l.b16 %v473
        %v501 = vunpack.c.l.b16 %v474
        %v502 = vpack.c.b16 %v498, %v497
        %v503 = vpack.c.b16 %v500, %v499
        %v504 = vpack.c.b16 %v501, %v501
        %vm505 = vsmask.f32 7424
        %v507 = vshrl.u32 %v502, 16
        %v509 = vshll.u32 %v502, 16
        %v511 = vrot.slane %v509, 1
        %v512 = vor.u32 %v507, %v511
        %v514 = vshll.u32 %v503, 16
        %v516 = vrot.slane %v514, 1
        %v517 = vsel %vm505, %v512, %v516
        %v518 = vshrl.u32 %v503, 16
        %v520 = vor.u32 %v518, %v516
        %v522 = vshll.u32 %v504, 16
        %v524 = vrot.slane %v522, 1
        %v525 = vsel %vm505, %v520, %v524
        %v544 = vunpack.c.l.b16 %v476
        %v545 = vunpack.c.l.b16 %v477
        %v546 = vunpack.c.l.b16 %v478
        %v547 = vunpack.c.l.b16 %v479
        %v548 = vunpack.c.l.b16 %v480
        %v549 = vunpack.c.l.b16 %v481
        %v550 = vunpack.c.l.b16 %v482
        %v551 = vunpack.c.l.b16 %v483
        %v552 = vunpack.c.l.b16 %v484
        %v553 = vunpack.c.l.b16 %v485
        %v554 = vunpack.c.l.b16 %v486
        %v555 = vunpack.c.l.b16 %v487
        %v556 = vunpack.c.l.b16 %v488
        %v557 = vunpack.c.l.b16 %v489
        %v558 = vunpack.c.l.b16 %v490
        %v559 = vunpack.c.l.b16 %v491
        %v560 = vpack.c.b16 %v545, %v544
        %v561 = vpack.c.b16 %v547, %v546
        %v562 = vpack.c.b16 %v549, %v548
        %v563 = vpack.c.b16 %v551, %v550
        %v564 = vpack.c.b16 %v553, %v552
        %v565 = vpack.c.b16 %v555, %v554
        %v566 = vpack.c.b16 %v557, %v556
        %v567 = vpack.c.b16 %v559, %v558
        %576 = vmatpush.bf16.msra.mxu0 %v567
        %577 = vmatpush.bf16.msra.mxu0 %v566
        %578 = vmatpush.bf16.msra.mxu0 %v565
        %579 = vmatpush.bf16.msra.mxu0 %v564
        %580 = vmatpush.bf16.msra.mxu0 %v563
        %581 = vmatpush.bf16.msra.mxu0 %v562
        %582 = vmatpush.bf16.msra.mxu0 %v561
        %583 = vmatpush.bf16.msra.mxu0 %v560
        %584 = vmatmul.bf16.gmra.mxu0 %v517
        %v585 = vpop.f32.mrf.mxu0
        %v586 = vadd.f32 0.0, %v585
        %v587 = vpop.f32.mrf.mxu0
        %v588 = vadd.f32 0.0, %v587
        %589 = vmatmul.bf16.gmra.mxu0 %v525
        %v590 = vpop.f32.mrf.mxu0
        %v591 = vadd.f32 0.0, %v590
        %v592 = vpop.f32.mrf.mxu0
        %v593 = vadd.f32 0.0, %v592
        %594 = vdwg.mxu0
        %v595 = vadd.f32 %v461, %v586
        %v596 = vadd.f32 %v463, %v588
        %v597 = vadd.f32 %v466, %v591
        %v598 = vadd.f32 %v468, %v593
        %v599 = vld [vmem:[%s290] sm:$0xf]
        %v600 = vld [vmem:[%s290 + $0x4] sm:$0xf]
        %v601 = vld [vmem:[%s290 + $0x8] sm:$0xf]
        %v602 = vld [vmem:[%s290 + $0xc] sm:$0xf]
        %v603 = vld [vmem:[%s290 + $0x10] sm:$0x1]
        %s604 = scalar_lea.vmem [#allocation2], 192
        %v605 = vld [vmem:[%s604] sm:$0xf]
        %v606 = vld [vmem:[%s604 + $0x4] sm:$0xf]
        %v607 = vld [vmem:[%s604 + $0x8] sm:$0xf]
        %v608 = vld [vmem:[%s604 + $0xc] sm:$0xf]
        %v609 = vld [vmem:[%s604 + $0x10] sm:$0xf]
        %v610 = vld [vmem:[%s604 + $0x14] sm:$0xf]
        %v611 = vld [vmem:[%s604 + $0x18] sm:$0xf]
        %v612 = vld [vmem:[%s604 + $0x1c] sm:$0xf]
        %v613 = vld [vmem:[%s604 + $0x20] sm:$0xf]
        %v614 = vld [vmem:[%s604 + $0x24] sm:$0xf]
        %v615 = vld [vmem:[%s604 + $0x28] sm:$0xf]
        %v616 = vld [vmem:[%s604 + $0x2c] sm:$0xf]
        %v617 = vld [vmem:[%s604 + $0x30] sm:$0xf]
        %v618 = vld [vmem:[%s604 + $0x34] sm:$0xf]
        %v619 = vld [vmem:[%s604 + $0x38] sm:$0xf]
        %v620 = vld [vmem:[%s604 + $0x3c] sm:$0xf]
        %v626 = vunpack.c.l.b16 %v599
        %v627 = vunpack.c.l.b16 %v600
        %v628 = vunpack.c.l.b16 %v601
        %v629 = vunpack.c.l.b16 %v602
        %v630 = vunpack.c.l.b16 %v603
        %v631 = vpack.c.b16 %v627, %v626
        %v632 = vpack.c.b16 %v629, %v628
        %v633 = vpack.c.b16 %v630, %v630
        %v635 = vshrl.u32 %v631, 16
        %v637 = vshll.u32 %v631, 16
        %v639 = vrot.slane %v637, 1
        %v640 = vor.u32 %v635, %v639
        %v642 = vshll.u32 %v632, 16
        %v644 = vrot.slane %v642, 1
        %v645 = vsel %vm505, %v640, %v644
        %v646 = vshrl.u32 %v632, 16
        %v648 = vor.u32 %v646, %v644
        %v650 = vshll.u32 %v633, 16
        %v652 = vrot.slane %v650, 1
        %v653 = vsel %vm505, %v648, %v652
        %v672 = vunpack.c.l.b16 %v605
        %v673 = vunpack.c.l.b16 %v606
        %v674 = vunpack.c.l.b16 %v607
        %v675 = vunpack.c.l.b16 %v608
        %v676 = vunpack.c.l.b16 %v609
        %v677 = vunpack.c.l.b16 %v610
        %v678 = vunpack.c.l.b16 %v611
        %v679 = vunpack.c.l.b16 %v612
        %v680 = vunpack.c.l.b16 %v613
        %v681 = vunpack.c.l.b16 %v614
        %v682 = vunpack.c.l.b16 %v615
        %v683 = vunpack.c.l.b16 %v616
        %v684 = vunpack.c.l.b16 %v617
        %v685 = vunpack.c.l.b16 %v618
        %v686 = vunpack.c.l.b16 %v619
        %v687 = vunpack.c.l.b16 %v620
        %v688 = vpack.c.b16 %v673, %v672
        %v689 = vpack.c.b16 %v675, %v674
        %v690 = vpack.c.b16 %v677, %v676
        %v691 = vpack.c.b16 %v679, %v678
        %v692 = vpack.c.b16 %v681, %v680
        %v693 = vpack.c.b16 %v683, %v682
        %v694 = vpack.c.b16 %v685, %v684
        %v695 = vpack.c.b16 %v687, %v686
        %704 = vmatpush.bf16.msra.mxu0 %v695
        %705 = vmatpush.bf16.msra.mxu0 %v694
        %706 = vmatpush.bf16.msra.mxu0 %v693
        %707 = vmatpush.bf16.msra.mxu0 %v692
        %708 = vmatpush.bf16.msra.mxu0 %v691
        %709 = vmatpush.bf16.msra.mxu0 %v690
        %710 = vmatpush.bf16.msra.mxu0 %v689
        %711 = vmatpush.bf16.msra.mxu0 %v688
        %712 = vmatmul.bf16.gmra.mxu0 %v645
        %v713 = vpop.f32.mrf.mxu0
        %v714 = vadd.f32 0.0, %v713
        %v715 = vpop.f32.mrf.mxu0
        %v716 = vadd.f32 0.0, %v715
        %717 = vmatmul.bf16.gmra.mxu0 %v653
        %v718 = vpop.f32.mrf.mxu0
        %v719 = vadd.f32 0.0, %v718
        %v720 = vpop.f32.mrf.mxu0
        %v721 = vadd.f32 0.0, %v720
        %722 = vdwg.mxu0
        %v723 = vadd.f32 %v595, %v714
        %v724 = vadd.f32 %v596, %v716
        %v725 = vadd.f32 %v597, %v719
        %v726 = vadd.f32 %v598, %v721
        %v727 = vld [vmem:[%s255] sm:$0xe]
        %s728 = scalar_lea.vmem [#allocation2], 256
        %v729 = vld [vmem:[%s728] sm:$0xf]
        %v730 = vld [vmem:[%s728 + $0x4] sm:$0xf]
        %v731 = vld [vmem:[%s728 + $0x8] sm:$0xf]
        %v732 = vld [vmem:[%s728 + $0xc] sm:$0xf]
        %v733 = vld [vmem:[%s728 + $0x10] sm:$0xf]
        %v734 = vld [vmem:[%s728 + $0x14] sm:$0xf]
        %v735 = vld [vmem:[%s728 + $0x18] sm:$0xf]
        %v736 = vld [vmem:[%s728 + $0x1c] sm:$0xf]
        %v737 = vld [vmem:[%s728 + $0x20] sm:$0xf]
        %v738 = vld [vmem:[%s728 + $0x24] sm:$0xf]
        %v739 = vld [vmem:[%s728 + $0x28] sm:$0xf]
        %v740 = vld [vmem:[%s728 + $0x2c] sm:$0xf]
        %v741 = vld [vmem:[%s728 + $0x30] sm:$0xf]
        %v742 = vld [vmem:[%s728 + $0x34] sm:$0xf]
        %v743 = vld [vmem:[%s728 + $0x38] sm:$0xf]
        %v744 = vld [vmem:[%s728 + $0x3c] sm:$0xf]
        %v746 = vunpack.c.l.b16 %v727
        %v747 = vpack.c.b16 %v498, %v746
        %vm748 = vcmask 1046528
        %v749 = vrot.slane %v747, 1
        %v750 = vrot.slane %v503, 1
        %v751 = vsel %vm748, %v749, %v750
        %v752 = vrot.slane %v504, 1
        %v753 = vsel %vm748, %v750, %v752
        %v772 = vunpack.c.l.b16 %v729
        %v773 = vunpack.c.l.b16 %v730
        %v774 = vunpack.c.l.b16 %v731
        %v775 = vunpack.c.l.b16 %v732
        %v776 = vunpack.c.l.b16 %v733
        %v777 = vunpack.c.l.b16 %v734
        %v778 = vunpack.c.l.b16 %v735
        %v779 = vunpack.c.l.b16 %v736
        %v780 = vunpack.c.l.b16 %v737
        %v781 = vunpack.c.l.b16 %v738
        %v782 = vunpack.c.l.b16 %v739
        %v783 = vunpack.c.l.b16 %v740
        %v784 = vunpack.c.l.b16 %v741
        %v785 = vunpack.c.l.b16 %v742
        %v786 = vunpack.c.l.b16 %v743
        %v787 = vunpack.c.l.b16 %v744
        %v788 = vpack.c.b16 %v773, %v772
        %v789 = vpack.c.b16 %v775, %v774
        %v790 = vpack.c.b16 %v777, %v776
        %v791 = vpack.c.b16 %v779, %v778
        %v792 = vpack.c.b16 %v781, %v780
        %v793 = vpack.c.b16 %v783, %v782
        %v794 = vpack.c.b16 %v785, %v784
        %v795 = vpack.c.b16 %v787, %v786
        %804 = vmatpush.bf16.msra.mxu0 %v795
        %805 = vmatpush.bf16.msra.mxu0 %v794
        %806 = vmatpush.bf16.msra.mxu0 %v793
        %807 = vmatpush.bf16.msra.mxu0 %v792
        %808 = vmatpush.bf16.msra.mxu0 %v791
        %809 = vmatpush.bf16.msra.mxu0 %v790
        %810 = vmatpush.bf16.msra.mxu0 %v789
        %811 = vmatpush.bf16.msra.mxu0 %v788
        %812 = vmatmul.bf16.gmra.mxu0 %v751
        %v813 = vpop.f32.mrf.mxu0
        %v814 = vadd.f32 0.0, %v813
        %v815 = vpop.f32.mrf.mxu0
        %v816 = vadd.f32 0.0, %v815
        %817 = vmatmul.bf16.gmra.mxu0 %v753
        %v818 = vpop.f32.mrf.mxu0
        %v819 = vadd.f32 0.0, %v818
        %v820 = vpop.f32.mrf.mxu0
        %v821 = vadd.f32 0.0, %v820
        %822 = vdwg.mxu0
        %v823 = vadd.f32 %v723, %v814
        %v824 = vadd.f32 %v724, %v816
        %v825 = vadd.f32 %v725, %v819
        %v826 = vadd.f32 %v726, %v821
        %v827 = vld [vmem:[%s290] sm:$0xe]
        %s828 = scalar_lea.vmem [#allocation2], 320
        %v829 = vld [vmem:[%s828] sm:$0xf]
        %v830 = vld [vmem:[%s828 + $0x4] sm:$0xf]
        %v831 = vld [vmem:[%s828 + $0x8] sm:$0xf]
        %v832 = vld [vmem:[%s828 + $0xc] sm:$0xf]
        %v833 = vld [vmem:[%s828 + $0x10] sm:$0xf]
        %v834 = vld [vmem:[%s828 + $0x14] sm:$0xf]
        %v835 = vld [vmem:[%s828 + $0x18] sm:$0xf]
        %v836 = vld [vmem:[%s828 + $0x1c] sm:$0xf]
        %v837 = vld [vmem:[%s828 + $0x20] sm:$0xf]
        %v838 = vld [vmem:[%s828 + $0x24] sm:$0xf]
        %v839 = vld [vmem:[%s828 + $0x28] sm:$0xf]
        %v840 = vld [vmem:[%s828 + $0x2c] sm:$0xf]
        %v841 = vld [vmem:[%s828 + $0x30] sm:$0xf]
        %v842 = vld [vmem:[%s828 + $0x34] sm:$0xf]
        %v843 = vld [vmem:[%s828 + $0x38] sm:$0xf]
        %v844 = vld [vmem:[%s828 + $0x3c] sm:$0xf]
        %v846 = vunpack.c.l.b16 %v827
        %v847 = vpack.c.b16 %v627, %v846
        %v848 = vrot.slane %v847, 1
        %v849 = vrot.slane %v632, 1
        %v850 = vsel %vm748, %v848, %v849
        %v851 = vrot.slane %v633, 1
        %v852 = vsel %vm748, %v849, %v851
        %v871 = vunpack.c.l.b16 %v829
        %v872 = vunpack.c.l.b16 %v830
        %v873 = vunpack.c.l.b16 %v831
        %v874 = vunpack.c.l.b16 %v832
        %v875 = vunpack.c.l.b16 %v833
        %v876 = vunpack.c.l.b16 %v834
        %v877 = vunpack.c.l.b16 %v835
        %v878 = vunpack.c.l.b16 %v836
        %v879 = vunpack.c.l.b16 %v837
        %v880 = vunpack.c.l.b16 %v838
        %v881 = vunpack.c.l.b16 %v839
        %v882 = vunpack.c.l.b16 %v840
        %v883 = vunpack.c.l.b16 %v841
        %v884 = vunpack.c.l.b16 %v842
        %v885 = vunpack.c.l.b16 %v843
        %v886 = vunpack.c.l.b16 %v844
        %v887 = vpack.c.b16 %v872, %v871
        %v888 = vpack.c.b16 %v874, %v873
        %v889 = vpack.c.b16 %v876, %v875
        %v890 = vpack.c.b16 %v878, %v877
        %v891 = vpack.c.b16 %v880, %v879
        %v892 = vpack.c.b16 %v882, %v881
        %v893 = vpack.c.b16 %v884, %v883
        %v894 = vpack.c.b16 %v886, %v885
        %903 = vmatpush.bf16.msra.mxu0 %v894
        %904 = vmatpush.bf16.msra.mxu0 %v893
        %905 = vmatpush.bf16.msra.mxu0 %v892
        %906 = vmatpush.bf16.msra.mxu0 %v891
        %907 = vmatpush.bf16.msra.mxu0 %v890
        %908 = vmatpush.bf16.msra.mxu0 %v889
        %909 = vmatpush.bf16.msra.mxu0 %v888
        %910 = vmatpush.bf16.msra.mxu0 %v887
        %911 = vmatmul.bf16.gmra.mxu0 %v850
        %v912 = vpop.f32.mrf.mxu0
        %v913 = vadd.f32 0.0, %v912
        %v914 = vpop.f32.mrf.mxu0
        %v915 = vadd.f32 0.0, %v914
        %916 = vmatmul.bf16.gmra.mxu0 %v852
        %v917 = vpop.f32.mrf.mxu0
        %v918 = vadd.f32 0.0, %v917
        %v919 = vpop.f32.mrf.mxu0
        %v920 = vadd.f32 0.0, %v919
        %921 = vdwg.mxu0
        %v922 = vadd.f32 %v823, %v913
        %v923 = vadd.f32 %v824, %v915
        %v924 = vadd.f32 %v825, %v918
        %v925 = vadd.f32 %v826, %v920
        %v926 = vld [vmem:[%s255 + $0x10] sm:$0x3]
        %s927 = scalar_lea.vmem [#allocation2], 384
        %v928 = vld [vmem:[%s927] sm:$0xf]
        %v929 = vld [vmem:[%s927 + $0x4] sm:$0xf]
        %v930 = vld [vmem:[%s927 + $0x8] sm:$0xf]
        %v931 = vld [vmem:[%s927 + $0xc] sm:$0xf]
        %v932 = vld [vmem:[%s927 + $0x10] sm:$0xf]
        %v933 = vld [vmem:[%s927 + $0x14] sm:$0xf]
        %v934 = vld [vmem:[%s927 + $0x18] sm:$0xf]
        %v935 = vld [vmem:[%s927 + $0x1c] sm:$0xf]
        %v936 = vld [vmem:[%s927 + $0x20] sm:$0xf]
        %v937 = vld [vmem:[%s927 + $0x24] sm:$0xf]
        %v938 = vld [vmem:[%s927 + $0x28] sm:$0xf]
        %v939 = vld [vmem:[%s927 + $0x2c] sm:$0xf]
        %v940 = vld [vmem:[%s927 + $0x30] sm:$0xf]
        %v941 = vld [vmem:[%s927 + $0x34] sm:$0xf]
        %v942 = vld [vmem:[%s927 + $0x38] sm:$0xf]
        %v943 = vld [vmem:[%s927 + $0x3c] sm:$0xf]
        %v945 = vunpack.c.l.b16 %v926
        %v946 = vpack.c.b16 %v945, %v945
        %vm947 = vsmask.f32 6400
        %v949 = vshrl.u32 %v747, 16
        %v951 = vrot.slane %v949, 1
        %v952 = vshll.u32 %v747, 16
        %v954 = vrot.slane %v952, 2
        %v955 = vor.u32 %v951, %v954
        %v956 = vrot.slane %v518, 1
        %v957 = vrot.slane %v514, 2
        %v958 = vor.u32 %v956, %v957
        %v959 = vsel %vm947, %v955, %v958
        %v961 = vshrl.u32 %v946, 16
        %v963 = vrot.slane %v961, 1
        %v964 = vshll.u32 %v946, 16
        %v966 = vrot.slane %v964, 2
        %v967 = vor.u32 %v963, %v966
        %v968 = vsel %vm947, %v958, %v967
        %v987 = vunpack.c.l.b16 %v928
        %v988 = vunpack.c.l.b16 %v929
        %v989 = vunpack.c.l.b16 %v930
        %v990 = vunpack.c.l.b16 %v931
        %v991 = vunpack.c.l.b16 %v932
        %v992 = vunpack.c.l.b16 %v933
        %v993 = vunpack.c.l.b16 %v934
        %v994 = vunpack.c.l.b16 %v935
        %v995 = vunpack.c.l.b16 %v936
        %v996 = vunpack.c.l.b16 %v937
        %v997 = vunpack.c.l.b16 %v938
        %v998 = vunpack.c.l.b16 %v939
        %v999 = vunpack.c.l.b16 %v940
        %v1000 = vunpack.c.l.b16 %v941
        %v1001 = vunpack.c.l.b16 %v942
        %v1002 = vunpack.c.l.b16 %v943
        %v1003 = vpack.c.b16 %v988, %v987
        %v1004 = vpack.c.b16 %v990, %v989
        %v1005 = vpack.c.b16 %v992, %v991
        %v1006 = vpack.c.b16 %v994, %v993
        %v1007 = vpack.c.b16 %v996, %v995
        %v1008 = vpack.c.b16 %v998, %v997
        %v1009 = vpack.c.b16 %v1000, %v999
        %v1010 = vpack.c.b16 %v1002, %v1001
        %1019 = vmatpush.bf16.msra.mxu0 %v1010
        %1020 = vmatpush.bf16.msra.mxu0 %v1009
        %1021 = vmatpush.bf16.msra.mxu0 %v1008
        %1022 = vmatpush.bf16.msra.mxu0 %v1007
        %1023 = vmatpush.bf16.msra.mxu0 %v1006
        %1024 = vmatpush.bf16.msra.mxu0 %v1005
        %1025 = vmatpush.bf16.msra.mxu0 %v1004
        %1026 = vmatpush.bf16.msra.mxu0 %v1003
        %1027 = vmatmul.bf16.gmra.mxu0 %v959
        %v1028 = vpop.f32.mrf.mxu0
        %v1029 = vadd.f32 0.0, %v1028
        %v1030 = vpop.f32.mrf.mxu0
        %v1031 = vadd.f32 0.0, %v1030
        %1032 = vmatmul.bf16.gmra.mxu0 %v968
        %v1033 = vpop.f32.mrf.mxu0
        %v1034 = vadd.f32 0.0, %v1033
        %v1035 = vpop.f32.mrf.mxu0
        %v1036 = vadd.f32 0.0, %v1035
        %1037 = vdwg.mxu0
        %v1038 = vadd.f32 %v922, %v1029
        %v1039 = vadd.f32 %v923, %v1031
        %v1040 = vadd.f32 %v924, %v1034
        %v1041 = vadd.f32 %v925, %v1036
        %v1042 = vld [vmem:[%s290 + $0x10] sm:$0x3]
        %s1043 = scalar_lea.vmem [#allocation2], 448
        %v1044 = vld [vmem:[%s1043] sm:$0xf]
        %v1045 = vld [vmem:[%s1043 + $0x4] sm:$0xf]
        %v1046 = vld [vmem:[%s1043 + $0x8] sm:$0xf]
        %v1047 = vld [vmem:[%s1043 + $0xc] sm:$0xf]
        %v1048 = vld [vmem:[%s1043 + $0x10] sm:$0xf]
        %v1049 = vld [vmem:[%s1043 + $0x14] sm:$0xf]
        %v1050 = vld [vmem:[%s1043 + $0x18] sm:$0xf]
        %v1051 = vld [vmem:[%s1043 + $0x1c] sm:$0xf]
        %v1052 = vld [vmem:[%s1043 + $0x20] sm:$0xf]
        %v1053 = vld [vmem:[%s1043 + $0x24] sm:$0xf]
        %v1054 = vld [vmem:[%s1043 + $0x28] sm:$0xf]
        %v1055 = vld [vmem:[%s1043 + $0x2c] sm:$0xf]
        %v1056 = vld [vmem:[%s1043 + $0x30] sm:$0xf]
        %v1057 = vld [vmem:[%s1043 + $0x34] sm:$0xf]
        %v1058 = vld [vmem:[%s1043 + $0x38] sm:$0xf]
        %v1059 = vld [vmem:[%s1043 + $0x3c] sm:$0xf]
        %v1061 = vunpack.c.l.b16 %v1042
        %v1062 = vpack.c.b16 %v1061, %v1061
        %v1064 = vshrl.u32 %v847, 16
        %v1066 = vrot.slane %v1064, 1
        %v1067 = vshll.u32 %v847, 16
        %v1069 = vrot.slane %v1067, 2
        %v1070 = vor.u32 %v1066, %v1069
        %v1071 = vrot.slane %v646, 1
        %v1072 = vrot.slane %v642, 2
        %v1073 = vor.u32 %v1071, %v1072
        %v1074 = vsel %vm947, %v1070, %v1073
        %v1076 = vshrl.u32 %v1062, 16
        %v1078 = vrot.slane %v1076, 1
        %v1079 = vshll.u32 %v1062, 16
        %v1081 = vrot.slane %v1079, 2
        %v1082 = vor.u32 %v1078, %v1081
        %v1083 = vsel %vm947, %v1073, %v1082
        %v1102 = vunpack.c.l.b16 %v1044
        %v1103 = vunpack.c.l.b16 %v1045
        %v1104 = vunpack.c.l.b16 %v1046
        %v1105 = vunpack.c.l.b16 %v1047
        %v1106 = vunpack.c.l.b16 %v1048
        %v1107 = vunpack.c.l.b16 %v1049
        %v1108 = vunpack.c.l.b16 %v1050
        %v1109 = vunpack.c.l.b16 %v1051
        %v1110 = vunpack.c.l.b16 %v1052
        %v1111 = vunpack.c.l.b16 %v1053
        %v1112 = vunpack.c.l.b16 %v1054
        %v1113 = vunpack.c.l.b16 %v1055
        %v1114 = vunpack.c.l.b16 %v1056
        %v1115 = vunpack.c.l.b16 %v1057
        %v1116 = vunpack.c.l.b16 %v1058
        %v1117 = vunpack.c.l.b16 %v1059
        %v1118 = vpack.c.b16 %v1103, %v1102
        %v1119 = vpack.c.b16 %v1105, %v1104
        %v1120 = vpack.c.b16 %v1107, %v1106
        %v1121 = vpack.c.b16 %v1109, %v1108
        %v1122 = vpack.c.b16 %v1111, %v1110
        %v1123 = vpack.c.b16 %v1113, %v1112
        %v1124 = vpack.c.b16 %v1115, %v1114
        %v1125 = vpack.c.b16 %v1117, %v1116
        %1134 = vmatpush.bf16.msra.mxu0 %v1125
        %1135 = vmatpush.bf16.msra.mxu0 %v1124
        %1136 = vmatpush.bf16.msra.mxu0 %v1123
        %1137 = vmatpush.bf16.msra.mxu0 %v1122
        %1138 = vmatpush.bf16.msra.mxu0 %v1121
        %1139 = vmatpush.bf16.msra.mxu0 %v1120
        %1140 = vmatpush.bf16.msra.mxu0 %v1119
        %1141 = vmatpush.bf16.msra.mxu0 %v1118
        %1142 = vmatmul.bf16.gmra.mxu0 %v1074
        %v1143 = vpop.f32.mrf.mxu0
        %v1144 = vadd.f32 0.0, %v1143
        %v1145 = vpop.f32.mrf.mxu0
        %v1146 = vadd.f32 0.0, %v1145
        %1147 = vmatmul.bf16.gmra.mxu0 %v1083
        %v1148 = vpop.f32.mrf.mxu0
        %v1149 = vadd.f32 0.0, %v1148
        %v1150 = vpop.f32.mrf.mxu0
        %v1151 = vadd.f32 0.0, %v1150
        %1152 = vdwg.mxu0
        %v1153 = vadd.f32 %v1038, %v1144
        %v1154 = vadd.f32 %v1039, %v1146
        %v1155 = vadd.f32 %v1040, %v1149
        %v1156 = vadd.f32 %v1041, %v1151
        %v1157 = vld [vmem:[%s255] sm:$0xc]
        %s1158 = scalar_lea.vmem [#allocation2], 512
        %v1159 = vld [vmem:[%s1158] sm:$0xf]
        %v1160 = vld [vmem:[%s1158 + $0x4] sm:$0xf]
        %v1161 = vld [vmem:[%s1158 + $0x8] sm:$0xf]
        %v1162 = vld [vmem:[%s1158 + $0xc] sm:$0xf]
        %v1163 = vld [vmem:[%s1158 + $0x10] sm:$0xf]
        %v1164 = vld [vmem:[%s1158 + $0x14] sm:$0xf]
        %v1165 = vld [vmem:[%s1158 + $0x18] sm:$0xf]
        %v1166 = vld [vmem:[%s1158 + $0x1c] sm:$0xf]
        %v1167 = vld [vmem:[%s1158 + $0x20] sm:$0xf]
        %v1168 = vld [vmem:[%s1158 + $0x24] sm:$0xf]
        %v1169 = vld [vmem:[%s1158 + $0x28] sm:$0xf]
        %v1170 = vld [vmem:[%s1158 + $0x2c] sm:$0xf]
        %v1171 = vld [vmem:[%s1158 + $0x30] sm:$0xf]
        %v1172 = vld [vmem:[%s1158 + $0x34] sm:$0xf]
        %v1173 = vld [vmem:[%s1158 + $0x38] sm:$0xf]
        %v1174 = vld [vmem:[%s1158 + $0x3c] sm:$0xf]
        %v1176 = vunpack.c.l.b16 %v1157
        %v1177 = vpack.c.b16 %v498, %v1176
        %vm1178 = vcmask 1045504
        %v1179 = vrot.slane %v1177, 2
        %v1180 = vrot.slane %v503, 2
        %v1181 = vsel %vm1178, %v1179, %v1180
        %v1182 = vrot.slane %v946, 2
        %v1183 = vsel %vm1178, %v1180, %v1182
        %v1202 = vunpack.c.l.b16 %v1159
        %v1203 = vunpack.c.l.b16 %v1160
        %v1204 = vunpack.c.l.b16 %v1161
        %v1205 = vunpack.c.l.b16 %v1162
        %v1206 = vunpack.c.l.b16 %v1163
        %v1207 = vunpack.c.l.b16 %v1164
        %v1208 = vunpack.c.l.b16 %v1165
        %v1209 = vunpack.c.l.b16 %v1166
        %v1210 = vunpack.c.l.b16 %v1167
        %v1211 = vunpack.c.l.b16 %v1168
        %v1212 = vunpack.c.l.b16 %v1169
        %v1213 = vunpack.c.l.b16 %v1170
        %v1214 = vunpack.c.l.b16 %v1171
        %v1215 = vunpack.c.l.b16 %v1172
        %v1216 = vunpack.c.l.b16 %v1173
        %v1217 = vunpack.c.l.b16 %v1174
        %v1218 = vpack.c.b16 %v1203, %v1202
        %v1219 = vpack.c.b16 %v1205, %v1204
        %v1220 = vpack.c.b16 %v1207, %v1206
        %v1221 = vpack.c.b16 %v1209, %v1208
        %v1222 = vpack.c.b16 %v1211, %v1210
        %v1223 = vpack.c.b16 %v1213, %v1212
        %v1224 = vpack.c.b16 %v1215, %v1214
        %v1225 = vpack.c.b16 %v1217, %v1216
        %1234 = vmatpush.bf16.msra.mxu0 %v1225
        %1235 = vmatpush.bf16.msra.mxu0 %v1224
        %1236 = vmatpush.bf16.msra.mxu0 %v1223
        %1237 = vmatpush.bf16.msra.mxu0 %v1222
        %1238 = vmatpush.bf16.msra.mxu0 %v1221
        %1239 = vmatpush.bf16.msra.mxu0 %v1220
        %1240 = vmatpush.bf16.msra.mxu0 %v1219
        %1241 = vmatpush.bf16.msra.mxu0 %v1218
        %1242 = vmatmul.bf16.gmra.mxu0 %v1181
        %v1243 = vpop.f32.mrf.mxu0
        %v1244 = vadd.f32 0.0, %v1243
        %v1245 = vpop.f32.mrf.mxu0
        %v1246 = vadd.f32 0.0, %v1245
        %1247 = vmatmul.bf16.gmra.mxu0 %v1183
        %v1248 = vpop.f32.mrf.mxu0
        %v1249 = vadd.f32 0.0, %v1248
        %v1250 = vpop.f32.mrf.mxu0
        %v1251 = vadd.f32 0.0, %v1250
        %1252 = vdwg.mxu0
        %v1253 = vadd.f32 %v1153, %v1244
        %v1254 = vadd.f32 %v1154, %v1246
        %v1255 = vadd.f32 %v1155, %v1249
        %v1256 = vadd.f32 %v1156, %v1251
        %v1257 = vld [vmem:[%s290] sm:$0xc]
        %s1258 = scalar_lea.vmem [#allocation2], 576
        %v1259 = vld [vmem:[%s1258] sm:$0xf]
        %v1260 = vld [vmem:[%s1258 + $0x4] sm:$0xf]
        %v1261 = vld [vmem:[%s1258 + $0x8] sm:$0xf]
        %v1262 = vld [vmem:[%s1258 + $0xc] sm:$0xf]
        %v1263 = vld [vmem:[%s1258 + $0x10] sm:$0xf]
        %v1264 = vld [vmem:[%s1258 + $0x14] sm:$0xf]
        %v1265 = vld [vmem:[%s1258 + $0x18] sm:$0xf]
        %v1266 = vld [vmem:[%s1258 + $0x1c] sm:$0xf]
        %v1267 = vld [vmem:[%s1258 + $0x20] sm:$0xf]
        %v1268 = vld [vmem:[%s1258 + $0x24] sm:$0xf]
        %v1269 = vld [vmem:[%s1258 + $0x28] sm:$0xf]
        %v1270 = vld [vmem:[%s1258 + $0x2c] sm:$0xf]
        %v1271 = vld [vmem:[%s1258 + $0x30] sm:$0xf]
        %v1272 = vld [vmem:[%s1258 + $0x34] sm:$0xf]
        %v1273 = vld [vmem:[%s1258 + $0x38] sm:$0xf]
        %v1274 = vld [vmem:[%s1258 + $0x3c] sm:$0xf]
        %v1276 = vunpack.c.l.b16 %v1257
        %v1277 = vpack.c.b16 %v627, %v1276
        %v1278 = vrot.slane %v1277, 2
        %v1279 = vrot.slane %v632, 2
        %v1280 = vsel %vm1178, %v1278, %v1279
        %v1281 = vrot.slane %v1062, 2
        %v1282 = vsel %vm1178, %v1279, %v1281
        %v1301 = vunpack.c.l.b16 %v1259
        %v1302 = vunpack.c.l.b16 %v1260
        %v1303 = vunpack.c.l.b16 %v1261
        %v1304 = vunpack.c.l.b16 %v1262
        %v1305 = vunpack.c.l.b16 %v1263
        %v1306 = vunpack.c.l.b16 %v1264
        %v1307 = vunpack.c.l.b16 %v1265
        %v1308 = vunpack.c.l.b16 %v1266
        %v1309 = vunpack.c.l.b16 %v1267
        %v1310 = vunpack.c.l.b16 %v1268
        %v1311 = vunpack.c.l.b16 %v1269
        %v1312 = vunpack.c.l.b16 %v1270
        %v1313 = vunpack.c.l.b16 %v1271
        %v1314 = vunpack.c.l.b16 %v1272
        %v1315 = vunpack.c.l.b16 %v1273
        %v1316 = vunpack.c.l.b16 %v1274
        %v1317 = vpack.c.b16 %v1302, %v1301
        %v1318 = vpack.c.b16 %v1304, %v1303
        %v1319 = vpack.c.b16 %v1306, %v1305
        %v1320 = vpack.c.b16 %v1308, %v1307
        %v1321 = vpack.c.b16 %v1310, %v1309
        %v1322 = vpack.c.b16 %v1312, %v1311
        %v1323 = vpack.c.b16 %v1314, %v1313
        %v1324 = vpack.c.b16 %v1316, %v1315
        %1333 = vmatpush.bf16.msra.mxu0 %v1324
        %1334 = vmatpush.bf16.msra.mxu0 %v1323
        %1335 = vmatpush.bf16.msra.mxu0 %v1322
        %1336 = vmatpush.bf16.msra.mxu0 %v1321
        %1337 = vmatpush.bf16.msra.mxu0 %v1320
        %1338 = vmatpush.bf16.msra.mxu0 %v1319
        %1339 = vmatpush.bf16.msra.mxu0 %v1318
        %1340 = vmatpush.bf16.msra.mxu0 %v1317
        %1341 = vmatmul.bf16.gmra.mxu0 %v1280
        %v1342 = vpop.f32.mrf.mxu0
        %v1343 = vadd.f32 0.0, %v1342
        %v1344 = vpop.f32.mrf.mxu0
        %v1345 = vadd.f32 0.0, %v1344
        %1346 = vmatmul.bf16.gmra.mxu0 %v1282
        %v1347 = vpop.f32.mrf.mxu0
        %v1348 = vadd.f32 0.0, %v1347
        %v1349 = vpop.f32.mrf.mxu0
        %v1350 = vadd.f32 0.0, %v1349
        %1351 = vdwg.mxu0
        %v1352 = vadd.f32 %v1253, %v1343
        %v1353 = vadd.f32 %v1254, %v1345
        %v1354 = vadd.f32 %v1255, %v1348
        %v1355 = vadd.f32 %v1256, %v1350
        %v1356 = vld [vmem:[%s255 + $0x10] sm:$0x7]
        %s1357 = scalar_lea.vmem [#allocation2], 640
        %v1358 = vld [vmem:[%s1357] sm:$0xf]
        %v1359 = vld [vmem:[%s1357 + $0x4] sm:$0xf]
        %v1360 = vld [vmem:[%s1357 + $0x8] sm:$0xf]
        %v1361 = vld [vmem:[%s1357 + $0xc] sm:$0xf]
        %v1362 = vld [vmem:[%s1357 + $0x10] sm:$0xf]
        %v1363 = vld [vmem:[%s1357 + $0x14] sm:$0xf]
        %v1364 = vld [vmem:[%s1357 + $0x18] sm:$0xf]
        %v1365 = vld [vmem:[%s1357 + $0x1c] sm:$0xf]
        %v1366 = vld [vmem:[%s1357 + $0x20] sm:$0xf]
        %v1367 = vld [vmem:[%s1357 + $0x24] sm:$0xf]
        %v1368 = vld [vmem:[%s1357 + $0x28] sm:$0xf]
        %v1369 = vld [vmem:[%s1357 + $0x2c] sm:$0xf]
        %v1370 = vld [vmem:[%s1357 + $0x30] sm:$0xf]
        %v1371 = vld [vmem:[%s1357 + $0x34] sm:$0xf]
        %v1372 = vld [vmem:[%s1357 + $0x38] sm:$0xf]
        %v1373 = vld [vmem:[%s1357 + $0x3c] sm:$0xf]
        %v1375 = vunpack.c.l.b16 %v1356
        %v1376 = vpack.c.b16 %v1375, %v1375
        %vm1377 = vsmask.f32 5376
        %v1379 = vshrl.u32 %v1177, 16
        %v1381 = vrot.slane %v1379, 2
        %v1382 = vshll.u32 %v1177, 16
        %v1384 = vrot.slane %v1382, 3
        %v1385 = vor.u32 %v1381, %v1384
        %v1386 = vrot.slane %v518, 2
        %v1387 = vrot.slane %v514, 3
        %v1388 = vor.u32 %v1386, %v1387
        %v1389 = vsel %vm1377, %v1385, %v1388
        %v1391 = vshrl.u32 %v1376, 16
        %v1393 = vrot.slane %v1391, 2
        %v1394 = vshll.u32 %v1376, 16
        %v1396 = vrot.slane %v1394, 3
        %v1397 = vor.u32 %v1393, %v1396
        %v1398 = vsel %vm1377, %v1388, %v1397
        %v1417 = vunpack.c.l.b16 %v1358
        %v1418 = vunpack.c.l.b16 %v1359
        %v1419 = vunpack.c.l.b16 %v1360
        %v1420 = vunpack.c.l.b16 %v1361
        %v1421 = vunpack.c.l.b16 %v1362
        %v1422 = vunpack.c.l.b16 %v1363
        %v1423 = vunpack.c.l.b16 %v1364
        %v1424 = vunpack.c.l.b16 %v1365
        %v1425 = vunpack.c.l.b16 %v1366
        %v1426 = vunpack.c.l.b16 %v1367
        %v1427 = vunpack.c.l.b16 %v1368
        %v1428 = vunpack.c.l.b16 %v1369
        %v1429 = vunpack.c.l.b16 %v1370
        %v1430 = vunpack.c.l.b16 %v1371
        %v1431 = vunpack.c.l.b16 %v1372
        %v1432 = vunpack.c.l.b16 %v1373
        %v1433 = vpack.c.b16 %v1418, %v1417
        %v1434 = vpack.c.b16 %v1420, %v1419
        %v1435 = vpack.c.b16 %v1422, %v1421
        %v1436 = vpack.c.b16 %v1424, %v1423
        %v1437 = vpack.c.b16 %v1426, %v1425
        %v1438 = vpack.c.b16 %v1428, %v1427
        %v1439 = vpack.c.b16 %v1430, %v1429
        %v1440 = vpack.c.b16 %v1432, %v1431
        %1449 = vmatpush.bf16.msra.mxu0 %v1440
        %1450 = vmatpush.bf16.msra.mxu0 %v1439
        %1451 = vmatpush.bf16.msra.mxu0 %v1438
        %1452 = vmatpush.bf16.msra.mxu0 %v1437
        %1453 = vmatpush.bf16.msra.mxu0 %v1436
        %1454 = vmatpush.bf16.msra.mxu0 %v1435
        %1455 = vmatpush.bf16.msra.mxu0 %v1434
        %1456 = vmatpush.bf16.msra.mxu0 %v1433
        %1457 = vmatmul.bf16.gmra.mxu0 %v1389
        %v1458 = vpop.f32.mrf.mxu0
        %v1459 = vadd.f32 0.0, %v1458
        %v1460 = vpop.f32.mrf.mxu0
        %v1461 = vadd.f32 0.0, %v1460
        %1462 = vmatmul.bf16.gmra.mxu0 %v1398
        %v1463 = vpop.f32.mrf.mxu0
        %v1464 = vadd.f32 0.0, %v1463
        %v1465 = vpop.f32.mrf.mxu0
        %v1466 = vadd.f32 0.0, %v1465
        %1467 = vdwg.mxu0
        %v1468 = vadd.f32 %v1352, %v1459
        %v1469 = vadd.f32 %v1353, %v1461
        %v1470 = vadd.f32 %v1354, %v1464
        %v1471 = vadd.f32 %v1355, %v1466
        %v1472 = vld [vmem:[%s290 + $0x10] sm:$0x7]
        %s1473 = scalar_lea.vmem [#allocation2], 704
        %v1474 = vld [vmem:[%s1473] sm:$0xf]
        %v1475 = vld [vmem:[%s1473 + $0x4] sm:$0xf]
        %v1476 = vld [vmem:[%s1473 + $0x8] sm:$0xf]
        %v1477 = vld [vmem:[%s1473 + $0xc] sm:$0xf]
        %v1478 = vld [vmem:[%s1473 + $0x10] sm:$0xf]
        %v1479 = vld [vmem:[%s1473 + $0x14] sm:$0xf]
        %v1480 = vld [vmem:[%s1473 + $0x18] sm:$0xf]
        %v1481 = vld [vmem:[%s1473 + $0x1c] sm:$0xf]
        %v1482 = vld [vmem:[%s1473 + $0x20] sm:$0xf]
        %v1483 = vld [vmem:[%s1473 + $0x24] sm:$0xf]
        %v1484 = vld [vmem:[%s1473 + $0x28] sm:$0xf]
        %v1485 = vld [vmem:[%s1473 + $0x2c] sm:$0xf]
        %v1486 = vld [vmem:[%s1473 + $0x30] sm:$0xf]
        %v1487 = vld [vmem:[%s1473 + $0x34] sm:$0xf]
        %v1488 = vld [vmem:[%s1473 + $0x38] sm:$0xf]
        %v1489 = vld [vmem:[%s1473 + $0x3c] sm:$0xf]
        %v1491 = vunpack.c.l.b16 %v1472
        %v1492 = vpack.c.b16 %v1491, %v1491
        %v1494 = vshrl.u32 %v1277, 16
        %v1496 = vrot.slane %v1494, 2
        %v1497 = vshll.u32 %v1277, 16
        %v1499 = vrot.slane %v1497, 3
        %v1500 = vor.u32 %v1496, %v1499
        %v1501 = vrot.slane %v646, 2
        %v1502 = vrot.slane %v642, 3
        %v1503 = vor.u32 %v1501, %v1502
        %v1504 = vsel %vm1377, %v1500, %v1503
        %v1506 = vshrl.u32 %v1492, 16
        %v1508 = vrot.slane %v1506, 2
        %v1509 = vshll.u32 %v1492, 16
        %v1511 = vrot.slane %v1509, 3
        %v1512 = vor.u32 %v1508, %v1511
        %v1513 = vsel %vm1377, %v1503, %v1512
        %v1532 = vunpack.c.l.b16 %v1474
        %v1533 = vunpack.c.l.b16 %v1475
        %v1534 = vunpack.c.l.b16 %v1476
        %v1535 = vunpack.c.l.b16 %v1477
        %v1536 = vunpack.c.l.b16 %v1478
        %v1537 = vunpack.c.l.b16 %v1479
        %v1538 = vunpack.c.l.b16 %v1480
        %v1539 = vunpack.c.l.b16 %v1481
        %v1540 = vunpack.c.l.b16 %v1482
        %v1541 = vunpack.c.l.b16 %v1483
        %v1542 = vunpack.c.l.b16 %v1484
        %v1543 = vunpack.c.l.b16 %v1485
        %v1544 = vunpack.c.l.b16 %v1486
        %v1545 = vunpack.c.l.b16 %v1487
        %v1546 = vunpack.c.l.b16 %v1488
        %v1547 = vunpack.c.l.b16 %v1489
        %v1548 = vpack.c.b16 %v1533, %v1532
        %v1549 = vpack.c.b16 %v1535, %v1534
        %v1550 = vpack.c.b16 %v1537, %v1536
        %v1551 = vpack.c.b16 %v1539, %v1538
        %v1552 = vpack.c.b16 %v1541, %v1540
        %v1553 = vpack.c.b16 %v1543, %v1542
        %v1554 = vpack.c.b16 %v1545, %v1544
        %v1555 = vpack.c.b16 %v1547, %v1546
        %1564 = vmatpush.bf16.msra.mxu0 %v1555
        %1565 = vmatpush.bf16.msra.mxu0 %v1554
        %1566 = vmatpush.bf16.msra.mxu0 %v1553
        %1567 = vmatpush.bf16.msra.mxu0 %v1552
        %1568 = vmatpush.bf16.msra.mxu0 %v1551
        %1569 = vmatpush.bf16.msra.mxu0 %v1550
        %1570 = vmatpush.bf16.msra.mxu0 %v1549
        %1571 = vmatpush.bf16.msra.mxu0 %v1548
        %1572 = vmatmul.bf16.gmra.mxu0 %v1504
        %v1573 = vpop.f32.mrf.mxu0
        %v1574 = vadd.f32 0.0, %v1573
        %v1575 = vpop.f32.mrf.mxu0
        %v1576 = vadd.f32 0.0, %v1575
        %1577 = vmatmul.bf16.gmra.mxu0 %v1513
        %v1578 = vpop.f32.mrf.mxu0
        %v1579 = vadd.f32 0.0, %v1578
        %v1580 = vpop.f32.mrf.mxu0
        %v1581 = vadd.f32 0.0, %v1580
        %1582 = vdwg.mxu0
        %v1583 = vadd.f32 %v1468, %v1574
        %v1584 = vadd.f32 %v1469, %v1576
        %v1585 = vadd.f32 %v1470, %v1579
        %v1586 = vadd.f32 %v1471, %v1581
        %v1587 = vld [vmem:[%s255] sm:$0x8]
        %s1588 = scalar_lea.vmem [#allocation2], 768
        %v1589 = vld [vmem:[%s1588] sm:$0xf]
        %v1590 = vld [vmem:[%s1588 + $0x4] sm:$0xf]
        %v1591 = vld [vmem:[%s1588 + $0x8] sm:$0xf]
        %v1592 = vld [vmem:[%s1588 + $0xc] sm:$0xf]
        %v1593 = vld [vmem:[%s1588 + $0x10] sm:$0xf]
        %v1594 = vld [vmem:[%s1588 + $0x14] sm:$0xf]
        %v1595 = vld [vmem:[%s1588 + $0x18] sm:$0xf]
        %v1596 = vld [vmem:[%s1588 + $0x1c] sm:$0xf]
        %v1597 = vld [vmem:[%s1588 + $0x20] sm:$0xf]
        %v1598 = vld [vmem:[%s1588 + $0x24] sm:$0xf]
        %v1599 = vld [vmem:[%s1588 + $0x28] sm:$0xf]
        %v1600 = vld [vmem:[%s1588 + $0x2c] sm:$0xf]
        %v1601 = vld [vmem:[%s1588 + $0x30] sm:$0xf]
        %v1602 = vld [vmem:[%s1588 + $0x34] sm:$0xf]
        %v1603 = vld [vmem:[%s1588 + $0x38] sm:$0xf]
        %v1604 = vld [vmem:[%s1588 + $0x3c] sm:$0xf]
        %v1606 = vunpack.c.l.b16 %v1587
        %v1607 = vpack.c.b16 %v498, %v1606
        %vm1608 = vcmask 1044480
        %v1609 = vrot.slane %v1607, 3
        %v1610 = vrot.slane %v503, 3
        %v1611 = vsel %vm1608, %v1609, %v1610
        %v1612 = vrot.slane %v1376, 3
        %v1613 = vsel %vm1608, %v1610, %v1612
        %v1632 = vunpack.c.l.b16 %v1589
        %v1633 = vunpack.c.l.b16 %v1590
        %v1634 = vunpack.c.l.b16 %v1591
        %v1635 = vunpack.c.l.b16 %v1592
        %v1636 = vunpack.c.l.b16 %v1593
        %v1637 = vunpack.c.l.b16 %v1594
        %v1638 = vunpack.c.l.b16 %v1595
        %v1639 = vunpack.c.l.b16 %v1596
        %v1640 = vunpack.c.l.b16 %v1597
        %v1641 = vunpack.c.l.b16 %v1598
        %v1642 = vunpack.c.l.b16 %v1599
        %v1643 = vunpack.c.l.b16 %v1600
        %v1644 = vunpack.c.l.b16 %v1601
        %v1645 = vunpack.c.l.b16 %v1602
        %v1646 = vunpack.c.l.b16 %v1603
        %v1647 = vunpack.c.l.b16 %v1604
        %v1648 = vpack.c.b16 %v1633, %v1632
        %v1649 = vpack.c.b16 %v1635, %v1634
        %v1650 = vpack.c.b16 %v1637, %v1636
        %v1651 = vpack.c.b16 %v1639, %v1638
        %v1652 = vpack.c.b16 %v1641, %v1640
        %v1653 = vpack.c.b16 %v1643, %v1642
        %v1654 = vpack.c.b16 %v1645, %v1644
        %v1655 = vpack.c.b16 %v1647, %v1646
        %1664 = vmatpush.bf16.msra.mxu0 %v1655
        %1665 = vmatpush.bf16.msra.mxu0 %v1654
        %1666 = vmatpush.bf16.msra.mxu0 %v1653
        %1667 = vmatpush.bf16.msra.mxu0 %v1652
        %1668 = vmatpush.bf16.msra.mxu0 %v1651
        %1669 = vmatpush.bf16.msra.mxu0 %v1650
        %1670 = vmatpush.bf16.msra.mxu0 %v1649
        %1671 = vmatpush.bf16.msra.mxu0 %v1648
        %1672 = vmatmul.bf16.gmra.mxu0 %v1611
        %v1673 = vpop.f32.mrf.mxu0
        %v1674 = vadd.f32 0.0, %v1673
        %v1675 = vpop.f32.mrf.mxu0
        %v1676 = vadd.f32 0.0, %v1675
        %1677 = vmatmul.bf16.gmra.mxu0 %v1613
        %v1678 = vpop.f32.mrf.mxu0
        %v1679 = vadd.f32 0.0, %v1678
        %v1680 = vpop.f32.mrf.mxu0
        %v1681 = vadd.f32 0.0, %v1680
        %1682 = vdwg.mxu0
        %v1683 = vadd.f32 %v1583, %v1674
        %v1684 = vadd.f32 %v1584, %v1676
        %v1685 = vadd.f32 %v1585, %v1679
        %v1686 = vadd.f32 %v1586, %v1681
        %v1687 = vld [vmem:[%s290] sm:$0x8]
        %s1688 = scalar_lea.vmem [#allocation2], 832
        %v1689 = vld [vmem:[%s1688] sm:$0xf]
        %v1690 = vld [vmem:[%s1688 + $0x4] sm:$0xf]
        %v1691 = vld [vmem:[%s1688 + $0x8] sm:$0xf]
        %v1692 = vld [vmem:[%s1688 + $0xc] sm:$0xf]
        %v1693 = vld [vmem:[%s1688 + $0x10] sm:$0xf]
        %v1694 = vld [vmem:[%s1688 + $0x14] sm:$0xf]
        %v1695 = vld [vmem:[%s1688 + $0x18] sm:$0xf]
        %v1696 = vld [vmem:[%s1688 + $0x1c] sm:$0xf]
        %v1697 = vld [vmem:[%s1688 + $0x20] sm:$0xf]
        %v1698 = vld [vmem:[%s1688 + $0x24] sm:$0xf]
        %v1699 = vld [vmem:[%s1688 + $0x28] sm:$0xf]
        %v1700 = vld [vmem:[%s1688 + $0x2c] sm:$0xf]
        %v1701 = vld [vmem:[%s1688 + $0x30] sm:$0xf]
        %v1702 = vld [vmem:[%s1688 + $0x34] sm:$0xf]
        %v1703 = vld [vmem:[%s1688 + $0x38] sm:$0xf]
        %v1704 = vld [vmem:[%s1688 + $0x3c] sm:$0xf]
        %v1706 = vunpack.c.l.b16 %v1687
        %v1707 = vpack.c.b16 %v627, %v1706
        %v1708 = vrot.slane %v1707, 3
        %v1709 = vrot.slane %v632, 3
        %v1710 = vsel %vm1608, %v1708, %v1709
        %v1711 = vrot.slane %v1492, 3
        %v1712 = vsel %vm1608, %v1709, %v1711
        %v1731 = vunpack.c.l.b16 %v1689
        %v1732 = vunpack.c.l.b16 %v1690
        %v1733 = vunpack.c.l.b16 %v1691
        %v1734 = vunpack.c.l.b16 %v1692
        %v1735 = vunpack.c.l.b16 %v1693
        %v1736 = vunpack.c.l.b16 %v1694
        %v1737 = vunpack.c.l.b16 %v1695
        %v1738 = vunpack.c.l.b16 %v1696
        %v1739 = vunpack.c.l.b16 %v1697
        %v1740 = vunpack.c.l.b16 %v1698
        %v1741 = vunpack.c.l.b16 %v1699
        %v1742 = vunpack.c.l.b16 %v1700
        %v1743 = vunpack.c.l.b16 %v1701
        %v1744 = vunpack.c.l.b16 %v1702
        %v1745 = vunpack.c.l.b16 %v1703
        %v1746 = vunpack.c.l.b16 %v1704
        %v1747 = vpack.c.b16 %v1732, %v1731
        %v1748 = vpack.c.b16 %v1734, %v1733
        %v1749 = vpack.c.b16 %v1736, %v1735
        %v1750 = vpack.c.b16 %v1738, %v1737
        %v1751 = vpack.c.b16 %v1740, %v1739
        %v1752 = vpack.c.b16 %v1742, %v1741
        %v1753 = vpack.c.b16 %v1744, %v1743
        %v1754 = vpack.c.b16 %v1746, %v1745
        %1763 = vmatpush.bf16.msra.mxu0 %v1754
        %1764 = vmatpush.bf16.msra.mxu0 %v1753
        %1765 = vmatpush.bf16.msra.mxu0 %v1752
        %1766 = vmatpush.bf16.msra.mxu0 %v1751
        %1767 = vmatpush.bf16.msra.mxu0 %v1750
        %1768 = vmatpush.bf16.msra.mxu0 %v1749
        %1769 = vmatpush.bf16.msra.mxu0 %v1748
        %1770 = vmatpush.bf16.msra.mxu0 %v1747
        %1771 = vmatmul.bf16.gmra.mxu0 %v1710
        %v1772 = vpop.f32.mrf.mxu0
        %v1773 = vadd.f32 0.0, %v1772
        %v1774 = vpop.f32.mrf.mxu0
        %v1775 = vadd.f32 0.0, %v1774
        %1776 = vmatmul.bf16.gmra.mxu0 %v1712
        %v1777 = vpop.f32.mrf.mxu0
        %v1778 = vadd.f32 0.0, %v1777
        %v1779 = vpop.f32.mrf.mxu0
        %v1780 = vadd.f32 0.0, %v1779
        %1781 = vdwg.mxu0
        %v1782 = vadd.f32 %v1683, %v1773
        %v1783 = vadd.f32 %v1684, %v1775
        %v1784 = vadd.f32 %v1685, %v1778
        %v1785 = vadd.f32 %v1686, %v1780
        %v1786 = vld [vmem:[%s255 + $0x10] sm:$0xf]
        %s1787 = scalar_lea.vmem [#allocation2], 896
        %v1788 = vld [vmem:[%s1787] sm:$0xf]
        %v1789 = vld [vmem:[%s1787 + $0x4] sm:$0xf]
        %v1790 = vld [vmem:[%s1787 + $0x8] sm:$0xf]
        %v1791 = vld [vmem:[%s1787 + $0xc] sm:$0xf]
        %v1792 = vld [vmem:[%s1787 + $0x10] sm:$0xf]
        %v1793 = vld [vmem:[%s1787 + $0x14] sm:$0xf]
        %v1794 = vld [vmem:[%s1787 + $0x18] sm:$0xf]
        %v1795 = vld [vmem:[%s1787 + $0x1c] sm:$0xf]
        %v1796 = vld [vmem:[%s1787 + $0x20] sm:$0xf]
        %v1797 = vld [vmem:[%s1787 + $0x24] sm:$0xf]
        %v1798 = vld [vmem:[%s1787 + $0x28] sm:$0xf]
        %v1799 = vld [vmem:[%s1787 + $0x2c] sm:$0xf]
        %v1800 = vld [vmem:[%s1787 + $0x30] sm:$0xf]
        %v1801 = vld [vmem:[%s1787 + $0x34] sm:$0xf]
        %v1802 = vld [vmem:[%s1787 + $0x38] sm:$0xf]
        %v1803 = vld [vmem:[%s1787 + $0x3c] sm:$0xf]
        %v1805 = vunpack.c.l.b16 %v1786
        %v1806 = vpack.c.b16 %v1805, %v1805
        %vm1807 = vsmask.f32 4352
        %v1809 = vshrl.u32 %v1607, 16
        %v1811 = vrot.slane %v1809, 3
        %v1812 = vshll.u32 %v1607, 16
        %v1814 = vrot.slane %v1812, 4
        %v1815 = vor.u32 %v1811, %v1814
        %v1816 = vrot.slane %v518, 3
        %v1817 = vrot.slane %v514, 4
        %v1818 = vor.u32 %v1816, %v1817
        %v1819 = vsel %vm1807, %v1815, %v1818
        %v1821 = vshrl.u32 %v1806, 16
        %v1823 = vrot.slane %v1821, 3
        %v1824 = vshll.u32 %v1806, 16
        %v1826 = vrot.slane %v1824, 4
        %v1827 = vor.u32 %v1823, %v1826
        %v1828 = vsel %vm1807, %v1818, %v1827
        %v1847 = vunpack.c.l.b16 %v1788
        %v1848 = vunpack.c.l.b16 %v1789
        %v1849 = vunpack.c.l.b16 %v1790
        %v1850 = vunpack.c.l.b16 %v1791
        %v1851 = vunpack.c.l.b16 %v1792
        %v1852 = vunpack.c.l.b16 %v1793
        %v1853 = vunpack.c.l.b16 %v1794
        %v1854 = vunpack.c.l.b16 %v1795
        %v1855 = vunpack.c.l.b16 %v1796
        %v1856 = vunpack.c.l.b16 %v1797
        %v1857 = vunpack.c.l.b16 %v1798
        %v1858 = vunpack.c.l.b16 %v1799
        %v1859 = vunpack.c.l.b16 %v1800
        %v1860 = vunpack.c.l.b16 %v1801
        %v1861 = vunpack.c.l.b16 %v1802
        %v1862 = vunpack.c.l.b16 %v1803
        %v1863 = vpack.c.b16 %v1848, %v1847
        %v1864 = vpack.c.b16 %v1850, %v1849
        %v1865 = vpack.c.b16 %v1852, %v1851
        %v1866 = vpack.c.b16 %v1854, %v1853
        %v1867 = vpack.c.b16 %v1856, %v1855
        %v1868 = vpack.c.b16 %v1858, %v1857
        %v1869 = vpack.c.b16 %v1860, %v1859
        %v1870 = vpack.c.b16 %v1862, %v1861
        %1879 = vmatpush.bf16.msra.mxu0 %v1870
        %1880 = vmatpush.bf16.msra.mxu0 %v1869
        %1881 = vmatpush.bf16.msra.mxu0 %v1868
        %1882 = vmatpush.bf16.msra.mxu0 %v1867
        %1883 = vmatpush.bf16.msra.mxu0 %v1866
        %1884 = vmatpush.bf16.msra.mxu0 %v1865
        %1885 = vmatpush.bf16.msra.mxu0 %v1864
        %1886 = vmatpush.bf16.msra.mxu0 %v1863
        %1887 = vmatmul.bf16.gmra.mxu0 %v1819
        %v1888 = vpop.f32.mrf.mxu0
        %v1889 = vadd.f32 0.0, %v1888
        %v1890 = vpop.f32.mrf.mxu0
        %v1891 = vadd.f32 0.0, %v1890
        %1892 = vmatmul.bf16.gmra.mxu0 %v1828
        %v1893 = vpop.f32.mrf.mxu0
        %v1894 = vadd.f32 0.0, %v1893
        %v1895 = vpop.f32.mrf.mxu0
        %v1896 = vadd.f32 0.0, %v1895
        %1897 = vdwg.mxu0
        %v1898 = vadd.f32 %v1782, %v1889
        %v1899 = vadd.f32 %v1783, %v1891
        %v1900 = vadd.f32 %v1784, %v1894
        %v1901 = vadd.f32 %v1785, %v1896
        %v1902 = vld [vmem:[%s290 + $0x10] sm:$0xf]
        %s1903 = scalar_lea.vmem [#allocation2], 960
        %v1904 = vld [vmem:[%s1903] sm:$0xf]
        %v1905 = vld [vmem:[%s1903 + $0x4] sm:$0xf]
        %v1906 = vld [vmem:[%s1903 + $0x8] sm:$0xf]
        %v1907 = vld [vmem:[%s1903 + $0xc] sm:$0xf]
        %v1908 = vld [vmem:[%s1903 + $0x10] sm:$0xf]
        %v1909 = vld [vmem:[%s1903 + $0x14] sm:$0xf]
        %v1910 = vld [vmem:[%s1903 + $0x18] sm:$0xf]
        %v1911 = vld [vmem:[%s1903 + $0x1c] sm:$0xf]
        %v1912 = vld [vmem:[%s1903 + $0x20] sm:$0xf]
        %v1913 = vld [vmem:[%s1903 + $0x24] sm:$0xf]
        %v1914 = vld [vmem:[%s1903 + $0x28] sm:$0xf]
        %v1915 = vld [vmem:[%s1903 + $0x2c] sm:$0xf]
        %v1916 = vld [vmem:[%s1903 + $0x30] sm:$0xf]
        %v1917 = vld [vmem:[%s1903 + $0x34] sm:$0xf]
        %v1918 = vld [vmem:[%s1903 + $0x38] sm:$0xf]
        %v1919 = vld [vmem:[%s1903 + $0x3c] sm:$0xf]
        %v1921 = vunpack.c.l.b16 %v1902
        %v1922 = vpack.c.b16 %v1921, %v1921
        %v1924 = vshrl.u32 %v1707, 16
        %v1926 = vrot.slane %v1924, 3
        %v1927 = vshll.u32 %v1707, 16
        %v1929 = vrot.slane %v1927, 4
        %v1930 = vor.u32 %v1926, %v1929
        %v1931 = vrot.slane %v646, 3
        %v1932 = vrot.slane %v642, 4
        %v1933 = vor.u32 %v1931, %v1932
        %v1934 = vsel %vm1807, %v1930, %v1933
        %v1936 = vshrl.u32 %v1922, 16
        %v1938 = vrot.slane %v1936, 3
        %v1939 = vshll.u32 %v1922, 16
        %v1941 = vrot.slane %v1939, 4
        %v1942 = vor.u32 %v1938, %v1941
        %v1943 = vsel %vm1807, %v1933, %v1942
        %v1962 = vunpack.c.l.b16 %v1904
        %v1963 = vunpack.c.l.b16 %v1905
        %v1964 = vunpack.c.l.b16 %v1906
        %v1965 = vunpack.c.l.b16 %v1907
        %v1966 = vunpack.c.l.b16 %v1908
        %v1967 = vunpack.c.l.b16 %v1909
        %v1968 = vunpack.c.l.b16 %v1910
        %v1969 = vunpack.c.l.b16 %v1911
        %v1970 = vunpack.c.l.b16 %v1912
        %v1971 = vunpack.c.l.b16 %v1913
        %v1972 = vunpack.c.l.b16 %v1914
        %v1973 = vunpack.c.l.b16 %v1915
        %v1974 = vunpack.c.l.b16 %v1916
        %v1975 = vunpack.c.l.b16 %v1917
        %v1976 = vunpack.c.l.b16 %v1918
        %v1977 = vunpack.c.l.b16 %v1919
        %v1978 = vpack.c.b16 %v1963, %v1962
        %v1979 = vpack.c.b16 %v1965, %v1964
        %v1980 = vpack.c.b16 %v1967, %v1966
        %v1981 = vpack.c.b16 %v1969, %v1968
        %v1982 = vpack.c.b16 %v1971, %v1970
        %v1983 = vpack.c.b16 %v1973, %v1972
        %v1984 = vpack.c.b16 %v1975, %v1974
        %v1985 = vpack.c.b16 %v1977, %v1976
        %1994 = vmatpush.bf16.msra.mxu0 %v1985
        %1995 = vmatpush.bf16.msra.mxu0 %v1984
        %1996 = vmatpush.bf16.msra.mxu0 %v1983
        %1997 = vmatpush.bf16.msra.mxu0 %v1982
        %1998 = vmatpush.bf16.msra.mxu0 %v1981
        %1999 = vmatpush.bf16.msra.mxu0 %v1980
        %2000 = vmatpush.bf16.msra.mxu0 %v1979
        %2001 = vmatpush.bf16.msra.mxu0 %v1978
        %2002 = vmatmul.bf16.gmra.mxu0 %v1934
        %v2003 = vpop.f32.mrf.mxu0
        %v2004 = vadd.f32 0.0, %v2003
        %v2005 = vpop.f32.mrf.mxu0
        %v2006 = vadd.f32 0.0, %v2005
        %2007 = vmatmul.bf16.gmra.mxu0 %v1943
        %v2008 = vpop.f32.mrf.mxu0
        %v2009 = vadd.f32 0.0, %v2008
        %v2010 = vpop.f32.mrf.mxu0
        %v2011 = vadd.f32 0.0, %v2010
        %2012 = vdwg.mxu0
        %v2013 = vadd.f32 %v1898, %v2004
        %v2014 = vadd.f32 %v1899, %v2006
        %v2015 = vadd.f32 %v1900, %v2009
        %v2016 = vadd.f32 %v1901, %v2011
        %s2017 = scalar_lea.vmem [#allocation2], 1024
        %v2018 = vld [vmem:[%s2017] sm:$0xf]
        %v2019 = vld [vmem:[%s2017 + $0x4] sm:$0xf]
        %v2020 = vld [vmem:[%s2017 + $0x8] sm:$0xf]
        %v2021 = vld [vmem:[%s2017 + $0xc] sm:$0xf]
        %v2022 = vld [vmem:[%s2017 + $0x10] sm:$0xf]
        %v2023 = vld [vmem:[%s2017 + $0x14] sm:$0xf]
        %v2024 = vld [vmem:[%s2017 + $0x18] sm:$0xf]
        %v2025 = vld [vmem:[%s2017 + $0x1c] sm:$0xf]
        %v2026 = vld [vmem:[%s2017 + $0x20] sm:$0xf]
        %v2027 = vld [vmem:[%s2017 + $0x24] sm:$0xf]
        %v2028 = vld [vmem:[%s2017 + $0x28] sm:$0xf]
        %v2029 = vld [vmem:[%s2017 + $0x2c] sm:$0xf]
        %v2030 = vld [vmem:[%s2017 + $0x30] sm:$0xf]
        %v2031 = vld [vmem:[%s2017 + $0x34] sm:$0xf]
        %v2032 = vld [vmem:[%s2017 + $0x38] sm:$0xf]
        %v2033 = vld [vmem:[%s2017 + $0x3c] sm:$0xf]
        %v2034 = vpack.c.b16 %v499, %v498
        %v2035 = vpack.c.b16 %v1805, %v500
        %v2054 = vunpack.c.l.b16 %v2018
        %v2055 = vunpack.c.l.b16 %v2019
        %v2056 = vunpack.c.l.b16 %v2020
        %v2057 = vunpack.c.l.b16 %v2021
        %v2058 = vunpack.c.l.b16 %v2022
        %v2059 = vunpack.c.l.b16 %v2023
        %v2060 = vunpack.c.l.b16 %v2024
        %v2061 = vunpack.c.l.b16 %v2025
        %v2062 = vunpack.c.l.b16 %v2026
        %v2063 = vunpack.c.l.b16 %v2027
        %v2064 = vunpack.c.l.b16 %v2028
        %v2065 = vunpack.c.l.b16 %v2029
        %v2066 = vunpack.c.l.b16 %v2030
        %v2067 = vunpack.c.l.b16 %v2031
        %v2068 = vunpack.c.l.b16 %v2032
        %v2069 = vunpack.c.l.b16 %v2033
        %v2070 = vpack.c.b16 %v2055, %v2054
        %v2071 = vpack.c.b16 %v2057, %v2056
        %v2072 = vpack.c.b16 %v2059, %v2058
        %v2073 = vpack.c.b16 %v2061, %v2060
        %v2074 = vpack.c.b16 %v2063, %v2062
        %v2075 = vpack.c.b16 %v2065, %v2064
        %v2076 = vpack.c.b16 %v2067, %v2066
        %v2077 = vpack.c.b16 %v2069, %v2068
        %2086 = vmatpush.bf16.msra.mxu0 %v2077
        %2087 = vmatpush.bf16.msra.mxu0 %v2076
        %2088 = vmatpush.bf16.msra.mxu0 %v2075
        %2089 = vmatpush.bf16.msra.mxu0 %v2074
        %2090 = vmatpush.bf16.msra.mxu0 %v2073
        %2091 = vmatpush.bf16.msra.mxu0 %v2072
        %2092 = vmatpush.bf16.msra.mxu0 %v2071
        %2093 = vmatpush.bf16.msra.mxu0 %v2070
        %2094 = vmatmul.bf16.gmra.mxu0 %v2034
        %v2095 = vpop.f32.mrf.mxu0
        %v2096 = vadd.f32 0.0, %v2095
        %v2097 = vpop.f32.mrf.mxu0
        %v2098 = vadd.f32 0.0, %v2097
        %2099 = vmatmul.bf16.gmra.mxu0 %v2035
        %v2100 = vpop.f32.mrf.mxu0
        %v2101 = vadd.f32 0.0, %v2100
        %v2102 = vpop.f32.mrf.mxu0
        %v2103 = vadd.f32 0.0, %v2102
        %2104 = vdwg.mxu0
        %v2105 = vadd.f32 %v2013, %v2096
        %v2106 = vadd.f32 %v2014, %v2098
        %v2107 = vadd.f32 %v2015, %v2101
        %v2108 = vadd.f32 %v2016, %v2103
        %v2109 = vld [vmem:[%s258] sm:$0x1]
        %v2111 = vperm.slane %v2109, 0
        %v2113 = vmul.f32 %v2105, %v2111
        %v2114 = vmul.f32 %v2106, %v2111
        %v2115 = vmul.f32 %v2107, %v2111
        %v2116 = vmul.f32 %v2108, %v2111
        %v2117 = vld [vmem:[%s261] sm:$0x1]
        %v2119 = vperm.slane %v2117, 0
        %v2121 = vadd.f32 %v2113, %v2119
        %v2122 = vadd.f32 %v2114, %v2119
        %v2123 = vadd.f32 %v2115, %v2119
        %v2124 = vadd.f32 %v2116, %v2119
        %v2125 = vpack.c.bf16 %v2121, %v2121
        %v2126 = vpack.c.bf16 %v2122, %v2122
        %v2127 = vpack.c.bf16 %v2123, %v2123
        %v2128 = vpack.c.bf16 %v2124, %v2124
        %2129 = vst [vmem:[%s269] sm:$0xf] %v2125
        %2130 = vst [vmem:[%s269 + $0x4] sm:$0xf] %v2126
        %2131 = vst [vmem:[%s269 + $0x8] sm:$0xf] %v2127
        %2132 = vst [vmem:[%s269 + $0xc] sm:$0xf] %v2128
        %p2133 = scmp.lt.s32.totalorder %s20, 1
        %s2134 = scalar_select %p2133, %s20, 1
        %p2135 = scmp.lt.s32.totalorder %s21, 0
        %s2136 = scalar_select %p2135, %s21, 0
        %s2137 = smul.addr %s2134, 4
        %s2138 = sadd.s32 %s2136, %s2137
        %s2139 = smul.addr %s2138, 4
        %s2140 = scalar_lea.vmem %s4, %s2139
        // Predicated region
        $region41: #{resnet1d_forward.5} parent=35 // pred_check
          %p2141 = pneg %p152
        $region42: #{resnet1d_forward.5} parent=35 // pred_check_branch
          %2143 = sbr.rel (%p2141) target = $region44
        $region43: #{resnet1d_forward.5} parent=35 // pred_region
          _
        $region44: #{resnet1d_forward.5} parent=35 // pred_fallthru
          _
      $region36: #{resnet1d_forward.5} parent=5 // pred_fallthru
        _
      %p2144 = scmp.le.s32.totalorder 2, %s11
      // Predicated region
      $region45: #{resnet1d_forward.5} parent=5 // pred_check
        %p2145 = pneg %p2144
      $region46: #{resnet1d_forward.5} parent=5 // pred_check_branch
        %2147 = sbr.rel (%p2145) target = $region48
      $region47: #{resnet1d_forward.5} parent=5 // pred_region
        %s2148 = ssub.s32 %s11, 2
        // Predicated region
        $region49: #{resnet1d_forward.5} parent=47 // pred_check
          %p2149 = pneg %p158
        $region50: #{resnet1d_forward.5} parent=47 // pred_check_branch
          %2151 = sbr.rel (%p2149) target = $region52
        $region51: #{resnet1d_forward.5} parent=47 // pred_region
          %p2152 = scmp.lt.s32.totalorder %s22, 1
          %s2153 = scalar_select %p2152, %s22, 1
          %p2154 = scmp.lt.s32.totalorder %s23, 0
          %s2155 = scalar_select %p2154, %s23, 0
          %s2156 = smul.addr %s2153, 4
          %s2157 = sadd.s32 %s2155, %s2156
          %s2158 = smul.addr %s2157, 4
          %s2159 = scalar_lea.vmem %s4, %s2158
        $region52: #{resnet1d_forward.5} parent=47 // pred_fallthru
          _
      $region48: #{resnet1d_forward.5} parent=5 // pred_fallthru
        _
    $region6: #{resnet1d_forward.5} parent=1 // loop_footer
      %s15 = sadd.s32 1, %s11
    $region7: #{resnet1d_forward.5} parent=1 // loop_footer_branch
      %10 = sbr.rel target = $region3
    $region8: #{resnet1d_forward.5} parent=1 // loop_exit
      _
    %2160 = vsyncpa [#allocation3], 1
    %s2161 = scalar_lea.sflag [#allocation3], 1
    %2162 = vsyncpa %s2161, 1

// kernel: resnet1d_forward.9
$region0: #{resnet1d_forward.9}
  #allocation0 [shape = 'u32[]', space=smem, size = 0x4, offset = 0x4, fixed_abs, tag = 'smem constant byte address 0x4 - core index']
  #allocation1 [shape = 'u32[72,128]{1,0:T(1,128)}', space=vmem, size = 0x9000, scoped, tag = 'internal scratch']
  %s0 = inlined_call_operand.vmem [shape: bf16[2,2,24,128], index: 0, kind: input, shape index: {}]
  %s1 = inlined_call_operand.hbm [shape: bf16[17,128,128], index: 1, kind: input, shape index: {}]
  %s2 = inlined_call_operand.vmem [shape: f32[1,128], index: 2, kind: input, shape index: {}]
  %s3 = inlined_call_operand.vmem [shape: f32[1,128], index: 3, kind: input, shape index: {}]
  %s4 = inlined_call_operand.vmem [shape: bf16[2,2,16,128], index: 4, kind: input, shape index: {}]
  %s5 = inlined_call_operand.vmem [shape: bf16[1,128,128], index: 5, kind: input, shape index: {}]
  %s6 = inlined_call_operand.vmem [shape: bf16[2,16,128], index: 6, kind: output, shape index: {0}]
  %s7 = inlined_call_operand.hbm [shape: bf16[2,16,128], index: 7, kind: output, shape index: {1}]
  %8 = xla_tuple %s6, %s7
  %s9 = sld [smem:[#allocation0]]
  $region69: #{resnet1d_forward.9} parent=0
    _
  %s11 = ssub.s32 1, %s9
  %s12 = scalar_select 0, %s11, %s9
  $region1: #{resnet1d_forward.9} parent=0
    #allocation2 [shape = 'u8[557056]{0}', space=vmem, size = 0x88000, scoped, tag = 'input window, operand 1, single buffered']
    #allocation3 [shape = 's32[2]{0}', space=sflag, size = 0x8, scoped, tag = 'scoped memory for resnet1d_forward.9']
    #allocation4 [shape = 's32[2]{0}', space=sflag, size = 0x8, scoped, tag = 'scoped memory for resnet1d_forward.9']
    #allocation5 [shape = 'u8[8192]{0}', space=vmem, size = 0x2000, scoped, tag = 'output window, operand 1']
    %13 = vsyncpa [#allocation3], 0
    %14 = vsyncpa [#allocation4], 0
    %s15 = scalar_lea.sflag [#allocation4], 1
    %16 = vsyncpa %s15, 0
    loop: start=0, step=1, limit=4
    $region2: #{resnet1d_forward.9} parent=1 // loop_pre_header
      _
    $region3: #{resnet1d_forward.9} parent=1 // loop_header
      %s18 = sphi 0, %s22
      %p19 = scmp.ge.s32.totalorder %s18, 4
      %s25 = sphi 0, %s37
      %s26 = sphi 0, %s33
      %s27 = sphi 0, %s25
      %s28 = sphi 0, %s26
      %s29 = sphi 0, %s27
      %s30 = sphi 0, %s28
      %s40 = sphi 0, %s42
      %s43 = sphi 0, %s40
      %s44 = sphi 0, %s43
      %s60 = sphi 0, %s44
      %s66 = sphi 0, %s68
      %s69 = sphi 0, %s66
      %s70 = sphi 0, %s69
      %s86 = sphi 0, %s70
      %s92 = sphi 0, %s94
      %s95 = sphi 0, %s92
      %s96 = sphi 0, %s95
      %s112 = sphi 0, %s96
      %s118 = sphi 0, %s120
      %s121 = sphi 0, %s118
      %s122 = sphi 0, %s121
      %s138 = sphi 0, %s122
      %s144 = sphi 0, %s146
      %s147 = sphi 0, %s144
      %s148 = sphi 0, %s147
      %s164 = sphi 0, %s148
      %s170 = sphi 0, %s172
      %s173 = sphi 0, %s170
      %s174 = sphi 0, %s173
      %s190 = sphi 0, %s174
      %s198 = sphi 0, %s200
      %s201 = sphi 0, %s198
      %s202 = sphi 0, %s201
      %s218 = sphi 0, %s202
      %s226 = sphi 0, %s228
      %s229 = sphi 0, %s226
      %s230 = sphi 0, %s229
      %s246 = sphi 0, %s230
    $region4: #{resnet1d_forward.9} parent=1 // loop_header_branch
      %21 = sbr.rel (%p19) target = $region8
    $region5: #{resnet1d_forward.9} parent=1 // loop_body
      %s23 = ssub.s32 %s18, 1
      %s24 = ssub.s32 %s18, 2
      %s31 = sadd.s32 1, %s26
      %p32 = scmp.ge.s32.totalorder %s31, 1
      %s33 = scalar_select %p32, 0, %s31
      %s34 = sadd.s32 1, %s25
      %s35 = scalar_select %p32, %s34, %s25
      %p36 = scmp.ge.s32.totalorder %s35, 2
      %s37 = scalar_select %p36, 0, %s35
      %s38 = ssub.s32 %s25, %s37
      %p39 = scmp.eq.s32.totalorder %s38, 0
      %s41 = sadd.s32 %s40, 1
      %s42 = scalar_select %p39, %s40, %s41
      %p45 = pneg %p39
      %p46 = scmp.eq.s32.totalorder %s18, 1
      %p47 = por %p45, %p46
      %p48 = scmp.ne.s32.totalorder %s40, %s43
      %p49 = scmp.eq.s32.totalorder %s18, 0
      %p50 = por %p48, %p49
      %p51 = scmp.ne.s32.totalorder %s40, %s43
      %p52 = scmp.eq.s32.totalorder %s23, 1
      %p53 = por %p51, %p52
      %p54 = scmp.ne.s32.totalorder %s43, %s44
      %p55 = scmp.eq.s32.totalorder %s23, 0
      %p56 = por %p54, %p55
      %p57 = scmp.ne.s32.totalorder %s43, %s44
      %p58 = scmp.eq.s32.totalorder %s24, 1
      %p59 = por %p57, %p58
      %p61 = scmp.ne.s32.totalorder %s44, %s60
      %p62 = scmp.eq.s32.totalorder %s24, 0
      %p63 = por %p61, %p62
      %s64 = ssub.s32 %s26, %s33
      %p65 = scmp.eq.s32.totalorder %s64, 0
      %s67 = sadd.s32 %s66, 1
      %s68 = scalar_select %p65, %s66, %s67
      %p71 = pneg %p65
      %p72 = scmp.eq.s32.totalorder %s18, 1
      %p73 = por %p71, %p72
      %p74 = scmp.ne.s32.totalorder %s66, %s69
      %p75 = scmp.eq.s32.totalorder %s18, 0
      %p76 = por %p74, %p75
      %p77 = scmp.ne.s32.totalorder %s66, %s69
      %p78 = scmp.eq.s32.totalorder %s23, 1
      %p79 = por %p77, %p78
      %p80 = scmp.ne.s32.totalorder %s69, %s70
      %p81 = scmp.eq.s32.totalorder %s23, 0
      %p82 = por %p80, %p81
      %p83 = scmp.ne.s32.totalorder %s69, %s70
      %p84 = scmp.eq.s32.totalorder %s24, 1
      %p85 = por %p83, %p84
      %p87 = scmp.ne.s32.totalorder %s70, %s86
      %p88 = scmp.eq.s32.totalorder %s24, 0
      %p89 = por %p87, %p88
      %s90 = ssub.s32 %s26, %s33
      %p91 = scmp.eq.s32.totalorder %s90, 0
      %s93 = sadd.s32 %s92, 1
      %s94 = scalar_select %p91, %s92, %s93
      %p97 = pneg %p91
      %p98 = scmp.eq.s32.totalorder %s18, 1
      %p99 = por %p97, %p98
      %p100 = scmp.ne.s32.totalorder %s92, %s95
      %p101 = scmp.eq.s32.totalorder %s18, 0
      %p102 = por %p100, %p101
      %p103 = scmp.ne.s32.totalorder %s92, %s95
      %p104 = scmp.eq.s32.totalorder %s23, 1
      %p105 = por %p103, %p104
      %p106 = scmp.ne.s32.totalorder %s95, %s96
      %p107 = scmp.eq.s32.totalorder %s23, 0
      %p108 = por %p106, %p107
      %p109 = scmp.ne.s32.totalorder %s95, %s96
      %p110 = scmp.eq.s32.totalorder %s24, 1
      %p111 = por %p109, %p110
      %p113 = scmp.ne.s32.totalorder %s96, %s112
      %p114 = scmp.eq.s32.totalorder %s24, 0
      %p115 = por %p113, %p114
      %s116 = ssub.s32 %s26, %s33
      %p117 = scmp.eq.s32.totalorder %s116, 0
      %s119 = sadd.s32 %s118, 1
      %s120 = scalar_select %p117, %s118, %s119
      %p123 = pneg %p117
      %p124 = scmp.eq.s32.totalorder %s18, 1
      %p125 = por %p123, %p124
      %p126 = scmp.ne.s32.totalorder %s118, %s121
      %p127 = scmp.eq.s32.totalorder %s18, 0
      %p128 = por %p126, %p127
      %p129 = scmp.ne.s32.totalorder %s118, %s121
      %p130 = scmp.eq.s32.totalorder %s23, 1
      %p131 = por %p129, %p130
      %p132 = scmp.ne.s32.totalorder %s121, %s122
      %p133 = scmp.eq.s32.totalorder %s23, 0
      %p134 = por %p132, %p133
      %p135 = scmp.ne.s32.totalorder %s121, %s122
      %p136 = scmp.eq.s32.totalorder %s24, 1
      %p137 = por %p135, %p136
      %p139 = scmp.ne.s32.totalorder %s122, %s138
      %p140 = scmp.eq.s32.totalorder %s24, 0
      %p141 = por %p139, %p140
      %s142 = ssub.s32 %s25, %s37
      %p143 = scmp.eq.s32.totalorder %s142, 0
      %s145 = sadd.s32 %s144, 1
      %s146 = scalar_select %p143, %s144, %s145
      %p149 = pneg %p143
      %p150 = scmp.eq.s32.totalorder %s18, 1
      %p151 = por %p149, %p150
      %p152 = scmp.ne.s32.totalorder %s144, %s147
      %p153 = scmp.eq.s32.totalorder %s18, 0
      %p154 = por %p152, %p153
      %p155 = scmp.ne.s32.totalorder %s144, %s147
      %p156 = scmp.eq.s32.totalorder %s23, 1
      %p157 = por %p155, %p156
      %p158 = scmp.ne.s32.totalorder %s147, %s148
      %p159 = scmp.eq.s32.totalorder %s23, 0
      %p160 = por %p158, %p159
      %p161 = scmp.ne.s32.totalorder %s147, %s148
      %p162 = scmp.eq.s32.totalorder %s24, 1
      %p163 = por %p161, %p162
      %p165 = scmp.ne.s32.totalorder %s148, %s164
      %p166 = scmp.eq.s32.totalorder %s24, 0
      %p167 = por %p165, %p166
      %s168 = ssub.s32 %s26, %s33
      %p169 = scmp.eq.s32.totalorder %s168, 0
      %s171 = sadd.s32 %s170, 1
      %s172 = scalar_select %p169, %s170, %s171
      %p175 = pneg %p169
      %p176 = scmp.eq.s32.totalorder %s18, 1
      %p177 = por %p175, %p176
      %p178 = scmp.ne.s32.totalorder %s170, %s173
      %p179 = scmp.eq.s32.totalorder %s18, 0
      %p180 = por %p178, %p179
      %p181 = scmp.ne.s32.totalorder %s170, %s173
      %p182 = scmp.eq.s32.totalorder %s23, 1
      %p183 = por %p181, %p182
      %p184 = scmp.ne.s32.totalorder %s173, %s174
      %p185 = scmp.eq.s32.totalorder %s23, 0
      %p186 = por %p184, %p185
      %p187 = scmp.ne.s32.totalorder %s173, %s174
      %p188 = scmp.eq.s32.totalorder %s24, 1
      %p189 = por %p187, %p188
      %p191 = scmp.ne.s32.totalorder %s174, %s190
      %p192 = scmp.eq.s32.totalorder %s24, 0
      %p193 = por %p191, %p192
      %s194 = ssub.s32 %s25, %s37
      %s195 = ssub.s32 %s26, %s33
      %s196 = sor.u32 %s194, %s195
      %p197 = scmp.eq.s32.totalorder %s196, 0
      %s199 = sadd.s32 %s198, 1
      %s200 = scalar_select %p197, %s198, %s199
      %p203 = pneg %p197
      %p204 = scmp.eq.s32.totalorder %s18, 1
      %p205 = por %p203, %p204
      %p206 = scmp.ne.s32.totalorder %s198, %s201
      %p207 = scmp.eq.s32.totalorder %s18, 0
      %p208 = por %p206, %p207
      %p209 = scmp.ne.s32.totalorder %s198, %s201
      %p210 = scmp.eq.s32.totalorder %s23, 1
      %p211 = por %p209, %p210
      %p212 = scmp.ne.s32.totalorder %s201, %s202
      %p213 = scmp.eq.s32.totalorder %s23, 0
      %p214 = por %p212, %p213
      %p215 = scmp.ne.s32.totalorder %s201, %s202
      %p216 = scmp.eq.s32.totalorder %s24, 1
      %p217 = por %p215, %p216
      %p219 = scmp.ne.s32.totalorder %s202, %s218
      %p220 = scmp.eq.s32.totalorder %s24, 0
      %p221 = por %p219, %p220
      %s222 = ssub.s32 %s25, %s37
      %s223 = ssub.s32 %s26, %s33
      %s224 = sor.u32 %s222, %s223
      %p225 = scmp.eq.s32.totalorder %s224, 0
      %s227 = sadd.s32 %s226, 1
      %s228 = scalar_select %p225, %s226, %s227
      %p231 = pneg %p225
      %p232 = scmp.eq.s32.totalorder %s18, 1
      %p233 = por %p231, %p232
      %p234 = scmp.ne.s32.totalorder %s226, %s229
      %p235 = scmp.eq.s32.totalorder %s18, 0
      %p236 = por %p234, %p235
      %p237 = scmp.ne.s32.totalorder %s226, %s229
      %p238 = scmp.eq.s32.totalorder %s23, 1
      %p239 = por %p237, %p238
      %p240 = scmp.ne.s32.totalorder %s229, %s230
      %p241 = scmp.eq.s32.totalorder %s23, 0
      %p242 = por %p240, %p241
      %p243 = scmp.ne.s32.totalorder %s229, %s230
      %p244 = scmp.eq.s32.totalorder %s24, 1
      %p245 = por %p243, %p244
      %p247 = scmp.ne.s32.totalorder %s230, %s246
      %p248 = scmp.eq.s32.totalorder %s24, 0
      %p249 = por %p247, %p248
      %p250 = scmp.le.s32.totalorder 1, %s18
      %p251 = scmp.lt.s32.totalorder %s18, 3
      %p252 = pnand %p250, %p251
      %p253 = pneg %p252
      // Predicated region
      $region9: #{resnet1d_forward.9} parent=5 // pred_check
        _
      $region10: #{resnet1d_forward.9} parent=5 // pred_check_branch
        %255 = sbr.rel (%p252) target = $region12
      $region11: #{resnet1d_forward.9} parent=5 // pred_region
        %s256 = ssub.s32 %s18, 1
        // Predicated region
        $region13: #{resnet1d_forward.9} parent=11 // pred_check
          %p257 = pneg %p82
        $region14: #{resnet1d_forward.9} parent=11 // pred_check_branch
          %259 = sbr.rel (%p257) target = $region16
        $region15: #{resnet1d_forward.9} parent=11 // pred_region
          %261 = vsyncadd [#allocation3], 0
          %s262 = smul.addr %s28, 4
          %s263 = scalar_lea.hbm %s1, %s262
          %s264 = sshll.u32 %s263, 4
          %s265 = int_to_ptr.hbm [resolvable:$true] %s264
          %s266 = sshll.u32 [#allocation2], 4
          %s267 = int_to_ptr.vmem [resolvable:$true] %s266
          %272 = dma.hbm_to_vmem [thread:$0]  %s265, 17408, %s267, [#allocation3], 64, 64, 4
        $region16: #{resnet1d_forward.9} parent=11 // pred_fallthru
          _
        // Predicated region
        $region17: #{resnet1d_forward.9} parent=11 // pred_check
          %p273 = pneg %p108
        $region18: #{resnet1d_forward.9} parent=11 // pred_check_branch
          %275 = sbr.rel (%p273) target = $region20
        $region19: #{resnet1d_forward.9} parent=11 // pred_region
          %p276 = scmp.lt.s32.totalorder %s28, 0
          %s277 = scalar_select %p276, %s28, 0
          %s278 = scalar_lea.vmem %s2, %s277
        $region20: #{resnet1d_forward.9} parent=11 // pred_fallthru
          _
        // Predicated region
        $region21: #{resnet1d_forward.9} parent=11 // pred_check
          %p279 = pneg %p134
        $region22: #{resnet1d_forward.9} parent=11 // pred_check_branch
          %281 = sbr.rel (%p279) target = $region24
        $region23: #{resnet1d_forward.9} parent=11 // pred_region
          %p282 = scmp.lt.s32.totalorder %s28, 0
          %s283 = scalar_select %p282, %s28, 0
          %s284 = scalar_lea.vmem %s3, %s283
        $region24: #{resnet1d_forward.9} parent=11 // pred_fallthru
          _
        // Predicated region
        $region25: #{resnet1d_forward.9} parent=11 // pred_check
          %p285 = pneg %p186
        $region26: #{resnet1d_forward.9} parent=11 // pred_check_branch
          %287 = sbr.rel (%p285) target = $region28
        $region27: #{resnet1d_forward.9} parent=11 // pred_region
          %p288 = scmp.lt.s32.totalorder %s28, 0
          %s289 = scalar_select %p288, %s28, 0
          %s290 = smul.addr %s289, 4
          %s291 = scalar_lea.vmem %s5, %s290
        $region28: #{resnet1d_forward.9} parent=11 // pred_fallthru
          _
      $region12: #{resnet1d_forward.9} parent=5 // pred_fallthru
        _
      %p292 = scmp.lt.s32.totalorder %s18, 2
      // Predicated region
      $region29: #{resnet1d_forward.9} parent=5 // pred_check
        %p293 = pneg %p292
      $region30: #{resnet1d_forward.9} parent=5 // pred_check_branch
        %295 = sbr.rel (%p293) target = $region32
      $region31: #{resnet1d_forward.9} parent=5 // pred_region
        // Predicated region
        $region33: #{resnet1d_forward.9} parent=31 // pred_check
          %p296 = pneg %p50
        $region34: #{resnet1d_forward.9} parent=31 // pred_check_branch
          %298 = sbr.rel (%p296) target = $region36
        $region35: #{resnet1d_forward.9} parent=31 // pred_region
          %p299 = scmp.lt.s32.totalorder %s25, 1
          %s300 = scalar_select %p299, %s25, 1
          %s301 = smul.addr %s300, 6
          %s302 = smul.addr %s301, 4
          %s303 = scalar_lea.vmem %s0, %s302
        $region36: #{resnet1d_forward.9} parent=31 // pred_fallthru
          _
        // Predicated region
        $region37: #{resnet1d_forward.9} parent=31 // pred_check
          %p304 = pneg %p154
        $region38: #{resnet1d_forward.9} parent=31 // pred_check_branch
          %306 = sbr.rel (%p304) target = $region40
        $region39: #{resnet1d_forward.9} parent=31 // pred_region
          %p307 = scmp.lt.s32.totalorder %s25, 1
          %s308 = scalar_select %p307, %s25, 1
          %s309 = smul.addr %s308, 4
          %s310 = smul.addr %s309, 4
          %s311 = scalar_lea.vmem %s4, %s310
        $region40: #{resnet1d_forward.9} parent=31 // pred_fallthru
          _
      $region32: #{resnet1d_forward.9} parent=5 // pred_fallthru
        _
      %p312 = scmp.le.s32.totalorder 1, %s18
      %p313 = scmp.lt.s32.totalorder %s18, 3
      %p314 = pnand %p312, %p313
      %p315 = pneg %p314
      // Predicated region
      $region41: #{resnet1d_forward.9} parent=5 // pred_check
        _
      $region42: #{resnet1d_forward.9} parent=5 // pred_check_branch
        %317 = sbr.rel (%p314) target = $region44
      $region43: #{resnet1d_forward.9} parent=5 // pred_region
        %s318 = ssub.s32 %s18, 1
        // Predicated region
        $region45: #{resnet1d_forward.9} parent=43 // pred_check
          %p319 = pneg %p82
        $region46: #{resnet1d_forward.9} parent=43 // pred_check_branch
          %321 = sbr.rel (%p319) target = $region48
        $region47: #{resnet1d_forward.9} parent=43 // pred_region
          %323 = dma.done [#allocation3], 17408
        $region48: #{resnet1d_forward.9} parent=43 // pred_fallthru
          _
        %p324 = scmp.lt.s32.totalorder %s27, 1
        %s325 = scalar_select %p324, %s27, 1
        %s326 = smul.addr %s325, 6
        %s327 = smul.addr %s326, 4
        %s328 = scalar_lea.vmem %s0, %s327
        %p329 = pneg %p56
        %p330 = pneg %p53
        %p331 = pneg %p82
        %p332 = pneg %p79
        %p333 = scmp.lt.s32.totalorder %s28, 0
        %s334 = scalar_select %p333, %s28, 0
        %s335 = scalar_lea.vmem %s2, %s334
        %p336 = pneg %p108
        %p337 = pneg %p105
        %p338 = scmp.lt.s32.totalorder %s28, 0
        %s339 = scalar_select %p338, %s28, 0
        %s340 = scalar_lea.vmem %s3, %s339
        %p341 = pneg %p134
        %p342 = pneg %p131
        %p343 = scmp.lt.s32.totalorder %s27, 1
        %s344 = scalar_select %p343, %s27, 1
        %s345 = smul.addr %s344, 4
        %s346 = smul.addr %s345, 4
        %s347 = scalar_lea.vmem %s4, %s346
        %p348 = pneg %p160
        %p349 = pneg %p157
        %p350 = scmp.lt.s32.totalorder %s28, 0
        %s351 = scalar_select %p350, %s28, 0
        %s352 = smul.addr %s351, 4
        %s353 = scalar_lea.vmem %s5, %s352
        %p354 = pneg %p186
        %p355 = pneg %p183
        %p356 = pneg %p214
        %p357 = pneg %p211
        %p358 = scmp.lt.s32.totalorder %s27, 1
        %s359 = scalar_select %p358, %s27, 1
        %p360 = scmp.lt.s32.totalorder %s28, 0
        %s361 = scalar_select %p360, %s28, 0
        %s362 = smul.addr %s359, 2
        %s363 = sadd.s32 %s361, %s362
        %s364 = smul.addr %s363, 4
        %s365 = scalar_lea.vmem %s6, %s364
        %p366 = pneg %p242
        %p367 = pneg %p239
        %s368 = sand.u32 %s229, 1
        %s369 = scalar_lea.sflag [#allocation4], %s368
        %s370 = sand.u32 %s229, 1
        %s371 = smul.addr %s370, 8
        %s372 = scalar_lea.vmem [#allocation5], %s371
        %p373 = scmp.lt.s32.totalorder %s27, 1
        %s374 = scalar_select %p373, %s27, 1
        %s375 = smul.addr %s374, 6
        %s376 = smul.addr %s375, 4
        %s377 = scalar_lea.vmem %s0, %s376
        %p378 = scmp.lt.s32.totalorder %s28, 0
        %s379 = scalar_select %p378, %s28, 0
        %s380 = scalar_lea.vmem %s2, %s379
        %p381 = scmp.lt.s32.totalorder %s28, 0
        %s382 = scalar_select %p381, %s28, 0
        %s383 = scalar_lea.vmem %s3, %s382
        %p384 = scmp.lt.s32.totalorder %s27, 1
        %s385 = scalar_select %p384, %s27, 1
        %s386 = smul.addr %s385, 4
        %s387 = smul.addr %s386, 4
        %s388 = scalar_lea.vmem %s4, %s387
        %p389 = scmp.lt.s32.totalorder %s28, 0
        %s390 = scalar_select %p389, %s28, 0
        %s391 = smul.addr %s390, 4
        %s392 = scalar_lea.vmem %s5, %s391
        %p393 = scmp.lt.s32.totalorder %s27, 1
        %s394 = scalar_select %p393, %s27, 1
        %p395 = scmp.lt.s32.totalorder %s28, 0
        %s396 = scalar_select %p395, %s28, 0
        %s397 = smul.addr %s394, 2
        %s398 = sadd.s32 %s396, %s397
        %s399 = smul.addr %s398, 4
        %s400 = scalar_lea.vmem %s6, %s399
        %v401 = vld [vmem:[%s377] sm:$0xf]
        %v402 = vld [vmem:[%s377 + $0x4] sm:$0xf]
        %v403 = vld [vmem:[#allocation2] sm:$0xf]
        %v404 = vld [vmem:[#allocation2 + $0x4] sm:$0xf]
        %v405 = vld [vmem:[#allocation2 + $0x8] sm:$0xf]
        %v406 = vld [vmem:[#allocation2 + $0xc] sm:$0xf]
        %v407 = vld [vmem:[#allocation2 + $0x10] sm:$0xf]
        %v408 = vld [vmem:[#allocation2 + $0x14] sm:$0xf]
        %v409 = vld [vmem:[#allocation2 + $0x18] sm:$0xf]
        %v410 = vld [vmem:[#allocation2 + $0x1c] sm:$0xf]
        %v411 = vld [vmem:[#allocation2 + $0x20] sm:$0xf]
        %v412 = vld [vmem:[#allocation2 + $0x24] sm:$0xf]
        %v413 = vld [vmem:[#allocation2 + $0x28] sm:$0xf]
        %v414 = vld [vmem:[#allocation2 + $0x2c] sm:$0xf]
        %v415 = vld [vmem:[#allocation2 + $0x30] sm:$0xf]
        %v416 = vld [vmem:[#allocation2 + $0x34] sm:$0xf]
        %v417 = vld [vmem:[#allocation2 + $0x38] sm:$0xf]
        %v418 = vld [vmem:[#allocation2 + $0x3c] sm:$0xf]
        %s419 = scalar_lea.vmem %s377, 12
        %v420 = vld [vmem:[%s419] sm:$0xf]
        %v421 = vld [vmem:[%s419 + $0x4] sm:$0xf]
        %s422 = scalar_lea.vmem [#allocation2], 64
        %v423 = vld [vmem:[%s422] sm:$0xf]
        %v424 = vld [vmem:[%s422 + $0x4] sm:$0xf]
        %v425 = vld [vmem:[%s422 + $0x8] sm:$0xf]
        %v426 = vld [vmem:[%s422 + $0xc] sm:$0xf]
        %v427 = vld [vmem:[%s422 + $0x10] sm:$0xf]
        %v428 = vld [vmem:[%s422 + $0x14] sm:$0xf]
        %v429 = vld [vmem:[%s422 + $0x18] sm:$0xf]
        %v430 = vld [vmem:[%s422 + $0x1c] sm:$0xf]
        %v431 = vld [vmem:[%s422 + $0x20] sm:$0xf]
        %v432 = vld [vmem:[%s422 + $0x24] sm:$0xf]
        %v433 = vld [vmem:[%s422 + $0x28] sm:$0xf]
        %v434 = vld [vmem:[%s422 + $0x2c] sm:$0xf]
        %v435 = vld [vmem:[%s422 + $0x30] sm:$0xf]
        %v436 = vld [vmem:[%s422 + $0x34] sm:$0xf]
        %v437 = vld [vmem:[%s422 + $0x38] sm:$0xf]
        %v438 = vld [vmem:[%s422 + $0x3c] sm:$0xf]
        %v441 = vunpack.c.l.b16 %v420
        %v442 = vunpack.c.l.b16 %v421
        %v443 = vpack.c.b16 %v442, %v441
        %v461 = vunpack.c.l.b16 %v423
        %v462 = vunpack.c.l.b16 %v424
        %v463 = vunpack.c.l.b16 %v425
        %v464 = vunpack.c.l.b16 %v426
        %v465 = vunpack.c.l.b16 %v427
        %v466 = vunpack.c.l.b16 %v428
        %v467 = vunpack.c.l.b16 %v429
        %v468 = vunpack.c.l.b16 %v430
        %v469 = vunpack.c.l.b16 %v431
        %v470 = vunpack.c.l.b16 %v432
        %v471 = vunpack.c.l.b16 %v433
        %v472 = vunpack.c.l.b16 %v434
        %v473 = vunpack.c.l.b16 %v435
        %v474 = vunpack.c.l.b16 %v436
        %v475 = vunpack.c.l.b16 %v437
        %v476 = vunpack.c.l.b16 %v438
        %v477 = vpack.c.b16 %v462, %v461
        %v478 = vpack.c.b16 %v464, %v463
        %v479 = vpack.c.b16 %v466, %v465
        %v480 = vpack.c.b16 %v468, %v467
        %v481 = vpack.c.b16 %v470, %v469
        %v482 = vpack.c.b16 %v472, %v471
        %v483 = vpack.c.b16 %v474, %v473
        %v484 = vpack.c.b16 %v476, %v475
        %493 = vmatpush.bf16.msra.mxu0 %v484
        %494 = vmatpush.bf16.msra.mxu0 %v483
        %495 = vmatpush.bf16.msra.mxu0 %v482
        %496 = vmatpush.bf16.msra.mxu0 %v481
        %497 = vmatpush.bf16.msra.mxu0 %v480
        %498 = vmatpush.bf16.msra.mxu0 %v479
        %499 = vmatpush.bf16.msra.mxu0 %v478
        %500 = vmatpush.bf16.msra.mxu0 %v477
        %501 = vmatmul.bf16.gmra.mxu0 %v443
        %v502 = vpop.f32.mrf.mxu0
        %v503 = vadd.f32 0.0, %v502
        %v504 = vpop.f32.mrf.mxu0
        %v505 = vadd.f32 0.0, %v504
        %506 = vdwg.mxu0
        %v509 = vunpack.c.l.b16 %v401
        %v510 = vunpack.c.l.b16 %v402
        %v511 = vpack.c.b16 %v510, %v509
        %v529 = vunpack.c.l.b16 %v403
        %v530 = vunpack.c.l.b16 %v404
        %v531 = vunpack.c.l.b16 %v405
        %v532 = vunpack.c.l.b16 %v406
        %v533 = vunpack.c.l.b16 %v407
        %v534 = vunpack.c.l.b16 %v408
        %v535 = vunpack.c.l.b16 %v409
        %v536 = vunpack.c.l.b16 %v410
        %v537 = vunpack.c.l.b16 %v411
        %v538 = vunpack.c.l.b16 %v412
        %v539 = vunpack.c.l.b16 %v413
        %v540 = vunpack.c.l.b16 %v414
        %v541 = vunpack.c.l.b16 %v415
        %v542 = vunpack.c.l.b16 %v416
        %v543 = vunpack.c.l.b16 %v417
        %v544 = vunpack.c.l.b16 %v418
        %v545 = vpack.c.b16 %v530, %v529
        %v546 = vpack.c.b16 %v532, %v531
        %v547 = vpack.c.b16 %v534, %v533
        %v548 = vpack.c.b16 %v536, %v535
        %v549 = vpack.c.b16 %v538, %v537
        %v550 = vpack.c.b16 %v540, %v539
        %v551 = vpack.c.b16 %v542, %v541
        %v552 = vpack.c.b16 %v544, %v543
        %561 = vmatpush.bf16.msra.mxu0 %v552
        %562 = vmatpush.bf16.msra.mxu0 %v551
        %563 = vmatpush.bf16.msra.mxu0 %v550
        %564 = vmatpush.bf16.msra.mxu0 %v549
        %565 = vmatpush.bf16.msra.mxu0 %v548
        %566 = vmatpush.bf16.msra.mxu0 %v547
        %567 = vmatpush.bf16.msra.mxu0 %v546
        %568 = vmatpush.bf16.msra.mxu0 %v545
        %569 = vmatmul.bf16.gmra.mxu0 %v511
        %v570 = vpop.f32.mrf.mxu0
        %v571 = vadd.f32 %v503, %v570
        %v572 = vpop.f32.mrf.mxu0
        %v573 = vadd.f32 %v505, %v572
        %574 = vdwg.mxu0
        %v575 = vld [vmem:[%s377] sm:$0xf]
        %v576 = vld [vmem:[%s377 + $0x4] sm:$0xf]
        %v577 = vld [vmem:[%s377 + $0x8] sm:$0x1]
        %s578 = scalar_lea.vmem [#allocation2], 128
        %v579 = vld [vmem:[%s578] sm:$0xf]
        %v580 = vld [vmem:[%s578 + $0x4] sm:$0xf]
        %v581 = vld [vmem:[%s578 + $0x8] sm:$0xf]
        %v582 = vld [vmem:[%s578 + $0xc] sm:$0xf]
        %v583 = vld [vmem:[%s578 + $0x10] sm:$0xf]
        %v584 = vld [vmem:[%s578 + $0x14] sm:$0xf]
        %v585 = vld [vmem:[%s578 + $0x18] sm:$0xf]
        %v586 = vld [vmem:[%s578 + $0x1c] sm:$0xf]
        %v587 = vld [vmem:[%s578 + $0x20] sm:$0xf]
        %v588 = vld [vmem:[%s578 + $0x24] sm:$0xf]
        %v589 = vld [vmem:[%s578 + $0x28] sm:$0xf]
        %v590 = vld [vmem:[%s578 + $0x2c] sm:$0xf]
        %v591 = vld [vmem:[%s578 + $0x30] sm:$0xf]
        %v592 = vld [vmem:[%s578 + $0x34] sm:$0xf]
        %v593 = vld [vmem:[%s578 + $0x38] sm:$0xf]
        %v594 = vld [vmem:[%s578 + $0x3c] sm:$0xf]
        %v598 = vunpack.c.l.b16 %v575
        %v599 = vunpack.c.l.b16 %v576
        %v600 = vunpack.c.l.b16 %v577
        %v601 = vpack.c.b16 %v599, %v598
        %v602 = vpack.c.b16 %v600, %v600
        %vm603 = vsmask.f32 7424
        %v605 = vshrl.u32 %v601, 16
        %v607 = vshll.u32 %v601, 16
        %v609 = vrot.slane %v607, 1
        %v610 = vor.u32 %v605, %v609
        %v612 = vshll.u32 %v602, 16
        %v614 = vrot.slane %v612, 1
        %v615 = vsel %vm603, %v610, %v614
        %v633 = vunpack.c.l.b16 %v579
        %v634 = vunpack.c.l.b16 %v580
        %v635 = vunpack.c.l.b16 %v581
        %v636 = vunpack.c.l.b16 %v582
        %v637 = vunpack.c.l.b16 %v583
        %v638 = vunpack.c.l.b16 %v584
        %v639 = vunpack.c.l.b16 %v585
        %v640 = vunpack.c.l.b16 %v586
        %v641 = vunpack.c.l.b16 %v587
        %v642 = vunpack.c.l.b16 %v588
        %v643 = vunpack.c.l.b16 %v589
        %v644 = vunpack.c.l.b16 %v590
        %v645 = vunpack.c.l.b16 %v591
        %v646 = vunpack.c.l.b16 %v592
        %v647 = vunpack.c.l.b16 %v593
        %v648 = vunpack.c.l.b16 %v594
        %v649 = vpack.c.b16 %v634, %v633
        %v650 = vpack.c.b16 %v636, %v635
        %v651 = vpack.c.b16 %v638, %v637
        %v652 = vpack.c.b16 %v640, %v639
        %v653 = vpack.c.b16 %v642, %v641
        %v654 = vpack.c.b16 %v644, %v643
        %v655 = vpack.c.b16 %v646, %v645
        %v656 = vpack.c.b16 %v648, %v647
        %665 = vmatpush.bf16.msra.mxu0 %v656
        %666 = vmatpush.bf16.msra.mxu0 %v655
        %667 = vmatpush.bf16.msra.mxu0 %v654
        %668 = vmatpush.bf16.msra.mxu0 %v653
        %669 = vmatpush.bf16.msra.mxu0 %v652
        %670 = vmatpush.bf16.msra.mxu0 %v651
        %671 = vmatpush.bf16.msra.mxu0 %v650
        %672 = vmatpush.bf16.msra.mxu0 %v649
        %673 = vmatmul.bf16.gmra.mxu0 %v615
        %v674 = vpop.f32.mrf.mxu0
        %v675 = vadd.f32 0.0, %v674
        %v676 = vpop.f32.mrf.mxu0
        %v677 = vadd.f32 0.0, %v676
        %678 = vdwg.mxu0
        %v679 = vadd.f32 %v571, %v675
        %v680 = vadd.f32 %v573, %v677
        %v681 = vld [vmem:[%s419] sm:$0xf]
        %v682 = vld [vmem:[%s419 + $0x4] sm:$0xf]
        %v683 = vld [vmem:[%s419 + $0x8] sm:$0x1]
        %s684 = scalar_lea.vmem [#allocation2], 192
        %v685 = vld [vmem:[%s684] sm:$0xf]
        %v686 = vld [vmem:[%s684 + $0x4] sm:$0xf]
        %v687 = vld [vmem:[%s684 + $0x8] sm:$0xf]
        %v688 = vld [vmem:[%s684 + $0xc] sm:$0xf]
        %v689 = vld [vmem:[%s684 + $0x10] sm:$0xf]
        %v690 = vld [vmem:[%s684 + $0x14] sm:$0xf]
        %v691 = vld [vmem:[%s684 + $0x18] sm:$0xf]
        %v692 = vld [vmem:[%s684 + $0x1c] sm:$0xf]
        %v693 = vld [vmem:[%s684 + $0x20] sm:$0xf]
        %v694 = vld [vmem:[%s684 + $0x24] sm:$0xf]
        %v695 = vld [vmem:[%s684 + $0x28] sm:$0xf]
        %v696 = vld [vmem:[%s684 + $0x2c] sm:$0xf]
        %v697 = vld [vmem:[%s684 + $0x30] sm:$0xf]
        %v698 = vld [vmem:[%s684 + $0x34] sm:$0xf]
        %v699 = vld [vmem:[%s684 + $0x38] sm:$0xf]
        %v700 = vld [vmem:[%s684 + $0x3c] sm:$0xf]
        %v704 = vunpack.c.l.b16 %v681
        %v705 = vunpack.c.l.b16 %v682
        %v706 = vunpack.c.l.b16 %v683
        %v707 = vpack.c.b16 %v705, %v704
        %v708 = vpack.c.b16 %v706, %v706
        %v710 = vshrl.u32 %v707, 16
        %v712 = vshll.u32 %v707, 16
        %v714 = vrot.slane %v712, 1
        %v715 = vor.u32 %v710, %v714
        %v717 = vshll.u32 %v708, 16
        %v719 = vrot.slane %v717, 1
        %v720 = vsel %vm603, %v715, %v719
        %v738 = vunpack.c.l.b16 %v685
        %v739 = vunpack.c.l.b16 %v686
        %v740 = vunpack.c.l.b16 %v687
        %v741 = vunpack.c.l.b16 %v688
        %v742 = vunpack.c.l.b16 %v689
        %v743 = vunpack.c.l.b16 %v690
        %v744 = vunpack.c.l.b16 %v691
        %v745 = vunpack.c.l.b16 %v692
        %v746 = vunpack.c.l.b16 %v693
        %v747 = vunpack.c.l.b16 %v694
        %v748 = vunpack.c.l.b16 %v695
        %v749 = vunpack.c.l.b16 %v696
        %v750 = vunpack.c.l.b16 %v697
        %v751 = vunpack.c.l.b16 %v698
        %v752 = vunpack.c.l.b16 %v699
        %v753 = vunpack.c.l.b16 %v700
        %v754 = vpack.c.b16 %v739, %v738
        %v755 = vpack.c.b16 %v741, %v740
        %v756 = vpack.c.b16 %v743, %v742
        %v757 = vpack.c.b16 %v745, %v744
        %v758 = vpack.c.b16 %v747, %v746
        %v759 = vpack.c.b16 %v749, %v748
        %v760 = vpack.c.b16 %v751, %v750
        %v761 = vpack.c.b16 %v753, %v752
        %770 = vmatpush.bf16.msra.mxu0 %v761
        %771 = vmatpush.bf16.msra.mxu0 %v760
        %772 = vmatpush.bf16.msra.mxu0 %v759
        %773 = vmatpush.bf16.msra.mxu0 %v758
        %774 = vmatpush.bf16.msra.mxu0 %v757
        %775 = vmatpush.bf16.msra.mxu0 %v756
        %776 = vmatpush.bf16.msra.mxu0 %v755
        %777 = vmatpush.bf16.msra.mxu0 %v754
        %778 = vmatmul.bf16.gmra.mxu0 %v720
        %v779 = vpop.f32.mrf.mxu0
        %v780 = vadd.f32 0.0, %v779
        %v781 = vpop.f32.mrf.mxu0
        %v782 = vadd.f32 0.0, %v781
        %783 = vdwg.mxu0
        %v784 = vadd.f32 %v679, %v780
        %v785 = vadd.f32 %v680, %v782
        %v786 = vld [vmem:[%s377] sm:$0xe]
        %s787 = scalar_lea.vmem [#allocation2], 256
        %v788 = vld [vmem:[%s787] sm:$0xf]
        %v789 = vld [vmem:[%s787 + $0x4] sm:$0xf]
        %v790 = vld [vmem:[%s787 + $0x8] sm:$0xf]
        %v791 = vld [vmem:[%s787 + $0xc] sm:$0xf]
        %v792 = vld [vmem:[%s787 + $0x10] sm:$0xf]
        %v793 = vld [vmem:[%s787 + $0x14] sm:$0xf]
        %v794 = vld [vmem:[%s787 + $0x18] sm:$0xf]
        %v795 = vld [vmem:[%s787 + $0x1c] sm:$0xf]
        %v796 = vld [vmem:[%s787 + $0x20] sm:$0xf]
        %v797 = vld [vmem:[%s787 + $0x24] sm:$0xf]
        %v798 = vld [vmem:[%s787 + $0x28] sm:$0xf]
        %v799 = vld [vmem:[%s787 + $0x2c] sm:$0xf]
        %v800 = vld [vmem:[%s787 + $0x30] sm:$0xf]
        %v801 = vld [vmem:[%s787 + $0x34] sm:$0xf]
        %v802 = vld [vmem:[%s787 + $0x38] sm:$0xf]
        %v803 = vld [vmem:[%s787 + $0x3c] sm:$0xf]
        %v805 = vunpack.c.l.b16 %v786
        %v806 = vpack.c.b16 %v599, %v805
        %vm807 = vcmask 1046528
        %v808 = vrot.slane %v806, 1
        %v809 = vrot.slane %v602, 1
        %v810 = vsel %vm807, %v808, %v809
        %v828 = vunpack.c.l.b16 %v788
        %v829 = vunpack.c.l.b16 %v789
        %v830 = vunpack.c.l.b16 %v790
        %v831 = vunpack.c.l.b16 %v791
        %v832 = vunpack.c.l.b16 %v792
        %v833 = vunpack.c.l.b16 %v793
        %v834 = vunpack.c.l.b16 %v794
        %v835 = vunpack.c.l.b16 %v795
        %v836 = vunpack.c.l.b16 %v796
        %v837 = vunpack.c.l.b16 %v797
        %v838 = vunpack.c.l.b16 %v798
        %v839 = vunpack.c.l.b16 %v799
        %v840 = vunpack.c.l.b16 %v800
        %v841 = vunpack.c.l.b16 %v801
        %v842 = vunpack.c.l.b16 %v802
        %v843 = vunpack.c.l.b16 %v803
        %v844 = vpack.c.b16 %v829, %v828
        %v845 = vpack.c.b16 %v831, %v830
        %v846 = vpack.c.b16 %v833, %v832
        %v847 = vpack.c.b16 %v835, %v834
        %v848 = vpack.c.b16 %v837, %v836
        %v849 = vpack.c.b16 %v839, %v838
        %v850 = vpack.c.b16 %v841, %v840
        %v851 = vpack.c.b16 %v843, %v842
        %860 = vmatpush.bf16.msra.mxu0 %v851
        %861 = vmatpush.bf16.msra.mxu0 %v850
        %862 = vmatpush.bf16.msra.mxu0 %v849
        %863 = vmatpush.bf16.msra.mxu0 %v848
        %864 = vmatpush.bf16.msra.mxu0 %v847
        %865 = vmatpush.bf16.msra.mxu0 %v846
        %866 = vmatpush.bf16.msra.mxu0 %v845
        %867 = vmatpush.bf16.msra.mxu0 %v844
        %868 = vmatmul.bf16.gmra.mxu0 %v810
        %v869 = vpop.f32.mrf.mxu0
        %v870 = vadd.f32 0.0, %v869
        %v871 = vpop.f32.mrf.mxu0
        %v872 = vadd.f32 0.0, %v871
        %873 = vdwg.mxu0
        %v874 = vadd.f32 %v784, %v870
        %v875 = vadd.f32 %v785, %v872
        %v876 = vld [vmem:[%s419] sm:$0xe]
        %s877 = scalar_lea.vmem [#allocation2], 320
        %v878 = vld [vmem:[%s877] sm:$0xf]
        %v879 = vld [vmem:[%s877 + $0x4] sm:$0xf]
        %v880 = vld [vmem:[%s877 + $0x8] sm:$0xf]
        %v881 = vld [vmem:[%s877 + $0xc] sm:$0xf]
        %v882 = vld [vmem:[%s877 + $0x10] sm:$0xf]
        %v883 = vld [vmem:[%s877 + $0x14] sm:$0xf]
        %v884 = vld [vmem:[%s877 + $0x18] sm:$0xf]
        %v885 = vld [vmem:[%s877 + $0x1c] sm:$0xf]
        %v886 = vld [vmem:[%s877 + $0x20] sm:$0xf]
        %v887 = vld [vmem:[%s877 + $0x24] sm:$0xf]
        %v888 = vld [vmem:[%s877 + $0x28] sm:$0xf]
        %v889 = vld [vmem:[%s877 + $0x2c] sm:$0xf]
        %v890 = vld [vmem:[%s877 + $0x30] sm:$0xf]
        %v891 = vld [vmem:[%s877 + $0x34] sm:$0xf]
        %v892 = vld [vmem:[%s877 + $0x38] sm:$0xf]
        %v893 = vld [vmem:[%s877 + $0x3c] sm:$0xf]
        %v895 = vunpack.c.l.b16 %v876
        %v896 = vpack.c.b16 %v705, %v895
        %v897 = vrot.slane %v896, 1
        %v898 = vrot.slane %v708, 1
        %v899 = vsel %vm807, %v897, %v898
        %v917 = vunpack.c.l.b16 %v878
        %v918 = vunpack.c.l.b16 %v879
        %v919 = vunpack.c.l.b16 %v880
        %v920 = vunpack.c.l.b16 %v881
        %v921 = vunpack.c.l.b16 %v882
        %v922 = vunpack.c.l.b16 %v883
        %v923 = vunpack.c.l.b16 %v884
        %v924 = vunpack.c.l.b16 %v885
        %v925 = vunpack.c.l.b16 %v886
        %v926 = vunpack.c.l.b16 %v887
        %v927 = vunpack.c.l.b16 %v888
        %v928 = vunpack.c.l.b16 %v889
        %v929 = vunpack.c.l.b16 %v890
        %v930 = vunpack.c.l.b16 %v891
        %v931 = vunpack.c.l.b16 %v892
        %v932 = vunpack.c.l.b16 %v893
        %v933 = vpack.c.b16 %v918, %v917
        %v934 = vpack.c.b16 %v920, %v919
        %v935 = vpack.c.b16 %v922, %v921
        %v936 = vpack.c.b16 %v924, %v923
        %v937 = vpack.c.b16 %v926, %v925
        %v938 = vpack.c.b16 %v928, %v927
        %v939 = vpack.c.b16 %v930, %v929
        %v940 = vpack.c.b16 %v932, %v931
        %949 = vmatpush.bf16.msra.mxu0 %v940
        %950 = vmatpush.bf16.msra.mxu0 %v939
        %951 = vmatpush.bf16.msra.mxu0 %v938
        %952 = vmatpush.bf16.msra.mxu0 %v937
        %953 = vmatpush.bf16.msra.mxu0 %v936
        %954 = vmatpush.bf16.msra.mxu0 %v935
        %955 = vmatpush.bf16.msra.mxu0 %v934
        %956 = vmatpush.bf16.msra.mxu0 %v933
        %957 = vmatmul.bf16.gmra.mxu0 %v899
        %v958 = vpop.f32.mrf.mxu0
        %v959 = vadd.f32 0.0, %v958
        %v960 = vpop.f32.mrf.mxu0
        %v961 = vadd.f32 0.0, %v960
        %962 = vdwg.mxu0
        %v963 = vadd.f32 %v874, %v959
        %v964 = vadd.f32 %v875, %v961
        %v965 = vld [vmem:[%s377 + $0x8] sm:$0x3]
        %s966 = scalar_lea.vmem [#allocation2], 384
        %v967 = vld [vmem:[%s966] sm:$0xf]
        %v968 = vld [vmem:[%s966 + $0x4] sm:$0xf]
        %v969 = vld [vmem:[%s966 + $0x8] sm:$0xf]
        %v970 = vld [vmem:[%s966 + $0xc] sm:$0xf]
        %v971 = vld [vmem:[%s966 + $0x10] sm:$0xf]
        %v972 = vld [vmem:[%s966 + $0x14] sm:$0xf]
        %v973 = vld [vmem:[%s966 + $0x18] sm:$0xf]
        %v974 = vld [vmem:[%s966 + $0x1c] sm:$0xf]
        %v975 = vld [vmem:[%s966 + $0x20] sm:$0xf]
        %v976 = vld [vmem:[%s966 + $0x24] sm:$0xf]
        %v977 = vld [vmem:[%s966 + $0x28] sm:$0xf]
        %v978 = vld [vmem:[%s966 + $0x2c] sm:$0xf]
        %v979 = vld [vmem:[%s966 + $0x30] sm:$0xf]
        %v980 = vld [vmem:[%s966 + $0x34] sm:$0xf]
        %v981 = vld [vmem:[%s966 + $0x38] sm:$0xf]
        %v982 = vld [vmem:[%s966 + $0x3c] sm:$0xf]
        %v984 = vunpack.c.l.b16 %v965
        %v985 = vpack.c.b16 %v984, %v984
        %vm986 = vsmask.f32 6400
        %v988 = vshrl.u32 %v806, 16
        %v990 = vrot.slane %v988, 1
        %v991 = vshll.u32 %v806, 16
        %v993 = vrot.slane %v991, 2
        %v994 = vor.u32 %v990, %v993
        %v996 = vshrl.u32 %v985, 16
        %v998 = vrot.slane %v996, 1
        %v999 = vshll.u32 %v985, 16
        %v1001 = vrot.slane %v999, 2
        %v1002 = vor.u32 %v998, %v1001
        %v1003 = vsel %vm986, %v994, %v1002
        %v1021 = vunpack.c.l.b16 %v967
        %v1022 = vunpack.c.l.b16 %v968
        %v1023 = vunpack.c.l.b16 %v969
        %v1024 = vunpack.c.l.b16 %v970
        %v1025 = vunpack.c.l.b16 %v971
        %v1026 = vunpack.c.l.b16 %v972
        %v1027 = vunpack.c.l.b16 %v973
        %v1028 = vunpack.c.l.b16 %v974
        %v1029 = vunpack.c.l.b16 %v975
        %v1030 = vunpack.c.l.b16 %v976
        %v1031 = vunpack.c.l.b16 %v977
        %v1032 = vunpack.c.l.b16 %v978
        %v1033 = vunpack.c.l.b16 %v979
        %v1034 = vunpack.c.l.b16 %v980
        %v1035 = vunpack.c.l.b16 %v981
        %v1036 = vunpack.c.l.b16 %v982
        %v1037 = vpack.c.b16 %v1022, %v1021
        %v1038 = vpack.c.b16 %v1024, %v1023
        %v1039 = vpack.c.b16 %v1026, %v1025
        %v1040 = vpack.c.b16 %v1028, %v1027
        %v1041 = vpack.c.b16 %v1030, %v1029
        %v1042 = vpack.c.b16 %v1032, %v1031
        %v1043 = vpack.c.b16 %v1034, %v1033
        %v1044 = vpack.c.b16 %v1036, %v1035
        %1053 = vmatpush.bf16.msra.mxu0 %v1044
        %1054 = vmatpush.bf16.msra.mxu0 %v1043
        %1055 = vmatpush.bf16.msra.mxu0 %v1042
        %1056 = vmatpush.bf16.msra.mxu0 %v1041
        %1057 = vmatpush.bf16.msra.mxu0 %v1040
        %1058 = vmatpush.bf16.msra.mxu0 %v1039
        %1059 = vmatpush.bf16.msra.mxu0 %v1038
        %1060 = vmatpush.bf16.msra.mxu0 %v1037
        %1061 = vmatmul.bf16.gmra.mxu0 %v1003
        %v1062 = vpop.f32.mrf.mxu0
        %v1063 = vadd.f32 0.0, %v1062
        %v1064 = vpop.f32.mrf.mxu0
        %v1065 = vadd.f32 0.0, %v1064
        %1066 = vdwg.mxu0
        %v1067 = vadd.f32 %v963, %v1063
        %v1068 = vadd.f32 %v964, %v1065
        %v1069 = vld [vmem:[%s419 + $0x8] sm:$0x3]
        %s1070 = scalar_lea.vmem [#allocation2], 448
        %v1071 = vld [vmem:[%s1070] sm:$0xf]
        %v1072 = vld [vmem:[%s1070 + $0x4] sm:$0xf]
        %v1073 = vld [vmem:[%s1070 + $0x8] sm:$0xf]
        %v1074 = vld [vmem:[%s1070 + $0xc] sm:$0xf]
        %v1075 = vld [vmem:[%s1070 + $0x10] sm:$0xf]
        %v1076 = vld [vmem:[%s1070 + $0x14] sm:$0xf]
        %v1077 = vld [vmem:[%s1070 + $0x18] sm:$0xf]
        %v1078 = vld [vmem:[%s1070 + $0x1c] sm:$0xf]
        %v1079 = vld [vmem:[%s1070 + $0x20] sm:$0xf]
        %v1080 = vld [vmem:[%s1070 + $0x24] sm:$0xf]
        %v1081 = vld [vmem:[%s1070 + $0x28] sm:$0xf]
        %v1082 = vld [vmem:[%s1070 + $0x2c] sm:$0xf]
        %v1083 = vld [vmem:[%s1070 + $0x30] sm:$0xf]
        %v1084 = vld [vmem:[%s1070 + $0x34] sm:$0xf]
        %v1085 = vld [vmem:[%s1070 + $0x38] sm:$0xf]
        %v1086 = vld [vmem:[%s1070 + $0x3c] sm:$0xf]
        %v1088 = vunpack.c.l.b16 %v1069
        %v1089 = vpack.c.b16 %v1088, %v1088
        %v1091 = vshrl.u32 %v896, 16
        %v1093 = vrot.slane %v1091, 1
        %v1094 = vshll.u32 %v896, 16
        %v1096 = vrot.slane %v1094, 2
        %v1097 = vor.u32 %v1093, %v1096
        %v1099 = vshrl.u32 %v1089, 16
        %v1101 = vrot.slane %v1099, 1
        %v1102 = vshll.u32 %v1089, 16
        %v1104 = vrot.slane %v1102, 2
        %v1105 = vor.u32 %v1101, %v1104
        %v1106 = vsel %vm986, %v1097, %v1105
        %v1124 = vunpack.c.l.b16 %v1071
        %v1125 = vunpack.c.l.b16 %v1072
        %v1126 = vunpack.c.l.b16 %v1073
        %v1127 = vunpack.c.l.b16 %v1074
        %v1128 = vunpack.c.l.b16 %v1075
        %v1129 = vunpack.c.l.b16 %v1076
        %v1130 = vunpack.c.l.b16 %v1077
        %v1131 = vunpack.c.l.b16 %v1078
        %v1132 = vunpack.c.l.b16 %v1079
        %v1133 = vunpack.c.l.b16 %v1080
        %v1134 = vunpack.c.l.b16 %v1081
        %v1135 = vunpack.c.l.b16 %v1082
        %v1136 = vunpack.c.l.b16 %v1083
        %v1137 = vunpack.c.l.b16 %v1084
        %v1138 = vunpack.c.l.b16 %v1085
        %v1139 = vunpack.c.l.b16 %v1086
        %v1140 = vpack.c.b16 %v1125, %v1124
        %v1141 = vpack.c.b16 %v1127, %v1126
        %v1142 = vpack.c.b16 %v1129, %v1128
        %v1143 = vpack.c.b16 %v1131, %v1130
        %v1144 = vpack.c.b16 %v1133, %v1132
        %v1145 = vpack.c.b16 %v1135, %v1134
        %v1146 = vpack.c.b16 %v1137, %v1136
        %v1147 = vpack.c.b16 %v1139, %v1138
        %1156 = vmatpush.bf16.msra.mxu0 %v1147
        %1157 = vmatpush.bf16.msra.mxu0 %v1146
        %1158 = vmatpush.bf16.msra.mxu0 %v1145
        %1159 = vmatpush.bf16.msra.mxu0 %v1144
        %1160 = vmatpush.bf16.msra.mxu0 %v1143
        %1161 = vmatpush.bf16.msra.mxu0 %v1142
        %1162 = vmatpush.bf16.msra.mxu0 %v1141
        %1163 = vmatpush.bf16.msra.mxu0 %v1140
        %1164 = vmatmul.bf16.gmra.mxu0 %v1106
        %v1165 = vpop.f32.mrf.mxu0
        %v1166 = vadd.f32 0.0, %v1165
        %v1167 = vpop.f32.mrf.mxu0
        %v1168 = vadd.f32 0.0, %v1167
        %1169 = vdwg.mxu0
        %v1170 = vadd.f32 %v1067, %v1166
        %v1171 = vadd.f32 %v1068, %v1168
        %v1172 = vld [vmem:[%s377] sm:$0xc]
        %s1173 = scalar_lea.vmem [#allocation2], 512
        %v1174 = vld [vmem:[%s1173] sm:$0xf]
        %v1175 = vld [vmem:[%s1173 + $0x4] sm:$0xf]
        %v1176 = vld [vmem:[%s1173 + $0x8] sm:$0xf]
        %v1177 = vld [vmem:[%s1173 + $0xc] sm:$0xf]
        %v1178 = vld [vmem:[%s1173 + $0x10] sm:$0xf]
        %v1179 = vld [vmem:[%s1173 + $0x14] sm:$0xf]
        %v1180 = vld [vmem:[%s1173 + $0x18] sm:$0xf]
        %v1181 = vld [vmem:[%s1173 + $0x1c] sm:$0xf]
        %v1182 = vld [vmem:[%s1173 + $0x20] sm:$0xf]
        %v1183 = vld [vmem:[%s1173 + $0x24] sm:$0xf]
        %v1184 = vld [vmem:[%s1173 + $0x28] sm:$0xf]
        %v1185 = vld [vmem:[%s1173 + $0x2c] sm:$0xf]
        %v1186 = vld [vmem:[%s1173 + $0x30] sm:$0xf]
        %v1187 = vld [vmem:[%s1173 + $0x34] sm:$0xf]
        %v1188 = vld [vmem:[%s1173 + $0x38] sm:$0xf]
        %v1189 = vld [vmem:[%s1173 + $0x3c] sm:$0xf]
        %v1191 = vunpack.c.l.b16 %v1172
        %v1192 = vpack.c.b16 %v599, %v1191
        %vm1193 = vcmask 1045504
        %v1194 = vrot.slane %v1192, 2
        %v1195 = vrot.slane %v985, 2
        %v1196 = vsel %vm1193, %v1194, %v1195
        %v1214 = vunpack.c.l.b16 %v1174
        %v1215 = vunpack.c.l.b16 %v1175
        %v1216 = vunpack.c.l.b16 %v1176
        %v1217 = vunpack.c.l.b16 %v1177
        %v1218 = vunpack.c.l.b16 %v1178
        %v1219 = vunpack.c.l.b16 %v1179
        %v1220 = vunpack.c.l.b16 %v1180
        %v1221 = vunpack.c.l.b16 %v1181
        %v1222 = vunpack.c.l.b16 %v1182
        %v1223 = vunpack.c.l.b16 %v1183
        %v1224 = vunpack.c.l.b16 %v1184
        %v1225 = vunpack.c.l.b16 %v1185
        %v1226 = vunpack.c.l.b16 %v1186
        %v1227 = vunpack.c.l.b16 %v1187
        %v1228 = vunpack.c.l.b16 %v1188
        %v1229 = vunpack.c.l.b16 %v1189
        %v1230 = vpack.c.b16 %v1215, %v1214
        %v1231 = vpack.c.b16 %v1217, %v1216
        %v1232 = vpack.c.b16 %v1219, %v1218
        %v1233 = vpack.c.b16 %v1221, %v1220
        %v1234 = vpack.c.b16 %v1223, %v1222
        %v1235 = vpack.c.b16 %v1225, %v1224
        %v1236 = vpack.c.b16 %v1227, %v1226
        %v1237 = vpack.c.b16 %v1229, %v1228
        %1246 = vmatpush.bf16.msra.mxu0 %v1237
        %1247 = vmatpush.bf16.msra.mxu0 %v1236
        %1248 = vmatpush.bf16.msra.mxu0 %v1235
        %1249 = vmatpush.bf16.msra.mxu0 %v1234
        %1250 = vmatpush.bf16.msra.mxu0 %v1233
        %1251 = vmatpush.bf16.msra.mxu0 %v1232
        %1252 = vmatpush.bf16.msra.mxu0 %v1231
        %1253 = vmatpush.bf16.msra.mxu0 %v1230
        %1254 = vmatmul.bf16.gmra.mxu0 %v1196
        %v1255 = vpop.f32.mrf.mxu0
        %v1256 = vadd.f32 0.0, %v1255
        %v1257 = vpop.f32.mrf.mxu0
        %v1258 = vadd.f32 0.0, %v1257
        %1259 = vdwg.mxu0
        %v1260 = vadd.f32 %v1170, %v1256
        %v1261 = vadd.f32 %v1171, %v1258
        %v1262 = vld [vmem:[%s419] sm:$0xc]
        %s1263 = scalar_lea.vmem [#allocation2], 576
        %v1264 = vld [vmem:[%s1263] sm:$0xf]
        %v1265 = vld [vmem:[%s1263 + $0x4] sm:$0xf]
        %v1266 = vld [vmem:[%s1263 + $0x8] sm:$0xf]
        %v1267 = vld [vmem:[%s1263 + $0xc] sm:$0xf]
        %v1268 = vld [vmem:[%s1263 + $0x10] sm:$0xf]
        %v1269 = vld [vmem:[%s1263 + $0x14] sm:$0xf]
        %v1270 = vld [vmem:[%s1263 + $0x18] sm:$0xf]
        %v1271 = vld [vmem:[%s1263 + $0x1c] sm:$0xf]
        %v1272 = vld [vmem:[%s1263 + $0x20] sm:$0xf]
        %v1273 = vld [vmem:[%s1263 + $0x24] sm:$0xf]
        %v1274 = vld [vmem:[%s1263 + $0x28] sm:$0xf]
        %v1275 = vld [vmem:[%s1263 + $0x2c] sm:$0xf]
        %v1276 = vld [vmem:[%s1263 + $0x30] sm:$0xf]
        %v1277 = vld [vmem:[%s1263 + $0x34] sm:$0xf]
        %v1278 = vld [vmem:[%s1263 + $0x38] sm:$0xf]
        %v1279 = vld [vmem:[%s1263 + $0x3c] sm:$0xf]
        %v1281 = vunpack.c.l.b16 %v1262
        %v1282 = vpack.c.b16 %v705, %v1281
        %v1283 = vrot.slane %v1282, 2
        %v1284 = vrot.slane %v1089, 2
        %v1285 = vsel %vm1193, %v1283, %v1284
        %v1303 = vunpack.c.l.b16 %v1264
        %v1304 = vunpack.c.l.b16 %v1265
        %v1305 = vunpack.c.l.b16 %v1266
        %v1306 = vunpack.c.l.b16 %v1267
        %v1307 = vunpack.c.l.b16 %v1268
        %v1308 = vunpack.c.l.b16 %v1269
        %v1309 = vunpack.c.l.b16 %v1270
        %v1310 = vunpack.c.l.b16 %v1271
        %v1311 = vunpack.c.l.b16 %v1272
        %v1312 = vunpack.c.l.b16 %v1273
        %v1313 = vunpack.c.l.b16 %v1274
        %v1314 = vunpack.c.l.b16 %v1275
        %v1315 = vunpack.c.l.b16 %v1276
        %v1316 = vunpack.c.l.b16 %v1277
        %v1317 = vunpack.c.l.b16 %v1278
        %v1318 = vunpack.c.l.b16 %v1279
        %v1319 = vpack.c.b16 %v1304, %v1303
        %v1320 = vpack.c.b16 %v1306, %v1305
        %v1321 = vpack.c.b16 %v1308, %v1307
        %v1322 = vpack.c.b16 %v1310, %v1309
        %v1323 = vpack.c.b16 %v1312, %v1311
        %v1324 = vpack.c.b16 %v1314, %v1313
        %v1325 = vpack.c.b16 %v1316, %v1315
        %v1326 = vpack.c.b16 %v1318, %v1317
        %1335 = vmatpush.bf16.msra.mxu0 %v1326
        %1336 = vmatpush.bf16.msra.mxu0 %v1325
        %1337 = vmatpush.bf16.msra.mxu0 %v1324
        %1338 = vmatpush.bf16.msra.mxu0 %v1323
        %1339 = vmatpush.bf16.msra.mxu0 %v1322
        %1340 = vmatpush.bf16.msra.mxu0 %v1321
        %1341 = vmatpush.bf16.msra.mxu0 %v1320
        %1342 = vmatpush.bf16.msra.mxu0 %v1319
        %1343 = vmatmul.bf16.gmra.mxu0 %v1285
        %v1344 = vpop.f32.mrf.mxu0
        %v1345 = vadd.f32 0.0, %v1344
        %v1346 = vpop.f32.mrf.mxu0
        %v1347 = vadd.f32 0.0, %v1346
        %1348 = vdwg.mxu0
        %v1349 = vadd.f32 %v1260, %v1345
        %v1350 = vadd.f32 %v1261, %v1347
        %v1351 = vld [vmem:[%s377 + $0x8] sm:$0x7]
        %s1352 = scalar_lea.vmem [#allocation2], 640
        %v1353 = vld [vmem:[%s1352] sm:$0xf]
        %v1354 = vld [vmem:[%s1352 + $0x4] sm:$0xf]
        %v1355 = vld [vmem:[%s1352 + $0x8] sm:$0xf]
        %v1356 = vld [vmem:[%s1352 + $0xc] sm:$0xf]
        %v1357 = vld [vmem:[%s1352 + $0x10] sm:$0xf]
        %v1358 = vld [vmem:[%s1352 + $0x14] sm:$0xf]
        %v1359 = vld [vmem:[%s1352 + $0x18] sm:$0xf]
        %v1360 = vld [vmem:[%s1352 + $0x1c] sm:$0xf]
        %v1361 = vld [vmem:[%s1352 + $0x20] sm:$0xf]
        %v1362 = vld [vmem:[%s1352 + $0x24] sm:$0xf]
        %v1363 = vld [vmem:[%s1352 + $0x28] sm:$0xf]
        %v1364 = vld [vmem:[%s1352 + $0x2c] sm:$0xf]
        %v1365 = vld [vmem:[%s1352 + $0x30] sm:$0xf]
        %v1366 = vld [vmem:[%s1352 + $0x34] sm:$0xf]
        %v1367 = vld [vmem:[%s1352 + $0x38] sm:$0xf]
        %v1368 = vld [vmem:[%s1352 + $0x3c] sm:$0xf]
        %v1370 = vunpack.c.l.b16 %v1351
        %v1371 = vpack.c.b16 %v1370, %v1370
        %vm1372 = vsmask.f32 5376
        %v1374 = vshrl.u32 %v1192, 16
        %v1376 = vrot.slane %v1374, 2
        %v1377 = vshll.u32 %v1192, 16
        %v1379 = vrot.slane %v1377, 3
        %v1380 = vor.u32 %v1376, %v1379
        %v1382 = vshrl.u32 %v1371, 16
        %v1384 = vrot.slane %v1382, 2
        %v1385 = vshll.u32 %v1371, 16
        %v1387 = vrot.slane %v1385, 3
        %v1388 = vor.u32 %v1384, %v1387
        %v1389 = vsel %vm1372, %v1380, %v1388
        %v1407 = vunpack.c.l.b16 %v1353
        %v1408 = vunpack.c.l.b16 %v1354
        %v1409 = vunpack.c.l.b16 %v1355
        %v1410 = vunpack.c.l.b16 %v1356
        %v1411 = vunpack.c.l.b16 %v1357
        %v1412 = vunpack.c.l.b16 %v1358
        %v1413 = vunpack.c.l.b16 %v1359
        %v1414 = vunpack.c.l.b16 %v1360
        %v1415 = vunpack.c.l.b16 %v1361
        %v1416 = vunpack.c.l.b16 %v1362
        %v1417 = vunpack.c.l.b16 %v1363
        %v1418 = vunpack.c.l.b16 %v1364
        %v1419 = vunpack.c.l.b16 %v1365
        %v1420 = vunpack.c.l.b16 %v1366
        %v1421 = vunpack.c.l.b16 %v1367
        %v1422 = vunpack.c.l.b16 %v1368
        %v1423 = vpack.c.b16 %v1408, %v1407
        %v1424 = vpack.c.b16 %v1410, %v1409
        %v1425 = vpack.c.b16 %v1412, %v1411
        %v1426 = vpack.c.b16 %v1414, %v1413
        %v1427 = vpack.c.b16 %v1416, %v1415
        %v1428 = vpack.c.b16 %v1418, %v1417
        %v1429 = vpack.c.b16 %v1420, %v1419
        %v1430 = vpack.c.b16 %v1422, %v1421
        %1439 = vmatpush.bf16.msra.mxu0 %v1430
        %1440 = vmatpush.bf16.msra.mxu0 %v1429
        %1441 = vmatpush.bf16.msra.mxu0 %v1428
        %1442 = vmatpush.bf16.msra.mxu0 %v1427
        %1443 = vmatpush.bf16.msra.mxu0 %v1426
        %1444 = vmatpush.bf16.msra.mxu0 %v1425
        %1445 = vmatpush.bf16.msra.mxu0 %v1424
        %1446 = vmatpush.bf16.msra.mxu0 %v1423
        %1447 = vmatmul.bf16.gmra.mxu0 %v1389
        %v1448 = vpop.f32.mrf.mxu0
        %v1449 = vadd.f32 0.0, %v1448
        %v1450 = vpop.f32.mrf.mxu0
        %v1451 = vadd.f32 0.0, %v1450
        %1452 = vdwg.mxu0
        %v1453 = vadd.f32 %v1349, %v1449
        %v1454 = vadd.f32 %v1350, %v1451
        %v1455 = vld [vmem:[%s419 + $0x8] sm:$0x7]
        %s1456 = scalar_lea.vmem [#allocation2], 704
        %v1457 = vld [vmem:[%s1456] sm:$0xf]
        %v1458 = vld [vmem:[%s1456 + $0x4] sm:$0xf]
        %v1459 = vld [vmem:[%s1456 + $0x8] sm:$0xf]
        %v1460 = vld [vmem:[%s1456 + $0xc] sm:$0xf]
        %v1461 = vld [vmem:[%s1456 + $0x10] sm:$0xf]
        %v1462 = vld [vmem:[%s1456 + $0x14] sm:$0xf]
        %v1463 = vld [vmem:[%s1456 + $0x18] sm:$0xf]
        %v1464 = vld [vmem:[%s1456 + $0x1c] sm:$0xf]
        %v1465 = vld [vmem:[%s1456 + $0x20] sm:$0xf]
        %v1466 = vld [vmem:[%s1456 + $0x24] sm:$0xf]
        %v1467 = vld [vmem:[%s1456 + $0x28] sm:$0xf]
        %v1468 = vld [vmem:[%s1456 + $0x2c] sm:$0xf]
        %v1469 = vld [vmem:[%s1456 + $0x30] sm:$0xf]
        %v1470 = vld [vmem:[%s1456 + $0x34] sm:$0xf]
        %v1471 = vld [vmem:[%s1456 + $0x38] sm:$0xf]
        %v1472 = vld [vmem:[%s1456 + $0x3c] sm:$0xf]
        %v1474 = vunpack.c.l.b16 %v1455
        %v1475 = vpack.c.b16 %v1474, %v1474
        %v1477 = vshrl.u32 %v1282, 16
        %v1479 = vrot.slane %v1477, 2
        %v1480 = vshll.u32 %v1282, 16
        %v1482 = vrot.slane %v1480, 3
        %v1483 = vor.u32 %v1479, %v1482
        %v1485 = vshrl.u32 %v1475, 16
        %v1487 = vrot.slane %v1485, 2
        %v1488 = vshll.u32 %v1475, 16
        %v1490 = vrot.slane %v1488, 3
        %v1491 = vor.u32 %v1487, %v1490
        %v1492 = vsel %vm1372, %v1483, %v1491
        %v1510 = vunpack.c.l.b16 %v1457
        %v1511 = vunpack.c.l.b16 %v1458
        %v1512 = vunpack.c.l.b16 %v1459
        %v1513 = vunpack.c.l.b16 %v1460
        %v1514 = vunpack.c.l.b16 %v1461
        %v1515 = vunpack.c.l.b16 %v1462
        %v1516 = vunpack.c.l.b16 %v1463
        %v1517 = vunpack.c.l.b16 %v1464
        %v1518 = vunpack.c.l.b16 %v1465
        %v1519 = vunpack.c.l.b16 %v1466
        %v1520 = vunpack.c.l.b16 %v1467
        %v1521 = vunpack.c.l.b16 %v1468
        %v1522 = vunpack.c.l.b16 %v1469
        %v1523 = vunpack.c.l.b16 %v1470
        %v1524 = vunpack.c.l.b16 %v1471
        %v1525 = vunpack.c.l.b16 %v1472
        %v1526 = vpack.c.b16 %v1511, %v1510
        %v1527 = vpack.c.b16 %v1513, %v1512
        %v1528 = vpack.c.b16 %v1515, %v1514
        %v1529 = vpack.c.b16 %v1517, %v1516
        %v1530 = vpack.c.b16 %v1519, %v1518
        %v1531 = vpack.c.b16 %v1521, %v1520
        %v1532 = vpack.c.b16 %v1523, %v1522
        %v1533 = vpack.c.b16 %v1525, %v1524
        %1542 = vmatpush.bf16.msra.mxu0 %v1533
        %1543 = vmatpush.bf16.msra.mxu0 %v1532
        %1544 = vmatpush.bf16.msra.mxu0 %v1531
        %1545 = vmatpush.bf16.msra.mxu0 %v1530
        %1546 = vmatpush.bf16.msra.mxu0 %v1529
        %1547 = vmatpush.bf16.msra.mxu0 %v1528
        %1548 = vmatpush.bf16.msra.mxu0 %v1527
        %1549 = vmatpush.bf16.msra.mxu0 %v1526
        %1550 = vmatmul.bf16.gmra.mxu0 %v1492
        %v1551 = vpop.f32.mrf.mxu0
        %v1552 = vadd.f32 0.0, %v1551
        %v1553 = vpop.f32.mrf.mxu0
        %v1554 = vadd.f32 0.0, %v1553
        %1555 = vdwg.mxu0
        %v1556 = vadd.f32 %v1453, %v1552
        %v1557 = vadd.f32 %v1454, %v1554
        %v1558 = vld [vmem:[%s377] sm:$0x8]
        %s1559 = scalar_lea.vmem [#allocation2], 768
        %v1560 = vld [vmem:[%s1559] sm:$0xf]
        %v1561 = vld [vmem:[%s1559 + $0x4] sm:$0xf]
        %v1562 = vld [vmem:[%s1559 + $0x8] sm:$0xf]
        %v1563 = vld [vmem:[%s1559 + $0xc] sm:$0xf]
        %v1564 = vld [vmem:[%s1559 + $0x10] sm:$0xf]
        %v1565 = vld [vmem:[%s1559 + $0x14] sm:$0xf]
        %v1566 = vld [vmem:[%s1559 + $0x18] sm:$0xf]
        %v1567 = vld [vmem:[%s1559 + $0x1c] sm:$0xf]
        %v1568 = vld [vmem:[%s1559 + $0x20] sm:$0xf]
        %v1569 = vld [vmem:[%s1559 + $0x24] sm:$0xf]
        %v1570 = vld [vmem:[%s1559 + $0x28] sm:$0xf]
        %v1571 = vld [vmem:[%s1559 + $0x2c] sm:$0xf]
        %v1572 = vld [vmem:[%s1559 + $0x30] sm:$0xf]
        %v1573 = vld [vmem:[%s1559 + $0x34] sm:$0xf]
        %v1574 = vld [vmem:[%s1559 + $0x38] sm:$0xf]
        %v1575 = vld [vmem:[%s1559 + $0x3c] sm:$0xf]
        %v1577 = vunpack.c.l.b16 %v1558
        %v1578 = vpack.c.b16 %v599, %v1577
        %vm1579 = vcmask 1044480
        %v1580 = vrot.slane %v1578, 3
        %v1581 = vrot.slane %v1371, 3
        %v1582 = vsel %vm1579, %v1580, %v1581
        %v1600 = vunpack.c.l.b16 %v1560
        %v1601 = vunpack.c.l.b16 %v1561
        %v1602 = vunpack.c.l.b16 %v1562
        %v1603 = vunpack.c.l.b16 %v1563
        %v1604 = vunpack.c.l.b16 %v1564
        %v1605 = vunpack.c.l.b16 %v1565
        %v1606 = vunpack.c.l.b16 %v1566
        %v1607 = vunpack.c.l.b16 %v1567
        %v1608 = vunpack.c.l.b16 %v1568
        %v1609 = vunpack.c.l.b16 %v1569
        %v1610 = vunpack.c.l.b16 %v1570
        %v1611 = vunpack.c.l.b16 %v1571
        %v1612 = vunpack.c.l.b16 %v1572
        %v1613 = vunpack.c.l.b16 %v1573
        %v1614 = vunpack.c.l.b16 %v1574
        %v1615 = vunpack.c.l.b16 %v1575
        %v1616 = vpack.c.b16 %v1601, %v1600
        %v1617 = vpack.c.b16 %v1603, %v1602
        %v1618 = vpack.c.b16 %v1605, %v1604
        %v1619 = vpack.c.b16 %v1607, %v1606
        %v1620 = vpack.c.b16 %v1609, %v1608
        %v1621 = vpack.c.b16 %v1611, %v1610
        %v1622 = vpack.c.b16 %v1613, %v1612
        %v1623 = vpack.c.b16 %v1615, %v1614
        %1632 = vmatpush.bf16.msra.mxu0 %v1623
        %1633 = vmatpush.bf16.msra.mxu0 %v1622
        %1634 = vmatpush.bf16.msra.mxu0 %v1621
        %1635 = vmatpush.bf16.msra.mxu0 %v1620
        %1636 = vmatpush.bf16.msra.mxu0 %v1619
        %1637 = vmatpush.bf16.msra.mxu0 %v1618
        %1638 = vmatpush.bf16.msra.mxu0 %v1617
        %1639 = vmatpush.bf16.msra.mxu0 %v1616
        %1640 = vmatmul.bf16.gmra.mxu0 %v1582
        %v1641 = vpop.f32.mrf.mxu0
        %v1642 = vadd.f32 0.0, %v1641
        %v1643 = vpop.f32.mrf.mxu0
        %v1644 = vadd.f32 0.0, %v1643
        %1645 = vdwg.mxu0
        %v1646 = vadd.f32 %v1556, %v1642
        %v1647 = vadd.f32 %v1557, %v1644
        %v1648 = vld [vmem:[%s419] sm:$0x8]
        %s1649 = scalar_lea.vmem [#allocation2], 832
        %v1650 = vld [vmem:[%s1649] sm:$0xf]
        %v1651 = vld [vmem:[%s1649 + $0x4] sm:$0xf]
        %v1652 = vld [vmem:[%s1649 + $0x8] sm:$0xf]
        %v1653 = vld [vmem:[%s1649 + $0xc] sm:$0xf]
        %v1654 = vld [vmem:[%s1649 + $0x10] sm:$0xf]
        %v1655 = vld [vmem:[%s1649 + $0x14] sm:$0xf]
        %v1656 = vld [vmem:[%s1649 + $0x18] sm:$0xf]
        %v1657 = vld [vmem:[%s1649 + $0x1c] sm:$0xf]
        %v1658 = vld [vmem:[%s1649 + $0x20] sm:$0xf]
        %v1659 = vld [vmem:[%s1649 + $0x24] sm:$0xf]
        %v1660 = vld [vmem:[%s1649 + $0x28] sm:$0xf]
        %v1661 = vld [vmem:[%s1649 + $0x2c] sm:$0xf]
        %v1662 = vld [vmem:[%s1649 + $0x30] sm:$0xf]
        %v1663 = vld [vmem:[%s1649 + $0x34] sm:$0xf]
        %v1664 = vld [vmem:[%s1649 + $0x38] sm:$0xf]
        %v1665 = vld [vmem:[%s1649 + $0x3c] sm:$0xf]
        %v1667 = vunpack.c.l.b16 %v1648
        %v1668 = vpack.c.b16 %v705, %v1667
        %v1669 = vrot.slane %v1668, 3
        %v1670 = vrot.slane %v1475, 3
        %v1671 = vsel %vm1579, %v1669, %v1670
        %v1689 = vunpack.c.l.b16 %v1650
        %v1690 = vunpack.c.l.b16 %v1651
        %v1691 = vunpack.c.l.b16 %v1652
        %v1692 = vunpack.c.l.b16 %v1653
        %v1693 = vunpack.c.l.b16 %v1654
        %v1694 = vunpack.c.l.b16 %v1655
        %v1695 = vunpack.c.l.b16 %v1656
        %v1696 = vunpack.c.l.b16 %v1657
        %v1697 = vunpack.c.l.b16 %v1658
        %v1698 = vunpack.c.l.b16 %v1659
        %v1699 = vunpack.c.l.b16 %v1660
        %v1700 = vunpack.c.l.b16 %v1661
        %v1701 = vunpack.c.l.b16 %v1662
        %v1702 = vunpack.c.l.b16 %v1663
        %v1703 = vunpack.c.l.b16 %v1664
        %v1704 = vunpack.c.l.b16 %v1665
        %v1705 = vpack.c.b16 %v1690, %v1689
        %v1706 = vpack.c.b16 %v1692, %v1691
        %v1707 = vpack.c.b16 %v1694, %v1693
        %v1708 = vpack.c.b16 %v1696, %v1695
        %v1709 = vpack.c.b16 %v1698, %v1697
        %v1710 = vpack.c.b16 %v1700, %v1699
        %v1711 = vpack.c.b16 %v1702, %v1701
        %v1712 = vpack.c.b16 %v1704, %v1703
        %1721 = vmatpush.bf16.msra.mxu0 %v1712
        %1722 = vmatpush.bf16.msra.mxu0 %v1711
        %1723 = vmatpush.bf16.msra.mxu0 %v1710
        %1724 = vmatpush.bf16.msra.mxu0 %v1709
        %1725 = vmatpush.bf16.msra.mxu0 %v1708
        %1726 = vmatpush.bf16.msra.mxu0 %v1707
        %1727 = vmatpush.bf16.msra.mxu0 %v1706
        %1728 = vmatpush.bf16.msra.mxu0 %v1705
        %1729 = vmatmul.bf16.gmra.mxu0 %v1671
        %v1730 = vpop.f32.mrf.mxu0
        %v1731 = vadd.f32 0.0, %v1730
        %v1732 = vpop.f32.mrf.mxu0
        %v1733 = vadd.f32 0.0, %v1732
        %1734 = vdwg.mxu0
        %v1735 = vadd.f32 %v1646, %v1731
        %v1736 = vadd.f32 %v1647, %v1733
        %v1737 = vld [vmem:[%s377 + $0x8] sm:$0xf]
        %s1738 = scalar_lea.vmem [#allocation2], 896
        %v1739 = vld [vmem:[%s1738] sm:$0xf]
        %v1740 = vld [vmem:[%s1738 + $0x4] sm:$0xf]
        %v1741 = vld [vmem:[%s1738 + $0x8] sm:$0xf]
        %v1742 = vld [vmem:[%s1738 + $0xc] sm:$0xf]
        %v1743 = vld [vmem:[%s1738 + $0x10] sm:$0xf]
        %v1744 = vld [vmem:[%s1738 + $0x14] sm:$0xf]
        %v1745 = vld [vmem:[%s1738 + $0x18] sm:$0xf]
        %v1746 = vld [vmem:[%s1738 + $0x1c] sm:$0xf]
        %v1747 = vld [vmem:[%s1738 + $0x20] sm:$0xf]
        %v1748 = vld [vmem:[%s1738 + $0x24] sm:$0xf]
        %v1749 = vld [vmem:[%s1738 + $0x28] sm:$0xf]
        %v1750 = vld [vmem:[%s1738 + $0x2c] sm:$0xf]
        %v1751 = vld [vmem:[%s1738 + $0x30] sm:$0xf]
        %v1752 = vld [vmem:[%s1738 + $0x34] sm:$0xf]
        %v1753 = vld [vmem:[%s1738 + $0x38] sm:$0xf]
        %v1754 = vld [vmem:[%s1738 + $0x3c] sm:$0xf]
        %v1756 = vunpack.c.l.b16 %v1737
        %v1757 = vpack.c.b16 %v1756, %v1756
        %vm1758 = vsmask.f32 4352
        %v1760 = vshrl.u32 %v1578, 16
        %v1762 = vrot.slane %v1760, 3
        %v1763 = vshll.u32 %v1578, 16
        %v1765 = vrot.slane %v1763, 4
        %v1766 = vor.u32 %v1762, %v1765
        %v1768 = vshrl.u32 %v1757, 16
        %v1770 = vrot.slane %v1768, 3
        %v1771 = vshll.u32 %v1757, 16
        %v1773 = vrot.slane %v1771, 4
        %v1774 = vor.u32 %v1770, %v1773
        %v1775 = vsel %vm1758, %v1766, %v1774
        %v1793 = vunpack.c.l.b16 %v1739
        %v1794 = vunpack.c.l.b16 %v1740
        %v1795 = vunpack.c.l.b16 %v1741
        %v1796 = vunpack.c.l.b16 %v1742
        %v1797 = vunpack.c.l.b16 %v1743
        %v1798 = vunpack.c.l.b16 %v1744
        %v1799 = vunpack.c.l.b16 %v1745
        %v1800 = vunpack.c.l.b16 %v1746
        %v1801 = vunpack.c.l.b16 %v1747
        %v1802 = vunpack.c.l.b16 %v1748
        %v1803 = vunpack.c.l.b16 %v1749
        %v1804 = vunpack.c.l.b16 %v1750
        %v1805 = vunpack.c.l.b16 %v1751
        %v1806 = vunpack.c.l.b16 %v1752
        %v1807 = vunpack.c.l.b16 %v1753
        %v1808 = vunpack.c.l.b16 %v1754
        %v1809 = vpack.c.b16 %v1794, %v1793
        %v1810 = vpack.c.b16 %v1796, %v1795
        %v1811 = vpack.c.b16 %v1798, %v1797
        %v1812 = vpack.c.b16 %v1800, %v1799
        %v1813 = vpack.c.b16 %v1802, %v1801
        %v1814 = vpack.c.b16 %v1804, %v1803
        %v1815 = vpack.c.b16 %v1806, %v1805
        %v1816 = vpack.c.b16 %v1808, %v1807
        %1825 = vmatpush.bf16.msra.mxu0 %v1816
        %1826 = vmatpush.bf16.msra.mxu0 %v1815
        %1827 = vmatpush.bf16.msra.mxu0 %v1814
        %1828 = vmatpush.bf16.msra.mxu0 %v1813
        %1829 = vmatpush.bf16.msra.mxu0 %v1812
        %1830 = vmatpush.bf16.msra.mxu0 %v1811
        %1831 = vmatpush.bf16.msra.mxu0 %v1810
        %1832 = vmatpush.bf16.msra.mxu0 %v1809
        %1833 = vmatmul.bf16.gmra.mxu0 %v1775
        %v1834 = vpop.f32.mrf.mxu0
        %v1835 = vadd.f32 0.0, %v1834
        %v1836 = vpop.f32.mrf.mxu0
        %v1837 = vadd.f32 0.0, %v1836
        %1838 = vdwg.mxu0
        %v1839 = vadd.f32 %v1735, %v1835
        %v1840 = vadd.f32 %v1736, %v1837
        %v1841 = vld [vmem:[%s419 + $0x8] sm:$0xf]
        %s1842 = scalar_lea.vmem [#allocation2], 960
        %v1843 = vld [vmem:[%s1842] sm:$0xf]
        %v1844 = vld [vmem:[%s1842 + $0x4] sm:$0xf]
        %v1845 = vld [vmem:[%s1842 + $0x8] sm:$0xf]
        %v1846 = vld [vmem:[%s1842 + $0xc] sm:$0xf]
        %v1847 = vld [vmem:[%s1842 + $0x10] sm:$0xf]
        %v1848 = vld [vmem:[%s1842 + $0x14] sm:$0xf]
        %v1849 = vld [vmem:[%s1842 + $0x18] sm:$0xf]
        %v1850 = vld [vmem:[%s1842 + $0x1c] sm:$0xf]
        %v1851 = vld [vmem:[%s1842 + $0x20] sm:$0xf]
        %v1852 = vld [vmem:[%s1842 + $0x24] sm:$0xf]
        %v1853 = vld [vmem:[%s1842 + $0x28] sm:$0xf]
        %v1854 = vld [vmem:[%s1842 + $0x2c] sm:$0xf]
        %v1855 = vld [vmem:[%s1842 + $0x30] sm:$0xf]
        %v1856 = vld [vmem:[%s1842 + $0x34] sm:$0xf]
        %v1857 = vld [vmem:[%s1842 + $0x38] sm:$0xf]
        %v1858 = vld [vmem:[%s1842 + $0x3c] sm:$0xf]
        %v1860 = vunpack.c.l.b16 %v1841
        %v1861 = vpack.c.b16 %v1860, %v1860
        %v1863 = vshrl.u32 %v1668, 16
        %v1865 = vrot.slane %v1863, 3
        %v1866 = vshll.u32 %v1668, 16
        %v1868 = vrot.slane %v1866, 4
        %v1869 = vor.u32 %v1865, %v1868
        %v1871 = vshrl.u32 %v1861, 16
        %v1873 = vrot.slane %v1871, 3
        %v1874 = vshll.u32 %v1861, 16
        %v1876 = vrot.slane %v1874, 4
        %v1877 = vor.u32 %v1873, %v1876
        %v1878 = vsel %vm1758, %v1869, %v1877
        %v1896 = vunpack.c.l.b16 %v1843
        %v1897 = vunpack.c.l.b16 %v1844
        %v1898 = vunpack.c.l.b16 %v1845
        %v1899 = vunpack.c.l.b16 %v1846
        %v1900 = vunpack.c.l.b16 %v1847
        %v1901 = vunpack.c.l.b16 %v1848
        %v1902 = vunpack.c.l.b16 %v1849
        %v1903 = vunpack.c.l.b16 %v1850
        %v1904 = vunpack.c.l.b16 %v1851
        %v1905 = vunpack.c.l.b16 %v1852
        %v1906 = vunpack.c.l.b16 %v1853
        %v1907 = vunpack.c.l.b16 %v1854
        %v1908 = vunpack.c.l.b16 %v1855
        %v1909 = vunpack.c.l.b16 %v1856
        %v1910 = vunpack.c.l.b16 %v1857
        %v1911 = vunpack.c.l.b16 %v1858
        %v1912 = vpack.c.b16 %v1897, %v1896
        %v1913 = vpack.c.b16 %v1899, %v1898
        %v1914 = vpack.c.b16 %v1901, %v1900
        %v1915 = vpack.c.b16 %v1903, %v1902
        %v1916 = vpack.c.b16 %v1905, %v1904
        %v1917 = vpack.c.b16 %v1907, %v1906
        %v1918 = vpack.c.b16 %v1909, %v1908
        %v1919 = vpack.c.b16 %v1911, %v1910
        %1928 = vmatpush.bf16.msra.mxu0 %v1919
        %1929 = vmatpush.bf16.msra.mxu0 %v1918
        %1930 = vmatpush.bf16.msra.mxu0 %v1917
        %1931 = vmatpush.bf16.msra.mxu0 %v1916
        %1932 = vmatpush.bf16.msra.mxu0 %v1915
        %1933 = vmatpush.bf16.msra.mxu0 %v1914
        %1934 = vmatpush.bf16.msra.mxu0 %v1913
        %1935 = vmatpush.bf16.msra.mxu0 %v1912
        %1936 = vmatmul.bf16.gmra.mxu0 %v1878
        %v1937 = vpop.f32.mrf.mxu0
        %v1938 = vadd.f32 0.0, %v1937
        %v1939 = vpop.f32.mrf.mxu0
        %v1940 = vadd.f32 0.0, %v1939
        %1941 = vdwg.mxu0
        %v1942 = vadd.f32 %v1839, %v1938
        %v1943 = vadd.f32 %v1840, %v1940
        %s1944 = scalar_lea.vmem [#allocation2], 1024
        %v1945 = vld [vmem:[%s1944] sm:$0xf]
        %v1946 = vld [vmem:[%s1944 + $0x4] sm:$0xf]
        %v1947 = vld [vmem:[%s1944 + $0x8] sm:$0xf]
        %v1948 = vld [vmem:[%s1944 + $0xc] sm:$0xf]
        %v1949 = vld [vmem:[%s1944 + $0x10] sm:$0xf]
        %v1950 = vld [vmem:[%s1944 + $0x14] sm:$0xf]
        %v1951 = vld [vmem:[%s1944 + $0x18] sm:$0xf]
        %v1952 = vld [vmem:[%s1944 + $0x1c] sm:$0xf]
        %v1953 = vld [vmem:[%s1944 + $0x20] sm:$0xf]
        %v1954 = vld [vmem:[%s1944 + $0x24] sm:$0xf]
        %v1955 = vld [vmem:[%s1944 + $0x28] sm:$0xf]
        %v1956 = vld [vmem:[%s1944 + $0x2c] sm:$0xf]
        %v1957 = vld [vmem:[%s1944 + $0x30] sm:$0xf]
        %v1958 = vld [vmem:[%s1944 + $0x34] sm:$0xf]
        %v1959 = vld [vmem:[%s1944 + $0x38] sm:$0xf]
        %v1960 = vld [vmem:[%s1944 + $0x3c] sm:$0xf]
        %v1961 = vpack.c.b16 %v1756, %v599
        %v1979 = vunpack.c.l.b16 %v1945
        %v1980 = vunpack.c.l.b16 %v1946
        %v1981 = vunpack.c.l.b16 %v1947
        %v1982 = vunpack.c.l.b16 %v1948
        %v1983 = vunpack.c.l.b16 %v1949
        %v1984 = vunpack.c.l.b16 %v1950
        %v1985 = vunpack.c.l.b16 %v1951
        %v1986 = vunpack.c.l.b16 %v1952
        %v1987 = vunpack.c.l.b16 %v1953
        %v1988 = vunpack.c.l.b16 %v1954
        %v1989 = vunpack.c.l.b16 %v1955
        %v1990 = vunpack.c.l.b16 %v1956
        %v1991 = vunpack.c.l.b16 %v1957
        %v1992 = vunpack.c.l.b16 %v1958
        %v1993 = vunpack.c.l.b16 %v1959
        %v1994 = vunpack.c.l.b16 %v1960
        %v1995 = vpack.c.b16 %v1980, %v1979
        %v1996 = vpack.c.b16 %v1982, %v1981
        %v1997 = vpack.c.b16 %v1984, %v1983
        %v1998 = vpack.c.b16 %v1986, %v1985
        %v1999 = vpack.c.b16 %v1988, %v1987
        %v2000 = vpack.c.b16 %v1990, %v1989
        %v2001 = vpack.c.b16 %v1992, %v1991
        %v2002 = vpack.c.b16 %v1994, %v1993
        %2011 = vmatpush.bf16.msra.mxu0 %v2002
        %2012 = vmatpush.bf16.msra.mxu0 %v2001
        %2013 = vmatpush.bf16.msra.mxu0 %v2000
        %2014 = vmatpush.bf16.msra.mxu0 %v1999
        %2015 = vmatpush.bf16.msra.mxu0 %v1998
        %2016 = vmatpush.bf16.msra.mxu0 %v1997
        %2017 = vmatpush.bf16.msra.mxu0 %v1996
        %2018 = vmatpush.bf16.msra.mxu0 %v1995
        %2019 = vmatmul.bf16.gmra.mxu0 %v1961
        %v2020 = vpop.f32.mrf.mxu0
        %v2021 = vadd.f32 0.0, %v2020
        %v2022 = vpop.f32.mrf.mxu0
        %v2023 = vadd.f32 0.0, %v2022
        %2024 = vdwg.mxu0
        %v2025 = vadd.f32 %v1942, %v2021
        %v2026 = vadd.f32 %v1943, %v2023
        %v2027 = vld [vmem:[%s388] sm:$0xf]
        %v2028 = vld [vmem:[%s388 + $0x4] sm:$0xf]
        %s2029 = scalar_lea.vmem %s388, 8
        %v2030 = vld [vmem:[%s2029] sm:$0xf]
        %v2031 = vld [vmem:[%s2029 + $0x4] sm:$0xf]
        %v2032 = vunpack.c.l.bf16 %v2027
        %v2033 = vunpack.c.l.bf16 %v2028
        %v2034 = vunpack.c.l.bf16 %v2030
        %v2035 = vunpack.c.l.bf16 %v2031
        %v2036 = vmax.f32 %v2032, %v2034
        %v2037 = vmax.f32 %v2033, %v2035
        %v2038 = vpack.c.bf16 %v2037, %v2036
        %v2039 = vld [vmem:[%s392] sm:$0xf]
        %v2040 = vld [vmem:[%s392 + $0x4] sm:$0xf]
        %v2041 = vld [vmem:[%s392 + $0x8] sm:$0xf]
        %v2042 = vld [vmem:[%s392 + $0xc] sm:$0xf]
        %v2043 = vld [vmem:[%s392 + $0x10] sm:$0xf]
        %v2044 = vld [vmem:[%s392 + $0x14] sm:$0xf]
        %v2045 = vld [vmem:[%s392 + $0x18] sm:$0xf]
        %v2046 = vld [vmem:[%s392 + $0x1c] sm:$0xf]
        %v2047 = vld [vmem:[%s392 + $0x20] sm:$0xf]
        %v2048 = vld [vmem:[%s392 + $0x24] sm:$0xf]
        %v2049 = vld [vmem:[%s392 + $0x28] sm:$0xf]
        %v2050 = vld [vmem:[%s392 + $0x2c] sm:$0xf]
        %v2051 = vld [vmem:[%s392 + $0x30] sm:$0xf]
        %v2052 = vld [vmem:[%s392 + $0x34] sm:$0xf]
        %v2053 = vld [vmem:[%s392 + $0x38] sm:$0xf]
        %v2054 = vld [vmem:[%s392 + $0x3c] sm:$0xf]
        %v2071 = vunpack.c.l.b16 %v2039
        %v2072 = vunpack.c.l.b16 %v2040
        %v2073 = vunpack.c.l.b16 %v2041
        %v2074 = vunpack.c.l.b16 %v2042
        %v2075 = vunpack.c.l.b16 %v2043
        %v2076 = vunpack.c.l.b16 %v2044
        %v2077 = vunpack.c.l.b16 %v2045
        %v2078 = vunpack.c.l.b16 %v2046
        %v2079 = vunpack.c.l.b16 %v2047
        %v2080 = vunpack.c.l.b16 %v2048
        %v2081 = vunpack.c.l.b16 %v2049
        %v2082 = vunpack.c.l.b16 %v2050
        %v2083 = vunpack.c.l.b16 %v2051
        %v2084 = vunpack.c.l.b16 %v2052
        %v2085 = vunpack.c.l.b16 %v2053
        %v2086 = vunpack.c.l.b16 %v2054
        %v2087 = vpack.c.b16 %v2072, %v2071
        %v2088 = vpack.c.b16 %v2074, %v2073
        %v2089 = vpack.c.b16 %v2076, %v2075
        %v2090 = vpack.c.b16 %v2078, %v2077
        %v2091 = vpack.c.b16 %v2080, %v2079
        %v2092 = vpack.c.b16 %v2082, %v2081
        %v2093 = vpack.c.b16 %v2084, %v2083
        %v2094 = vpack.c.b16 %v2086, %v2085
        %2103 = vmatpush.bf16.msra.mxu0 %v2094
        %2104 = vmatpush.bf16.msra.mxu0 %v2093
        %2105 = vmatpush.bf16.msra.mxu0 %v2092
        %2106 = vmatpush.bf16.msra.mxu0 %v2091
        %2107 = vmatpush.bf16.msra.mxu0 %v2090
        %2108 = vmatpush.bf16.msra.mxu0 %v2089
        %2109 = vmatpush.bf16.msra.mxu0 %v2088
        %2110 = vmatpush.bf16.msra.mxu0 %v2087
        %2111 = vmatmul.bf16.gmra.mxu0 %v2038
        %v2112 = vpop.f32.mrf.mxu0
        %v2113 = vadd.f32 0.0, %v2112
        %v2114 = vpop.f32.mrf.mxu0
        %v2115 = vadd.f32 0.0, %v2114
        %2116 = vdwg.mxu0
        %v2117 = vadd.f32 %v2025, %v2113
        %v2118 = vadd.f32 %v2026, %v2115
        %v2119 = vpack.c.bf16 %v2117, %v2117
        %v2120 = vpack.c.bf16 %v2118, %v2118
        %2121 = vst [vmem:[%s372] sm:$0xf] %v2119
        %2122 = vst [vmem:[%s372 + $0x4] sm:$0xf] %v2120
        %v2123 = vld [vmem:[%s380] sm:$0x1]
        %v2125 = vperm.slane %v2123, 0
        %v2127 = vmul.f32 %v2117, %v2125
        %v2128 = vmul.f32 %v2118, %v2125
        %v2129 = vld [vmem:[%s383] sm:$0x1]
        %v2131 = vperm.slane %v2129, 0
        %v2133 = vadd.f32 %v2127, %v2131
        %v2134 = vadd.f32 %v2128, %v2131
        %v2135 = vmax.f32 %v2133, 0.0
        %v2136 = vmax.f32 %v2134, 0.0
        %v2137 = vpack.c.bf16 %v2135, %v2135
        %v2138 = vpack.c.bf16 %v2136, %v2136
        %2139 = vst [vmem:[%s400] sm:$0xf] %v2137
        %2140 = vst [vmem:[%s400 + $0x4] sm:$0xf] %v2138
        %p2141 = scmp.lt.s32.totalorder %s27, 1
        %s2142 = scalar_select %p2141, %s27, 1
        %p2143 = scmp.lt.s32.totalorder %s28, 0
        %s2144 = scalar_select %p2143, %s28, 0
        %s2145 = smul.addr %s2142, 2
        %s2146 = sadd.s32 %s2144, %s2145
        %s2147 = smul.addr %s2146, 4
        %s2148 = scalar_lea.vmem %s6, %s2147
        %s2149 = sand.u32 %s229, 1
        %s2150 = scalar_lea.sflag [#allocation4], %s2149
        %s2151 = sand.u32 %s229, 1
        %s2152 = smul.addr %s2151, 8
        %s2153 = scalar_lea.vmem [#allocation5], %s2152
        // Predicated region
        $region49: #{resnet1d_forward.9} parent=43 // pred_check
          %p2154 = pneg %p211
        $region50: #{resnet1d_forward.9} parent=43 // pred_check_branch
          %2156 = sbr.rel (%p2154) target = $region52
        $region51: #{resnet1d_forward.9} parent=43 // pred_region
          _
        $region52: #{resnet1d_forward.9} parent=43 // pred_fallthru
          _
        // Predicated region
        $region53: #{resnet1d_forward.9} parent=43 // pred_check
          %p2157 = pneg %p239
        $region54: #{resnet1d_forward.9} parent=43 // pred_check_branch
          %2159 = sbr.rel (%p2157) target = $region56
        $region55: #{resnet1d_forward.9} parent=43 // pred_region
          %2161 = vsyncadd %s2150, 0
          %s2162 = smul.addr %s27, 2
          %s2163 = sadd.s32 %s28, %s2162
          %s2164 = smul.addr %s2163, 4
          %s2165 = scalar_lea.hbm %s7, %s2164
          %s2166 = sshll.u32 %s2153, 4
          %s2167 = int_to_ptr.vmem [resolvable:$true] %s2166
          %s2168 = sshll.u32 %s2165, 4
          %s2169 = int_to_ptr.hbm [resolvable:$true] %s2168
          %2174 = dma.vmem_to_hbm [thread:$0]  %s2167, 128, %s2169, %s2150, 64, 64, 4
        $region56: #{resnet1d_forward.9} parent=43 // pred_fallthru
          _
      $region44: #{resnet1d_forward.9} parent=5 // pred_fallthru
        _
      %p2175 = scmp.le.s32.totalorder 2, %s18
      // Predicated region
      $region57: #{resnet1d_forward.9} parent=5 // pred_check
        %p2176 = pneg %p2175
      $region58: #{resnet1d_forward.9} parent=5 // pred_check_branch
        %2178 = sbr.rel (%p2176) target = $region60
      $region59: #{resnet1d_forward.9} parent=5 // pred_region
        %s2179 = ssub.s32 %s18, 2
        // Predicated region
        $region61: #{resnet1d_forward.9} parent=59 // pred_check
          %p2180 = pneg %p217
        $region62: #{resnet1d_forward.9} parent=59 // pred_check_branch
          %2182 = sbr.rel (%p2180) target = $region64
        $region63: #{resnet1d_forward.9} parent=59 // pred_region
          %p2183 = scmp.lt.s32.totalorder %s29, 1
          %s2184 = scalar_select %p2183, %s29, 1
          %p2185 = scmp.lt.s32.totalorder %s30, 0
          %s2186 = scalar_select %p2185, %s30, 0
          %s2187 = smul.addr %s2184, 2
          %s2188 = sadd.s32 %s2186, %s2187
          %s2189 = smul.addr %s2188, 4
          %s2190 = scalar_lea.vmem %s6, %s2189
        $region64: #{resnet1d_forward.9} parent=59 // pred_fallthru
          _
        // Predicated region
        $region65: #{resnet1d_forward.9} parent=59 // pred_check
          %p2191 = pneg %p245
        $region66: #{resnet1d_forward.9} parent=59 // pred_check_branch
          %2193 = sbr.rel (%p2191) target = $region68
        $region67: #{resnet1d_forward.9} parent=59 // pred_region
          %s2194 = sand.u32 %s230, 1
          %s2195 = scalar_lea.sflag [#allocation4], %s2194
          %s2196 = sand.u32 %s230, 1
          %s2197 = smul.addr %s2196, 8
          %s2198 = scalar_lea.vmem [#allocation5], %s2197
          %2200 = dma.done %s2195, 128
        $region68: #{resnet1d_forward.9} parent=59 // pred_fallthru
          _
      $region60: #{resnet1d_forward.9} parent=5 // pred_fallthru
        _
    $region6: #{resnet1d_forward.9} parent=1 // loop_footer
      %s22 = sadd.s32 1, %s18
    $region7: #{resnet1d_forward.9} parent=1 // loop_footer_branch
      %17 = sbr.rel target = $region3
    $region8: #{resnet1d_forward.9} parent=1 // loop_exit
      _
    %2201 = vsyncpa [#allocation3], 1
    %s2202 = scalar_lea.sflag [#allocation3], 1
    %2203 = vsyncpa %s2202, 1
    %2204 = vsyncpa [#allocation4], 1
    %s2205 = scalar_lea.sflag [#allocation4], 1
    %2206 = vsyncpa %s2205, 1

// kernel: resnet1d_forward.6
$region0: #{resnet1d_forward.6}
  #allocation0 [shape = 'u32[]', space=smem, size = 0x4, offset = 0x4, fixed_abs, tag = 'smem constant byte address 0x4 - core index']
  #allocation1 [shape = 'u32[72,128]{1,0:T(1,128)}', space=vmem, size = 0x9000, scoped, tag = 'internal scratch']
  %s0 = inlined_call_operand.vmem [shape: bf16[2,1,48,128], index: 0, kind: input, shape index: {}]
  %s1 = inlined_call_operand.hbm [shape: bf16[17,128,128], index: 1, kind: input, shape index: {}]
  %s2 = inlined_call_operand.vmem [shape: f32[1,128], index: 2, kind: input, shape index: {}]
  %s3 = inlined_call_operand.vmem [shape: f32[1,128], index: 3, kind: input, shape index: {}]
  %s4 = inlined_call_operand.vmem [shape: bf16[2,32,128], index: 4, kind: output, shape index: {}]
  %s5 = sld [smem:[#allocation0]]
  $region53: #{resnet1d_forward.6} parent=0
    _
  %s7 = ssub.s32 1, %s5
  %s8 = scalar_select 0, %s7, %s5
  $region1: #{resnet1d_forward.6} parent=0
    #allocation2 [shape = 'u8[557056]{0}', space=vmem, size = 0x88000, scoped, tag = 'input window, operand 1, single buffered']
    #allocation3 [shape = 's32[2]{0}', space=sflag, size = 0x8, scoped, tag = 'scoped memory for resnet1d_forward.6']
    %9 = vsyncpa [#allocation3], 0
    loop: start=0, step=1, limit=4
    $region2: #{resnet1d_forward.6} parent=1 // loop_pre_header
      _
    $region3: #{resnet1d_forward.6} parent=1 // loop_header
      %s11 = sphi 0, %s15
      %p12 = scmp.ge.s32.totalorder %s11, 4
      %s18 = sphi 0, %s30
      %s19 = sphi 0, %s26
      %s20 = sphi 0, %s18
      %s21 = sphi 0, %s19
      %s22 = sphi 0, %s20
      %s23 = sphi 0, %s21
      %s33 = sphi 0, %s35
      %s36 = sphi 0, %s33
      %s37 = sphi 0, %s36
      %s53 = sphi 0, %s37
      %s59 = sphi 0, %s61
      %s62 = sphi 0, %s59
      %s63 = sphi 0, %s62
      %s79 = sphi 0, %s63
      %s85 = sphi 0, %s87
      %s88 = sphi 0, %s85
      %s89 = sphi 0, %s88
      %s105 = sphi 0, %s89
      %s111 = sphi 0, %s113
      %s114 = sphi 0, %s111
      %s115 = sphi 0, %s114
      %s131 = sphi 0, %s115
      %s139 = sphi 0, %s141
      %s142 = sphi 0, %s139
      %s143 = sphi 0, %s142
      %s159 = sphi 0, %s143
    $region4: #{resnet1d_forward.6} parent=1 // loop_header_branch
      %14 = sbr.rel (%p12) target = $region8
    $region5: #{resnet1d_forward.6} parent=1 // loop_body
      %s16 = ssub.s32 %s11, 1
      %s17 = ssub.s32 %s11, 2
      %s24 = sadd.s32 1, %s19
      %p25 = scmp.ge.s32.totalorder %s24, 1
      %s26 = scalar_select %p25, 0, %s24
      %s27 = sadd.s32 1, %s18
      %s28 = scalar_select %p25, %s27, %s18
      %p29 = scmp.ge.s32.totalorder %s28, 2
      %s30 = scalar_select %p29, 0, %s28
      %s31 = ssub.s32 %s18, %s30
      %p32 = scmp.eq.s32.totalorder %s31, 0
      %s34 = sadd.s32 %s33, 1
      %s35 = scalar_select %p32, %s33, %s34
      %p38 = pneg %p32
      %p39 = scmp.eq.s32.totalorder %s11, 1
      %p40 = por %p38, %p39
      %p41 = scmp.ne.s32.totalorder %s33, %s36
      %p42 = scmp.eq.s32.totalorder %s11, 0
      %p43 = por %p41, %p42
      %p44 = scmp.ne.s32.totalorder %s33, %s36
      %p45 = scmp.eq.s32.totalorder %s16, 1
      %p46 = por %p44, %p45
      %p47 = scmp.ne.s32.totalorder %s36, %s37
      %p48 = scmp.eq.s32.totalorder %s16, 0
      %p49 = por %p47, %p48
      %p50 = scmp.ne.s32.totalorder %s36, %s37
      %p51 = scmp.eq.s32.totalorder %s17, 1
      %p52 = por %p50, %p51
      %p54 = scmp.ne.s32.totalorder %s37, %s53
      %p55 = scmp.eq.s32.totalorder %s17, 0
      %p56 = por %p54, %p55
      %s57 = ssub.s32 %s19, %s26
      %p58 = scmp.eq.s32.totalorder %s57, 0
      %s60 = sadd.s32 %s59, 1
      %s61 = scalar_select %p58, %s59, %s60
      %p64 = pneg %p58
      %p65 = scmp.eq.s32.totalorder %s11, 1
      %p66 = por %p64, %p65
      %p67 = scmp.ne.s32.totalorder %s59, %s62
      %p68 = scmp.eq.s32.totalorder %s11, 0
      %p69 = por %p67, %p68
      %p70 = scmp.ne.s32.totalorder %s59, %s62
      %p71 = scmp.eq.s32.totalorder %s16, 1
      %p72 = por %p70, %p71
      %p73 = scmp.ne.s32.totalorder %s62, %s63
      %p74 = scmp.eq.s32.totalorder %s16, 0
      %p75 = por %p73, %p74
      %p76 = scmp.ne.s32.totalorder %s62, %s63
      %p77 = scmp.eq.s32.totalorder %s17, 1
      %p78 = por %p76, %p77
      %p80 = scmp.ne.s32.totalorder %s63, %s79
      %p81 = scmp.eq.s32.totalorder %s17, 0
      %p82 = por %p80, %p81
      %s83 = ssub.s32 %s19, %s26
      %p84 = scmp.eq.s32.totalorder %s83, 0
      %s86 = sadd.s32 %s85, 1
      %s87 = scalar_select %p84, %s85, %s86
      %p90 = pneg %p84
      %p91 = scmp.eq.s32.totalorder %s11, 1
      %p92 = por %p90, %p91
      %p93 = scmp.ne.s32.totalorder %s85, %s88
      %p94 = scmp.eq.s32.totalorder %s11, 0
      %p95 = por %p93, %p94
      %p96 = scmp.ne.s32.totalorder %s85, %s88
      %p97 = scmp.eq.s32.totalorder %s16, 1
      %p98 = por %p96, %p97
      %p99 = scmp.ne.s32.totalorder %s88, %s89
      %p100 = scmp.eq.s32.totalorder %s16, 0
      %p101 = por %p99, %p100
      %p102 = scmp.ne.s32.totalorder %s88, %s89
      %p103 = scmp.eq.s32.totalorder %s17, 1
      %p104 = por %p102, %p103
      %p106 = scmp.ne.s32.totalorder %s89, %s105
      %p107 = scmp.eq.s32.totalorder %s17, 0
      %p108 = por %p106, %p107
      %s109 = ssub.s32 %s19, %s26
      %p110 = scmp.eq.s32.totalorder %s109, 0
      %s112 = sadd.s32 %s111, 1
      %s113 = scalar_select %p110, %s111, %s112
      %p116 = pneg %p110
      %p117 = scmp.eq.s32.totalorder %s11, 1
      %p118 = por %p116, %p117
      %p119 = scmp.ne.s32.totalorder %s111, %s114
      %p120 = scmp.eq.s32.totalorder %s11, 0
      %p121 = por %p119, %p120
      %p122 = scmp.ne.s32.totalorder %s111, %s114
      %p123 = scmp.eq.s32.totalorder %s16, 1
      %p124 = por %p122, %p123
      %p125 = scmp.ne.s32.totalorder %s114, %s115
      %p126 = scmp.eq.s32.totalorder %s16, 0
      %p127 = por %p125, %p126
      %p128 = scmp.ne.s32.totalorder %s114, %s115
      %p129 = scmp.eq.s32.totalorder %s17, 1
      %p130 = por %p128, %p129
      %p132 = scmp.ne.s32.totalorder %s115, %s131
      %p133 = scmp.eq.s32.totalorder %s17, 0
      %p134 = por %p132, %p133
      %s135 = ssub.s32 %s18, %s30
      %s136 = ssub.s32 %s19, %s26
      %s137 = sor.u32 %s135, %s136
      %p138 = scmp.eq.s32.totalorder %s137, 0
      %s140 = sadd.s32 %s139, 1
      %s141 = scalar_select %p138, %s139, %s140
      %p144 = pneg %p138
      %p145 = scmp.eq.s32.totalorder %s11, 1
      %p146 = por %p144, %p145
      %p147 = scmp.ne.s32.totalorder %s139, %s142
      %p148 = scmp.eq.s32.totalorder %s11, 0
      %p149 = por %p147, %p148
      %p150 = scmp.ne.s32.totalorder %s139, %s142
      %p151 = scmp.eq.s32.totalorder %s16, 1
      %p152 = por %p150, %p151
      %p153 = scmp.ne.s32.totalorder %s142, %s143
      %p154 = scmp.eq.s32.totalorder %s16, 0
      %p155 = por %p153, %p154
      %p156 = scmp.ne.s32.totalorder %s142, %s143
      %p157 = scmp.eq.s32.totalorder %s17, 1
      %p158 = por %p156, %p157
      %p160 = scmp.ne.s32.totalorder %s143, %s159
      %p161 = scmp.eq.s32.totalorder %s17, 0
      %p162 = por %p160, %p161
      %p163 = scmp.le.s32.totalorder 1, %s11
      %p164 = scmp.lt.s32.totalorder %s11, 3
      %p165 = pnand %p163, %p164
      %p166 = pneg %p165
      // Predicated region
      $region9: #{resnet1d_forward.6} parent=5 // pred_check
        _
      $region10: #{resnet1d_forward.6} parent=5 // pred_check_branch
        %168 = sbr.rel (%p165) target = $region12
      $region11: #{resnet1d_forward.6} parent=5 // pred_region
        %s169 = ssub.s32 %s11, 1
        // Predicated region
        $region13: #{resnet1d_forward.6} parent=11 // pred_check
          %p170 = pneg %p75
        $region14: #{resnet1d_forward.6} parent=11 // pred_check_branch
          %172 = sbr.rel (%p170) target = $region16
        $region15: #{resnet1d_forward.6} parent=11 // pred_region
          %174 = vsyncadd [#allocation3], 0
          %s175 = smul.addr %s21, 4
          %s176 = scalar_lea.hbm %s1, %s175
          %s177 = sshll.u32 %s176, 4
          %s178 = int_to_ptr.hbm [resolvable:$true] %s177
          %s179 = sshll.u32 [#allocation2], 4
          %s180 = int_to_ptr.vmem [resolvable:$true] %s179
          %185 = dma.hbm_to_vmem [thread:$0]  %s178, 17408, %s180, [#allocation3], 64, 64, 4
        $region16: #{resnet1d_forward.6} parent=11 // pred_fallthru
          _
        // Predicated region
        $region17: #{resnet1d_forward.6} parent=11 // pred_check
          %p186 = pneg %p101
        $region18: #{resnet1d_forward.6} parent=11 // pred_check_branch
          %188 = sbr.rel (%p186) target = $region20
        $region19: #{resnet1d_forward.6} parent=11 // pred_region
          %p189 = scmp.lt.s32.totalorder %s21, 0
          %s190 = scalar_select %p189, %s21, 0
          %s191 = scalar_lea.vmem %s2, %s190
        $region20: #{resnet1d_forward.6} parent=11 // pred_fallthru
          _
        // Predicated region
        $region21: #{resnet1d_forward.6} parent=11 // pred_check
          %p192 = pneg %p127
        $region22: #{resnet1d_forward.6} parent=11 // pred_check_branch
          %194 = sbr.rel (%p192) target = $region24
        $region23: #{resnet1d_forward.6} parent=11 // pred_region
          %p195 = scmp.lt.s32.totalorder %s21, 0
          %s196 = scalar_select %p195, %s21, 0
          %s197 = scalar_lea.vmem %s3, %s196
        $region24: #{resnet1d_forward.6} parent=11 // pred_fallthru
          _
      $region12: #{resnet1d_forward.6} parent=5 // pred_fallthru
        _
      %p198 = scmp.lt.s32.totalorder %s11, 2
      // Predicated region
      $region25: #{resnet1d_forward.6} parent=5 // pred_check
        %p199 = pneg %p198
      $region26: #{resnet1d_forward.6} parent=5 // pred_check_branch
        %201 = sbr.rel (%p199) target = $region28
      $region27: #{resnet1d_forward.6} parent=5 // pred_region
        // Predicated region
        $region29: #{resnet1d_forward.6} parent=27 // pred_check
          %p202 = pneg %p43
        $region30: #{resnet1d_forward.6} parent=27 // pred_check_branch
          %204 = sbr.rel (%p202) target = $region32
        $region31: #{resnet1d_forward.6} parent=27 // pred_region
          %p205 = scmp.lt.s32.totalorder %s18, 1
          %s206 = scalar_select %p205, %s18, 1
          %s207 = smul.addr %s206, 6
          %s208 = smul.addr %s207, 4
          %s209 = scalar_lea.vmem %s0, %s208
        $region32: #{resnet1d_forward.6} parent=27 // pred_fallthru
          _
      $region28: #{resnet1d_forward.6} parent=5 // pred_fallthru
        _
      %p210 = scmp.le.s32.totalorder 1, %s11
      %p211 = scmp.lt.s32.totalorder %s11, 3
      %p212 = pnand %p210, %p211
      %p213 = pneg %p212
      // Predicated region
      $region33: #{resnet1d_forward.6} parent=5 // pred_check
        _
      $region34: #{resnet1d_forward.6} parent=5 // pred_check_branch
        %215 = sbr.rel (%p212) target = $region36
      $region35: #{resnet1d_forward.6} parent=5 // pred_region
        %s216 = ssub.s32 %s11, 1
        // Predicated region
        $region37: #{resnet1d_forward.6} parent=35 // pred_check
          %p217 = pneg %p75
        $region38: #{resnet1d_forward.6} parent=35 // pred_check_branch
          %219 = sbr.rel (%p217) target = $region40
        $region39: #{resnet1d_forward.6} parent=35 // pred_region
          %221 = dma.done [#allocation3], 17408
        $region40: #{resnet1d_forward.6} parent=35 // pred_fallthru
          _
        %p222 = scmp.lt.s32.totalorder %s20, 1
        %s223 = scalar_select %p222, %s20, 1
        %s224 = smul.addr %s223, 6
        %s225 = smul.addr %s224, 4
        %s226 = scalar_lea.vmem %s0, %s225
        %p227 = pneg %p49
        %p228 = pneg %p46
        %p229 = pneg %p75
        %p230 = pneg %p72
        %p231 = scmp.lt.s32.totalorder %s21, 0
        %s232 = scalar_select %p231, %s21, 0
        %s233 = scalar_lea.vmem %s2, %s232
        %p234 = pneg %p101
        %p235 = pneg %p98
        %p236 = scmp.lt.s32.totalorder %s21, 0
        %s237 = scalar_select %p236, %s21, 0
        %s238 = scalar_lea.vmem %s3, %s237
        %p239 = pneg %p127
        %p240 = pneg %p124
        %p241 = pneg %p155
        %p242 = pneg %p152
        %p243 = scmp.lt.s32.totalorder %s20, 1
        %s244 = scalar_select %p243, %s20, 1
        %p245 = scmp.lt.s32.totalorder %s21, 0
        %s246 = scalar_select %p245, %s21, 0
        %s247 = smul.addr %s244, 4
        %s248 = sadd.s32 %s246, %s247
        %s249 = smul.addr %s248, 4
        %s250 = scalar_lea.vmem %s4, %s249
        %p251 = scmp.lt.s32.totalorder %s20, 1
        %s252 = scalar_select %p251, %s20, 1
        %s253 = smul.addr %s252, 6
        %s254 = smul.addr %s253, 4
        %s255 = scalar_lea.vmem %s0, %s254
        %p256 = scmp.lt.s32.totalorder %s21, 0
        %s257 = scalar_select %p256, %s21, 0
        %s258 = scalar_lea.vmem %s2, %s257
        %p259 = scmp.lt.s32.totalorder %s21, 0
        %s260 = scalar_select %p259, %s21, 0
        %s261 = scalar_lea.vmem %s3, %s260
        %p262 = scmp.lt.s32.totalorder %s20, 1
        %s263 = scalar_select %p262, %s20, 1
        %p264 = scmp.lt.s32.totalorder %s21, 0
        %s265 = scalar_select %p264, %s21, 0
        %s266 = smul.addr %s263, 4
        %s267 = sadd.s32 %s265, %s266
        %s268 = smul.addr %s267, 4
        %s269 = scalar_lea.vmem %s4, %s268
        %v270 = vld [vmem:[%s255] sm:$0xf]
        %v271 = vld [vmem:[%s255 + $0x4] sm:$0xf]
        %v272 = vld [vmem:[%s255 + $0x8] sm:$0xf]
        %v273 = vld [vmem:[%s255 + $0xc] sm:$0xf]
        %v274 = vld [vmem:[#allocation2] sm:$0xf]
        %v275 = vld [vmem:[#allocation2 + $0x4] sm:$0xf]
        %v276 = vld [vmem:[#allocation2 + $0x8] sm:$0xf]
        %v277 = vld [vmem:[#allocation2 + $0xc] sm:$0xf]
        %v278 = vld [vmem:[#allocation2 + $0x10] sm:$0xf]
        %v279 = vld [vmem:[#allocation2 + $0x14] sm:$0xf]
        %v280 = vld [vmem:[#allocation2 + $0x18] sm:$0xf]
        %v281 = vld [vmem:[#allocation2 + $0x1c] sm:$0xf]
        %v282 = vld [vmem:[#allocation2 + $0x20] sm:$0xf]
        %v283 = vld [vmem:[#allocation2 + $0x24] sm:$0xf]
        %v284 = vld [vmem:[#allocation2 + $0x28] sm:$0xf]
        %v285 = vld [vmem:[#allocation2 + $0x2c] sm:$0xf]
        %v286 = vld [vmem:[#allocation2 + $0x30] sm:$0xf]
        %v287 = vld [vmem:[#allocation2 + $0x34] sm:$0xf]
        %v288 = vld [vmem:[#allocation2 + $0x38] sm:$0xf]
        %v289 = vld [vmem:[#allocation2 + $0x3c] sm:$0xf]
        %v290 = vld [vmem:[%s255 + $0x10] sm:$0x1]
        %s291 = scalar_lea.vmem [#allocation2], 64
        %v292 = vld [vmem:[%s291] sm:$0xf]
        %v293 = vld [vmem:[%s291 + $0x4] sm:$0xf]
        %v294 = vld [vmem:[%s291 + $0x8] sm:$0xf]
        %v295 = vld [vmem:[%s291 + $0xc] sm:$0xf]
        %v296 = vld [vmem:[%s291 + $0x10] sm:$0xf]
        %v297 = vld [vmem:[%s291 + $0x14] sm:$0xf]
        %v298 = vld [vmem:[%s291 + $0x18] sm:$0xf]
        %v299 = vld [vmem:[%s291 + $0x1c] sm:$0xf]
        %v300 = vld [vmem:[%s291 + $0x20] sm:$0xf]
        %v301 = vld [vmem:[%s291 + $0x24] sm:$0xf]
        %v302 = vld [vmem:[%s291 + $0x28] sm:$0xf]
        %v303 = vld [vmem:[%s291 + $0x2c] sm:$0xf]
        %v304 = vld [vmem:[%s291 + $0x30] sm:$0xf]
        %v305 = vld [vmem:[%s291 + $0x34] sm:$0xf]
        %v306 = vld [vmem:[%s291 + $0x38] sm:$0xf]
        %v307 = vld [vmem:[%s291 + $0x3c] sm:$0xf]
        %v313 = vunpack.c.l.b16 %v270
        %v314 = vunpack.c.l.b16 %v271
        %v315 = vunpack.c.l.b16 %v272
        %v316 = vunpack.c.l.b16 %v273
        %v317 = vunpack.c.l.b16 %v290
        %v318 = vpack.c.b16 %v314, %v313
        %v319 = vpack.c.b16 %v316, %v315
        %v320 = vpack.c.b16 %v317, %v317
        %vm321 = vsmask.f32 7424
        %v323 = vshrl.u32 %v318, 16
        %v325 = vshll.u32 %v318, 16
        %v327 = vrot.slane %v325, 1
        %v328 = vor.u32 %v323, %v327
        %v330 = vshll.u32 %v319, 16
        %v332 = vrot.slane %v330, 1
        %v333 = vsel %vm321, %v328, %v332
        %v334 = vshrl.u32 %v319, 16
        %v336 = vor.u32 %v334, %v332
        %v338 = vshll.u32 %v320, 16
        %v340 = vrot.slane %v338, 1
        %v341 = vsel %vm321, %v336, %v340
        %v360 = vunpack.c.l.b16 %v292
        %v361 = vunpack.c.l.b16 %v293
        %v362 = vunpack.c.l.b16 %v294
        %v363 = vunpack.c.l.b16 %v295
        %v364 = vunpack.c.l.b16 %v296
        %v365 = vunpack.c.l.b16 %v297
        %v366 = vunpack.c.l.b16 %v298
        %v367 = vunpack.c.l.b16 %v299
        %v368 = vunpack.c.l.b16 %v300
        %v369 = vunpack.c.l.b16 %v301
        %v370 = vunpack.c.l.b16 %v302
        %v371 = vunpack.c.l.b16 %v303
        %v372 = vunpack.c.l.b16 %v304
        %v373 = vunpack.c.l.b16 %v305
        %v374 = vunpack.c.l.b16 %v306
        %v375 = vunpack.c.l.b16 %v307
        %v376 = vpack.c.b16 %v361, %v360
        %v377 = vpack.c.b16 %v363, %v362
        %v378 = vpack.c.b16 %v365, %v364
        %v379 = vpack.c.b16 %v367, %v366
        %v380 = vpack.c.b16 %v369, %v368
        %v381 = vpack.c.b16 %v371, %v370
        %v382 = vpack.c.b16 %v373, %v372
        %v383 = vpack.c.b16 %v375, %v374
        %392 = vmatpush.bf16.msra.mxu0 %v383
        %393 = vmatpush.bf16.msra.mxu0 %v382
        %394 = vmatpush.bf16.msra.mxu0 %v381
        %395 = vmatpush.bf16.msra.mxu0 %v380
        %396 = vmatpush.bf16.msra.mxu0 %v379
        %397 = vmatpush.bf16.msra.mxu0 %v378
        %398 = vmatpush.bf16.msra.mxu0 %v377
        %399 = vmatpush.bf16.msra.mxu0 %v376
        %400 = vmatmul.bf16.gmra.mxu0 %v333
        %v401 = vpop.f32.mrf.mxu0
        %v402 = vadd.f32 0.0, %v401
        %v403 = vpop.f32.mrf.mxu0
        %v404 = vadd.f32 0.0, %v403
        %405 = vmatmul.bf16.gmra.mxu0 %v341
        %v406 = vpop.f32.mrf.mxu0
        %v407 = vadd.f32 0.0, %v406
        %v408 = vpop.f32.mrf.mxu0
        %v409 = vadd.f32 0.0, %v408
        %410 = vdwg.mxu0
        %v429 = vunpack.c.l.b16 %v274
        %v430 = vunpack.c.l.b16 %v275
        %v431 = vunpack.c.l.b16 %v276
        %v432 = vunpack.c.l.b16 %v277
        %v433 = vunpack.c.l.b16 %v278
        %v434 = vunpack.c.l.b16 %v279
        %v435 = vunpack.c.l.b16 %v280
        %v436 = vunpack.c.l.b16 %v281
        %v437 = vunpack.c.l.b16 %v282
        %v438 = vunpack.c.l.b16 %v283
        %v439 = vunpack.c.l.b16 %v284
        %v440 = vunpack.c.l.b16 %v285
        %v441 = vunpack.c.l.b16 %v286
        %v442 = vunpack.c.l.b16 %v287
        %v443 = vunpack.c.l.b16 %v288
        %v444 = vunpack.c.l.b16 %v289
        %v445 = vpack.c.b16 %v430, %v429
        %v446 = vpack.c.b16 %v432, %v431
        %v447 = vpack.c.b16 %v434, %v433
        %v448 = vpack.c.b16 %v436, %v435
        %v449 = vpack.c.b16 %v438, %v437
        %v450 = vpack.c.b16 %v440, %v439
        %v451 = vpack.c.b16 %v442, %v441
        %v452 = vpack.c.b16 %v444, %v443
        %461 = vmatpush.bf16.msra.mxu0 %v452
        %462 = vmatpush.bf16.msra.mxu0 %v451
        %463 = vmatpush.bf16.msra.mxu0 %v450
        %464 = vmatpush.bf16.msra.mxu0 %v449
        %465 = vmatpush.bf16.msra.mxu0 %v448
        %466 = vmatpush.bf16.msra.mxu0 %v447
        %467 = vmatpush.bf16.msra.mxu0 %v446
        %468 = vmatpush.bf16.msra.mxu0 %v445
        %469 = vmatmul.bf16.gmra.mxu0 %v318
        %v470 = vpop.f32.mrf.mxu0
        %v471 = vadd.f32 %v402, %v470
        %v472 = vpop.f32.mrf.mxu0
        %v473 = vadd.f32 %v404, %v472
        %474 = vmatmul.bf16.gmra.mxu0 %v319
        %v475 = vpop.f32.mrf.mxu0
        %v476 = vadd.f32 %v407, %v475
        %v477 = vpop.f32.mrf.mxu0
        %v478 = vadd.f32 %v409, %v477
        %479 = vdwg.mxu0
        %v480 = vld [vmem:[%s255] sm:$0xe]
        %s481 = scalar_lea.vmem [#allocation2], 128
        %v482 = vld [vmem:[%s481] sm:$0xf]
        %v483 = vld [vmem:[%s481 + $0x4] sm:$0xf]
        %v484 = vld [vmem:[%s481 + $0x8] sm:$0xf]
        %v485 = vld [vmem:[%s481 + $0xc] sm:$0xf]
        %v486 = vld [vmem:[%s481 + $0x10] sm:$0xf]
        %v487 = vld [vmem:[%s481 + $0x14] sm:$0xf]
        %v488 = vld [vmem:[%s481 + $0x18] sm:$0xf]
        %v489 = vld [vmem:[%s481 + $0x1c] sm:$0xf]
        %v490 = vld [vmem:[%s481 + $0x20] sm:$0xf]
        %v491 = vld [vmem:[%s481 + $0x24] sm:$0xf]
        %v492 = vld [vmem:[%s481 + $0x28] sm:$0xf]
        %v493 = vld [vmem:[%s481 + $0x2c] sm:$0xf]
        %v494 = vld [vmem:[%s481 + $0x30] sm:$0xf]
        %v495 = vld [vmem:[%s481 + $0x34] sm:$0xf]
        %v496 = vld [vmem:[%s481 + $0x38] sm:$0xf]
        %v497 = vld [vmem:[%s481 + $0x3c] sm:$0xf]
        %v499 = vunpack.c.l.b16 %v480
        %v500 = vpack.c.b16 %v314, %v499
        %vm501 = vcmask 1046528
        %v502 = vrot.slane %v500, 1
        %v503 = vrot.slane %v319, 1
        %v504 = vsel %vm501, %v502, %v503
        %v505 = vrot.slane %v320, 1
        %v506 = vsel %vm501, %v503, %v505
        %v525 = vunpack.c.l.b16 %v482
        %v526 = vunpack.c.l.b16 %v483
        %v527 = vunpack.c.l.b16 %v484
        %v528 = vunpack.c.l.b16 %v485
        %v529 = vunpack.c.l.b16 %v486
        %v530 = vunpack.c.l.b16 %v487
        %v531 = vunpack.c.l.b16 %v488
        %v532 = vunpack.c.l.b16 %v489
        %v533 = vunpack.c.l.b16 %v490
        %v534 = vunpack.c.l.b16 %v491
        %v535 = vunpack.c.l.b16 %v492
        %v536 = vunpack.c.l.b16 %v493
        %v537 = vunpack.c.l.b16 %v494
        %v538 = vunpack.c.l.b16 %v495
        %v539 = vunpack.c.l.b16 %v496
        %v540 = vunpack.c.l.b16 %v497
        %v541 = vpack.c.b16 %v526, %v525
        %v542 = vpack.c.b16 %v528, %v527
        %v543 = vpack.c.b16 %v530, %v529
        %v544 = vpack.c.b16 %v532, %v531
        %v545 = vpack.c.b16 %v534, %v533
        %v546 = vpack.c.b16 %v536, %v535
        %v547 = vpack.c.b16 %v538, %v537
        %v548 = vpack.c.b16 %v540, %v539
        %557 = vmatpush.bf16.msra.mxu0 %v548
        %558 = vmatpush.bf16.msra.mxu0 %v547
        %559 = vmatpush.bf16.msra.mxu0 %v546
        %560 = vmatpush.bf16.msra.mxu0 %v545
        %561 = vmatpush.bf16.msra.mxu0 %v544
        %562 = vmatpush.bf16.msra.mxu0 %v543
        %563 = vmatpush.bf16.msra.mxu0 %v542
        %564 = vmatpush.bf16.msra.mxu0 %v541
        %565 = vmatmul.bf16.gmra.mxu0 %v504
        %v566 = vpop.f32.mrf.mxu0
        %v567 = vadd.f32 0.0, %v566
        %v568 = vpop.f32.mrf.mxu0
        %v569 = vadd.f32 0.0, %v568
        %570 = vmatmul.bf16.gmra.mxu0 %v506
        %v571 = vpop.f32.mrf.mxu0
        %v572 = vadd.f32 0.0, %v571
        %v573 = vpop.f32.mrf.mxu0
        %v574 = vadd.f32 0.0, %v573
        %575 = vdwg.mxu0
        %v576 = vadd.f32 %v471, %v567
        %v577 = vadd.f32 %v473, %v569
        %v578 = vadd.f32 %v476, %v572
        %v579 = vadd.f32 %v478, %v574
        %v580 = vld [vmem:[%s255 + $0x10] sm:$0x3]
        %s581 = scalar_lea.vmem [#allocation2], 192
        %v582 = vld [vmem:[%s581] sm:$0xf]
        %v583 = vld [vmem:[%s581 + $0x4] sm:$0xf]
        %v584 = vld [vmem:[%s581 + $0x8] sm:$0xf]
        %v585 = vld [vmem:[%s581 + $0xc] sm:$0xf]
        %v586 = vld [vmem:[%s581 + $0x10] sm:$0xf]
        %v587 = vld [vmem:[%s581 + $0x14] sm:$0xf]
        %v588 = vld [vmem:[%s581 + $0x18] sm:$0xf]
        %v589 = vld [vmem:[%s581 + $0x1c] sm:$0xf]
        %v590 = vld [vmem:[%s581 + $0x20] sm:$0xf]
        %v591 = vld [vmem:[%s581 + $0x24] sm:$0xf]
        %v592 = vld [vmem:[%s581 + $0x28] sm:$0xf]
        %v593 = vld [vmem:[%s581 + $0x2c] sm:$0xf]
        %v594 = vld [vmem:[%s581 + $0x30] sm:$0xf]
        %v595 = vld [vmem:[%s581 + $0x34] sm:$0xf]
        %v596 = vld [vmem:[%s581 + $0x38] sm:$0xf]
        %v597 = vld [vmem:[%s581 + $0x3c] sm:$0xf]
        %v599 = vunpack.c.l.b16 %v580
        %v600 = vpack.c.b16 %v599, %v599
        %vm601 = vsmask.f32 6400
        %v603 = vshrl.u32 %v500, 16
        %v605 = vrot.slane %v603, 1
        %v606 = vshll.u32 %v500, 16
        %v608 = vrot.slane %v606, 2
        %v609 = vor.u32 %v605, %v608
        %v610 = vrot.slane %v334, 1
        %v611 = vrot.slane %v330, 2
        %v612 = vor.u32 %v610, %v611
        %v613 = vsel %vm601, %v609, %v612
        %v615 = vshrl.u32 %v600, 16
        %v617 = vrot.slane %v615, 1
        %v618 = vshll.u32 %v600, 16
        %v620 = vrot.slane %v618, 2
        %v621 = vor.u32 %v617, %v620
        %v622 = vsel %vm601, %v612, %v621
        %v641 = vunpack.c.l.b16 %v582
        %v642 = vunpack.c.l.b16 %v583
        %v643 = vunpack.c.l.b16 %v584
        %v644 = vunpack.c.l.b16 %v585
        %v645 = vunpack.c.l.b16 %v586
        %v646 = vunpack.c.l.b16 %v587
        %v647 = vunpack.c.l.b16 %v588
        %v648 = vunpack.c.l.b16 %v589
        %v649 = vunpack.c.l.b16 %v590
        %v650 = vunpack.c.l.b16 %v591
        %v651 = vunpack.c.l.b16 %v592
        %v652 = vunpack.c.l.b16 %v593
        %v653 = vunpack.c.l.b16 %v594
        %v654 = vunpack.c.l.b16 %v595
        %v655 = vunpack.c.l.b16 %v596
        %v656 = vunpack.c.l.b16 %v597
        %v657 = vpack.c.b16 %v642, %v641
        %v658 = vpack.c.b16 %v644, %v643
        %v659 = vpack.c.b16 %v646, %v645
        %v660 = vpack.c.b16 %v648, %v647
        %v661 = vpack.c.b16 %v650, %v649
        %v662 = vpack.c.b16 %v652, %v651
        %v663 = vpack.c.b16 %v654, %v653
        %v664 = vpack.c.b16 %v656, %v655
        %673 = vmatpush.bf16.msra.mxu0 %v664
        %674 = vmatpush.bf16.msra.mxu0 %v663
        %675 = vmatpush.bf16.msra.mxu0 %v662
        %676 = vmatpush.bf16.msra.mxu0 %v661
        %677 = vmatpush.bf16.msra.mxu0 %v660
        %678 = vmatpush.bf16.msra.mxu0 %v659
        %679 = vmatpush.bf16.msra.mxu0 %v658
        %680 = vmatpush.bf16.msra.mxu0 %v657
        %681 = vmatmul.bf16.gmra.mxu0 %v613
        %v682 = vpop.f32.mrf.mxu0
        %v683 = vadd.f32 0.0, %v682
        %v684 = vpop.f32.mrf.mxu0
        %v685 = vadd.f32 0.0, %v684
        %686 = vmatmul.bf16.gmra.mxu0 %v622
        %v687 = vpop.f32.mrf.mxu0
        %v688 = vadd.f32 0.0, %v687
        %v689 = vpop.f32.mrf.mxu0
        %v690 = vadd.f32 0.0, %v689
        %691 = vdwg.mxu0
        %v692 = vadd.f32 %v576, %v683
        %v693 = vadd.f32 %v577, %v685
        %v694 = vadd.f32 %v578, %v688
        %v695 = vadd.f32 %v579, %v690
        %v696 = vld [vmem:[%s255] sm:$0xc]
        %s697 = scalar_lea.vmem [#allocation2], 256
        %v698 = vld [vmem:[%s697] sm:$0xf]
        %v699 = vld [vmem:[%s697 + $0x4] sm:$0xf]
        %v700 = vld [vmem:[%s697 + $0x8] sm:$0xf]
        %v701 = vld [vmem:[%s697 + $0xc] sm:$0xf]
        %v702 = vld [vmem:[%s697 + $0x10] sm:$0xf]
        %v703 = vld [vmem:[%s697 + $0x14] sm:$0xf]
        %v704 = vld [vmem:[%s697 + $0x18] sm:$0xf]
        %v705 = vld [vmem:[%s697 + $0x1c] sm:$0xf]
        %v706 = vld [vmem:[%s697 + $0x20] sm:$0xf]
        %v707 = vld [vmem:[%s697 + $0x24] sm:$0xf]
        %v708 = vld [vmem:[%s697 + $0x28] sm:$0xf]
        %v709 = vld [vmem:[%s697 + $0x2c] sm:$0xf]
        %v710 = vld [vmem:[%s697 + $0x30] sm:$0xf]
        %v711 = vld [vmem:[%s697 + $0x34] sm:$0xf]
        %v712 = vld [vmem:[%s697 + $0x38] sm:$0xf]
        %v713 = vld [vmem:[%s697 + $0x3c] sm:$0xf]
        %v715 = vunpack.c.l.b16 %v696
        %v716 = vpack.c.b16 %v314, %v715
        %vm717 = vcmask 1045504
        %v718 = vrot.slane %v716, 2
        %v719 = vrot.slane %v319, 2
        %v720 = vsel %vm717, %v718, %v719
        %v721 = vrot.slane %v600, 2
        %v722 = vsel %vm717, %v719, %v721
        %v741 = vunpack.c.l.b16 %v698
        %v742 = vunpack.c.l.b16 %v699
        %v743 = vunpack.c.l.b16 %v700
        %v744 = vunpack.c.l.b16 %v701
        %v745 = vunpack.c.l.b16 %v702
        %v746 = vunpack.c.l.b16 %v703
        %v747 = vunpack.c.l.b16 %v704
        %v748 = vunpack.c.l.b16 %v705
        %v749 = vunpack.c.l.b16 %v706
        %v750 = vunpack.c.l.b16 %v707
        %v751 = vunpack.c.l.b16 %v708
        %v752 = vunpack.c.l.b16 %v709
        %v753 = vunpack.c.l.b16 %v710
        %v754 = vunpack.c.l.b16 %v711
        %v755 = vunpack.c.l.b16 %v712
        %v756 = vunpack.c.l.b16 %v713
        %v757 = vpack.c.b16 %v742, %v741
        %v758 = vpack.c.b16 %v744, %v743
        %v759 = vpack.c.b16 %v746, %v745
        %v760 = vpack.c.b16 %v748, %v747
        %v761 = vpack.c.b16 %v750, %v749
        %v762 = vpack.c.b16 %v752, %v751
        %v763 = vpack.c.b16 %v754, %v753
        %v764 = vpack.c.b16 %v756, %v755
        %773 = vmatpush.bf16.msra.mxu0 %v764
        %774 = vmatpush.bf16.msra.mxu0 %v763
        %775 = vmatpush.bf16.msra.mxu0 %v762
        %776 = vmatpush.bf16.msra.mxu0 %v761
        %777 = vmatpush.bf16.msra.mxu0 %v760
        %778 = vmatpush.bf16.msra.mxu0 %v759
        %779 = vmatpush.bf16.msra.mxu0 %v758
        %780 = vmatpush.bf16.msra.mxu0 %v757
        %781 = vmatmul.bf16.gmra.mxu0 %v720
        %v782 = vpop.f32.mrf.mxu0
        %v783 = vadd.f32 0.0, %v782
        %v784 = vpop.f32.mrf.mxu0
        %v785 = vadd.f32 0.0, %v784
        %786 = vmatmul.bf16.gmra.mxu0 %v722
        %v787 = vpop.f32.mrf.mxu0
        %v788 = vadd.f32 0.0, %v787
        %v789 = vpop.f32.mrf.mxu0
        %v790 = vadd.f32 0.0, %v789
        %791 = vdwg.mxu0
        %v792 = vadd.f32 %v692, %v783
        %v793 = vadd.f32 %v693, %v785
        %v794 = vadd.f32 %v694, %v788
        %v795 = vadd.f32 %v695, %v790
        %v796 = vld [vmem:[%s255 + $0x10] sm:$0x7]
        %s797 = scalar_lea.vmem [#allocation2], 320
        %v798 = vld [vmem:[%s797] sm:$0xf]
        %v799 = vld [vmem:[%s797 + $0x4] sm:$0xf]
        %v800 = vld [vmem:[%s797 + $0x8] sm:$0xf]
        %v801 = vld [vmem:[%s797 + $0xc] sm:$0xf]
        %v802 = vld [vmem:[%s797 + $0x10] sm:$0xf]
        %v803 = vld [vmem:[%s797 + $0x14] sm:$0xf]
        %v804 = vld [vmem:[%s797 + $0x18] sm:$0xf]
        %v805 = vld [vmem:[%s797 + $0x1c] sm:$0xf]
        %v806 = vld [vmem:[%s797 + $0x20] sm:$0xf]
        %v807 = vld [vmem:[%s797 + $0x24] sm:$0xf]
        %v808 = vld [vmem:[%s797 + $0x28] sm:$0xf]
        %v809 = vld [vmem:[%s797 + $0x2c] sm:$0xf]
        %v810 = vld [vmem:[%s797 + $0x30] sm:$0xf]
        %v811 = vld [vmem:[%s797 + $0x34] sm:$0xf]
        %v812 = vld [vmem:[%s797 + $0x38] sm:$0xf]
        %v813 = vld [vmem:[%s797 + $0x3c] sm:$0xf]
        %v815 = vunpack.c.l.b16 %v796
        %v816 = vpack.c.b16 %v815, %v815
        %vm817 = vsmask.f32 5376
        %v819 = vshrl.u32 %v716, 16
        %v821 = vrot.slane %v819, 2
        %v822 = vshll.u32 %v716, 16
        %v824 = vrot.slane %v822, 3
        %v825 = vor.u32 %v821, %v824
        %v826 = vrot.slane %v334, 2
        %v827 = vrot.slane %v330, 3
        %v828 = vor.u32 %v826, %v827
        %v829 = vsel %vm817, %v825, %v828
        %v831 = vshrl.u32 %v816, 16
        %v833 = vrot.slane %v831, 2
        %v834 = vshll.u32 %v816, 16
        %v836 = vrot.slane %v834, 3
        %v837 = vor.u32 %v833, %v836
        %v838 = vsel %vm817, %v828, %v837
        %v857 = vunpack.c.l.b16 %v798
        %v858 = vunpack.c.l.b16 %v799
        %v859 = vunpack.c.l.b16 %v800
        %v860 = vunpack.c.l.b16 %v801
        %v861 = vunpack.c.l.b16 %v802
        %v862 = vunpack.c.l.b16 %v803
        %v863 = vunpack.c.l.b16 %v804
        %v864 = vunpack.c.l.b16 %v805
        %v865 = vunpack.c.l.b16 %v806
        %v866 = vunpack.c.l.b16 %v807
        %v867 = vunpack.c.l.b16 %v808
        %v868 = vunpack.c.l.b16 %v809
        %v869 = vunpack.c.l.b16 %v810
        %v870 = vunpack.c.l.b16 %v811
        %v871 = vunpack.c.l.b16 %v812
        %v872 = vunpack.c.l.b16 %v813
        %v873 = vpack.c.b16 %v858, %v857
        %v874 = vpack.c.b16 %v860, %v859
        %v875 = vpack.c.b16 %v862, %v861
        %v876 = vpack.c.b16 %v864, %v863
        %v877 = vpack.c.b16 %v866, %v865
        %v878 = vpack.c.b16 %v868, %v867
        %v879 = vpack.c.b16 %v870, %v869
        %v880 = vpack.c.b16 %v872, %v871
        %889 = vmatpush.bf16.msra.mxu0 %v880
        %890 = vmatpush.bf16.msra.mxu0 %v879
        %891 = vmatpush.bf16.msra.mxu0 %v878
        %892 = vmatpush.bf16.msra.mxu0 %v877
        %893 = vmatpush.bf16.msra.mxu0 %v876
        %894 = vmatpush.bf16.msra.mxu0 %v875
        %895 = vmatpush.bf16.msra.mxu0 %v874
        %896 = vmatpush.bf16.msra.mxu0 %v873
        %897 = vmatmul.bf16.gmra.mxu0 %v829
        %v898 = vpop.f32.mrf.mxu0
        %v899 = vadd.f32 0.0, %v898
        %v900 = vpop.f32.mrf.mxu0
        %v901 = vadd.f32 0.0, %v900
        %902 = vmatmul.bf16.gmra.mxu0 %v838
        %v903 = vpop.f32.mrf.mxu0
        %v904 = vadd.f32 0.0, %v903
        %v905 = vpop.f32.mrf.mxu0
        %v906 = vadd.f32 0.0, %v905
        %907 = vdwg.mxu0
        %v908 = vadd.f32 %v792, %v899
        %v909 = vadd.f32 %v793, %v901
        %v910 = vadd.f32 %v794, %v904
        %v911 = vadd.f32 %v795, %v906
        %v912 = vld [vmem:[%s255] sm:$0x8]
        %s913 = scalar_lea.vmem [#allocation2], 384
        %v914 = vld [vmem:[%s913] sm:$0xf]
        %v915 = vld [vmem:[%s913 + $0x4] sm:$0xf]
        %v916 = vld [vmem:[%s913 + $0x8] sm:$0xf]
        %v917 = vld [vmem:[%s913 + $0xc] sm:$0xf]
        %v918 = vld [vmem:[%s913 + $0x10] sm:$0xf]
        %v919 = vld [vmem:[%s913 + $0x14] sm:$0xf]
        %v920 = vld [vmem:[%s913 + $0x18] sm:$0xf]
        %v921 = vld [vmem:[%s913 + $0x1c] sm:$0xf]
        %v922 = vld [vmem:[%s913 + $0x20] sm:$0xf]
        %v923 = vld [vmem:[%s913 + $0x24] sm:$0xf]
        %v924 = vld [vmem:[%s913 + $0x28] sm:$0xf]
        %v925 = vld [vmem:[%s913 + $0x2c] sm:$0xf]
        %v926 = vld [vmem:[%s913 + $0x30] sm:$0xf]
        %v927 = vld [vmem:[%s913 + $0x34] sm:$0xf]
        %v928 = vld [vmem:[%s913 + $0x38] sm:$0xf]
        %v929 = vld [vmem:[%s913 + $0x3c] sm:$0xf]
        %v931 = vunpack.c.l.b16 %v912
        %v932 = vpack.c.b16 %v314, %v931
        %vm933 = vcmask 1044480
        %v934 = vrot.slane %v932, 3
        %v935 = vrot.slane %v319, 3
        %v936 = vsel %vm933, %v934, %v935
        %v937 = vrot.slane %v816, 3
        %v938 = vsel %vm933, %v935, %v937
        %v957 = vunpack.c.l.b16 %v914
        %v958 = vunpack.c.l.b16 %v915
        %v959 = vunpack.c.l.b16 %v916
        %v960 = vunpack.c.l.b16 %v917
        %v961 = vunpack.c.l.b16 %v918
        %v962 = vunpack.c.l.b16 %v919
        %v963 = vunpack.c.l.b16 %v920
        %v964 = vunpack.c.l.b16 %v921
        %v965 = vunpack.c.l.b16 %v922
        %v966 = vunpack.c.l.b16 %v923
        %v967 = vunpack.c.l.b16 %v924
        %v968 = vunpack.c.l.b16 %v925
        %v969 = vunpack.c.l.b16 %v926
        %v970 = vunpack.c.l.b16 %v927
        %v971 = vunpack.c.l.b16 %v928
        %v972 = vunpack.c.l.b16 %v929
        %v973 = vpack.c.b16 %v958, %v957
        %v974 = vpack.c.b16 %v960, %v959
        %v975 = vpack.c.b16 %v962, %v961
        %v976 = vpack.c.b16 %v964, %v963
        %v977 = vpack.c.b16 %v966, %v965
        %v978 = vpack.c.b16 %v968, %v967
        %v979 = vpack.c.b16 %v970, %v969
        %v980 = vpack.c.b16 %v972, %v971
        %989 = vmatpush.bf16.msra.mxu0 %v980
        %990 = vmatpush.bf16.msra.mxu0 %v979
        %991 = vmatpush.bf16.msra.mxu0 %v978
        %992 = vmatpush.bf16.msra.mxu0 %v977
        %993 = vmatpush.bf16.msra.mxu0 %v976
        %994 = vmatpush.bf16.msra.mxu0 %v975
        %995 = vmatpush.bf16.msra.mxu0 %v974
        %996 = vmatpush.bf16.msra.mxu0 %v973
        %997 = vmatmul.bf16.gmra.mxu0 %v936
        %v998 = vpop.f32.mrf.mxu0
        %v999 = vadd.f32 0.0, %v998
        %v1000 = vpop.f32.mrf.mxu0
        %v1001 = vadd.f32 0.0, %v1000
        %1002 = vmatmul.bf16.gmra.mxu0 %v938
        %v1003 = vpop.f32.mrf.mxu0
        %v1004 = vadd.f32 0.0, %v1003
        %v1005 = vpop.f32.mrf.mxu0
        %v1006 = vadd.f32 0.0, %v1005
        %1007 = vdwg.mxu0
        %v1008 = vadd.f32 %v908, %v999
        %v1009 = vadd.f32 %v909, %v1001
        %v1010 = vadd.f32 %v910, %v1004
        %v1011 = vadd.f32 %v911, %v1006
        %v1012 = vld [vmem:[%s255 + $0x10] sm:$0xf]
        %s1013 = scalar_lea.vmem [#allocation2], 448
        %v1014 = vld [vmem:[%s1013] sm:$0xf]
        %v1015 = vld [vmem:[%s1013 + $0x4] sm:$0xf]
        %v1016 = vld [vmem:[%s1013 + $0x8] sm:$0xf]
        %v1017 = vld [vmem:[%s1013 + $0xc] sm:$0xf]
        %v1018 = vld [vmem:[%s1013 + $0x10] sm:$0xf]
        %v1019 = vld [vmem:[%s1013 + $0x14] sm:$0xf]
        %v1020 = vld [vmem:[%s1013 + $0x18] sm:$0xf]
        %v1021 = vld [vmem:[%s1013 + $0x1c] sm:$0xf]
        %v1022 = vld [vmem:[%s1013 + $0x20] sm:$0xf]
        %v1023 = vld [vmem:[%s1013 + $0x24] sm:$0xf]
        %v1024 = vld [vmem:[%s1013 + $0x28] sm:$0xf]
        %v1025 = vld [vmem:[%s1013 + $0x2c] sm:$0xf]
        %v1026 = vld [vmem:[%s1013 + $0x30] sm:$0xf]
        %v1027 = vld [vmem:[%s1013 + $0x34] sm:$0xf]
        %v1028 = vld [vmem:[%s1013 + $0x38] sm:$0xf]
        %v1029 = vld [vmem:[%s1013 + $0x3c] sm:$0xf]
        %v1031 = vunpack.c.l.b16 %v1012
        %v1032 = vpack.c.b16 %v1031, %v1031
        %vm1033 = vsmask.f32 4352
        %v1035 = vshrl.u32 %v932, 16
        %v1037 = vrot.slane %v1035, 3
        %v1038 = vshll.u32 %v932, 16
        %v1040 = vrot.slane %v1038, 4
        %v1041 = vor.u32 %v1037, %v1040
        %v1042 = vrot.slane %v334, 3
        %v1043 = vrot.slane %v330, 4
        %v1044 = vor.u32 %v1042, %v1043
        %v1045 = vsel %vm1033, %v1041, %v1044
        %v1047 = vshrl.u32 %v1032, 16
        %v1049 = vrot.slane %v1047, 3
        %v1050 = vshll.u32 %v1032, 16
        %v1052 = vrot.slane %v1050, 4
        %v1053 = vor.u32 %v1049, %v1052
        %v1054 = vsel %vm1033, %v1044, %v1053
        %v1073 = vunpack.c.l.b16 %v1014
        %v1074 = vunpack.c.l.b16 %v1015
        %v1075 = vunpack.c.l.b16 %v1016
        %v1076 = vunpack.c.l.b16 %v1017
        %v1077 = vunpack.c.l.b16 %v1018
        %v1078 = vunpack.c.l.b16 %v1019
        %v1079 = vunpack.c.l.b16 %v1020
        %v1080 = vunpack.c.l.b16 %v1021
        %v1081 = vunpack.c.l.b16 %v1022
        %v1082 = vunpack.c.l.b16 %v1023
        %v1083 = vunpack.c.l.b16 %v1024
        %v1084 = vunpack.c.l.b16 %v1025
        %v1085 = vunpack.c.l.b16 %v1026
        %v1086 = vunpack.c.l.b16 %v1027
        %v1087 = vunpack.c.l.b16 %v1028
        %v1088 = vunpack.c.l.b16 %v1029
        %v1089 = vpack.c.b16 %v1074, %v1073
        %v1090 = vpack.c.b16 %v1076, %v1075
        %v1091 = vpack.c.b16 %v1078, %v1077
        %v1092 = vpack.c.b16 %v1080, %v1079
        %v1093 = vpack.c.b16 %v1082, %v1081
        %v1094 = vpack.c.b16 %v1084, %v1083
        %v1095 = vpack.c.b16 %v1086, %v1085
        %v1096 = vpack.c.b16 %v1088, %v1087
        %1105 = vmatpush.bf16.msra.mxu0 %v1096
        %1106 = vmatpush.bf16.msra.mxu0 %v1095
        %1107 = vmatpush.bf16.msra.mxu0 %v1094
        %1108 = vmatpush.bf16.msra.mxu0 %v1093
        %1109 = vmatpush.bf16.msra.mxu0 %v1092
        %1110 = vmatpush.bf16.msra.mxu0 %v1091
        %1111 = vmatpush.bf16.msra.mxu0 %v1090
        %1112 = vmatpush.bf16.msra.mxu0 %v1089
        %1113 = vmatmul.bf16.gmra.mxu0 %v1045
        %v1114 = vpop.f32.mrf.mxu0
        %v1115 = vadd.f32 0.0, %v1114
        %v1116 = vpop.f32.mrf.mxu0
        %v1117 = vadd.f32 0.0, %v1116
        %1118 = vmatmul.bf16.gmra.mxu0 %v1054
        %v1119 = vpop.f32.mrf.mxu0
        %v1120 = vadd.f32 0.0, %v1119
        %v1121 = vpop.f32.mrf.mxu0
        %v1122 = vadd.f32 0.0, %v1121
        %1123 = vdwg.mxu0
        %v1124 = vadd.f32 %v1008, %v1115
        %v1125 = vadd.f32 %v1009, %v1117
        %v1126 = vadd.f32 %v1010, %v1120
        %v1127 = vadd.f32 %v1011, %v1122
        %s1128 = scalar_lea.vmem [#allocation2], 512
        %v1129 = vld [vmem:[%s1128] sm:$0xf]
        %v1130 = vld [vmem:[%s1128 + $0x4] sm:$0xf]
        %v1131 = vld [vmem:[%s1128 + $0x8] sm:$0xf]
        %v1132 = vld [vmem:[%s1128 + $0xc] sm:$0xf]
        %v1133 = vld [vmem:[%s1128 + $0x10] sm:$0xf]
        %v1134 = vld [vmem:[%s1128 + $0x14] sm:$0xf]
        %v1135 = vld [vmem:[%s1128 + $0x18] sm:$0xf]
        %v1136 = vld [vmem:[%s1128 + $0x1c] sm:$0xf]
        %v1137 = vld [vmem:[%s1128 + $0x20] sm:$0xf]
        %v1138 = vld [vmem:[%s1128 + $0x24] sm:$0xf]
        %v1139 = vld [vmem:[%s1128 + $0x28] sm:$0xf]
        %v1140 = vld [vmem:[%s1128 + $0x2c] sm:$0xf]
        %v1141 = vld [vmem:[%s1128 + $0x30] sm:$0xf]
        %v1142 = vld [vmem:[%s1128 + $0x34] sm:$0xf]
        %v1143 = vld [vmem:[%s1128 + $0x38] sm:$0xf]
        %v1144 = vld [vmem:[%s1128 + $0x3c] sm:$0xf]
        %v1145 = vpack.c.b16 %v315, %v314
        %v1146 = vpack.c.b16 %v1031, %v316
        %v1165 = vunpack.c.l.b16 %v1129
        %v1166 = vunpack.c.l.b16 %v1130
        %v1167 = vunpack.c.l.b16 %v1131
        %v1168 = vunpack.c.l.b16 %v1132
        %v1169 = vunpack.c.l.b16 %v1133
        %v1170 = vunpack.c.l.b16 %v1134
        %v1171 = vunpack.c.l.b16 %v1135
        %v1172 = vunpack.c.l.b16 %v1136
        %v1173 = vunpack.c.l.b16 %v1137
        %v1174 = vunpack.c.l.b16 %v1138
        %v1175 = vunpack.c.l.b16 %v1139
        %v1176 = vunpack.c.l.b16 %v1140
        %v1177 = vunpack.c.l.b16 %v1141
        %v1178 = vunpack.c.l.b16 %v1142
        %v1179 = vunpack.c.l.b16 %v1143
        %v1180 = vunpack.c.l.b16 %v1144
        %v1181 = vpack.c.b16 %v1166, %v1165
        %v1182 = vpack.c.b16 %v1168, %v1167
        %v1183 = vpack.c.b16 %v1170, %v1169
        %v1184 = vpack.c.b16 %v1172, %v1171
        %v1185 = vpack.c.b16 %v1174, %v1173
        %v1186 = vpack.c.b16 %v1176, %v1175
        %v1187 = vpack.c.b16 %v1178, %v1177
        %v1188 = vpack.c.b16 %v1180, %v1179
        %1197 = vmatpush.bf16.msra.mxu0 %v1188
        %1198 = vmatpush.bf16.msra.mxu0 %v1187
        %1199 = vmatpush.bf16.msra.mxu0 %v1186
        %1200 = vmatpush.bf16.msra.mxu0 %v1185
        %1201 = vmatpush.bf16.msra.mxu0 %v1184
        %1202 = vmatpush.bf16.msra.mxu0 %v1183
        %1203 = vmatpush.bf16.msra.mxu0 %v1182
        %1204 = vmatpush.bf16.msra.mxu0 %v1181
        %1205 = vmatmul.bf16.gmra.mxu0 %v1145
        %v1206 = vpop.f32.mrf.mxu0
        %v1207 = vadd.f32 0.0, %v1206
        %v1208 = vpop.f32.mrf.mxu0
        %v1209 = vadd.f32 0.0, %v1208
        %1210 = vmatmul.bf16.gmra.mxu0 %v1146
        %v1211 = vpop.f32.mrf.mxu0
        %v1212 = vadd.f32 0.0, %v1211
        %v1213 = vpop.f32.mrf.mxu0
        %v1214 = vadd.f32 0.0, %v1213
        %1215 = vdwg.mxu0
        %v1216 = vadd.f32 %v1124, %v1207
        %v1217 = vadd.f32 %v1125, %v1209
        %v1218 = vadd.f32 %v1126, %v1212
        %v1219 = vadd.f32 %v1127, %v1214
        %v1220 = vld [vmem:[%s255 + $0x4] sm:$0xf]
        %v1221 = vld [vmem:[%s255 + $0x8] sm:$0xf]
        %v1222 = vld [vmem:[%s255 + $0xc] sm:$0xf]
        %v1223 = vld [vmem:[%s255 + $0x10] sm:$0xf]
        %v1224 = vld [vmem:[%s255 + $0x14] sm:$0x1]
        %s1225 = scalar_lea.vmem [#allocation2], 576
        %v1226 = vld [vmem:[%s1225] sm:$0xf]
        %v1227 = vld [vmem:[%s1225 + $0x4] sm:$0xf]
        %v1228 = vld [vmem:[%s1225 + $0x8] sm:$0xf]
        %v1229 = vld [vmem:[%s1225 + $0xc] sm:$0xf]
        %v1230 = vld [vmem:[%s1225 + $0x10] sm:$0xf]
        %v1231 = vld [vmem:[%s1225 + $0x14] sm:$0xf]
        %v1232 = vld [vmem:[%s1225 + $0x18] sm:$0xf]
        %v1233 = vld [vmem:[%s1225 + $0x1c] sm:$0xf]
        %v1234 = vld [vmem:[%s1225 + $0x20] sm:$0xf]
        %v1235 = vld [vmem:[%s1225 + $0x24] sm:$0xf]
        %v1236 = vld [vmem:[%s1225 + $0x28] sm:$0xf]
        %v1237 = vld [vmem:[%s1225 + $0x2c] sm:$0xf]
        %v1238 = vld [vmem:[%s1225 + $0x30] sm:$0xf]
        %v1239 = vld [vmem:[%s1225 + $0x34] sm:$0xf]
        %v1240 = vld [vmem:[%s1225 + $0x38] sm:$0xf]
        %v1241 = vld [vmem:[%s1225 + $0x3c] sm:$0xf]
        %v1247 = vunpack.c.l.b16 %v1220
        %v1248 = vunpack.c.l.b16 %v1221
        %v1249 = vunpack.c.l.b16 %v1222
        %v1250 = vunpack.c.l.b16 %v1223
        %v1251 = vunpack.c.l.b16 %v1224
        %v1252 = vpack.c.b16 %v1248, %v1247
        %v1253 = vpack.c.b16 %v1250, %v1249
        %v1254 = vpack.c.b16 %v1251, %v1251
        %v1256 = vshrl.u32 %v1252, 16
        %v1258 = vshll.u32 %v1252, 16
        %v1260 = vrot.slane %v1258, 1
        %v1261 = vor.u32 %v1256, %v1260
        %v1263 = vshll.u32 %v1253, 16
        %v1265 = vrot.slane %v1263, 1
        %v1266 = vsel %vm321, %v1261, %v1265
        %v1267 = vshrl.u32 %v1253, 16
        %v1269 = vor.u32 %v1267, %v1265
        %v1271 = vshll.u32 %v1254, 16
        %v1273 = vrot.slane %v1271, 1
        %v1274 = vsel %vm321, %v1269, %v1273
        %v1293 = vunpack.c.l.b16 %v1226
        %v1294 = vunpack.c.l.b16 %v1227
        %v1295 = vunpack.c.l.b16 %v1228
        %v1296 = vunpack.c.l.b16 %v1229
        %v1297 = vunpack.c.l.b16 %v1230
        %v1298 = vunpack.c.l.b16 %v1231
        %v1299 = vunpack.c.l.b16 %v1232
        %v1300 = vunpack.c.l.b16 %v1233
        %v1301 = vunpack.c.l.b16 %v1234
        %v1302 = vunpack.c.l.b16 %v1235
        %v1303 = vunpack.c.l.b16 %v1236
        %v1304 = vunpack.c.l.b16 %v1237
        %v1305 = vunpack.c.l.b16 %v1238
        %v1306 = vunpack.c.l.b16 %v1239
        %v1307 = vunpack.c.l.b16 %v1240
        %v1308 = vunpack.c.l.b16 %v1241
        %v1309 = vpack.c.b16 %v1294, %v1293
        %v1310 = vpack.c.b16 %v1296, %v1295
        %v1311 = vpack.c.b16 %v1298, %v1297
        %v1312 = vpack.c.b16 %v1300, %v1299
        %v1313 = vpack.c.b16 %v1302, %v1301
        %v1314 = vpack.c.b16 %v1304, %v1303
        %v1315 = vpack.c.b16 %v1306, %v1305
        %v1316 = vpack.c.b16 %v1308, %v1307
        %1325 = vmatpush.bf16.msra.mxu0 %v1316
        %1326 = vmatpush.bf16.msra.mxu0 %v1315
        %1327 = vmatpush.bf16.msra.mxu0 %v1314
        %1328 = vmatpush.bf16.msra.mxu0 %v1313
        %1329 = vmatpush.bf16.msra.mxu0 %v1312
        %1330 = vmatpush.bf16.msra.mxu0 %v1311
        %1331 = vmatpush.bf16.msra.mxu0 %v1310
        %1332 = vmatpush.bf16.msra.mxu0 %v1309
        %1333 = vmatmul.bf16.gmra.mxu0 %v1266
        %v1334 = vpop.f32.mrf.mxu0
        %v1335 = vadd.f32 0.0, %v1334
        %v1336 = vpop.f32.mrf.mxu0
        %v1337 = vadd.f32 0.0, %v1336
        %1338 = vmatmul.bf16.gmra.mxu0 %v1274
        %v1339 = vpop.f32.mrf.mxu0
        %v1340 = vadd.f32 0.0, %v1339
        %v1341 = vpop.f32.mrf.mxu0
        %v1342 = vadd.f32 0.0, %v1341
        %1343 = vdwg.mxu0
        %v1344 = vadd.f32 %v1216, %v1335
        %v1345 = vadd.f32 %v1217, %v1337
        %v1346 = vadd.f32 %v1218, %v1340
        %v1347 = vadd.f32 %v1219, %v1342
        %v1348 = vld [vmem:[%s255 + $0x4] sm:$0xe]
        %s1349 = scalar_lea.vmem [#allocation2], 640
        %v1350 = vld [vmem:[%s1349] sm:$0xf]
        %v1351 = vld [vmem:[%s1349 + $0x4] sm:$0xf]
        %v1352 = vld [vmem:[%s1349 + $0x8] sm:$0xf]
        %v1353 = vld [vmem:[%s1349 + $0xc] sm:$0xf]
        %v1354 = vld [vmem:[%s1349 + $0x10] sm:$0xf]
        %v1355 = vld [vmem:[%s1349 + $0x14] sm:$0xf]
        %v1356 = vld [vmem:[%s1349 + $0x18] sm:$0xf]
        %v1357 = vld [vmem:[%s1349 + $0x1c] sm:$0xf]
        %v1358 = vld [vmem:[%s1349 + $0x20] sm:$0xf]
        %v1359 = vld [vmem:[%s1349 + $0x24] sm:$0xf]
        %v1360 = vld [vmem:[%s1349 + $0x28] sm:$0xf]
        %v1361 = vld [vmem:[%s1349 + $0x2c] sm:$0xf]
        %v1362 = vld [vmem:[%s1349 + $0x30] sm:$0xf]
        %v1363 = vld [vmem:[%s1349 + $0x34] sm:$0xf]
        %v1364 = vld [vmem:[%s1349 + $0x38] sm:$0xf]
        %v1365 = vld [vmem:[%s1349 + $0x3c] sm:$0xf]
        %v1367 = vunpack.c.l.b16 %v1348
        %v1368 = vpack.c.b16 %v1248, %v1367
        %v1369 = vrot.slane %v1368, 1
        %v1370 = vrot.slane %v1253, 1
        %v1371 = vsel %vm501, %v1369, %v1370
        %v1372 = vrot.slane %v1254, 1
        %v1373 = vsel %vm501, %v1370, %v1372
        %v1392 = vunpack.c.l.b16 %v1350
        %v1393 = vunpack.c.l.b16 %v1351
        %v1394 = vunpack.c.l.b16 %v1352
        %v1395 = vunpack.c.l.b16 %v1353
        %v1396 = vunpack.c.l.b16 %v1354
        %v1397 = vunpack.c.l.b16 %v1355
        %v1398 = vunpack.c.l.b16 %v1356
        %v1399 = vunpack.c.l.b16 %v1357
        %v1400 = vunpack.c.l.b16 %v1358
        %v1401 = vunpack.c.l.b16 %v1359
        %v1402 = vunpack.c.l.b16 %v1360
        %v1403 = vunpack.c.l.b16 %v1361
        %v1404 = vunpack.c.l.b16 %v1362
        %v1405 = vunpack.c.l.b16 %v1363
        %v1406 = vunpack.c.l.b16 %v1364
        %v1407 = vunpack.c.l.b16 %v1365
        %v1408 = vpack.c.b16 %v1393, %v1392
        %v1409 = vpack.c.b16 %v1395, %v1394
        %v1410 = vpack.c.b16 %v1397, %v1396
        %v1411 = vpack.c.b16 %v1399, %v1398
        %v1412 = vpack.c.b16 %v1401, %v1400
        %v1413 = vpack.c.b16 %v1403, %v1402
        %v1414 = vpack.c.b16 %v1405, %v1404
        %v1415 = vpack.c.b16 %v1407, %v1406
        %1424 = vmatpush.bf16.msra.mxu0 %v1415
        %1425 = vmatpush.bf16.msra.mxu0 %v1414
        %1426 = vmatpush.bf16.msra.mxu0 %v1413
        %1427 = vmatpush.bf16.msra.mxu0 %v1412
        %1428 = vmatpush.bf16.msra.mxu0 %v1411
        %1429 = vmatpush.bf16.msra.mxu0 %v1410
        %1430 = vmatpush.bf16.msra.mxu0 %v1409
        %1431 = vmatpush.bf16.msra.mxu0 %v1408
        %1432 = vmatmul.bf16.gmra.mxu0 %v1371
        %v1433 = vpop.f32.mrf.mxu0
        %v1434 = vadd.f32 0.0, %v1433
        %v1435 = vpop.f32.mrf.mxu0
        %v1436 = vadd.f32 0.0, %v1435
        %1437 = vmatmul.bf16.gmra.mxu0 %v1373
        %v1438 = vpop.f32.mrf.mxu0
        %v1439 = vadd.f32 0.0, %v1438
        %v1440 = vpop.f32.mrf.mxu0
        %v1441 = vadd.f32 0.0, %v1440
        %1442 = vdwg.mxu0
        %v1443 = vadd.f32 %v1344, %v1434
        %v1444 = vadd.f32 %v1345, %v1436
        %v1445 = vadd.f32 %v1346, %v1439
        %v1446 = vadd.f32 %v1347, %v1441
        %v1447 = vld [vmem:[%s255 + $0x14] sm:$0x3]
        %s1448 = scalar_lea.vmem [#allocation2], 704
        %v1449 = vld [vmem:[%s1448] sm:$0xf]
        %v1450 = vld [vmem:[%s1448 + $0x4] sm:$0xf]
        %v1451 = vld [vmem:[%s1448 + $0x8] sm:$0xf]
        %v1452 = vld [vmem:[%s1448 + $0xc] sm:$0xf]
        %v1453 = vld [vmem:[%s1448 + $0x10] sm:$0xf]
        %v1454 = vld [vmem:[%s1448 + $0x14] sm:$0xf]
        %v1455 = vld [vmem:[%s1448 + $0x18] sm:$0xf]
        %v1456 = vld [vmem:[%s1448 + $0x1c] sm:$0xf]
        %v1457 = vld [vmem:[%s1448 + $0x20] sm:$0xf]
        %v1458 = vld [vmem:[%s1448 + $0x24] sm:$0xf]
        %v1459 = vld [vmem:[%s1448 + $0x28] sm:$0xf]
        %v1460 = vld [vmem:[%s1448 + $0x2c] sm:$0xf]
        %v1461 = vld [vmem:[%s1448 + $0x30] sm:$0xf]
        %v1462 = vld [vmem:[%s1448 + $0x34] sm:$0xf]
        %v1463 = vld [vmem:[%s1448 + $0x38] sm:$0xf]
        %v1464 = vld [vmem:[%s1448 + $0x3c] sm:$0xf]
        %v1466 = vunpack.c.l.b16 %v1447
        %v1467 = vpack.c.b16 %v1466, %v1466
        %v1469 = vshrl.u32 %v1368, 16
        %v1471 = vrot.slane %v1469, 1
        %v1472 = vshll.u32 %v1368, 16
        %v1474 = vrot.slane %v1472, 2
        %v1475 = vor.u32 %v1471, %v1474
        %v1476 = vrot.slane %v1267, 1
        %v1477 = vrot.slane %v1263, 2
        %v1478 = vor.u32 %v1476, %v1477
        %v1479 = vsel %vm601, %v1475, %v1478
        %v1481 = vshrl.u32 %v1467, 16
        %v1483 = vrot.slane %v1481, 1
        %v1484 = vshll.u32 %v1467, 16
        %v1486 = vrot.slane %v1484, 2
        %v1487 = vor.u32 %v1483, %v1486
        %v1488 = vsel %vm601, %v1478, %v1487
        %v1507 = vunpack.c.l.b16 %v1449
        %v1508 = vunpack.c.l.b16 %v1450
        %v1509 = vunpack.c.l.b16 %v1451
        %v1510 = vunpack.c.l.b16 %v1452
        %v1511 = vunpack.c.l.b16 %v1453
        %v1512 = vunpack.c.l.b16 %v1454
        %v1513 = vunpack.c.l.b16 %v1455
        %v1514 = vunpack.c.l.b16 %v1456
        %v1515 = vunpack.c.l.b16 %v1457
        %v1516 = vunpack.c.l.b16 %v1458
        %v1517 = vunpack.c.l.b16 %v1459
        %v1518 = vunpack.c.l.b16 %v1460
        %v1519 = vunpack.c.l.b16 %v1461
        %v1520 = vunpack.c.l.b16 %v1462
        %v1521 = vunpack.c.l.b16 %v1463
        %v1522 = vunpack.c.l.b16 %v1464
        %v1523 = vpack.c.b16 %v1508, %v1507
        %v1524 = vpack.c.b16 %v1510, %v1509
        %v1525 = vpack.c.b16 %v1512, %v1511
        %v1526 = vpack.c.b16 %v1514, %v1513
        %v1527 = vpack.c.b16 %v1516, %v1515
        %v1528 = vpack.c.b16 %v1518, %v1517
        %v1529 = vpack.c.b16 %v1520, %v1519
        %v1530 = vpack.c.b16 %v1522, %v1521
        %1539 = vmatpush.bf16.msra.mxu0 %v1530
        %1540 = vmatpush.bf16.msra.mxu0 %v1529
        %1541 = vmatpush.bf16.msra.mxu0 %v1528
        %1542 = vmatpush.bf16.msra.mxu0 %v1527
        %1543 = vmatpush.bf16.msra.mxu0 %v1526
        %1544 = vmatpush.bf16.msra.mxu0 %v1525
        %1545 = vmatpush.bf16.msra.mxu0 %v1524
        %1546 = vmatpush.bf16.msra.mxu0 %v1523
        %1547 = vmatmul.bf16.gmra.mxu0 %v1479
        %v1548 = vpop.f32.mrf.mxu0
        %v1549 = vadd.f32 0.0, %v1548
        %v1550 = vpop.f32.mrf.mxu0
        %v1551 = vadd.f32 0.0, %v1550
        %1552 = vmatmul.bf16.gmra.mxu0 %v1488
        %v1553 = vpop.f32.mrf.mxu0
        %v1554 = vadd.f32 0.0, %v1553
        %v1555 = vpop.f32.mrf.mxu0
        %v1556 = vadd.f32 0.0, %v1555
        %1557 = vdwg.mxu0
        %v1558 = vadd.f32 %v1443, %v1549
        %v1559 = vadd.f32 %v1444, %v1551
        %v1560 = vadd.f32 %v1445, %v1554
        %v1561 = vadd.f32 %v1446, %v1556
        %v1562 = vld [vmem:[%s255 + $0x4] sm:$0xc]
        %s1563 = scalar_lea.vmem [#allocation2], 768
        %v1564 = vld [vmem:[%s1563] sm:$0xf]
        %v1565 = vld [vmem:[%s1563 + $0x4] sm:$0xf]
        %v1566 = vld [vmem:[%s1563 + $0x8] sm:$0xf]
        %v1567 = vld [vmem:[%s1563 + $0xc] sm:$0xf]
        %v1568 = vld [vmem:[%s1563 + $0x10] sm:$0xf]
        %v1569 = vld [vmem:[%s1563 + $0x14] sm:$0xf]
        %v1570 = vld [vmem:[%s1563 + $0x18] sm:$0xf]
        %v1571 = vld [vmem:[%s1563 + $0x1c] sm:$0xf]
        %v1572 = vld [vmem:[%s1563 + $0x20] sm:$0xf]
        %v1573 = vld [vmem:[%s1563 + $0x24] sm:$0xf]
        %v1574 = vld [vmem:[%s1563 + $0x28] sm:$0xf]
        %v1575 = vld [vmem:[%s1563 + $0x2c] sm:$0xf]
        %v1576 = vld [vmem:[%s1563 + $0x30] sm:$0xf]
        %v1577 = vld [vmem:[%s1563 + $0x34] sm:$0xf]
        %v1578 = vld [vmem:[%s1563 + $0x38] sm:$0xf]
        %v1579 = vld [vmem:[%s1563 + $0x3c] sm:$0xf]
        %v1581 = vunpack.c.l.b16 %v1562
        %v1582 = vpack.c.b16 %v1248, %v1581
        %v1583 = vrot.slane %v1582, 2
        %v1584 = vrot.slane %v1253, 2
        %v1585 = vsel %vm717, %v1583, %v1584
        %v1586 = vrot.slane %v1467, 2
        %v1587 = vsel %vm717, %v1584, %v1586
        %v1606 = vunpack.c.l.b16 %v1564
        %v1607 = vunpack.c.l.b16 %v1565
        %v1608 = vunpack.c.l.b16 %v1566
        %v1609 = vunpack.c.l.b16 %v1567
        %v1610 = vunpack.c.l.b16 %v1568
        %v1611 = vunpack.c.l.b16 %v1569
        %v1612 = vunpack.c.l.b16 %v1570
        %v1613 = vunpack.c.l.b16 %v1571
        %v1614 = vunpack.c.l.b16 %v1572
        %v1615 = vunpack.c.l.b16 %v1573
        %v1616 = vunpack.c.l.b16 %v1574
        %v1617 = vunpack.c.l.b16 %v1575
        %v1618 = vunpack.c.l.b16 %v1576
        %v1619 = vunpack.c.l.b16 %v1577
        %v1620 = vunpack.c.l.b16 %v1578
        %v1621 = vunpack.c.l.b16 %v1579
        %v1622 = vpack.c.b16 %v1607, %v1606
        %v1623 = vpack.c.b16 %v1609, %v1608
        %v1624 = vpack.c.b16 %v1611, %v1610
        %v1625 = vpack.c.b16 %v1613, %v1612
        %v1626 = vpack.c.b16 %v1615, %v1614
        %v1627 = vpack.c.b16 %v1617, %v1616
        %v1628 = vpack.c.b16 %v1619, %v1618
        %v1629 = vpack.c.b16 %v1621, %v1620
        %1638 = vmatpush.bf16.msra.mxu0 %v1629
        %1639 = vmatpush.bf16.msra.mxu0 %v1628
        %1640 = vmatpush.bf16.msra.mxu0 %v1627
        %1641 = vmatpush.bf16.msra.mxu0 %v1626
        %1642 = vmatpush.bf16.msra.mxu0 %v1625
        %1643 = vmatpush.bf16.msra.mxu0 %v1624
        %1644 = vmatpush.bf16.msra.mxu0 %v1623
        %1645 = vmatpush.bf16.msra.mxu0 %v1622
        %1646 = vmatmul.bf16.gmra.mxu0 %v1585
        %v1647 = vpop.f32.mrf.mxu0
        %v1648 = vadd.f32 0.0, %v1647
        %v1649 = vpop.f32.mrf.mxu0
        %v1650 = vadd.f32 0.0, %v1649
        %1651 = vmatmul.bf16.gmra.mxu0 %v1587
        %v1652 = vpop.f32.mrf.mxu0
        %v1653 = vadd.f32 0.0, %v1652
        %v1654 = vpop.f32.mrf.mxu0
        %v1655 = vadd.f32 0.0, %v1654
        %1656 = vdwg.mxu0
        %v1657 = vadd.f32 %v1558, %v1648
        %v1658 = vadd.f32 %v1559, %v1650
        %v1659 = vadd.f32 %v1560, %v1653
        %v1660 = vadd.f32 %v1561, %v1655
        %v1661 = vld [vmem:[%s255 + $0x14] sm:$0x7]
        %s1662 = scalar_lea.vmem [#allocation2], 832
        %v1663 = vld [vmem:[%s1662] sm:$0xf]
        %v1664 = vld [vmem:[%s1662 + $0x4] sm:$0xf]
        %v1665 = vld [vmem:[%s1662 + $0x8] sm:$0xf]
        %v1666 = vld [vmem:[%s1662 + $0xc] sm:$0xf]
        %v1667 = vld [vmem:[%s1662 + $0x10] sm:$0xf]
        %v1668 = vld [vmem:[%s1662 + $0x14] sm:$0xf]
        %v1669 = vld [vmem:[%s1662 + $0x18] sm:$0xf]
        %v1670 = vld [vmem:[%s1662 + $0x1c] sm:$0xf]
        %v1671 = vld [vmem:[%s1662 + $0x20] sm:$0xf]
        %v1672 = vld [vmem:[%s1662 + $0x24] sm:$0xf]
        %v1673 = vld [vmem:[%s1662 + $0x28] sm:$0xf]
        %v1674 = vld [vmem:[%s1662 + $0x2c] sm:$0xf]
        %v1675 = vld [vmem:[%s1662 + $0x30] sm:$0xf]
        %v1676 = vld [vmem:[%s1662 + $0x34] sm:$0xf]
        %v1677 = vld [vmem:[%s1662 + $0x38] sm:$0xf]
        %v1678 = vld [vmem:[%s1662 + $0x3c] sm:$0xf]
        %v1680 = vunpack.c.l.b16 %v1661
        %v1681 = vpack.c.b16 %v1680, %v1680
        %v1683 = vshrl.u32 %v1582, 16
        %v1685 = vrot.slane %v1683, 2
        %v1686 = vshll.u32 %v1582, 16
        %v1688 = vrot.slane %v1686, 3
        %v1689 = vor.u32 %v1685, %v1688
        %v1690 = vrot.slane %v1267, 2
        %v1691 = vrot.slane %v1263, 3
        %v1692 = vor.u32 %v1690, %v1691
        %v1693 = vsel %vm817, %v1689, %v1692
        %v1695 = vshrl.u32 %v1681, 16
        %v1697 = vrot.slane %v1695, 2
        %v1698 = vshll.u32 %v1681, 16
        %v1700 = vrot.slane %v1698, 3
        %v1701 = vor.u32 %v1697, %v1700
        %v1702 = vsel %vm817, %v1692, %v1701
        %v1721 = vunpack.c.l.b16 %v1663
        %v1722 = vunpack.c.l.b16 %v1664
        %v1723 = vunpack.c.l.b16 %v1665
        %v1724 = vunpack.c.l.b16 %v1666
        %v1725 = vunpack.c.l.b16 %v1667
        %v1726 = vunpack.c.l.b16 %v1668
        %v1727 = vunpack.c.l.b16 %v1669
        %v1728 = vunpack.c.l.b16 %v1670
        %v1729 = vunpack.c.l.b16 %v1671
        %v1730 = vunpack.c.l.b16 %v1672
        %v1731 = vunpack.c.l.b16 %v1673
        %v1732 = vunpack.c.l.b16 %v1674
        %v1733 = vunpack.c.l.b16 %v1675
        %v1734 = vunpack.c.l.b16 %v1676
        %v1735 = vunpack.c.l.b16 %v1677
        %v1736 = vunpack.c.l.b16 %v1678
        %v1737 = vpack.c.b16 %v1722, %v1721
        %v1738 = vpack.c.b16 %v1724, %v1723
        %v1739 = vpack.c.b16 %v1726, %v1725
        %v1740 = vpack.c.b16 %v1728, %v1727
        %v1741 = vpack.c.b16 %v1730, %v1729
        %v1742 = vpack.c.b16 %v1732, %v1731
        %v1743 = vpack.c.b16 %v1734, %v1733
        %v1744 = vpack.c.b16 %v1736, %v1735
        %1753 = vmatpush.bf16.msra.mxu0 %v1744
        %1754 = vmatpush.bf16.msra.mxu0 %v1743
        %1755 = vmatpush.bf16.msra.mxu0 %v1742
        %1756 = vmatpush.bf16.msra.mxu0 %v1741
        %1757 = vmatpush.bf16.msra.mxu0 %v1740
        %1758 = vmatpush.bf16.msra.mxu0 %v1739
        %1759 = vmatpush.bf16.msra.mxu0 %v1738
        %1760 = vmatpush.bf16.msra.mxu0 %v1737
        %1761 = vmatmul.bf16.gmra.mxu0 %v1693
        %v1762 = vpop.f32.mrf.mxu0
        %v1763 = vadd.f32 0.0, %v1762
        %v1764 = vpop.f32.mrf.mxu0
        %v1765 = vadd.f32 0.0, %v1764
        %1766 = vmatmul.bf16.gmra.mxu0 %v1702
        %v1767 = vpop.f32.mrf.mxu0
        %v1768 = vadd.f32 0.0, %v1767
        %v1769 = vpop.f32.mrf.mxu0
        %v1770 = vadd.f32 0.0, %v1769
        %1771 = vdwg.mxu0
        %v1772 = vadd.f32 %v1657, %v1763
        %v1773 = vadd.f32 %v1658, %v1765
        %v1774 = vadd.f32 %v1659, %v1768
        %v1775 = vadd.f32 %v1660, %v1770
        %v1776 = vld [vmem:[%s255 + $0x4] sm:$0x8]
        %s1777 = scalar_lea.vmem [#allocation2], 896
        %v1778 = vld [vmem:[%s1777] sm:$0xf]
        %v1779 = vld [vmem:[%s1777 + $0x4] sm:$0xf]
        %v1780 = vld [vmem:[%s1777 + $0x8] sm:$0xf]
        %v1781 = vld [vmem:[%s1777 + $0xc] sm:$0xf]
        %v1782 = vld [vmem:[%s1777 + $0x10] sm:$0xf]
        %v1783 = vld [vmem:[%s1777 + $0x14] sm:$0xf]
        %v1784 = vld [vmem:[%s1777 + $0x18] sm:$0xf]
        %v1785 = vld [vmem:[%s1777 + $0x1c] sm:$0xf]
        %v1786 = vld [vmem:[%s1777 + $0x20] sm:$0xf]
        %v1787 = vld [vmem:[%s1777 + $0x24] sm:$0xf]
        %v1788 = vld [vmem:[%s1777 + $0x28] sm:$0xf]
        %v1789 = vld [vmem:[%s1777 + $0x2c] sm:$0xf]
        %v1790 = vld [vmem:[%s1777 + $0x30] sm:$0xf]
        %v1791 = vld [vmem:[%s1777 + $0x34] sm:$0xf]
        %v1792 = vld [vmem:[%s1777 + $0x38] sm:$0xf]
        %v1793 = vld [vmem:[%s1777 + $0x3c] sm:$0xf]
        %v1795 = vunpack.c.l.b16 %v1776
        %v1796 = vpack.c.b16 %v1248, %v1795
        %v1797 = vrot.slane %v1796, 3
        %v1798 = vrot.slane %v1253, 3
        %v1799 = vsel %vm933, %v1797, %v1798
        %v1800 = vrot.slane %v1681, 3
        %v1801 = vsel %vm933, %v1798, %v1800
        %v1820 = vunpack.c.l.b16 %v1778
        %v1821 = vunpack.c.l.b16 %v1779
        %v1822 = vunpack.c.l.b16 %v1780
        %v1823 = vunpack.c.l.b16 %v1781
        %v1824 = vunpack.c.l.b16 %v1782
        %v1825 = vunpack.c.l.b16 %v1783
        %v1826 = vunpack.c.l.b16 %v1784
        %v1827 = vunpack.c.l.b16 %v1785
        %v1828 = vunpack.c.l.b16 %v1786
        %v1829 = vunpack.c.l.b16 %v1787
        %v1830 = vunpack.c.l.b16 %v1788
        %v1831 = vunpack.c.l.b16 %v1789
        %v1832 = vunpack.c.l.b16 %v1790
        %v1833 = vunpack.c.l.b16 %v1791
        %v1834 = vunpack.c.l.b16 %v1792
        %v1835 = vunpack.c.l.b16 %v1793
        %v1836 = vpack.c.b16 %v1821, %v1820
        %v1837 = vpack.c.b16 %v1823, %v1822
        %v1838 = vpack.c.b16 %v1825, %v1824
        %v1839 = vpack.c.b16 %v1827, %v1826
        %v1840 = vpack.c.b16 %v1829, %v1828
        %v1841 = vpack.c.b16 %v1831, %v1830
        %v1842 = vpack.c.b16 %v1833, %v1832
        %v1843 = vpack.c.b16 %v1835, %v1834
        %1852 = vmatpush.bf16.msra.mxu0 %v1843
        %1853 = vmatpush.bf16.msra.mxu0 %v1842
        %1854 = vmatpush.bf16.msra.mxu0 %v1841
        %1855 = vmatpush.bf16.msra.mxu0 %v1840
        %1856 = vmatpush.bf16.msra.mxu0 %v1839
        %1857 = vmatpush.bf16.msra.mxu0 %v1838
        %1858 = vmatpush.bf16.msra.mxu0 %v1837
        %1859 = vmatpush.bf16.msra.mxu0 %v1836
        %1860 = vmatmul.bf16.gmra.mxu0 %v1799
        %v1861 = vpop.f32.mrf.mxu0
        %v1862 = vadd.f32 0.0, %v1861
        %v1863 = vpop.f32.mrf.mxu0
        %v1864 = vadd.f32 0.0, %v1863
        %1865 = vmatmul.bf16.gmra.mxu0 %v1801
        %v1866 = vpop.f32.mrf.mxu0
        %v1867 = vadd.f32 0.0, %v1866
        %v1868 = vpop.f32.mrf.mxu0
        %v1869 = vadd.f32 0.0, %v1868
        %1870 = vdwg.mxu0
        %v1871 = vadd.f32 %v1772, %v1862
        %v1872 = vadd.f32 %v1773, %v1864
        %v1873 = vadd.f32 %v1774, %v1867
        %v1874 = vadd.f32 %v1775, %v1869
        %v1875 = vld [vmem:[%s255 + $0x14] sm:$0xf]
        %s1876 = scalar_lea.vmem [#allocation2], 960
        %v1877 = vld [vmem:[%s1876] sm:$0xf]
        %v1878 = vld [vmem:[%s1876 + $0x4] sm:$0xf]
        %v1879 = vld [vmem:[%s1876 + $0x8] sm:$0xf]
        %v1880 = vld [vmem:[%s1876 + $0xc] sm:$0xf]
        %v1881 = vld [vmem:[%s1876 + $0x10] sm:$0xf]
        %v1882 = vld [vmem:[%s1876 + $0x14] sm:$0xf]
        %v1883 = vld [vmem:[%s1876 + $0x18] sm:$0xf]
        %v1884 = vld [vmem:[%s1876 + $0x1c] sm:$0xf]
        %v1885 = vld [vmem:[%s1876 + $0x20] sm:$0xf]
        %v1886 = vld [vmem:[%s1876 + $0x24] sm:$0xf]
        %v1887 = vld [vmem:[%s1876 + $0x28] sm:$0xf]
        %v1888 = vld [vmem:[%s1876 + $0x2c] sm:$0xf]
        %v1889 = vld [vmem:[%s1876 + $0x30] sm:$0xf]
        %v1890 = vld [vmem:[%s1876 + $0x34] sm:$0xf]
        %v1891 = vld [vmem:[%s1876 + $0x38] sm:$0xf]
        %v1892 = vld [vmem:[%s1876 + $0x3c] sm:$0xf]
        %v1894 = vunpack.c.l.b16 %v1875
        %v1895 = vpack.c.b16 %v1894, %v1894
        %v1897 = vshrl.u32 %v1796, 16
        %v1899 = vrot.slane %v1897, 3
        %v1900 = vshll.u32 %v1796, 16
        %v1902 = vrot.slane %v1900, 4
        %v1903 = vor.u32 %v1899, %v1902
        %v1904 = vrot.slane %v1267, 3
        %v1905 = vrot.slane %v1263, 4
        %v1906 = vor.u32 %v1904, %v1905
        %v1907 = vsel %vm1033, %v1903, %v1906
        %v1909 = vshrl.u32 %v1895, 16
        %v1911 = vrot.slane %v1909, 3
        %v1912 = vshll.u32 %v1895, 16
        %v1914 = vrot.slane %v1912, 4
        %v1915 = vor.u32 %v1911, %v1914
        %v1916 = vsel %vm1033, %v1906, %v1915
        %v1935 = vunpack.c.l.b16 %v1877
        %v1936 = vunpack.c.l.b16 %v1878
        %v1937 = vunpack.c.l.b16 %v1879
        %v1938 = vunpack.c.l.b16 %v1880
        %v1939 = vunpack.c.l.b16 %v1881
        %v1940 = vunpack.c.l.b16 %v1882
        %v1941 = vunpack.c.l.b16 %v1883
        %v1942 = vunpack.c.l.b16 %v1884
        %v1943 = vunpack.c.l.b16 %v1885
        %v1944 = vunpack.c.l.b16 %v1886
        %v1945 = vunpack.c.l.b16 %v1887
        %v1946 = vunpack.c.l.b16 %v1888
        %v1947 = vunpack.c.l.b16 %v1889
        %v1948 = vunpack.c.l.b16 %v1890
        %v1949 = vunpack.c.l.b16 %v1891
        %v1950 = vunpack.c.l.b16 %v1892
        %v1951 = vpack.c.b16 %v1936, %v1935
        %v1952 = vpack.c.b16 %v1938, %v1937
        %v1953 = vpack.c.b16 %v1940, %v1939
        %v1954 = vpack.c.b16 %v1942, %v1941
        %v1955 = vpack.c.b16 %v1944, %v1943
        %v1956 = vpack.c.b16 %v1946, %v1945
        %v1957 = vpack.c.b16 %v1948, %v1947
        %v1958 = vpack.c.b16 %v1950, %v1949
        %1967 = vmatpush.bf16.msra.mxu0 %v1958
        %1968 = vmatpush.bf16.msra.mxu0 %v1957
        %1969 = vmatpush.bf16.msra.mxu0 %v1956
        %1970 = vmatpush.bf16.msra.mxu0 %v1955
        %1971 = vmatpush.bf16.msra.mxu0 %v1954
        %1972 = vmatpush.bf16.msra.mxu0 %v1953
        %1973 = vmatpush.bf16.msra.mxu0 %v1952
        %1974 = vmatpush.bf16.msra.mxu0 %v1951
        %1975 = vmatmul.bf16.gmra.mxu0 %v1907
        %v1976 = vpop.f32.mrf.mxu0
        %v1977 = vadd.f32 0.0, %v1976
        %v1978 = vpop.f32.mrf.mxu0
        %v1979 = vadd.f32 0.0, %v1978
        %1980 = vmatmul.bf16.gmra.mxu0 %v1916
        %v1981 = vpop.f32.mrf.mxu0
        %v1982 = vadd.f32 0.0, %v1981
        %v1983 = vpop.f32.mrf.mxu0
        %v1984 = vadd.f32 0.0, %v1983
        %1985 = vdwg.mxu0
        %v1986 = vadd.f32 %v1871, %v1977
        %v1987 = vadd.f32 %v1872, %v1979
        %v1988 = vadd.f32 %v1873, %v1982
        %v1989 = vadd.f32 %v1874, %v1984
        %s1990 = scalar_lea.vmem [#allocation2], 1024
        %v1991 = vld [vmem:[%s1990] sm:$0xf]
        %v1992 = vld [vmem:[%s1990 + $0x4] sm:$0xf]
        %v1993 = vld [vmem:[%s1990 + $0x8] sm:$0xf]
        %v1994 = vld [vmem:[%s1990 + $0xc] sm:$0xf]
        %v1995 = vld [vmem:[%s1990 + $0x10] sm:$0xf]
        %v1996 = vld [vmem:[%s1990 + $0x14] sm:$0xf]
        %v1997 = vld [vmem:[%s1990 + $0x18] sm:$0xf]
        %v1998 = vld [vmem:[%s1990 + $0x1c] sm:$0xf]
        %v1999 = vld [vmem:[%s1990 + $0x20] sm:$0xf]
        %v2000 = vld [vmem:[%s1990 + $0x24] sm:$0xf]
        %v2001 = vld [vmem:[%s1990 + $0x28] sm:$0xf]
        %v2002 = vld [vmem:[%s1990 + $0x2c] sm:$0xf]
        %v2003 = vld [vmem:[%s1990 + $0x30] sm:$0xf]
        %v2004 = vld [vmem:[%s1990 + $0x34] sm:$0xf]
        %v2005 = vld [vmem:[%s1990 + $0x38] sm:$0xf]
        %v2006 = vld [vmem:[%s1990 + $0x3c] sm:$0xf]
        %v2007 = vpack.c.b16 %v1249, %v1248
        %v2008 = vpack.c.b16 %v1894, %v1250
        %v2027 = vunpack.c.l.b16 %v1991
        %v2028 = vunpack.c.l.b16 %v1992
        %v2029 = vunpack.c.l.b16 %v1993
        %v2030 = vunpack.c.l.b16 %v1994
        %v2031 = vunpack.c.l.b16 %v1995
        %v2032 = vunpack.c.l.b16 %v1996
        %v2033 = vunpack.c.l.b16 %v1997
        %v2034 = vunpack.c.l.b16 %v1998
        %v2035 = vunpack.c.l.b16 %v1999
        %v2036 = vunpack.c.l.b16 %v2000
        %v2037 = vunpack.c.l.b16 %v2001
        %v2038 = vunpack.c.l.b16 %v2002
        %v2039 = vunpack.c.l.b16 %v2003
        %v2040 = vunpack.c.l.b16 %v2004
        %v2041 = vunpack.c.l.b16 %v2005
        %v2042 = vunpack.c.l.b16 %v2006
        %v2043 = vpack.c.b16 %v2028, %v2027
        %v2044 = vpack.c.b16 %v2030, %v2029
        %v2045 = vpack.c.b16 %v2032, %v2031
        %v2046 = vpack.c.b16 %v2034, %v2033
        %v2047 = vpack.c.b16 %v2036, %v2035
        %v2048 = vpack.c.b16 %v2038, %v2037
        %v2049 = vpack.c.b16 %v2040, %v2039
        %v2050 = vpack.c.b16 %v2042, %v2041
        %2059 = vmatpush.bf16.msra.mxu0 %v2050
        %2060 = vmatpush.bf16.msra.mxu0 %v2049
        %2061 = vmatpush.bf16.msra.mxu0 %v2048
        %2062 = vmatpush.bf16.msra.mxu0 %v2047
        %2063 = vmatpush.bf16.msra.mxu0 %v2046
        %2064 = vmatpush.bf16.msra.mxu0 %v2045
        %2065 = vmatpush.bf16.msra.mxu0 %v2044
        %2066 = vmatpush.bf16.msra.mxu0 %v2043
        %2067 = vmatmul.bf16.gmra.mxu0 %v2007
        %v2068 = vpop.f32.mrf.mxu0
        %v2069 = vadd.f32 0.0, %v2068
        %v2070 = vpop.f32.mrf.mxu0
        %v2071 = vadd.f32 0.0, %v2070
        %2072 = vmatmul.bf16.gmra.mxu0 %v2008
        %v2073 = vpop.f32.mrf.mxu0
        %v2074 = vadd.f32 0.0, %v2073
        %v2075 = vpop.f32.mrf.mxu0
        %v2076 = vadd.f32 0.0, %v2075
        %2077 = vdwg.mxu0
        %v2078 = vadd.f32 %v1986, %v2069
        %v2079 = vadd.f32 %v1987, %v2071
        %v2080 = vadd.f32 %v1988, %v2074
        %v2081 = vadd.f32 %v1989, %v2076
        %v2082 = vld [vmem:[%s258] sm:$0x1]
        %v2084 = vperm.slane %v2082, 0
        %v2086 = vmul.f32 %v2078, %v2084
        %v2087 = vmul.f32 %v2079, %v2084
        %v2088 = vmul.f32 %v2080, %v2084
        %v2089 = vmul.f32 %v2081, %v2084
        %v2090 = vld [vmem:[%s261] sm:$0x1]
        %v2092 = vperm.slane %v2090, 0
        %v2094 = vadd.f32 %v2086, %v2092
        %v2095 = vadd.f32 %v2087, %v2092
        %v2096 = vadd.f32 %v2088, %v2092
        %v2097 = vadd.f32 %v2089, %v2092
        %v2098 = vmax.f32 %v2094, 0.0
        %v2099 = vmax.f32 %v2095, 0.0
        %v2100 = vmax.f32 %v2096, 0.0
        %v2101 = vmax.f32 %v2097, 0.0
        %v2102 = vpack.c.bf16 %v2098, %v2098
        %v2103 = vpack.c.bf16 %v2099, %v2099
        %v2104 = vpack.c.bf16 %v2100, %v2100
        %v2105 = vpack.c.bf16 %v2101, %v2101
        %2106 = vst [vmem:[%s269] sm:$0xf] %v2102
        %2107 = vst [vmem:[%s269 + $0x4] sm:$0xf] %v2103
        %2108 = vst [vmem:[%s269 + $0x8] sm:$0xf] %v2104
        %2109 = vst [vmem:[%s269 + $0xc] sm:$0xf] %v2105
        %p2110 = scmp.lt.s32.totalorder %s20, 1
        %s2111 = scalar_select %p2110, %s20, 1
        %p2112 = scmp.lt.s32.totalorder %s21, 0
        %s2113 = scalar_select %p2112, %s21, 0
        %s2114 = smul.addr %s2111, 4
        %s2115 = sadd.s32 %s2113, %s2114
        %s2116 = smul.addr %s2115, 4
        %s2117 = scalar_lea.vmem %s4, %s2116
        // Predicated region
        $region41: #{resnet1d_forward.6} parent=35 // pred_check
          %p2118 = pneg %p152
        $region42: #{resnet1d_forward.6} parent=35 // pred_check_branch
          %2120 = sbr.rel (%p2118) target = $region44
        $region43: #{resnet1d_forward.6} parent=35 // pred_region
          _
        $region44: #{resnet1d_forward.6} parent=35 // pred_fallthru
          _
      $region36: #{resnet1d_forward.6} parent=5 // pred_fallthru
        _
      %p2121 = scmp.le.s32.totalorder 2, %s11
      // Predicated region
      $region45: #{resnet1d_forward.6} parent=5 // pred_check
        %p2122 = pneg %p2121
      $region46: #{resnet1d_forward.6} parent=5 // pred_check_branch
        %2124 = sbr.rel (%p2122) target = $region48
      $region47: #{resnet1d_forward.6} parent=5 // pred_region
        %s2125 = ssub.s32 %s11, 2
        // Predicated region
        $region49: #{resnet1d_forward.6} parent=47 // pred_check
          %p2126 = pneg %p158
        $region50: #{resnet1d_forward.6} parent=47 // pred_check_branch
          %2128 = sbr.rel (%p2126) target = $region52
        $region51: #{resnet1d_forward.6} parent=47 // pred_region
          %p2129 = scmp.lt.s32.totalorder %s22, 1
          %s2130 = scalar_select %p2129, %s22, 1
          %p2131 = scmp.lt.s32.totalorder %s23, 0
          %s2132 = scalar_select %p2131, %s23, 0
          %s2133 = smul.addr %s2130, 4
          %s2134 = sadd.s32 %s2132, %s2133
          %s2135 = smul.addr %s2134, 4
          %s2136 = scalar_lea.vmem %s4, %s2135
        $region52: #{resnet1d_forward.6} parent=47 // pred_fallthru
          _
      $region48: #{resnet1d_forward.6} parent=5 // pred_fallthru
        _
    $region6: #{resnet1d_forward.6} parent=1 // loop_footer
      %s15 = sadd.s32 1, %s11
    $region7: #{resnet1d_forward.6} parent=1 // loop_footer_branch
      %10 = sbr.rel target = $region3
    $region8: #{resnet1d_forward.6} parent=1 // loop_exit
      _
    %2137 = vsyncpa [#allocation3], 1
    %s2138 = scalar_lea.sflag [#allocation3], 1
    %2139 = vsyncpa %s2138, 1

// kernel: resnet1d_forward.7
$region0: #{resnet1d_forward.7}
  #allocation0 [shape = 'u32[]', space=smem, size = 0x4, offset = 0x4, fixed_abs, tag = 'smem constant byte address 0x4 - core index']
  #allocation1 [shape = 'u32[72,128]{1,0:T(1,128)}', space=vmem, size = 0x9000, scoped, tag = 'internal scratch']
  %s0 = inlined_call_operand.vmem [shape: bf16[2,1,48,128], index: 0, kind: input, shape index: {}]
  %s1 = inlined_call_operand.hbm [shape: bf16[17,128,128], index: 1, kind: input, shape index: {}]
  %s2 = inlined_call_operand.vmem [shape: f32[1,128], index: 2, kind: input, shape index: {}]
  %s3 = inlined_call_operand.vmem [shape: f32[1,128], index: 3, kind: input, shape index: {}]
  %s4 = inlined_call_operand.vmem [shape: bf16[2,1,32,128], index: 4, kind: input, shape index: {}]
  %s5 = inlined_call_operand.vmem [shape: bf16[2,32,128], index: 5, kind: output, shape index: {0}]
  %s6 = inlined_call_operand.vmem [shape: bf16[2,32,128], index: 6, kind: output, shape index: {1}]
  %7 = xla_tuple %s5, %s6
  %s8 = sld [smem:[#allocation0]]
  $region65: #{resnet1d_forward.7} parent=0
    _
  %s10 = ssub.s32 1, %s8
  %s11 = scalar_select 0, %s10, %s8
  $region1: #{resnet1d_forward.7} parent=0
    #allocation2 [shape = 'u8[557056]{0}', space=vmem, size = 0x88000, scoped, tag = 'input window, operand 1, single buffered']
    #allocation3 [shape = 's32[2]{0}', space=sflag, size = 0x8, scoped, tag = 'scoped memory for resnet1d_forward.7']
    %12 = vsyncpa [#allocation3], 0
    loop: start=0, step=1, limit=4
    $region2: #{resnet1d_forward.7} parent=1 // loop_pre_header
      _
    $region3: #{resnet1d_forward.7} parent=1 // loop_header
      %s14 = sphi 0, %s18
      %p15 = scmp.ge.s32.totalorder %s14, 4
      %s21 = sphi 0, %s33
      %s22 = sphi 0, %s29
      %s23 = sphi 0, %s21
      %s24 = sphi 0, %s22
      %s25 = sphi 0, %s23
      %s26 = sphi 0, %s24
      %s36 = sphi 0, %s38
      %s39 = sphi 0, %s36
      %s40 = sphi 0, %s39
      %s56 = sphi 0, %s40
      %s62 = sphi 0, %s64
      %s65 = sphi 0, %s62
      %s66 = sphi 0, %s65
      %s82 = sphi 0, %s66
      %s88 = sphi 0, %s90
      %s91 = sphi 0, %s88
      %s92 = sphi 0, %s91
      %s108 = sphi 0, %s92
      %s114 = sphi 0, %s116
      %s117 = sphi 0, %s114
      %s118 = sphi 0, %s117
      %s134 = sphi 0, %s118
      %s142 = sphi 0, %s144
      %s145 = sphi 0, %s142
      %s146 = sphi 0, %s145
      %s162 = sphi 0, %s146
      %s170 = sphi 0, %s172
      %s173 = sphi 0, %s170
      %s174 = sphi 0, %s173
      %s190 = sphi 0, %s174
      %s198 = sphi 0, %s200
      %s201 = sphi 0, %s198
      %s202 = sphi 0, %s201
      %s218 = sphi 0, %s202
    $region4: #{resnet1d_forward.7} parent=1 // loop_header_branch
      %17 = sbr.rel (%p15) target = $region8
    $region5: #{resnet1d_forward.7} parent=1 // loop_body
      %s19 = ssub.s32 %s14, 1
      %s20 = ssub.s32 %s14, 2
      %s27 = sadd.s32 1, %s22
      %p28 = scmp.ge.s32.totalorder %s27, 1
      %s29 = scalar_select %p28, 0, %s27
      %s30 = sadd.s32 1, %s21
      %s31 = scalar_select %p28, %s30, %s21
      %p32 = scmp.ge.s32.totalorder %s31, 2
      %s33 = scalar_select %p32, 0, %s31
      %s34 = ssub.s32 %s21, %s33
      %p35 = scmp.eq.s32.totalorder %s34, 0
      %s37 = sadd.s32 %s36, 1
      %s38 = scalar_select %p35, %s36, %s37
      %p41 = pneg %p35
      %p42 = scmp.eq.s32.totalorder %s14, 1
      %p43 = por %p41, %p42
      %p44 = scmp.ne.s32.totalorder %s36, %s39
      %p45 = scmp.eq.s32.totalorder %s14, 0
      %p46 = por %p44, %p45
      %p47 = scmp.ne.s32.totalorder %s36, %s39
      %p48 = scmp.eq.s32.totalorder %s19, 1
      %p49 = por %p47, %p48
      %p50 = scmp.ne.s32.totalorder %s39, %s40
      %p51 = scmp.eq.s32.totalorder %s19, 0
      %p52 = por %p50, %p51
      %p53 = scmp.ne.s32.totalorder %s39, %s40
      %p54 = scmp.eq.s32.totalorder %s20, 1
      %p55 = por %p53, %p54
      %p57 = scmp.ne.s32.totalorder %s40, %s56
      %p58 = scmp.eq.s32.totalorder %s20, 0
      %p59 = por %p57, %p58
      %s60 = ssub.s32 %s22, %s29
      %p61 = scmp.eq.s32.totalorder %s60, 0
      %s63 = sadd.s32 %s62, 1
      %s64 = scalar_select %p61, %s62, %s63
      %p67 = pneg %p61
      %p68 = scmp.eq.s32.totalorder %s14, 1
      %p69 = por %p67, %p68
      %p70 = scmp.ne.s32.totalorder %s62, %s65
      %p71 = scmp.eq.s32.totalorder %s14, 0
      %p72 = por %p70, %p71
      %p73 = scmp.ne.s32.totalorder %s62, %s65
      %p74 = scmp.eq.s32.totalorder %s19, 1
      %p75 = por %p73, %p74
      %p76 = scmp.ne.s32.totalorder %s65, %s66
      %p77 = scmp.eq.s32.totalorder %s19, 0
      %p78 = por %p76, %p77
      %p79 = scmp.ne.s32.totalorder %s65, %s66
      %p80 = scmp.eq.s32.totalorder %s20, 1
      %p81 = por %p79, %p80
      %p83 = scmp.ne.s32.totalorder %s66, %s82
      %p84 = scmp.eq.s32.totalorder %s20, 0
      %p85 = por %p83, %p84
      %s86 = ssub.s32 %s22, %s29
      %p87 = scmp.eq.s32.totalorder %s86, 0
      %s89 = sadd.s32 %s88, 1
      %s90 = scalar_select %p87, %s88, %s89
      %p93 = pneg %p87
      %p94 = scmp.eq.s32.totalorder %s14, 1
      %p95 = por %p93, %p94
      %p96 = scmp.ne.s32.totalorder %s88, %s91
      %p97 = scmp.eq.s32.totalorder %s14, 0
      %p98 = por %p96, %p97
      %p99 = scmp.ne.s32.totalorder %s88, %s91
      %p100 = scmp.eq.s32.totalorder %s19, 1
      %p101 = por %p99, %p100
      %p102 = scmp.ne.s32.totalorder %s91, %s92
      %p103 = scmp.eq.s32.totalorder %s19, 0
      %p104 = por %p102, %p103
      %p105 = scmp.ne.s32.totalorder %s91, %s92
      %p106 = scmp.eq.s32.totalorder %s20, 1
      %p107 = por %p105, %p106
      %p109 = scmp.ne.s32.totalorder %s92, %s108
      %p110 = scmp.eq.s32.totalorder %s20, 0
      %p111 = por %p109, %p110
      %s112 = ssub.s32 %s22, %s29
      %p113 = scmp.eq.s32.totalorder %s112, 0
      %s115 = sadd.s32 %s114, 1
      %s116 = scalar_select %p113, %s114, %s115
      %p119 = pneg %p113
      %p120 = scmp.eq.s32.totalorder %s14, 1
      %p121 = por %p119, %p120
      %p122 = scmp.ne.s32.totalorder %s114, %s117
      %p123 = scmp.eq.s32.totalorder %s14, 0
      %p124 = por %p122, %p123
      %p125 = scmp.ne.s32.totalorder %s114, %s117
      %p126 = scmp.eq.s32.totalorder %s19, 1
      %p127 = por %p125, %p126
      %p128 = scmp.ne.s32.totalorder %s117, %s118
      %p129 = scmp.eq.s32.totalorder %s19, 0
      %p130 = por %p128, %p129
      %p131 = scmp.ne.s32.totalorder %s117, %s118
      %p132 = scmp.eq.s32.totalorder %s20, 1
      %p133 = por %p131, %p132
      %p135 = scmp.ne.s32.totalorder %s118, %s134
      %p136 = scmp.eq.s32.totalorder %s20, 0
      %p137 = por %p135, %p136
      %s138 = ssub.s32 %s21, %s33
      %s139 = ssub.s32 %s22, %s29
      %s140 = sor.u32 %s138, %s139
      %p141 = scmp.eq.s32.totalorder %s140, 0
      %s143 = sadd.s32 %s142, 1
      %s144 = scalar_select %p141, %s142, %s143
      %p147 = pneg %p141
      %p148 = scmp.eq.s32.totalorder %s14, 1
      %p149 = por %p147, %p148
      %p150 = scmp.ne.s32.totalorder %s142, %s145
      %p151 = scmp.eq.s32.totalorder %s14, 0
      %p152 = por %p150, %p151
      %p153 = scmp.ne.s32.totalorder %s142, %s145
      %p154 = scmp.eq.s32.totalorder %s19, 1
      %p155 = por %p153, %p154
      %p156 = scmp.ne.s32.totalorder %s145, %s146
      %p157 = scmp.eq.s32.totalorder %s19, 0
      %p158 = por %p156, %p157
      %p159 = scmp.ne.s32.totalorder %s145, %s146
      %p160 = scmp.eq.s32.totalorder %s20, 1
      %p161 = por %p159, %p160
      %p163 = scmp.ne.s32.totalorder %s146, %s162
      %p164 = scmp.eq.s32.totalorder %s20, 0
      %p165 = por %p163, %p164
      %s166 = ssub.s32 %s21, %s33
      %s167 = ssub.s32 %s22, %s29
      %s168 = sor.u32 %s166, %s167
      %p169 = scmp.eq.s32.totalorder %s168, 0
      %s171 = sadd.s32 %s170, 1
      %s172 = scalar_select %p169, %s170, %s171
      %p175 = pneg %p169
      %p176 = scmp.eq.s32.totalorder %s14, 1
      %p177 = por %p175, %p176
      %p178 = scmp.ne.s32.totalorder %s170, %s173
      %p179 = scmp.eq.s32.totalorder %s14, 0
      %p180 = por %p178, %p179
      %p181 = scmp.ne.s32.totalorder %s170, %s173
      %p182 = scmp.eq.s32.totalorder %s19, 1
      %p183 = por %p181, %p182
      %p184 = scmp.ne.s32.totalorder %s173, %s174
      %p185 = scmp.eq.s32.totalorder %s19, 0
      %p186 = por %p184, %p185
      %p187 = scmp.ne.s32.totalorder %s173, %s174
      %p188 = scmp.eq.s32.totalorder %s20, 1
      %p189 = por %p187, %p188
      %p191 = scmp.ne.s32.totalorder %s174, %s190
      %p192 = scmp.eq.s32.totalorder %s20, 0
      %p193 = por %p191, %p192
      %s194 = ssub.s32 %s21, %s33
      %s195 = ssub.s32 %s22, %s29
      %s196 = sor.u32 %s194, %s195
      %p197 = scmp.eq.s32.totalorder %s196, 0
      %s199 = sadd.s32 %s198, 1
      %s200 = scalar_select %p197, %s198, %s199
      %p203 = pneg %p197
      %p204 = scmp.eq.s32.totalorder %s14, 1
      %p205 = por %p203, %p204
      %p206 = scmp.ne.s32.totalorder %s198, %s201
      %p207 = scmp.eq.s32.totalorder %s14, 0
      %p208 = por %p206, %p207
      %p209 = scmp.ne.s32.totalorder %s198, %s201
      %p210 = scmp.eq.s32.totalorder %s19, 1
      %p211 = por %p209, %p210
      %p212 = scmp.ne.s32.totalorder %s201, %s202
      %p213 = scmp.eq.s32.totalorder %s19, 0
      %p214 = por %p212, %p213
      %p215 = scmp.ne.s32.totalorder %s201, %s202
      %p216 = scmp.eq.s32.totalorder %s20, 1
      %p217 = por %p215, %p216
      %p219 = scmp.ne.s32.totalorder %s202, %s218
      %p220 = scmp.eq.s32.totalorder %s20, 0
      %p221 = por %p219, %p220
      %p222 = scmp.le.s32.totalorder 1, %s14
      %p223 = scmp.lt.s32.totalorder %s14, 3
      %p224 = pnand %p222, %p223
      %p225 = pneg %p224
      // Predicated region
      $region9: #{resnet1d_forward.7} parent=5 // pred_check
        _
      $region10: #{resnet1d_forward.7} parent=5 // pred_check_branch
        %227 = sbr.rel (%p224) target = $region12
      $region11: #{resnet1d_forward.7} parent=5 // pred_region
        %s228 = ssub.s32 %s14, 1
        // Predicated region
        $region13: #{resnet1d_forward.7} parent=11 // pred_check
          %p229 = pneg %p78
        $region14: #{resnet1d_forward.7} parent=11 // pred_check_branch
          %231 = sbr.rel (%p229) target = $region16
        $region15: #{resnet1d_forward.7} parent=11 // pred_region
          %233 = vsyncadd [#allocation3], 0
          %s234 = smul.addr %s24, 4
          %s235 = scalar_lea.hbm %s1, %s234
          %s236 = sshll.u32 %s235, 4
          %s237 = int_to_ptr.hbm [resolvable:$true] %s236
          %s238 = sshll.u32 [#allocation2], 4
          %s239 = int_to_ptr.vmem [resolvable:$true] %s238
          %244 = dma.hbm_to_vmem [thread:$0]  %s237, 17408, %s239, [#allocation3], 64, 64, 4
        $region16: #{resnet1d_forward.7} parent=11 // pred_fallthru
          _
        // Predicated region
        $region17: #{resnet1d_forward.7} parent=11 // pred_check
          %p245 = pneg %p104
        $region18: #{resnet1d_forward.7} parent=11 // pred_check_branch
          %247 = sbr.rel (%p245) target = $region20
        $region19: #{resnet1d_forward.7} parent=11 // pred_region
          %p248 = scmp.lt.s32.totalorder %s24, 0
          %s249 = scalar_select %p248, %s24, 0
          %s250 = scalar_lea.vmem %s2, %s249
        $region20: #{resnet1d_forward.7} parent=11 // pred_fallthru
          _
        // Predicated region
        $region21: #{resnet1d_forward.7} parent=11 // pred_check
          %p251 = pneg %p130
        $region22: #{resnet1d_forward.7} parent=11 // pred_check_branch
          %253 = sbr.rel (%p251) target = $region24
        $region23: #{resnet1d_forward.7} parent=11 // pred_region
          %p254 = scmp.lt.s32.totalorder %s24, 0
          %s255 = scalar_select %p254, %s24, 0
          %s256 = scalar_lea.vmem %s3, %s255
        $region24: #{resnet1d_forward.7} parent=11 // pred_fallthru
          _
      $region12: #{resnet1d_forward.7} parent=5 // pred_fallthru
        _
      %p257 = scmp.lt.s32.totalorder %s14, 2
      // Predicated region
      $region25: #{resnet1d_forward.7} parent=5 // pred_check
        %p258 = pneg %p257
      $region26: #{resnet1d_forward.7} parent=5 // pred_check_branch
        %260 = sbr.rel (%p258) target = $region28
      $region27: #{resnet1d_forward.7} parent=5 // pred_region
        // Predicated region
        $region29: #{resnet1d_forward.7} parent=27 // pred_check
          %p261 = pneg %p46
        $region30: #{resnet1d_forward.7} parent=27 // pred_check_branch
          %263 = sbr.rel (%p261) target = $region32
        $region31: #{resnet1d_forward.7} parent=27 // pred_region
          %p264 = scmp.lt.s32.totalorder %s21, 1
          %s265 = scalar_select %p264, %s21, 1
          %s266 = smul.addr %s265, 6
          %s267 = smul.addr %s266, 4
          %s268 = scalar_lea.vmem %s0, %s267
        $region32: #{resnet1d_forward.7} parent=27 // pred_fallthru
          _
        // Predicated region
        $region33: #{resnet1d_forward.7} parent=27 // pred_check
          %p269 = pneg %p152
        $region34: #{resnet1d_forward.7} parent=27 // pred_check_branch
          %271 = sbr.rel (%p269) target = $region36
        $region35: #{resnet1d_forward.7} parent=27 // pred_region
          %p272 = scmp.lt.s32.totalorder %s21, 1
          %s273 = scalar_select %p272, %s21, 1
          %p274 = scmp.lt.s32.totalorder %s22, 0
          %s275 = scalar_select %p274, %s22, 0
          %s276 = smul.addr %s273, 4
          %s277 = sadd.s32 %s275, %s276
          %s278 = smul.addr %s277, 4
          %s279 = scalar_lea.vmem %s4, %s278
        $region36: #{resnet1d_forward.7} parent=27 // pred_fallthru
          _
      $region28: #{resnet1d_forward.7} parent=5 // pred_fallthru
        _
      %p280 = scmp.le.s32.totalorder 1, %s14
      %p281 = scmp.lt.s32.totalorder %s14, 3
      %p282 = pnand %p280, %p281
      %p283 = pneg %p282
      // Predicated region
      $region37: #{resnet1d_forward.7} parent=5 // pred_check
        _
      $region38: #{resnet1d_forward.7} parent=5 // pred_check_branch
        %285 = sbr.rel (%p282) target = $region40
      $region39: #{resnet1d_forward.7} parent=5 // pred_region
        %s286 = ssub.s32 %s14, 1
        // Predicated region
        $region41: #{resnet1d_forward.7} parent=39 // pred_check
          %p287 = pneg %p78
        $region42: #{resnet1d_forward.7} parent=39 // pred_check_branch
          %289 = sbr.rel (%p287) target = $region44
        $region43: #{resnet1d_forward.7} parent=39 // pred_region
          %291 = dma.done [#allocation3], 17408
        $region44: #{resnet1d_forward.7} parent=39 // pred_fallthru
          _
        %p292 = scmp.lt.s32.totalorder %s23, 1
        %s293 = scalar_select %p292, %s23, 1
        %s294 = smul.addr %s293, 6
        %s295 = smul.addr %s294, 4
        %s296 = scalar_lea.vmem %s0, %s295
        %p297 = pneg %p52
        %p298 = pneg %p49
        %p299 = pneg %p78
        %p300 = pneg %p75
        %p301 = scmp.lt.s32.totalorder %s24, 0
        %s302 = scalar_select %p301, %s24, 0
        %s303 = scalar_lea.vmem %s2, %s302
        %p304 = pneg %p104
        %p305 = pneg %p101
        %p306 = scmp.lt.s32.totalorder %s24, 0
        %s307 = scalar_select %p306, %s24, 0
        %s308 = scalar_lea.vmem %s3, %s307
        %p309 = pneg %p130
        %p310 = pneg %p127
        %p311 = scmp.lt.s32.totalorder %s23, 1
        %s312 = scalar_select %p311, %s23, 1
        %p313 = scmp.lt.s32.totalorder %s24, 0
        %s314 = scalar_select %p313, %s24, 0
        %s315 = smul.addr %s312, 4
        %s316 = sadd.s32 %s314, %s315
        %s317 = smul.addr %s316, 4
        %s318 = scalar_lea.vmem %s4, %s317
        %p319 = pneg %p158
        %p320 = pneg %p155
        %p321 = pneg %p186
        %p322 = pneg %p183
        %p323 = scmp.lt.s32.totalorder %s23, 1
        %s324 = scalar_select %p323, %s23, 1
        %p325 = scmp.lt.s32.totalorder %s24, 0
        %s326 = scalar_select %p325, %s24, 0
        %s327 = smul.addr %s324, 4
        %s328 = sadd.s32 %s326, %s327
        %s329 = smul.addr %s328, 4
        %s330 = scalar_lea.vmem %s5, %s329
        %p331 = pneg %p214
        %p332 = pneg %p211
        %p333 = scmp.lt.s32.totalorder %s23, 1
        %s334 = scalar_select %p333, %s23, 1
        %p335 = scmp.lt.s32.totalorder %s24, 0
        %s336 = scalar_select %p335, %s24, 0
        %s337 = smul.addr %s334, 4
        %s338 = sadd.s32 %s336, %s337
        %s339 = smul.addr %s338, 4
        %s340 = scalar_lea.vmem %s6, %s339
        %p341 = scmp.lt.s32.totalorder %s23, 1
        %s342 = scalar_select %p341, %s23, 1
        %s343 = smul.addr %s342, 6
        %s344 = smul.addr %s343, 4
        %s345 = scalar_lea.vmem %s0, %s344
        %p346 = scmp.lt.s32.totalorder %s24, 0
        %s347 = scalar_select %p346, %s24, 0
        %s348 = scalar_lea.vmem %s2, %s347
        %p349 = scmp.lt.s32.totalorder %s24, 0
        %s350 = scalar_select %p349, %s24, 0
        %s351 = scalar_lea.vmem %s3, %s350
        %p352 = scmp.lt.s32.totalorder %s23, 1
        %s353 = scalar_select %p352, %s23, 1
        %p354 = scmp.lt.s32.totalorder %s24, 0
        %s355 = scalar_select %p354, %s24, 0
        %s356 = smul.addr %s353, 4
        %s357 = sadd.s32 %s355, %s356
        %s358 = smul.addr %s357, 4
        %s359 = scalar_lea.vmem %s4, %s358
        %p360 = scmp.lt.s32.totalorder %s23, 1
        %s361 = scalar_select %p360, %s23, 1
        %p362 = scmp.lt.s32.totalorder %s24, 0
        %s363 = scalar_select %p362, %s24, 0
        %s364 = smul.addr %s361, 4
        %s365 = sadd.s32 %s363, %s364
        %s366 = smul.addr %s365, 4
        %s367 = scalar_lea.vmem %s5, %s366
        %p368 = scmp.lt.s32.totalorder %s23, 1
        %s369 = scalar_select %p368, %s23, 1
        %p370 = scmp.lt.s32.totalorder %s24, 0
        %s371 = scalar_select %p370, %s24, 0
        %s372 = smul.addr %s369, 4
        %s373 = sadd.s32 %s371, %s372
        %s374 = smul.addr %s373, 4
        %s375 = scalar_lea.vmem %s6, %s374
        %v376 = vld [vmem:[%s345] sm:$0xf]
        %v377 = vld [vmem:[%s345 + $0x4] sm:$0xf]
        %v378 = vld [vmem:[%s345 + $0x8] sm:$0xf]
        %v379 = vld [vmem:[%s345 + $0xc] sm:$0xf]
        %v380 = vld [vmem:[#allocation2] sm:$0xf]
        %v381 = vld [vmem:[#allocation2 + $0x4] sm:$0xf]
        %v382 = vld [vmem:[#allocation2 + $0x8] sm:$0xf]
        %v383 = vld [vmem:[#allocation2 + $0xc] sm:$0xf]
        %v384 = vld [vmem:[#allocation2 + $0x10] sm:$0xf]
        %v385 = vld [vmem:[#allocation2 + $0x14] sm:$0xf]
        %v386 = vld [vmem:[#allocation2 + $0x18] sm:$0xf]
        %v387 = vld [vmem:[#allocation2 + $0x1c] sm:$0xf]
        %v388 = vld [vmem:[#allocation2 + $0x20] sm:$0xf]
        %v389 = vld [vmem:[#allocation2 + $0x24] sm:$0xf]
        %v390 = vld [vmem:[#allocation2 + $0x28] sm:$0xf]
        %v391 = vld [vmem:[#allocation2 + $0x2c] sm:$0xf]
        %v392 = vld [vmem:[#allocation2 + $0x30] sm:$0xf]
        %v393 = vld [vmem:[#allocation2 + $0x34] sm:$0xf]
        %v394 = vld [vmem:[#allocation2 + $0x38] sm:$0xf]
        %v395 = vld [vmem:[#allocation2 + $0x3c] sm:$0xf]
        %v396 = vld [vmem:[%s345 + $0x10] sm:$0x1]
        %s397 = scalar_lea.vmem [#allocation2], 64
        %v398 = vld [vmem:[%s397] sm:$0xf]
        %v399 = vld [vmem:[%s397 + $0x4] sm:$0xf]
        %v400 = vld [vmem:[%s397 + $0x8] sm:$0xf]
        %v401 = vld [vmem:[%s397 + $0xc] sm:$0xf]
        %v402 = vld [vmem:[%s397 + $0x10] sm:$0xf]
        %v403 = vld [vmem:[%s397 + $0x14] sm:$0xf]
        %v404 = vld [vmem:[%s397 + $0x18] sm:$0xf]
        %v405 = vld [vmem:[%s397 + $0x1c] sm:$0xf]
        %v406 = vld [vmem:[%s397 + $0x20] sm:$0xf]
        %v407 = vld [vmem:[%s397 + $0x24] sm:$0xf]
        %v408 = vld [vmem:[%s397 + $0x28] sm:$0xf]
        %v409 = vld [vmem:[%s397 + $0x2c] sm:$0xf]
        %v410 = vld [vmem:[%s397 + $0x30] sm:$0xf]
        %v411 = vld [vmem:[%s397 + $0x34] sm:$0xf]
        %v412 = vld [vmem:[%s397 + $0x38] sm:$0xf]
        %v413 = vld [vmem:[%s397 + $0x3c] sm:$0xf]
        %v419 = vunpack.c.l.b16 %v376
        %v420 = vunpack.c.l.b16 %v377
        %v421 = vunpack.c.l.b16 %v378
        %v422 = vunpack.c.l.b16 %v379
        %v423 = vunpack.c.l.b16 %v396
        %v424 = vpack.c.b16 %v420, %v419
        %v425 = vpack.c.b16 %v422, %v421
        %v426 = vpack.c.b16 %v423, %v423
        %vm427 = vsmask.f32 7424
        %v429 = vshrl.u32 %v424, 16
        %v431 = vshll.u32 %v424, 16
        %v433 = vrot.slane %v431, 1
        %v434 = vor.u32 %v429, %v433
        %v436 = vshll.u32 %v425, 16
        %v438 = vrot.slane %v436, 1
        %v439 = vsel %vm427, %v434, %v438
        %v440 = vshrl.u32 %v425, 16
        %v442 = vor.u32 %v440, %v438
        %v444 = vshll.u32 %v426, 16
        %v446 = vrot.slane %v444, 1
        %v447 = vsel %vm427, %v442, %v446
        %v466 = vunpack.c.l.b16 %v398
        %v467 = vunpack.c.l.b16 %v399
        %v468 = vunpack.c.l.b16 %v400
        %v469 = vunpack.c.l.b16 %v401
        %v470 = vunpack.c.l.b16 %v402
        %v471 = vunpack.c.l.b16 %v403
        %v472 = vunpack.c.l.b16 %v404
        %v473 = vunpack.c.l.b16 %v405
        %v474 = vunpack.c.l.b16 %v406
        %v475 = vunpack.c.l.b16 %v407
        %v476 = vunpack.c.l.b16 %v408
        %v477 = vunpack.c.l.b16 %v409
        %v478 = vunpack.c.l.b16 %v410
        %v479 = vunpack.c.l.b16 %v411
        %v480 = vunpack.c.l.b16 %v412
        %v481 = vunpack.c.l.b16 %v413
        %v482 = vpack.c.b16 %v467, %v466
        %v483 = vpack.c.b16 %v469, %v468
        %v484 = vpack.c.b16 %v471, %v470
        %v485 = vpack.c.b16 %v473, %v472
        %v486 = vpack.c.b16 %v475, %v474
        %v487 = vpack.c.b16 %v477, %v476
        %v488 = vpack.c.b16 %v479, %v478
        %v489 = vpack.c.b16 %v481, %v480
        %498 = vmatpush.bf16.msra.mxu0 %v489
        %499 = vmatpush.bf16.msra.mxu0 %v488
        %500 = vmatpush.bf16.msra.mxu0 %v487
        %501 = vmatpush.bf16.msra.mxu0 %v486
        %502 = vmatpush.bf16.msra.mxu0 %v485
        %503 = vmatpush.bf16.msra.mxu0 %v484
        %504 = vmatpush.bf16.msra.mxu0 %v483
        %505 = vmatpush.bf16.msra.mxu0 %v482
        %506 = vmatmul.bf16.gmra.mxu0 %v439
        %v507 = vpop.f32.mrf.mxu0
        %v508 = vadd.f32 0.0, %v507
        %v509 = vpop.f32.mrf.mxu0
        %v510 = vadd.f32 0.0, %v509
        %511 = vmatmul.bf16.gmra.mxu0 %v447
        %v512 = vpop.f32.mrf.mxu0
        %v513 = vadd.f32 0.0, %v512
        %v514 = vpop.f32.mrf.mxu0
        %v515 = vadd.f32 0.0, %v514
        %516 = vdwg.mxu0
        %v535 = vunpack.c.l.b16 %v380
        %v536 = vunpack.c.l.b16 %v381
        %v537 = vunpack.c.l.b16 %v382
        %v538 = vunpack.c.l.b16 %v383
        %v539 = vunpack.c.l.b16 %v384
        %v540 = vunpack.c.l.b16 %v385
        %v541 = vunpack.c.l.b16 %v386
        %v542 = vunpack.c.l.b16 %v387
        %v543 = vunpack.c.l.b16 %v388
        %v544 = vunpack.c.l.b16 %v389
        %v545 = vunpack.c.l.b16 %v390
        %v546 = vunpack.c.l.b16 %v391
        %v547 = vunpack.c.l.b16 %v392
        %v548 = vunpack.c.l.b16 %v393
        %v549 = vunpack.c.l.b16 %v394
        %v550 = vunpack.c.l.b16 %v395
        %v551 = vpack.c.b16 %v536, %v535
        %v552 = vpack.c.b16 %v538, %v537
        %v553 = vpack.c.b16 %v540, %v539
        %v554 = vpack.c.b16 %v542, %v541
        %v555 = vpack.c.b16 %v544, %v543
        %v556 = vpack.c.b16 %v546, %v545
        %v557 = vpack.c.b16 %v548, %v547
        %v558 = vpack.c.b16 %v550, %v549
        %567 = vmatpush.bf16.msra.mxu0 %v558
        %568 = vmatpush.bf16.msra.mxu0 %v557
        %569 = vmatpush.bf16.msra.mxu0 %v556
        %570 = vmatpush.bf16.msra.mxu0 %v555
        %571 = vmatpush.bf16.msra.mxu0 %v554
        %572 = vmatpush.bf16.msra.mxu0 %v553
        %573 = vmatpush.bf16.msra.mxu0 %v552
        %574 = vmatpush.bf16.msra.mxu0 %v551
        %575 = vmatmul.bf16.gmra.mxu0 %v424
        %v576 = vpop.f32.mrf.mxu0
        %v577 = vadd.f32 %v508, %v576
        %v578 = vpop.f32.mrf.mxu0
        %v579 = vadd.f32 %v510, %v578
        %580 = vmatmul.bf16.gmra.mxu0 %v425
        %v581 = vpop.f32.mrf.mxu0
        %v582 = vadd.f32 %v513, %v581
        %v583 = vpop.f32.mrf.mxu0
        %v584 = vadd.f32 %v515, %v583
        %585 = vdwg.mxu0
        %v586 = vld [vmem:[%s345] sm:$0xe]
        %s587 = scalar_lea.vmem [#allocation2], 128
        %v588 = vld [vmem:[%s587] sm:$0xf]
        %v589 = vld [vmem:[%s587 + $0x4] sm:$0xf]
        %v590 = vld [vmem:[%s587 + $0x8] sm:$0xf]
        %v591 = vld [vmem:[%s587 + $0xc] sm:$0xf]
        %v592 = vld [vmem:[%s587 + $0x10] sm:$0xf]
        %v593 = vld [vmem:[%s587 + $0x14] sm:$0xf]
        %v594 = vld [vmem:[%s587 + $0x18] sm:$0xf]
        %v595 = vld [vmem:[%s587 + $0x1c] sm:$0xf]
        %v596 = vld [vmem:[%s587 + $0x20] sm:$0xf]
        %v597 = vld [vmem:[%s587 + $0x24] sm:$0xf]
        %v598 = vld [vmem:[%s587 + $0x28] sm:$0xf]
        %v599 = vld [vmem:[%s587 + $0x2c] sm:$0xf]
        %v600 = vld [vmem:[%s587 + $0x30] sm:$0xf]
        %v601 = vld [vmem:[%s587 + $0x34] sm:$0xf]
        %v602 = vld [vmem:[%s587 + $0x38] sm:$0xf]
        %v603 = vld [vmem:[%s587 + $0x3c] sm:$0xf]
        %v605 = vunpack.c.l.b16 %v586
        %v606 = vpack.c.b16 %v420, %v605
        %vm607 = vcmask 1046528
        %v608 = vrot.slane %v606, 1
        %v609 = vrot.slane %v425, 1
        %v610 = vsel %vm607, %v608, %v609
        %v611 = vrot.slane %v426, 1
        %v612 = vsel %vm607, %v609, %v611
        %v631 = vunpack.c.l.b16 %v588
        %v632 = vunpack.c.l.b16 %v589
        %v633 = vunpack.c.l.b16 %v590
        %v634 = vunpack.c.l.b16 %v591
        %v635 = vunpack.c.l.b16 %v592
        %v636 = vunpack.c.l.b16 %v593
        %v637 = vunpack.c.l.b16 %v594
        %v638 = vunpack.c.l.b16 %v595
        %v639 = vunpack.c.l.b16 %v596
        %v640 = vunpack.c.l.b16 %v597
        %v641 = vunpack.c.l.b16 %v598
        %v642 = vunpack.c.l.b16 %v599
        %v643 = vunpack.c.l.b16 %v600
        %v644 = vunpack.c.l.b16 %v601
        %v645 = vunpack.c.l.b16 %v602
        %v646 = vunpack.c.l.b16 %v603
        %v647 = vpack.c.b16 %v632, %v631
        %v648 = vpack.c.b16 %v634, %v633
        %v649 = vpack.c.b16 %v636, %v635
        %v650 = vpack.c.b16 %v638, %v637
        %v651 = vpack.c.b16 %v640, %v639
        %v652 = vpack.c.b16 %v642, %v641
        %v653 = vpack.c.b16 %v644, %v643
        %v654 = vpack.c.b16 %v646, %v645
        %663 = vmatpush.bf16.msra.mxu0 %v654
        %664 = vmatpush.bf16.msra.mxu0 %v653
        %665 = vmatpush.bf16.msra.mxu0 %v652
        %666 = vmatpush.bf16.msra.mxu0 %v651
        %667 = vmatpush.bf16.msra.mxu0 %v650
        %668 = vmatpush.bf16.msra.mxu0 %v649
        %669 = vmatpush.bf16.msra.mxu0 %v648
        %670 = vmatpush.bf16.msra.mxu0 %v647
        %671 = vmatmul.bf16.gmra.mxu0 %v610
        %v672 = vpop.f32.mrf.mxu0
        %v673 = vadd.f32 0.0, %v672
        %v674 = vpop.f32.mrf.mxu0
        %v675 = vadd.f32 0.0, %v674
        %676 = vmatmul.bf16.gmra.mxu0 %v612
        %v677 = vpop.f32.mrf.mxu0
        %v678 = vadd.f32 0.0, %v677
        %v679 = vpop.f32.mrf.mxu0
        %v680 = vadd.f32 0.0, %v679
        %681 = vdwg.mxu0
        %v682 = vadd.f32 %v577, %v673
        %v683 = vadd.f32 %v579, %v675
        %v684 = vadd.f32 %v582, %v678
        %v685 = vadd.f32 %v584, %v680
        %v686 = vld [vmem:[%s345 + $0x10] sm:$0x3]
        %s687 = scalar_lea.vmem [#allocation2], 192
        %v688 = vld [vmem:[%s687] sm:$0xf]
        %v689 = vld [vmem:[%s687 + $0x4] sm:$0xf]
        %v690 = vld [vmem:[%s687 + $0x8] sm:$0xf]
        %v691 = vld [vmem:[%s687 + $0xc] sm:$0xf]
        %v692 = vld [vmem:[%s687 + $0x10] sm:$0xf]
        %v693 = vld [vmem:[%s687 + $0x14] sm:$0xf]
        %v694 = vld [vmem:[%s687 + $0x18] sm:$0xf]
        %v695 = vld [vmem:[%s687 + $0x1c] sm:$0xf]
        %v696 = vld [vmem:[%s687 + $0x20] sm:$0xf]
        %v697 = vld [vmem:[%s687 + $0x24] sm:$0xf]
        %v698 = vld [vmem:[%s687 + $0x28] sm:$0xf]
        %v699 = vld [vmem:[%s687 + $0x2c] sm:$0xf]
        %v700 = vld [vmem:[%s687 + $0x30] sm:$0xf]
        %v701 = vld [vmem:[%s687 + $0x34] sm:$0xf]
        %v702 = vld [vmem:[%s687 + $0x38] sm:$0xf]
        %v703 = vld [vmem:[%s687 + $0x3c] sm:$0xf]
        %v705 = vunpack.c.l.b16 %v686
        %v706 = vpack.c.b16 %v705, %v705
        %vm707 = vsmask.f32 6400
        %v709 = vshrl.u32 %v606, 16
        %v711 = vrot.slane %v709, 1
        %v712 = vshll.u32 %v606, 16
        %v714 = vrot.slane %v712, 2
        %v715 = vor.u32 %v711, %v714
        %v716 = vrot.slane %v440, 1
        %v717 = vrot.slane %v436, 2
        %v718 = vor.u32 %v716, %v717
        %v719 = vsel %vm707, %v715, %v718
        %v721 = vshrl.u32 %v706, 16
        %v723 = vrot.slane %v721, 1
        %v724 = vshll.u32 %v706, 16
        %v726 = vrot.slane %v724, 2
        %v727 = vor.u32 %v723, %v726
        %v728 = vsel %vm707, %v718, %v727
        %v747 = vunpack.c.l.b16 %v688
        %v748 = vunpack.c.l.b16 %v689
        %v749 = vunpack.c.l.b16 %v690
        %v750 = vunpack.c.l.b16 %v691
        %v751 = vunpack.c.l.b16 %v692
        %v752 = vunpack.c.l.b16 %v693
        %v753 = vunpack.c.l.b16 %v694
        %v754 = vunpack.c.l.b16 %v695
        %v755 = vunpack.c.l.b16 %v696
        %v756 = vunpack.c.l.b16 %v697
        %v757 = vunpack.c.l.b16 %v698
        %v758 = vunpack.c.l.b16 %v699
        %v759 = vunpack.c.l.b16 %v700
        %v760 = vunpack.c.l.b16 %v701
        %v761 = vunpack.c.l.b16 %v702
        %v762 = vunpack.c.l.b16 %v703
        %v763 = vpack.c.b16 %v748, %v747
        %v764 = vpack.c.b16 %v750, %v749
        %v765 = vpack.c.b16 %v752, %v751
        %v766 = vpack.c.b16 %v754, %v753
        %v767 = vpack.c.b16 %v756, %v755
        %v768 = vpack.c.b16 %v758, %v757
        %v769 = vpack.c.b16 %v760, %v759
        %v770 = vpack.c.b16 %v762, %v761
        %779 = vmatpush.bf16.msra.mxu0 %v770
        %780 = vmatpush.bf16.msra.mxu0 %v769
        %781 = vmatpush.bf16.msra.mxu0 %v768
        %782 = vmatpush.bf16.msra.mxu0 %v767
        %783 = vmatpush.bf16.msra.mxu0 %v766
        %784 = vmatpush.bf16.msra.mxu0 %v765
        %785 = vmatpush.bf16.msra.mxu0 %v764
        %786 = vmatpush.bf16.msra.mxu0 %v763
        %787 = vmatmul.bf16.gmra.mxu0 %v719
        %v788 = vpop.f32.mrf.mxu0
        %v789 = vadd.f32 0.0, %v788
        %v790 = vpop.f32.mrf.mxu0
        %v791 = vadd.f32 0.0, %v790
        %792 = vmatmul.bf16.gmra.mxu0 %v728
        %v793 = vpop.f32.mrf.mxu0
        %v794 = vadd.f32 0.0, %v793
        %v795 = vpop.f32.mrf.mxu0
        %v796 = vadd.f32 0.0, %v795
        %797 = vdwg.mxu0
        %v798 = vadd.f32 %v682, %v789
        %v799 = vadd.f32 %v683, %v791
        %v800 = vadd.f32 %v684, %v794
        %v801 = vadd.f32 %v685, %v796
        %v802 = vld [vmem:[%s345] sm:$0xc]
        %s803 = scalar_lea.vmem [#allocation2], 256
        %v804 = vld [vmem:[%s803] sm:$0xf]
        %v805 = vld [vmem:[%s803 + $0x4] sm:$0xf]
        %v806 = vld [vmem:[%s803 + $0x8] sm:$0xf]
        %v807 = vld [vmem:[%s803 + $0xc] sm:$0xf]
        %v808 = vld [vmem:[%s803 + $0x10] sm:$0xf]
        %v809 = vld [vmem:[%s803 + $0x14] sm:$0xf]
        %v810 = vld [vmem:[%s803 + $0x18] sm:$0xf]
        %v811 = vld [vmem:[%s803 + $0x1c] sm:$0xf]
        %v812 = vld [vmem:[%s803 + $0x20] sm:$0xf]
        %v813 = vld [vmem:[%s803 + $0x24] sm:$0xf]
        %v814 = vld [vmem:[%s803 + $0x28] sm:$0xf]
        %v815 = vld [vmem:[%s803 + $0x2c] sm:$0xf]
        %v816 = vld [vmem:[%s803 + $0x30] sm:$0xf]
        %v817 = vld [vmem:[%s803 + $0x34] sm:$0xf]
        %v818 = vld [vmem:[%s803 + $0x38] sm:$0xf]
        %v819 = vld [vmem:[%s803 + $0x3c] sm:$0xf]
        %v821 = vunpack.c.l.b16 %v802
        %v822 = vpack.c.b16 %v420, %v821
        %vm823 = vcmask 1045504
        %v824 = vrot.slane %v822, 2
        %v825 = vrot.slane %v425, 2
        %v826 = vsel %vm823, %v824, %v825
        %v827 = vrot.slane %v706, 2
        %v828 = vsel %vm823, %v825, %v827
        %v847 = vunpack.c.l.b16 %v804
        %v848 = vunpack.c.l.b16 %v805
        %v849 = vunpack.c.l.b16 %v806
        %v850 = vunpack.c.l.b16 %v807
        %v851 = vunpack.c.l.b16 %v808
        %v852 = vunpack.c.l.b16 %v809
        %v853 = vunpack.c.l.b16 %v810
        %v854 = vunpack.c.l.b16 %v811
        %v855 = vunpack.c.l.b16 %v812
        %v856 = vunpack.c.l.b16 %v813
        %v857 = vunpack.c.l.b16 %v814
        %v858 = vunpack.c.l.b16 %v815
        %v859 = vunpack.c.l.b16 %v816
        %v860 = vunpack.c.l.b16 %v817
        %v861 = vunpack.c.l.b16 %v818
        %v862 = vunpack.c.l.b16 %v819
        %v863 = vpack.c.b16 %v848, %v847
        %v864 = vpack.c.b16 %v850, %v849
        %v865 = vpack.c.b16 %v852, %v851
        %v866 = vpack.c.b16 %v854, %v853
        %v867 = vpack.c.b16 %v856, %v855
        %v868 = vpack.c.b16 %v858, %v857
        %v869 = vpack.c.b16 %v860, %v859
        %v870 = vpack.c.b16 %v862, %v861
        %879 = vmatpush.bf16.msra.mxu0 %v870
        %880 = vmatpush.bf16.msra.mxu0 %v869
        %881 = vmatpush.bf16.msra.mxu0 %v868
        %882 = vmatpush.bf16.msra.mxu0 %v867
        %883 = vmatpush.bf16.msra.mxu0 %v866
        %884 = vmatpush.bf16.msra.mxu0 %v865
        %885 = vmatpush.bf16.msra.mxu0 %v864
        %886 = vmatpush.bf16.msra.mxu0 %v863
        %887 = vmatmul.bf16.gmra.mxu0 %v826
        %v888 = vpop.f32.mrf.mxu0
        %v889 = vadd.f32 0.0, %v888
        %v890 = vpop.f32.mrf.mxu0
        %v891 = vadd.f32 0.0, %v890
        %892 = vmatmul.bf16.gmra.mxu0 %v828
        %v893 = vpop.f32.mrf.mxu0
        %v894 = vadd.f32 0.0, %v893
        %v895 = vpop.f32.mrf.mxu0
        %v896 = vadd.f32 0.0, %v895
        %897 = vdwg.mxu0
        %v898 = vadd.f32 %v798, %v889
        %v899 = vadd.f32 %v799, %v891
        %v900 = vadd.f32 %v800, %v894
        %v901 = vadd.f32 %v801, %v896
        %v902 = vld [vmem:[%s345 + $0x10] sm:$0x7]
        %s903 = scalar_lea.vmem [#allocation2], 320
        %v904 = vld [vmem:[%s903] sm:$0xf]
        %v905 = vld [vmem:[%s903 + $0x4] sm:$0xf]
        %v906 = vld [vmem:[%s903 + $0x8] sm:$0xf]
        %v907 = vld [vmem:[%s903 + $0xc] sm:$0xf]
        %v908 = vld [vmem:[%s903 + $0x10] sm:$0xf]
        %v909 = vld [vmem:[%s903 + $0x14] sm:$0xf]
        %v910 = vld [vmem:[%s903 + $0x18] sm:$0xf]
        %v911 = vld [vmem:[%s903 + $0x1c] sm:$0xf]
        %v912 = vld [vmem:[%s903 + $0x20] sm:$0xf]
        %v913 = vld [vmem:[%s903 + $0x24] sm:$0xf]
        %v914 = vld [vmem:[%s903 + $0x28] sm:$0xf]
        %v915 = vld [vmem:[%s903 + $0x2c] sm:$0xf]
        %v916 = vld [vmem:[%s903 + $0x30] sm:$0xf]
        %v917 = vld [vmem:[%s903 + $0x34] sm:$0xf]
        %v918 = vld [vmem:[%s903 + $0x38] sm:$0xf]
        %v919 = vld [vmem:[%s903 + $0x3c] sm:$0xf]
        %v921 = vunpack.c.l.b16 %v902
        %v922 = vpack.c.b16 %v921, %v921
        %vm923 = vsmask.f32 5376
        %v925 = vshrl.u32 %v822, 16
        %v927 = vrot.slane %v925, 2
        %v928 = vshll.u32 %v822, 16
        %v930 = vrot.slane %v928, 3
        %v931 = vor.u32 %v927, %v930
        %v932 = vrot.slane %v440, 2
        %v933 = vrot.slane %v436, 3
        %v934 = vor.u32 %v932, %v933
        %v935 = vsel %vm923, %v931, %v934
        %v937 = vshrl.u32 %v922, 16
        %v939 = vrot.slane %v937, 2
        %v940 = vshll.u32 %v922, 16
        %v942 = vrot.slane %v940, 3
        %v943 = vor.u32 %v939, %v942
        %v944 = vsel %vm923, %v934, %v943
        %v963 = vunpack.c.l.b16 %v904
        %v964 = vunpack.c.l.b16 %v905
        %v965 = vunpack.c.l.b16 %v906
        %v966 = vunpack.c.l.b16 %v907
        %v967 = vunpack.c.l.b16 %v908
        %v968 = vunpack.c.l.b16 %v909
        %v969 = vunpack.c.l.b16 %v910
        %v970 = vunpack.c.l.b16 %v911
        %v971 = vunpack.c.l.b16 %v912
        %v972 = vunpack.c.l.b16 %v913
        %v973 = vunpack.c.l.b16 %v914
        %v974 = vunpack.c.l.b16 %v915
        %v975 = vunpack.c.l.b16 %v916
        %v976 = vunpack.c.l.b16 %v917
        %v977 = vunpack.c.l.b16 %v918
        %v978 = vunpack.c.l.b16 %v919
        %v979 = vpack.c.b16 %v964, %v963
        %v980 = vpack.c.b16 %v966, %v965
        %v981 = vpack.c.b16 %v968, %v967
        %v982 = vpack.c.b16 %v970, %v969
        %v983 = vpack.c.b16 %v972, %v971
        %v984 = vpack.c.b16 %v974, %v973
        %v985 = vpack.c.b16 %v976, %v975
        %v986 = vpack.c.b16 %v978, %v977
        %995 = vmatpush.bf16.msra.mxu0 %v986
        %996 = vmatpush.bf16.msra.mxu0 %v985
        %997 = vmatpush.bf16.msra.mxu0 %v984
        %998 = vmatpush.bf16.msra.mxu0 %v983
        %999 = vmatpush.bf16.msra.mxu0 %v982
        %1000 = vmatpush.bf16.msra.mxu0 %v981
        %1001 = vmatpush.bf16.msra.mxu0 %v980
        %1002 = vmatpush.bf16.msra.mxu0 %v979
        %1003 = vmatmul.bf16.gmra.mxu0 %v935
        %v1004 = vpop.f32.mrf.mxu0
        %v1005 = vadd.f32 0.0, %v1004
        %v1006 = vpop.f32.mrf.mxu0
        %v1007 = vadd.f32 0.0, %v1006
        %1008 = vmatmul.bf16.gmra.mxu0 %v944
        %v1009 = vpop.f32.mrf.mxu0
        %v1010 = vadd.f32 0.0, %v1009
        %v1011 = vpop.f32.mrf.mxu0
        %v1012 = vadd.f32 0.0, %v1011
        %1013 = vdwg.mxu0
        %v1014 = vadd.f32 %v898, %v1005
        %v1015 = vadd.f32 %v899, %v1007
        %v1016 = vadd.f32 %v900, %v1010
        %v1017 = vadd.f32 %v901, %v1012
        %v1018 = vld [vmem:[%s345] sm:$0x8]
        %s1019 = scalar_lea.vmem [#allocation2], 384
        %v1020 = vld [vmem:[%s1019] sm:$0xf]
        %v1021 = vld [vmem:[%s1019 + $0x4] sm:$0xf]
        %v1022 = vld [vmem:[%s1019 + $0x8] sm:$0xf]
        %v1023 = vld [vmem:[%s1019 + $0xc] sm:$0xf]
        %v1024 = vld [vmem:[%s1019 + $0x10] sm:$0xf]
        %v1025 = vld [vmem:[%s1019 + $0x14] sm:$0xf]
        %v1026 = vld [vmem:[%s1019 + $0x18] sm:$0xf]
        %v1027 = vld [vmem:[%s1019 + $0x1c] sm:$0xf]
        %v1028 = vld [vmem:[%s1019 + $0x20] sm:$0xf]
        %v1029 = vld [vmem:[%s1019 + $0x24] sm:$0xf]
        %v1030 = vld [vmem:[%s1019 + $0x28] sm:$0xf]
        %v1031 = vld [vmem:[%s1019 + $0x2c] sm:$0xf]
        %v1032 = vld [vmem:[%s1019 + $0x30] sm:$0xf]
        %v1033 = vld [vmem:[%s1019 + $0x34] sm:$0xf]
        %v1034 = vld [vmem:[%s1019 + $0x38] sm:$0xf]
        %v1035 = vld [vmem:[%s1019 + $0x3c] sm:$0xf]
        %v1037 = vunpack.c.l.b16 %v1018
        %v1038 = vpack.c.b16 %v420, %v1037
        %vm1039 = vcmask 1044480
        %v1040 = vrot.slane %v1038, 3
        %v1041 = vrot.slane %v425, 3
        %v1042 = vsel %vm1039, %v1040, %v1041
        %v1043 = vrot.slane %v922, 3
        %v1044 = vsel %vm1039, %v1041, %v1043
        %v1063 = vunpack.c.l.b16 %v1020
        %v1064 = vunpack.c.l.b16 %v1021
        %v1065 = vunpack.c.l.b16 %v1022
        %v1066 = vunpack.c.l.b16 %v1023
        %v1067 = vunpack.c.l.b16 %v1024
        %v1068 = vunpack.c.l.b16 %v1025
        %v1069 = vunpack.c.l.b16 %v1026
        %v1070 = vunpack.c.l.b16 %v1027
        %v1071 = vunpack.c.l.b16 %v1028
        %v1072 = vunpack.c.l.b16 %v1029
        %v1073 = vunpack.c.l.b16 %v1030
        %v1074 = vunpack.c.l.b16 %v1031
        %v1075 = vunpack.c.l.b16 %v1032
        %v1076 = vunpack.c.l.b16 %v1033
        %v1077 = vunpack.c.l.b16 %v1034
        %v1078 = vunpack.c.l.b16 %v1035
        %v1079 = vpack.c.b16 %v1064, %v1063
        %v1080 = vpack.c.b16 %v1066, %v1065
        %v1081 = vpack.c.b16 %v1068, %v1067
        %v1082 = vpack.c.b16 %v1070, %v1069
        %v1083 = vpack.c.b16 %v1072, %v1071
        %v1084 = vpack.c.b16 %v1074, %v1073
        %v1085 = vpack.c.b16 %v1076, %v1075
        %v1086 = vpack.c.b16 %v1078, %v1077
        %1095 = vmatpush.bf16.msra.mxu0 %v1086
        %1096 = vmatpush.bf16.msra.mxu0 %v1085
        %1097 = vmatpush.bf16.msra.mxu0 %v1084
        %1098 = vmatpush.bf16.msra.mxu0 %v1083
        %1099 = vmatpush.bf16.msra.mxu0 %v1082
        %1100 = vmatpush.bf16.msra.mxu0 %v1081
        %1101 = vmatpush.bf16.msra.mxu0 %v1080
        %1102 = vmatpush.bf16.msra.mxu0 %v1079
        %1103 = vmatmul.bf16.gmra.mxu0 %v1042
        %v1104 = vpop.f32.mrf.mxu0
        %v1105 = vadd.f32 0.0, %v1104
        %v1106 = vpop.f32.mrf.mxu0
        %v1107 = vadd.f32 0.0, %v1106
        %1108 = vmatmul.bf16.gmra.mxu0 %v1044
        %v1109 = vpop.f32.mrf.mxu0
        %v1110 = vadd.f32 0.0, %v1109
        %v1111 = vpop.f32.mrf.mxu0
        %v1112 = vadd.f32 0.0, %v1111
        %1113 = vdwg.mxu0
        %v1114 = vadd.f32 %v1014, %v1105
        %v1115 = vadd.f32 %v1015, %v1107
        %v1116 = vadd.f32 %v1016, %v1110
        %v1117 = vadd.f32 %v1017, %v1112
        %v1118 = vld [vmem:[%s345 + $0x10] sm:$0xf]
        %s1119 = scalar_lea.vmem [#allocation2], 448
        %v1120 = vld [vmem:[%s1119] sm:$0xf]
        %v1121 = vld [vmem:[%s1119 + $0x4] sm:$0xf]
        %v1122 = vld [vmem:[%s1119 + $0x8] sm:$0xf]
        %v1123 = vld [vmem:[%s1119 + $0xc] sm:$0xf]
        %v1124 = vld [vmem:[%s1119 + $0x10] sm:$0xf]
        %v1125 = vld [vmem:[%s1119 + $0x14] sm:$0xf]
        %v1126 = vld [vmem:[%s1119 + $0x18] sm:$0xf]
        %v1127 = vld [vmem:[%s1119 + $0x1c] sm:$0xf]
        %v1128 = vld [vmem:[%s1119 + $0x20] sm:$0xf]
        %v1129 = vld [vmem:[%s1119 + $0x24] sm:$0xf]
        %v1130 = vld [vmem:[%s1119 + $0x28] sm:$0xf]
        %v1131 = vld [vmem:[%s1119 + $0x2c] sm:$0xf]
        %v1132 = vld [vmem:[%s1119 + $0x30] sm:$0xf]
        %v1133 = vld [vmem:[%s1119 + $0x34] sm:$0xf]
        %v1134 = vld [vmem:[%s1119 + $0x38] sm:$0xf]
        %v1135 = vld [vmem:[%s1119 + $0x3c] sm:$0xf]
        %v1137 = vunpack.c.l.b16 %v1118
        %v1138 = vpack.c.b16 %v1137, %v1137
        %vm1139 = vsmask.f32 4352
        %v1141 = vshrl.u32 %v1038, 16
        %v1143 = vrot.slane %v1141, 3
        %v1144 = vshll.u32 %v1038, 16
        %v1146 = vrot.slane %v1144, 4
        %v1147 = vor.u32 %v1143, %v1146
        %v1148 = vrot.slane %v440, 3
        %v1149 = vrot.slane %v436, 4
        %v1150 = vor.u32 %v1148, %v1149
        %v1151 = vsel %vm1139, %v1147, %v1150
        %v1153 = vshrl.u32 %v1138, 16
        %v1155 = vrot.slane %v1153, 3
        %v1156 = vshll.u32 %v1138, 16
        %v1158 = vrot.slane %v1156, 4
        %v1159 = vor.u32 %v1155, %v1158
        %v1160 = vsel %vm1139, %v1150, %v1159
        %v1179 = vunpack.c.l.b16 %v1120
        %v1180 = vunpack.c.l.b16 %v1121
        %v1181 = vunpack.c.l.b16 %v1122
        %v1182 = vunpack.c.l.b16 %v1123
        %v1183 = vunpack.c.l.b16 %v1124
        %v1184 = vunpack.c.l.b16 %v1125
        %v1185 = vunpack.c.l.b16 %v1126
        %v1186 = vunpack.c.l.b16 %v1127
        %v1187 = vunpack.c.l.b16 %v1128
        %v1188 = vunpack.c.l.b16 %v1129
        %v1189 = vunpack.c.l.b16 %v1130
        %v1190 = vunpack.c.l.b16 %v1131
        %v1191 = vunpack.c.l.b16 %v1132
        %v1192 = vunpack.c.l.b16 %v1133
        %v1193 = vunpack.c.l.b16 %v1134
        %v1194 = vunpack.c.l.b16 %v1135
        %v1195 = vpack.c.b16 %v1180, %v1179
        %v1196 = vpack.c.b16 %v1182, %v1181
        %v1197 = vpack.c.b16 %v1184, %v1183
        %v1198 = vpack.c.b16 %v1186, %v1185
        %v1199 = vpack.c.b16 %v1188, %v1187
        %v1200 = vpack.c.b16 %v1190, %v1189
        %v1201 = vpack.c.b16 %v1192, %v1191
        %v1202 = vpack.c.b16 %v1194, %v1193
        %1211 = vmatpush.bf16.msra.mxu0 %v1202
        %1212 = vmatpush.bf16.msra.mxu0 %v1201
        %1213 = vmatpush.bf16.msra.mxu0 %v1200
        %1214 = vmatpush.bf16.msra.mxu0 %v1199
        %1215 = vmatpush.bf16.msra.mxu0 %v1198
        %1216 = vmatpush.bf16.msra.mxu0 %v1197
        %1217 = vmatpush.bf16.msra.mxu0 %v1196
        %1218 = vmatpush.bf16.msra.mxu0 %v1195
        %1219 = vmatmul.bf16.gmra.mxu0 %v1151
        %v1220 = vpop.f32.mrf.mxu0
        %v1221 = vadd.f32 0.0, %v1220
        %v1222 = vpop.f32.mrf.mxu0
        %v1223 = vadd.f32 0.0, %v1222
        %1224 = vmatmul.bf16.gmra.mxu0 %v1160
        %v1225 = vpop.f32.mrf.mxu0
        %v1226 = vadd.f32 0.0, %v1225
        %v1227 = vpop.f32.mrf.mxu0
        %v1228 = vadd.f32 0.0, %v1227
        %1229 = vdwg.mxu0
        %v1230 = vadd.f32 %v1114, %v1221
        %v1231 = vadd.f32 %v1115, %v1223
        %v1232 = vadd.f32 %v1116, %v1226
        %v1233 = vadd.f32 %v1117, %v1228
        %s1234 = scalar_lea.vmem [#allocation2], 512
        %v1235 = vld [vmem:[%s1234] sm:$0xf]
        %v1236 = vld [vmem:[%s1234 + $0x4] sm:$0xf]
        %v1237 = vld [vmem:[%s1234 + $0x8] sm:$0xf]
        %v1238 = vld [vmem:[%s1234 + $0xc] sm:$0xf]
        %v1239 = vld [vmem:[%s1234 + $0x10] sm:$0xf]
        %v1240 = vld [vmem:[%s1234 + $0x14] sm:$0xf]
        %v1241 = vld [vmem:[%s1234 + $0x18] sm:$0xf]
        %v1242 = vld [vmem:[%s1234 + $0x1c] sm:$0xf]
        %v1243 = vld [vmem:[%s1234 + $0x20] sm:$0xf]
        %v1244 = vld [vmem:[%s1234 + $0x24] sm:$0xf]
        %v1245 = vld [vmem:[%s1234 + $0x28] sm:$0xf]
        %v1246 = vld [vmem:[%s1234 + $0x2c] sm:$0xf]
        %v1247 = vld [vmem:[%s1234 + $0x30] sm:$0xf]
        %v1248 = vld [vmem:[%s1234 + $0x34] sm:$0xf]
        %v1249 = vld [vmem:[%s1234 + $0x38] sm:$0xf]
        %v1250 = vld [vmem:[%s1234 + $0x3c] sm:$0xf]
        %v1251 = vpack.c.b16 %v421, %v420
        %v1252 = vpack.c.b16 %v1137, %v422
        %v1271 = vunpack.c.l.b16 %v1235
        %v1272 = vunpack.c.l.b16 %v1236
        %v1273 = vunpack.c.l.b16 %v1237
        %v1274 = vunpack.c.l.b16 %v1238
        %v1275 = vunpack.c.l.b16 %v1239
        %v1276 = vunpack.c.l.b16 %v1240
        %v1277 = vunpack.c.l.b16 %v1241
        %v1278 = vunpack.c.l.b16 %v1242
        %v1279 = vunpack.c.l.b16 %v1243
        %v1280 = vunpack.c.l.b16 %v1244
        %v1281 = vunpack.c.l.b16 %v1245
        %v1282 = vunpack.c.l.b16 %v1246
        %v1283 = vunpack.c.l.b16 %v1247
        %v1284 = vunpack.c.l.b16 %v1248
        %v1285 = vunpack.c.l.b16 %v1249
        %v1286 = vunpack.c.l.b16 %v1250
        %v1287 = vpack.c.b16 %v1272, %v1271
        %v1288 = vpack.c.b16 %v1274, %v1273
        %v1289 = vpack.c.b16 %v1276, %v1275
        %v1290 = vpack.c.b16 %v1278, %v1277
        %v1291 = vpack.c.b16 %v1280, %v1279
        %v1292 = vpack.c.b16 %v1282, %v1281
        %v1293 = vpack.c.b16 %v1284, %v1283
        %v1294 = vpack.c.b16 %v1286, %v1285
        %1303 = vmatpush.bf16.msra.mxu0 %v1294
        %1304 = vmatpush.bf16.msra.mxu0 %v1293
        %1305 = vmatpush.bf16.msra.mxu0 %v1292
        %1306 = vmatpush.bf16.msra.mxu0 %v1291
        %1307 = vmatpush.bf16.msra.mxu0 %v1290
        %1308 = vmatpush.bf16.msra.mxu0 %v1289
        %1309 = vmatpush.bf16.msra.mxu0 %v1288
        %1310 = vmatpush.bf16.msra.mxu0 %v1287
        %1311 = vmatmul.bf16.gmra.mxu0 %v1251
        %v1312 = vpop.f32.mrf.mxu0
        %v1313 = vadd.f32 0.0, %v1312
        %v1314 = vpop.f32.mrf.mxu0
        %v1315 = vadd.f32 0.0, %v1314
        %1316 = vmatmul.bf16.gmra.mxu0 %v1252
        %v1317 = vpop.f32.mrf.mxu0
        %v1318 = vadd.f32 0.0, %v1317
        %v1319 = vpop.f32.mrf.mxu0
        %v1320 = vadd.f32 0.0, %v1319
        %1321 = vdwg.mxu0
        %v1322 = vadd.f32 %v1230, %v1313
        %v1323 = vadd.f32 %v1231, %v1315
        %v1324 = vadd.f32 %v1232, %v1318
        %v1325 = vadd.f32 %v1233, %v1320
        %v1326 = vld [vmem:[%s345 + $0x4] sm:$0xf]
        %v1327 = vld [vmem:[%s345 + $0x8] sm:$0xf]
        %v1328 = vld [vmem:[%s345 + $0xc] sm:$0xf]
        %v1329 = vld [vmem:[%s345 + $0x10] sm:$0xf]
        %v1330 = vld [vmem:[%s345 + $0x14] sm:$0x1]
        %s1331 = scalar_lea.vmem [#allocation2], 576
        %v1332 = vld [vmem:[%s1331] sm:$0xf]
        %v1333 = vld [vmem:[%s1331 + $0x4] sm:$0xf]
        %v1334 = vld [vmem:[%s1331 + $0x8] sm:$0xf]
        %v1335 = vld [vmem:[%s1331 + $0xc] sm:$0xf]
        %v1336 = vld [vmem:[%s1331 + $0x10] sm:$0xf]
        %v1337 = vld [vmem:[%s1331 + $0x14] sm:$0xf]
        %v1338 = vld [vmem:[%s1331 + $0x18] sm:$0xf]
        %v1339 = vld [vmem:[%s1331 + $0x1c] sm:$0xf]
        %v1340 = vld [vmem:[%s1331 + $0x20] sm:$0xf]
        %v1341 = vld [vmem:[%s1331 + $0x24] sm:$0xf]
        %v1342 = vld [vmem:[%s1331 + $0x28] sm:$0xf]
        %v1343 = vld [vmem:[%s1331 + $0x2c] sm:$0xf]
        %v1344 = vld [vmem:[%s1331 + $0x30] sm:$0xf]
        %v1345 = vld [vmem:[%s1331 + $0x34] sm:$0xf]
        %v1346 = vld [vmem:[%s1331 + $0x38] sm:$0xf]
        %v1347 = vld [vmem:[%s1331 + $0x3c] sm:$0xf]
        %v1353 = vunpack.c.l.b16 %v1326
        %v1354 = vunpack.c.l.b16 %v1327
        %v1355 = vunpack.c.l.b16 %v1328
        %v1356 = vunpack.c.l.b16 %v1329
        %v1357 = vunpack.c.l.b16 %v1330
        %v1358 = vpack.c.b16 %v1354, %v1353
        %v1359 = vpack.c.b16 %v1356, %v1355
        %v1360 = vpack.c.b16 %v1357, %v1357
        %v1362 = vshrl.u32 %v1358, 16
        %v1364 = vshll.u32 %v1358, 16
        %v1366 = vrot.slane %v1364, 1
        %v1367 = vor.u32 %v1362, %v1366
        %v1369 = vshll.u32 %v1359, 16
        %v1371 = vrot.slane %v1369, 1
        %v1372 = vsel %vm427, %v1367, %v1371
        %v1373 = vshrl.u32 %v1359, 16
        %v1375 = vor.u32 %v1373, %v1371
        %v1377 = vshll.u32 %v1360, 16
        %v1379 = vrot.slane %v1377, 1
        %v1380 = vsel %vm427, %v1375, %v1379
        %v1399 = vunpack.c.l.b16 %v1332
        %v1400 = vunpack.c.l.b16 %v1333
        %v1401 = vunpack.c.l.b16 %v1334
        %v1402 = vunpack.c.l.b16 %v1335
        %v1403 = vunpack.c.l.b16 %v1336
        %v1404 = vunpack.c.l.b16 %v1337
        %v1405 = vunpack.c.l.b16 %v1338
        %v1406 = vunpack.c.l.b16 %v1339
        %v1407 = vunpack.c.l.b16 %v1340
        %v1408 = vunpack.c.l.b16 %v1341
        %v1409 = vunpack.c.l.b16 %v1342
        %v1410 = vunpack.c.l.b16 %v1343
        %v1411 = vunpack.c.l.b16 %v1344
        %v1412 = vunpack.c.l.b16 %v1345
        %v1413 = vunpack.c.l.b16 %v1346
        %v1414 = vunpack.c.l.b16 %v1347
        %v1415 = vpack.c.b16 %v1400, %v1399
        %v1416 = vpack.c.b16 %v1402, %v1401
        %v1417 = vpack.c.b16 %v1404, %v1403
        %v1418 = vpack.c.b16 %v1406, %v1405
        %v1419 = vpack.c.b16 %v1408, %v1407
        %v1420 = vpack.c.b16 %v1410, %v1409
        %v1421 = vpack.c.b16 %v1412, %v1411
        %v1422 = vpack.c.b16 %v1414, %v1413
        %1431 = vmatpush.bf16.msra.mxu0 %v1422
        %1432 = vmatpush.bf16.msra.mxu0 %v1421
        %1433 = vmatpush.bf16.msra.mxu0 %v1420
        %1434 = vmatpush.bf16.msra.mxu0 %v1419
        %1435 = vmatpush.bf16.msra.mxu0 %v1418
        %1436 = vmatpush.bf16.msra.mxu0 %v1417
        %1437 = vmatpush.bf16.msra.mxu0 %v1416
        %1438 = vmatpush.bf16.msra.mxu0 %v1415
        %1439 = vmatmul.bf16.gmra.mxu0 %v1372
        %v1440 = vpop.f32.mrf.mxu0
        %v1441 = vadd.f32 0.0, %v1440
        %v1442 = vpop.f32.mrf.mxu0
        %v1443 = vadd.f32 0.0, %v1442
        %1444 = vmatmul.bf16.gmra.mxu0 %v1380
        %v1445 = vpop.f32.mrf.mxu0
        %v1446 = vadd.f32 0.0, %v1445
        %v1447 = vpop.f32.mrf.mxu0
        %v1448 = vadd.f32 0.0, %v1447
        %1449 = vdwg.mxu0
        %v1450 = vadd.f32 %v1322, %v1441
        %v1451 = vadd.f32 %v1323, %v1443
        %v1452 = vadd.f32 %v1324, %v1446
        %v1453 = vadd.f32 %v1325, %v1448
        %v1454 = vld [vmem:[%s345 + $0x4] sm:$0xe]
        %s1455 = scalar_lea.vmem [#allocation2], 640
        %v1456 = vld [vmem:[%s1455] sm:$0xf]
        %v1457 = vld [vmem:[%s1455 + $0x4] sm:$0xf]
        %v1458 = vld [vmem:[%s1455 + $0x8] sm:$0xf]
        %v1459 = vld [vmem:[%s1455 + $0xc] sm:$0xf]
        %v1460 = vld [vmem:[%s1455 + $0x10] sm:$0xf]
        %v1461 = vld [vmem:[%s1455 + $0x14] sm:$0xf]
        %v1462 = vld [vmem:[%s1455 + $0x18] sm:$0xf]
        %v1463 = vld [vmem:[%s1455 + $0x1c] sm:$0xf]
        %v1464 = vld [vmem:[%s1455 + $0x20] sm:$0xf]
        %v1465 = vld [vmem:[%s1455 + $0x24] sm:$0xf]
        %v1466 = vld [vmem:[%s1455 + $0x28] sm:$0xf]
        %v1467 = vld [vmem:[%s1455 + $0x2c] sm:$0xf]
        %v1468 = vld [vmem:[%s1455 + $0x30] sm:$0xf]
        %v1469 = vld [vmem:[%s1455 + $0x34] sm:$0xf]
        %v1470 = vld [vmem:[%s1455 + $0x38] sm:$0xf]
        %v1471 = vld [vmem:[%s1455 + $0x3c] sm:$0xf]
        %v1473 = vunpack.c.l.b16 %v1454
        %v1474 = vpack.c.b16 %v1354, %v1473
        %v1475 = vrot.slane %v1474, 1
        %v1476 = vrot.slane %v1359, 1
        %v1477 = vsel %vm607, %v1475, %v1476
        %v1478 = vrot.slane %v1360, 1
        %v1479 = vsel %vm607, %v1476, %v1478
        %v1498 = vunpack.c.l.b16 %v1456
        %v1499 = vunpack.c.l.b16 %v1457
        %v1500 = vunpack.c.l.b16 %v1458
        %v1501 = vunpack.c.l.b16 %v1459
        %v1502 = vunpack.c.l.b16 %v1460
        %v1503 = vunpack.c.l.b16 %v1461
        %v1504 = vunpack.c.l.b16 %v1462
        %v1505 = vunpack.c.l.b16 %v1463
        %v1506 = vunpack.c.l.b16 %v1464
        %v1507 = vunpack.c.l.b16 %v1465
        %v1508 = vunpack.c.l.b16 %v1466
        %v1509 = vunpack.c.l.b16 %v1467
        %v1510 = vunpack.c.l.b16 %v1468
        %v1511 = vunpack.c.l.b16 %v1469
        %v1512 = vunpack.c.l.b16 %v1470
        %v1513 = vunpack.c.l.b16 %v1471
        %v1514 = vpack.c.b16 %v1499, %v1498
        %v1515 = vpack.c.b16 %v1501, %v1500
        %v1516 = vpack.c.b16 %v1503, %v1502
        %v1517 = vpack.c.b16 %v1505, %v1504
        %v1518 = vpack.c.b16 %v1507, %v1506
        %v1519 = vpack.c.b16 %v1509, %v1508
        %v1520 = vpack.c.b16 %v1511, %v1510
        %v1521 = vpack.c.b16 %v1513, %v1512
        %1530 = vmatpush.bf16.msra.mxu0 %v1521
        %1531 = vmatpush.bf16.msra.mxu0 %v1520
        %1532 = vmatpush.bf16.msra.mxu0 %v1519
        %1533 = vmatpush.bf16.msra.mxu0 %v1518
        %1534 = vmatpush.bf16.msra.mxu0 %v1517
        %1535 = vmatpush.bf16.msra.mxu0 %v1516
        %1536 = vmatpush.bf16.msra.mxu0 %v1515
        %1537 = vmatpush.bf16.msra.mxu0 %v1514
        %1538 = vmatmul.bf16.gmra.mxu0 %v1477
        %v1539 = vpop.f32.mrf.mxu0
        %v1540 = vadd.f32 0.0, %v1539
        %v1541 = vpop.f32.mrf.mxu0
        %v1542 = vadd.f32 0.0, %v1541
        %1543 = vmatmul.bf16.gmra.mxu0 %v1479
        %v1544 = vpop.f32.mrf.mxu0
        %v1545 = vadd.f32 0.0, %v1544
        %v1546 = vpop.f32.mrf.mxu0
        %v1547 = vadd.f32 0.0, %v1546
        %1548 = vdwg.mxu0
        %v1549 = vadd.f32 %v1450, %v1540
        %v1550 = vadd.f32 %v1451, %v1542
        %v1551 = vadd.f32 %v1452, %v1545
        %v1552 = vadd.f32 %v1453, %v1547
        %v1553 = vld [vmem:[%s345 + $0x14] sm:$0x3]
        %s1554 = scalar_lea.vmem [#allocation2], 704
        %v1555 = vld [vmem:[%s1554] sm:$0xf]
        %v1556 = vld [vmem:[%s1554 + $0x4] sm:$0xf]
        %v1557 = vld [vmem:[%s1554 + $0x8] sm:$0xf]
        %v1558 = vld [vmem:[%s1554 + $0xc] sm:$0xf]
        %v1559 = vld [vmem:[%s1554 + $0x10] sm:$0xf]
        %v1560 = vld [vmem:[%s1554 + $0x14] sm:$0xf]
        %v1561 = vld [vmem:[%s1554 + $0x18] sm:$0xf]
        %v1562 = vld [vmem:[%s1554 + $0x1c] sm:$0xf]
        %v1563 = vld [vmem:[%s1554 + $0x20] sm:$0xf]
        %v1564 = vld [vmem:[%s1554 + $0x24] sm:$0xf]
        %v1565 = vld [vmem:[%s1554 + $0x28] sm:$0xf]
        %v1566 = vld [vmem:[%s1554 + $0x2c] sm:$0xf]
        %v1567 = vld [vmem:[%s1554 + $0x30] sm:$0xf]
        %v1568 = vld [vmem:[%s1554 + $0x34] sm:$0xf]
        %v1569 = vld [vmem:[%s1554 + $0x38] sm:$0xf]
        %v1570 = vld [vmem:[%s1554 + $0x3c] sm:$0xf]
        %v1572 = vunpack.c.l.b16 %v1553
        %v1573 = vpack.c.b16 %v1572, %v1572
        %v1575 = vshrl.u32 %v1474, 16
        %v1577 = vrot.slane %v1575, 1
        %v1578 = vshll.u32 %v1474, 16
        %v1580 = vrot.slane %v1578, 2
        %v1581 = vor.u32 %v1577, %v1580
        %v1582 = vrot.slane %v1373, 1
        %v1583 = vrot.slane %v1369, 2
        %v1584 = vor.u32 %v1582, %v1583
        %v1585 = vsel %vm707, %v1581, %v1584
        %v1587 = vshrl.u32 %v1573, 16
        %v1589 = vrot.slane %v1587, 1
        %v1590 = vshll.u32 %v1573, 16
        %v1592 = vrot.slane %v1590, 2
        %v1593 = vor.u32 %v1589, %v1592
        %v1594 = vsel %vm707, %v1584, %v1593
        %v1613 = vunpack.c.l.b16 %v1555
        %v1614 = vunpack.c.l.b16 %v1556
        %v1615 = vunpack.c.l.b16 %v1557
        %v1616 = vunpack.c.l.b16 %v1558
        %v1617 = vunpack.c.l.b16 %v1559
        %v1618 = vunpack.c.l.b16 %v1560
        %v1619 = vunpack.c.l.b16 %v1561
        %v1620 = vunpack.c.l.b16 %v1562
        %v1621 = vunpack.c.l.b16 %v1563
        %v1622 = vunpack.c.l.b16 %v1564
        %v1623 = vunpack.c.l.b16 %v1565
        %v1624 = vunpack.c.l.b16 %v1566
        %v1625 = vunpack.c.l.b16 %v1567
        %v1626 = vunpack.c.l.b16 %v1568
        %v1627 = vunpack.c.l.b16 %v1569
        %v1628 = vunpack.c.l.b16 %v1570
        %v1629 = vpack.c.b16 %v1614, %v1613
        %v1630 = vpack.c.b16 %v1616, %v1615
        %v1631 = vpack.c.b16 %v1618, %v1617
        %v1632 = vpack.c.b16 %v1620, %v1619
        %v1633 = vpack.c.b16 %v1622, %v1621
        %v1634 = vpack.c.b16 %v1624, %v1623
        %v1635 = vpack.c.b16 %v1626, %v1625
        %v1636 = vpack.c.b16 %v1628, %v1627
        %1645 = vmatpush.bf16.msra.mxu0 %v1636
        %1646 = vmatpush.bf16.msra.mxu0 %v1635
        %1647 = vmatpush.bf16.msra.mxu0 %v1634
        %1648 = vmatpush.bf16.msra.mxu0 %v1633
        %1649 = vmatpush.bf16.msra.mxu0 %v1632
        %1650 = vmatpush.bf16.msra.mxu0 %v1631
        %1651 = vmatpush.bf16.msra.mxu0 %v1630
        %1652 = vmatpush.bf16.msra.mxu0 %v1629
        %1653 = vmatmul.bf16.gmra.mxu0 %v1585
        %v1654 = vpop.f32.mrf.mxu0
        %v1655 = vadd.f32 0.0, %v1654
        %v1656 = vpop.f32.mrf.mxu0
        %v1657 = vadd.f32 0.0, %v1656
        %1658 = vmatmul.bf16.gmra.mxu0 %v1594
        %v1659 = vpop.f32.mrf.mxu0
        %v1660 = vadd.f32 0.0, %v1659
        %v1661 = vpop.f32.mrf.mxu0
        %v1662 = vadd.f32 0.0, %v1661
        %1663 = vdwg.mxu0
        %v1664 = vadd.f32 %v1549, %v1655
        %v1665 = vadd.f32 %v1550, %v1657
        %v1666 = vadd.f32 %v1551, %v1660
        %v1667 = vadd.f32 %v1552, %v1662
        %v1668 = vld [vmem:[%s345 + $0x4] sm:$0xc]
        %s1669 = scalar_lea.vmem [#allocation2], 768
        %v1670 = vld [vmem:[%s1669] sm:$0xf]
        %v1671 = vld [vmem:[%s1669 + $0x4] sm:$0xf]
        %v1672 = vld [vmem:[%s1669 + $0x8] sm:$0xf]
        %v1673 = vld [vmem:[%s1669 + $0xc] sm:$0xf]
        %v1674 = vld [vmem:[%s1669 + $0x10] sm:$0xf]
        %v1675 = vld [vmem:[%s1669 + $0x14] sm:$0xf]
        %v1676 = vld [vmem:[%s1669 + $0x18] sm:$0xf]
        %v1677 = vld [vmem:[%s1669 + $0x1c] sm:$0xf]
        %v1678 = vld [vmem:[%s1669 + $0x20] sm:$0xf]
        %v1679 = vld [vmem:[%s1669 + $0x24] sm:$0xf]
        %v1680 = vld [vmem:[%s1669 + $0x28] sm:$0xf]
        %v1681 = vld [vmem:[%s1669 + $0x2c] sm:$0xf]
        %v1682 = vld [vmem:[%s1669 + $0x30] sm:$0xf]
        %v1683 = vld [vmem:[%s1669 + $0x34] sm:$0xf]
        %v1684 = vld [vmem:[%s1669 + $0x38] sm:$0xf]
        %v1685 = vld [vmem:[%s1669 + $0x3c] sm:$0xf]
        %v1687 = vunpack.c.l.b16 %v1668
        %v1688 = vpack.c.b16 %v1354, %v1687
        %v1689 = vrot.slane %v1688, 2
        %v1690 = vrot.slane %v1359, 2
        %v1691 = vsel %vm823, %v1689, %v1690
        %v1692 = vrot.slane %v1573, 2
        %v1693 = vsel %vm823, %v1690, %v1692
        %v1712 = vunpack.c.l.b16 %v1670
        %v1713 = vunpack.c.l.b16 %v1671
        %v1714 = vunpack.c.l.b16 %v1672
        %v1715 = vunpack.c.l.b16 %v1673
        %v1716 = vunpack.c.l.b16 %v1674
        %v1717 = vunpack.c.l.b16 %v1675
        %v1718 = vunpack.c.l.b16 %v1676
        %v1719 = vunpack.c.l.b16 %v1677
        %v1720 = vunpack.c.l.b16 %v1678
        %v1721 = vunpack.c.l.b16 %v1679
        %v1722 = vunpack.c.l.b16 %v1680
        %v1723 = vunpack.c.l.b16 %v1681
        %v1724 = vunpack.c.l.b16 %v1682
        %v1725 = vunpack.c.l.b16 %v1683
        %v1726 = vunpack.c.l.b16 %v1684
        %v1727 = vunpack.c.l.b16 %v1685
        %v1728 = vpack.c.b16 %v1713, %v1712
        %v1729 = vpack.c.b16 %v1715, %v1714
        %v1730 = vpack.c.b16 %v1717, %v1716
        %v1731 = vpack.c.b16 %v1719, %v1718
        %v1732 = vpack.c.b16 %v1721, %v1720
        %v1733 = vpack.c.b16 %v1723, %v1722
        %v1734 = vpack.c.b16 %v1725, %v1724
        %v1735 = vpack.c.b16 %v1727, %v1726
        %1744 = vmatpush.bf16.msra.mxu0 %v1735
        %1745 = vmatpush.bf16.msra.mxu0 %v1734
        %1746 = vmatpush.bf16.msra.mxu0 %v1733
        %1747 = vmatpush.bf16.msra.mxu0 %v1732
        %1748 = vmatpush.bf16.msra.mxu0 %v1731
        %1749 = vmatpush.bf16.msra.mxu0 %v1730
        %1750 = vmatpush.bf16.msra.mxu0 %v1729
        %1751 = vmatpush.bf16.msra.mxu0 %v1728
        %1752 = vmatmul.bf16.gmra.mxu0 %v1691
        %v1753 = vpop.f32.mrf.mxu0
        %v1754 = vadd.f32 0.0, %v1753
        %v1755 = vpop.f32.mrf.mxu0
        %v1756 = vadd.f32 0.0, %v1755
        %1757 = vmatmul.bf16.gmra.mxu0 %v1693
        %v1758 = vpop.f32.mrf.mxu0
        %v1759 = vadd.f32 0.0, %v1758
        %v1760 = vpop.f32.mrf.mxu0
        %v1761 = vadd.f32 0.0, %v1760
        %1762 = vdwg.mxu0
        %v1763 = vadd.f32 %v1664, %v1754
        %v1764 = vadd.f32 %v1665, %v1756
        %v1765 = vadd.f32 %v1666, %v1759
        %v1766 = vadd.f32 %v1667, %v1761
        %v1767 = vld [vmem:[%s345 + $0x14] sm:$0x7]
        %s1768 = scalar_lea.vmem [#allocation2], 832
        %v1769 = vld [vmem:[%s1768] sm:$0xf]
        %v1770 = vld [vmem:[%s1768 + $0x4] sm:$0xf]
        %v1771 = vld [vmem:[%s1768 + $0x8] sm:$0xf]
        %v1772 = vld [vmem:[%s1768 + $0xc] sm:$0xf]
        %v1773 = vld [vmem:[%s1768 + $0x10] sm:$0xf]
        %v1774 = vld [vmem:[%s1768 + $0x14] sm:$0xf]
        %v1775 = vld [vmem:[%s1768 + $0x18] sm:$0xf]
        %v1776 = vld [vmem:[%s1768 + $0x1c] sm:$0xf]
        %v1777 = vld [vmem:[%s1768 + $0x20] sm:$0xf]
        %v1778 = vld [vmem:[%s1768 + $0x24] sm:$0xf]
        %v1779 = vld [vmem:[%s1768 + $0x28] sm:$0xf]
        %v1780 = vld [vmem:[%s1768 + $0x2c] sm:$0xf]
        %v1781 = vld [vmem:[%s1768 + $0x30] sm:$0xf]
        %v1782 = vld [vmem:[%s1768 + $0x34] sm:$0xf]
        %v1783 = vld [vmem:[%s1768 + $0x38] sm:$0xf]
        %v1784 = vld [vmem:[%s1768 + $0x3c] sm:$0xf]
        %v1786 = vunpack.c.l.b16 %v1767
        %v1787 = vpack.c.b16 %v1786, %v1786
        %v1789 = vshrl.u32 %v1688, 16
        %v1791 = vrot.slane %v1789, 2
        %v1792 = vshll.u32 %v1688, 16
        %v1794 = vrot.slane %v1792, 3
        %v1795 = vor.u32 %v1791, %v1794
        %v1796 = vrot.slane %v1373, 2
        %v1797 = vrot.slane %v1369, 3
        %v1798 = vor.u32 %v1796, %v1797
        %v1799 = vsel %vm923, %v1795, %v1798
        %v1801 = vshrl.u32 %v1787, 16
        %v1803 = vrot.slane %v1801, 2
        %v1804 = vshll.u32 %v1787, 16
        %v1806 = vrot.slane %v1804, 3
        %v1807 = vor.u32 %v1803, %v1806
        %v1808 = vsel %vm923, %v1798, %v1807
        %v1827 = vunpack.c.l.b16 %v1769
        %v1828 = vunpack.c.l.b16 %v1770
        %v1829 = vunpack.c.l.b16 %v1771
        %v1830 = vunpack.c.l.b16 %v1772
        %v1831 = vunpack.c.l.b16 %v1773
        %v1832 = vunpack.c.l.b16 %v1774
        %v1833 = vunpack.c.l.b16 %v1775
        %v1834 = vunpack.c.l.b16 %v1776
        %v1835 = vunpack.c.l.b16 %v1777
        %v1836 = vunpack.c.l.b16 %v1778
        %v1837 = vunpack.c.l.b16 %v1779
        %v1838 = vunpack.c.l.b16 %v1780
        %v1839 = vunpack.c.l.b16 %v1781
        %v1840 = vunpack.c.l.b16 %v1782
        %v1841 = vunpack.c.l.b16 %v1783
        %v1842 = vunpack.c.l.b16 %v1784
        %v1843 = vpack.c.b16 %v1828, %v1827
        %v1844 = vpack.c.b16 %v1830, %v1829
        %v1845 = vpack.c.b16 %v1832, %v1831
        %v1846 = vpack.c.b16 %v1834, %v1833
        %v1847 = vpack.c.b16 %v1836, %v1835
        %v1848 = vpack.c.b16 %v1838, %v1837
        %v1849 = vpack.c.b16 %v1840, %v1839
        %v1850 = vpack.c.b16 %v1842, %v1841
        %1859 = vmatpush.bf16.msra.mxu0 %v1850
        %1860 = vmatpush.bf16.msra.mxu0 %v1849
        %1861 = vmatpush.bf16.msra.mxu0 %v1848
        %1862 = vmatpush.bf16.msra.mxu0 %v1847
        %1863 = vmatpush.bf16.msra.mxu0 %v1846
        %1864 = vmatpush.bf16.msra.mxu0 %v1845
        %1865 = vmatpush.bf16.msra.mxu0 %v1844
        %1866 = vmatpush.bf16.msra.mxu0 %v1843
        %1867 = vmatmul.bf16.gmra.mxu0 %v1799
        %v1868 = vpop.f32.mrf.mxu0
        %v1869 = vadd.f32 0.0, %v1868
        %v1870 = vpop.f32.mrf.mxu0
        %v1871 = vadd.f32 0.0, %v1870
        %1872 = vmatmul.bf16.gmra.mxu0 %v1808
        %v1873 = vpop.f32.mrf.mxu0
        %v1874 = vadd.f32 0.0, %v1873
        %v1875 = vpop.f32.mrf.mxu0
        %v1876 = vadd.f32 0.0, %v1875
        %1877 = vdwg.mxu0
        %v1878 = vadd.f32 %v1763, %v1869
        %v1879 = vadd.f32 %v1764, %v1871
        %v1880 = vadd.f32 %v1765, %v1874
        %v1881 = vadd.f32 %v1766, %v1876
        %v1882 = vld [vmem:[%s345 + $0x4] sm:$0x8]
        %s1883 = scalar_lea.vmem [#allocation2], 896
        %v1884 = vld [vmem:[%s1883] sm:$0xf]
        %v1885 = vld [vmem:[%s1883 + $0x4] sm:$0xf]
        %v1886 = vld [vmem:[%s1883 + $0x8] sm:$0xf]
        %v1887 = vld [vmem:[%s1883 + $0xc] sm:$0xf]
        %v1888 = vld [vmem:[%s1883 + $0x10] sm:$0xf]
        %v1889 = vld [vmem:[%s1883 + $0x14] sm:$0xf]
        %v1890 = vld [vmem:[%s1883 + $0x18] sm:$0xf]
        %v1891 = vld [vmem:[%s1883 + $0x1c] sm:$0xf]
        %v1892 = vld [vmem:[%s1883 + $0x20] sm:$0xf]
        %v1893 = vld [vmem:[%s1883 + $0x24] sm:$0xf]
        %v1894 = vld [vmem:[%s1883 + $0x28] sm:$0xf]
        %v1895 = vld [vmem:[%s1883 + $0x2c] sm:$0xf]
        %v1896 = vld [vmem:[%s1883 + $0x30] sm:$0xf]
        %v1897 = vld [vmem:[%s1883 + $0x34] sm:$0xf]
        %v1898 = vld [vmem:[%s1883 + $0x38] sm:$0xf]
        %v1899 = vld [vmem:[%s1883 + $0x3c] sm:$0xf]
        %v1901 = vunpack.c.l.b16 %v1882
        %v1902 = vpack.c.b16 %v1354, %v1901
        %v1903 = vrot.slane %v1902, 3
        %v1904 = vrot.slane %v1359, 3
        %v1905 = vsel %vm1039, %v1903, %v1904
        %v1906 = vrot.slane %v1787, 3
        %v1907 = vsel %vm1039, %v1904, %v1906
        %v1926 = vunpack.c.l.b16 %v1884
        %v1927 = vunpack.c.l.b16 %v1885
        %v1928 = vunpack.c.l.b16 %v1886
        %v1929 = vunpack.c.l.b16 %v1887
        %v1930 = vunpack.c.l.b16 %v1888
        %v1931 = vunpack.c.l.b16 %v1889
        %v1932 = vunpack.c.l.b16 %v1890
        %v1933 = vunpack.c.l.b16 %v1891
        %v1934 = vunpack.c.l.b16 %v1892
        %v1935 = vunpack.c.l.b16 %v1893
        %v1936 = vunpack.c.l.b16 %v1894
        %v1937 = vunpack.c.l.b16 %v1895
        %v1938 = vunpack.c.l.b16 %v1896
        %v1939 = vunpack.c.l.b16 %v1897
        %v1940 = vunpack.c.l.b16 %v1898
        %v1941 = vunpack.c.l.b16 %v1899
        %v1942 = vpack.c.b16 %v1927, %v1926
        %v1943 = vpack.c.b16 %v1929, %v1928
        %v1944 = vpack.c.b16 %v1931, %v1930
        %v1945 = vpack.c.b16 %v1933, %v1932
        %v1946 = vpack.c.b16 %v1935, %v1934
        %v1947 = vpack.c.b16 %v1937, %v1936
        %v1948 = vpack.c.b16 %v1939, %v1938
        %v1949 = vpack.c.b16 %v1941, %v1940
        %1958 = vmatpush.bf16.msra.mxu0 %v1949
        %1959 = vmatpush.bf16.msra.mxu0 %v1948
        %1960 = vmatpush.bf16.msra.mxu0 %v1947
        %1961 = vmatpush.bf16.msra.mxu0 %v1946
        %1962 = vmatpush.bf16.msra.mxu0 %v1945
        %1963 = vmatpush.bf16.msra.mxu0 %v1944
        %1964 = vmatpush.bf16.msra.mxu0 %v1943
        %1965 = vmatpush.bf16.msra.mxu0 %v1942
        %1966 = vmatmul.bf16.gmra.mxu0 %v1905
        %v1967 = vpop.f32.mrf.mxu0
        %v1968 = vadd.f32 0.0, %v1967
        %v1969 = vpop.f32.mrf.mxu0
        %v1970 = vadd.f32 0.0, %v1969
        %1971 = vmatmul.bf16.gmra.mxu0 %v1907
        %v1972 = vpop.f32.mrf.mxu0
        %v1973 = vadd.f32 0.0, %v1972
        %v1974 = vpop.f32.mrf.mxu0
        %v1975 = vadd.f32 0.0, %v1974
        %1976 = vdwg.mxu0
        %v1977 = vadd.f32 %v1878, %v1968
        %v1978 = vadd.f32 %v1879, %v1970
        %v1979 = vadd.f32 %v1880, %v1973
        %v1980 = vadd.f32 %v1881, %v1975
        %v1981 = vld [vmem:[%s345 + $0x14] sm:$0xf]
        %s1982 = scalar_lea.vmem [#allocation2], 960
        %v1983 = vld [vmem:[%s1982] sm:$0xf]
        %v1984 = vld [vmem:[%s1982 + $0x4] sm:$0xf]
        %v1985 = vld [vmem:[%s1982 + $0x8] sm:$0xf]
        %v1986 = vld [vmem:[%s1982 + $0xc] sm:$0xf]
        %v1987 = vld [vmem:[%s1982 + $0x10] sm:$0xf]
        %v1988 = vld [vmem:[%s1982 + $0x14] sm:$0xf]
        %v1989 = vld [vmem:[%s1982 + $0x18] sm:$0xf]
        %v1990 = vld [vmem:[%s1982 + $0x1c] sm:$0xf]
        %v1991 = vld [vmem:[%s1982 + $0x20] sm:$0xf]
        %v1992 = vld [vmem:[%s1982 + $0x24] sm:$0xf]
        %v1993 = vld [vmem:[%s1982 + $0x28] sm:$0xf]
        %v1994 = vld [vmem:[%s1982 + $0x2c] sm:$0xf]
        %v1995 = vld [vmem:[%s1982 + $0x30] sm:$0xf]
        %v1996 = vld [vmem:[%s1982 + $0x34] sm:$0xf]
        %v1997 = vld [vmem:[%s1982 + $0x38] sm:$0xf]
        %v1998 = vld [vmem:[%s1982 + $0x3c] sm:$0xf]
        %v2000 = vunpack.c.l.b16 %v1981
        %v2001 = vpack.c.b16 %v2000, %v2000
        %v2003 = vshrl.u32 %v1902, 16
        %v2005 = vrot.slane %v2003, 3
        %v2006 = vshll.u32 %v1902, 16
        %v2008 = vrot.slane %v2006, 4
        %v2009 = vor.u32 %v2005, %v2008
        %v2010 = vrot.slane %v1373, 3
        %v2011 = vrot.slane %v1369, 4
        %v2012 = vor.u32 %v2010, %v2011
        %v2013 = vsel %vm1139, %v2009, %v2012
        %v2015 = vshrl.u32 %v2001, 16
        %v2017 = vrot.slane %v2015, 3
        %v2018 = vshll.u32 %v2001, 16
        %v2020 = vrot.slane %v2018, 4
        %v2021 = vor.u32 %v2017, %v2020
        %v2022 = vsel %vm1139, %v2012, %v2021
        %v2041 = vunpack.c.l.b16 %v1983
        %v2042 = vunpack.c.l.b16 %v1984
        %v2043 = vunpack.c.l.b16 %v1985
        %v2044 = vunpack.c.l.b16 %v1986
        %v2045 = vunpack.c.l.b16 %v1987
        %v2046 = vunpack.c.l.b16 %v1988
        %v2047 = vunpack.c.l.b16 %v1989
        %v2048 = vunpack.c.l.b16 %v1990
        %v2049 = vunpack.c.l.b16 %v1991
        %v2050 = vunpack.c.l.b16 %v1992
        %v2051 = vunpack.c.l.b16 %v1993
        %v2052 = vunpack.c.l.b16 %v1994
        %v2053 = vunpack.c.l.b16 %v1995
        %v2054 = vunpack.c.l.b16 %v1996
        %v2055 = vunpack.c.l.b16 %v1997
        %v2056 = vunpack.c.l.b16 %v1998
        %v2057 = vpack.c.b16 %v2042, %v2041
        %v2058 = vpack.c.b16 %v2044, %v2043
        %v2059 = vpack.c.b16 %v2046, %v2045
        %v2060 = vpack.c.b16 %v2048, %v2047
        %v2061 = vpack.c.b16 %v2050, %v2049
        %v2062 = vpack.c.b16 %v2052, %v2051
        %v2063 = vpack.c.b16 %v2054, %v2053
        %v2064 = vpack.c.b16 %v2056, %v2055
        %2073 = vmatpush.bf16.msra.mxu0 %v2064
        %2074 = vmatpush.bf16.msra.mxu0 %v2063
        %2075 = vmatpush.bf16.msra.mxu0 %v2062
        %2076 = vmatpush.bf16.msra.mxu0 %v2061
        %2077 = vmatpush.bf16.msra.mxu0 %v2060
        %2078 = vmatpush.bf16.msra.mxu0 %v2059
        %2079 = vmatpush.bf16.msra.mxu0 %v2058
        %2080 = vmatpush.bf16.msra.mxu0 %v2057
        %2081 = vmatmul.bf16.gmra.mxu0 %v2013
        %v2082 = vpop.f32.mrf.mxu0
        %v2083 = vadd.f32 0.0, %v2082
        %v2084 = vpop.f32.mrf.mxu0
        %v2085 = vadd.f32 0.0, %v2084
        %2086 = vmatmul.bf16.gmra.mxu0 %v2022
        %v2087 = vpop.f32.mrf.mxu0
        %v2088 = vadd.f32 0.0, %v2087
        %v2089 = vpop.f32.mrf.mxu0
        %v2090 = vadd.f32 0.0, %v2089
        %2091 = vdwg.mxu0
        %v2092 = vadd.f32 %v1977, %v2083
        %v2093 = vadd.f32 %v1978, %v2085
        %v2094 = vadd.f32 %v1979, %v2088
        %v2095 = vadd.f32 %v1980, %v2090
        %s2096 = scalar_lea.vmem [#allocation2], 1024
        %v2097 = vld [vmem:[%s2096] sm:$0xf]
        %v2098 = vld [vmem:[%s2096 + $0x4] sm:$0xf]
        %v2099 = vld [vmem:[%s2096 + $0x8] sm:$0xf]
        %v2100 = vld [vmem:[%s2096 + $0xc] sm:$0xf]
        %v2101 = vld [vmem:[%s2096 + $0x10] sm:$0xf]
        %v2102 = vld [vmem:[%s2096 + $0x14] sm:$0xf]
        %v2103 = vld [vmem:[%s2096 + $0x18] sm:$0xf]
        %v2104 = vld [vmem:[%s2096 + $0x1c] sm:$0xf]
        %v2105 = vld [vmem:[%s2096 + $0x20] sm:$0xf]
        %v2106 = vld [vmem:[%s2096 + $0x24] sm:$0xf]
        %v2107 = vld [vmem:[%s2096 + $0x28] sm:$0xf]
        %v2108 = vld [vmem:[%s2096 + $0x2c] sm:$0xf]
        %v2109 = vld [vmem:[%s2096 + $0x30] sm:$0xf]
        %v2110 = vld [vmem:[%s2096 + $0x34] sm:$0xf]
        %v2111 = vld [vmem:[%s2096 + $0x38] sm:$0xf]
        %v2112 = vld [vmem:[%s2096 + $0x3c] sm:$0xf]
        %v2113 = vpack.c.b16 %v1355, %v1354
        %v2114 = vpack.c.b16 %v2000, %v1356
        %v2133 = vunpack.c.l.b16 %v2097
        %v2134 = vunpack.c.l.b16 %v2098
        %v2135 = vunpack.c.l.b16 %v2099
        %v2136 = vunpack.c.l.b16 %v2100
        %v2137 = vunpack.c.l.b16 %v2101
        %v2138 = vunpack.c.l.b16 %v2102
        %v2139 = vunpack.c.l.b16 %v2103
        %v2140 = vunpack.c.l.b16 %v2104
        %v2141 = vunpack.c.l.b16 %v2105
        %v2142 = vunpack.c.l.b16 %v2106
        %v2143 = vunpack.c.l.b16 %v2107
        %v2144 = vunpack.c.l.b16 %v2108
        %v2145 = vunpack.c.l.b16 %v2109
        %v2146 = vunpack.c.l.b16 %v2110
        %v2147 = vunpack.c.l.b16 %v2111
        %v2148 = vunpack.c.l.b16 %v2112
        %v2149 = vpack.c.b16 %v2134, %v2133
        %v2150 = vpack.c.b16 %v2136, %v2135
        %v2151 = vpack.c.b16 %v2138, %v2137
        %v2152 = vpack.c.b16 %v2140, %v2139
        %v2153 = vpack.c.b16 %v2142, %v2141
        %v2154 = vpack.c.b16 %v2144, %v2143
        %v2155 = vpack.c.b16 %v2146, %v2145
        %v2156 = vpack.c.b16 %v2148, %v2147
        %2165 = vmatpush.bf16.msra.mxu0 %v2156
        %2166 = vmatpush.bf16.msra.mxu0 %v2155
        %2167 = vmatpush.bf16.msra.mxu0 %v2154
        %2168 = vmatpush.bf16.msra.mxu0 %v2153
        %2169 = vmatpush.bf16.msra.mxu0 %v2152
        %2170 = vmatpush.bf16.msra.mxu0 %v2151
        %2171 = vmatpush.bf16.msra.mxu0 %v2150
        %2172 = vmatpush.bf16.msra.mxu0 %v2149
        %2173 = vmatmul.bf16.gmra.mxu0 %v2113
        %v2174 = vpop.f32.mrf.mxu0
        %v2175 = vadd.f32 0.0, %v2174
        %v2176 = vpop.f32.mrf.mxu0
        %v2177 = vadd.f32 0.0, %v2176
        %2178 = vmatmul.bf16.gmra.mxu0 %v2114
        %v2179 = vpop.f32.mrf.mxu0
        %v2180 = vadd.f32 0.0, %v2179
        %v2181 = vpop.f32.mrf.mxu0
        %v2182 = vadd.f32 0.0, %v2181
        %2183 = vdwg.mxu0
        %v2184 = vadd.f32 %v2092, %v2175
        %v2185 = vadd.f32 %v2093, %v2177
        %v2186 = vadd.f32 %v2094, %v2180
        %v2187 = vadd.f32 %v2095, %v2182
        %v2188 = vld [vmem:[%s359] sm:$0xf]
        %v2189 = vld [vmem:[%s359 + $0x4] sm:$0xf]
        %v2190 = vld [vmem:[%s359 + $0x8] sm:$0xf]
        %v2191 = vld [vmem:[%s359 + $0xc] sm:$0xf]
        %v2192 = vunpack.c.l.bf16 %v2188
        %v2193 = vunpack.c.l.bf16 %v2189
        %v2194 = vunpack.c.l.bf16 %v2190
        %v2195 = vunpack.c.l.bf16 %v2191
        %v2196 = vadd.f32 %v2184, %v2192
        %v2197 = vadd.f32 %v2185, %v2193
        %v2198 = vadd.f32 %v2186, %v2194
        %v2199 = vadd.f32 %v2187, %v2195
        %v2200 = vpack.c.bf16 %v2196, %v2196
        %v2201 = vpack.c.bf16 %v2197, %v2197
        %v2202 = vpack.c.bf16 %v2198, %v2198
        %v2203 = vpack.c.bf16 %v2199, %v2199
        %2204 = vst [vmem:[%s375] sm:$0xf] %v2200
        %2205 = vst [vmem:[%s375 + $0x4] sm:$0xf] %v2201
        %2206 = vst [vmem:[%s375 + $0x8] sm:$0xf] %v2202
        %2207 = vst [vmem:[%s375 + $0xc] sm:$0xf] %v2203
        %v2208 = vld [vmem:[%s348] sm:$0x1]
        %v2210 = vperm.slane %v2208, 0
        %v2212 = vmul.f32 %v2196, %v2210
        %v2213 = vmul.f32 %v2197, %v2210
        %v2214 = vmul.f32 %v2198, %v2210
        %v2215 = vmul.f32 %v2199, %v2210
        %v2216 = vld [vmem:[%s351] sm:$0x1]
        %v2218 = vperm.slane %v2216, 0
        %v2220 = vadd.f32 %v2212, %v2218
        %v2221 = vadd.f32 %v2213, %v2218
        %v2222 = vadd.f32 %v2214, %v2218
        %v2223 = vadd.f32 %v2215, %v2218
        %v2224 = vmax.f32 %v2220, 0.0
        %v2225 = vmax.f32 %v2221, 0.0
        %v2226 = vmax.f32 %v2222, 0.0
        %v2227 = vmax.f32 %v2223, 0.0
        %v2228 = vpack.c.bf16 %v2224, %v2224
        %v2229 = vpack.c.bf16 %v2225, %v2225
        %v2230 = vpack.c.bf16 %v2226, %v2226
        %v2231 = vpack.c.bf16 %v2227, %v2227
        %2232 = vst [vmem:[%s367] sm:$0xf] %v2228
        %2233 = vst [vmem:[%s367 + $0x4] sm:$0xf] %v2229
        %2234 = vst [vmem:[%s367 + $0x8] sm:$0xf] %v2230
        %2235 = vst [vmem:[%s367 + $0xc] sm:$0xf] %v2231
        %p2236 = scmp.lt.s32.totalorder %s23, 1
        %s2237 = scalar_select %p2236, %s23, 1
        %p2238 = scmp.lt.s32.totalorder %s24, 0
        %s2239 = scalar_select %p2238, %s24, 0
        %s2240 = smul.addr %s2237, 4
        %s2241 = sadd.s32 %s2239, %s2240
        %s2242 = smul.addr %s2241, 4
        %s2243 = scalar_lea.vmem %s5, %s2242
        %p2244 = scmp.lt.s32.totalorder %s23, 1
        %s2245 = scalar_select %p2244, %s23, 1
        %p2246 = scmp.lt.s32.totalorder %s24, 0
        %s2247 = scalar_select %p2246, %s24, 0
        %s2248 = smul.addr %s2245, 4
        %s2249 = sadd.s32 %s2247, %s2248
        %s2250 = smul.addr %s2249, 4
        %s2251 = scalar_lea.vmem %s6, %s2250
        // Predicated region
        $region45: #{resnet1d_forward.7} parent=39 // pred_check
          %p2252 = pneg %p183
        $region46: #{resnet1d_forward.7} parent=39 // pred_check_branch
          %2254 = sbr.rel (%p2252) target = $region48
        $region47: #{resnet1d_forward.7} parent=39 // pred_region
          _
        $region48: #{resnet1d_forward.7} parent=39 // pred_fallthru
          _
        // Predicated region
        $region49: #{resnet1d_forward.7} parent=39 // pred_check
          %p2255 = pneg %p211
        $region50: #{resnet1d_forward.7} parent=39 // pred_check_branch
          %2257 = sbr.rel (%p2255) target = $region52
        $region51: #{resnet1d_forward.7} parent=39 // pred_region
          _
        $region52: #{resnet1d_forward.7} parent=39 // pred_fallthru
          _
      $region40: #{resnet1d_forward.7} parent=5 // pred_fallthru
        _
      %p2258 = scmp.le.s32.totalorder 2, %s14
      // Predicated region
      $region53: #{resnet1d_forward.7} parent=5 // pred_check
        %p2259 = pneg %p2258
      $region54: #{resnet1d_forward.7} parent=5 // pred_check_branch
        %2261 = sbr.rel (%p2259) target = $region56
      $region55: #{resnet1d_forward.7} parent=5 // pred_region
        %s2262 = ssub.s32 %s14, 2
        // Predicated region
        $region57: #{resnet1d_forward.7} parent=55 // pred_check
          %p2263 = pneg %p189
        $region58: #{resnet1d_forward.7} parent=55 // pred_check_branch
          %2265 = sbr.rel (%p2263) target = $region60
        $region59: #{resnet1d_forward.7} parent=55 // pred_region
          %p2266 = scmp.lt.s32.totalorder %s25, 1
          %s2267 = scalar_select %p2266, %s25, 1
          %p2268 = scmp.lt.s32.totalorder %s26, 0
          %s2269 = scalar_select %p2268, %s26, 0
          %s2270 = smul.addr %s2267, 4
          %s2271 = sadd.s32 %s2269, %s2270
          %s2272 = smul.addr %s2271, 4
          %s2273 = scalar_lea.vmem %s5, %s2272
        $region60: #{resnet1d_forward.7} parent=55 // pred_fallthru
          _
        // Predicated region
        $region61: #{resnet1d_forward.7} parent=55 // pred_check
          %p2274 = pneg %p217
        $region62: #{resnet1d_forward.7} parent=55 // pred_check_branch
          %2276 = sbr.rel (%p2274) target = $region64
        $region63: #{resnet1d_forward.7} parent=55 // pred_region
          %p2277 = scmp.lt.s32.totalorder %s25, 1
          %s2278 = scalar_select %p2277, %s25, 1
          %p2279 = scmp.lt.s32.totalorder %s26, 0
          %s2280 = scalar_select %p2279, %s26, 0
          %s2281 = smul.addr %s2278, 4
          %s2282 = sadd.s32 %s2280, %s2281
          %s2283 = smul.addr %s2282, 4
          %s2284 = scalar_lea.vmem %s6, %s2283
        $region64: #{resnet1d_forward.7} parent=55 // pred_fallthru
          _
      $region56: #{resnet1d_forward.7} parent=5 // pred_fallthru
        _
    $region6: #{resnet1d_forward.7} parent=1 // loop_footer
      %s18 = sadd.s32 1, %s14
    $region7: #{resnet1d_forward.7} parent=1 // loop_footer_branch
      %13 = sbr.rel target = $region3
    $region8: #{resnet1d_forward.7} parent=1 // loop_exit
      _
    %2285 = vsyncpa [#allocation3], 1
    %s2286 = scalar_lea.sflag [#allocation3], 1
    %2287 = vsyncpa %s2286, 1

</llo_original>
